<compile_context>
chip_gen: v5e
topology: v5e:2x2
jax: 0.10.0
libtpu: 0.0.40
codegen_flags: <defaults>
</compile_context>

<pallas_src>
import functools

import jax
import jax.numpy as jnp
from jax.scipy import linalg as jsp_linalg
from jax.experimental import pallas as pl
from jax.experimental.pallas import tpu as pltpu

_VMEM = pl.BlockSpec(memory_space=pltpu.MemorySpace.VMEM)


# --------------------------- weight layout helpers --------------------------- #
def _w3x3_to_im2col(w_oihw):
    """(Cout, Cin, 3, 3) -> (9*Cin, Cout); row = (kh*3+kw)*Cin + cin (tap-major)."""
    ci = w_oihw.shape[1]
    co = w_oihw.shape[0]
    return jnp.transpose(w_oihw, (2, 3, 1, 0)).reshape(9 * ci, co)


def _w3x3_to_taps(w_oihw):
    """(Cout, Cin, 3, 3) -> (9, Cin, Cout); tap t = kh*3 + kw."""
    ci = w_oihw.shape[1]
    co = w_oihw.shape[0]
    return jnp.transpose(w_oihw, (2, 3, 1, 0)).reshape(9, ci, co)


def _w1x1_to_2d(w_oihw):
    return w_oihw[:, :, 0, 0].T  # (Cin, Cout)


def _lu_calc_weight(ip):
    c = ip["w_l"].shape[0]
    l_mask = jnp.tril(jnp.ones((c, c), jnp.float32), -1)
    u_mask = l_mask.T
    eye = jnp.eye(c, dtype=jnp.float32)
    return ip["w_p"] @ (ip["w_l"] * l_mask + eye) @ (
        ip["w_u"] * u_mask + jnp.diag(ip["s_sign"] * jnp.exp(ip["log_ws"]))
    )


# ----------------------------- in-kernel helpers ---------------------------- #
def _im2col_3x3(xpad, rows, cols, cin):
    """xpad: (n, rows+2, cols+2, cin) value -> (n*rows*cols, 9*cin), tap-major."""
    n = xpad.shape[0]
    taps = [xpad[:, kh:kh + rows, kw:kw + cols, :].reshape(n * rows * cols, cin)
            for kh in range(3) for kw in range(3)]
    return jnp.concatenate(taps, axis=-1)


# ------------------------------ Pallas kernels ------------------------------ #
def _cond_net_kernel(cond_ref, w1_ref, b1_ref, w2_ref, b2_ref, gam_ref, bet_ref,
                     w3_ref, b3_ref, out_ref, xpad_scr, hpad_scr,
                     *, B, Hc, Wc, Cc, C, eps):
    # Whole condition_net in one un-tiled, whole-batch call:
    #   conv3x3(Cc->C)+LeakyReLU(0.2) -> conv3x3(C->C) -> BatchNorm(batch stats)
    #   + LeakyReLU(0.2) -> conv1x1(C->C//2).
    # BN needs every row and channels are tiny, so a single VMEM-resident pass is
    # both correct and cheap at these shapes.
    # TODO(synk): for large B*Hc*Wc this must become a two-pass tiled kernel
    #             (tiled sum/sumsq accumulation, then tiled normalize + 1x1).
    m = B * Hc * Wc
    half = C // 2

    xpad_scr[...] = jnp.zeros(xpad_scr.shape, xpad_scr.dtype)
    xpad_scr[:, pl.ds(1, Hc), pl.ds(1, Wc), :] = cond_ref[...]
    h = jnp.dot(_im2col_3x3(xpad_scr[...], Hc, Wc, Cc), w1_ref[...],
                preferred_element_type=jnp.float32) + b1_ref[...]
    h = jnp.where(h >= 0.0, h, 0.2 * h)

    hpad_scr[...] = jnp.zeros(hpad_scr.shape, hpad_scr.dtype)
    hpad_scr[:, pl.ds(1, Hc), pl.ds(1, Wc), :] = h.reshape(B, Hc, Wc, C)
    h = jnp.dot(_im2col_3x3(hpad_scr[...], Hc, Wc, C), w2_ref[...],
                preferred_element_type=jnp.float32) + b2_ref[...]

    # BatchNorm2d, training mode: batch statistics with biased variance.
    mean = jnp.sum(h, axis=0, keepdims=True) * (1.0 / m)
    h0 = h - mean
    var = jnp.sum(h0 * h0, axis=0, keepdims=True) * (1.0 / m)
    h = h0 * jax.lax.rsqrt(var + eps) * gam_ref[...] + bet_ref[...]
    h = jnp.where(h >= 0.0, h, 0.2 * h)

    out = jnp.dot(h, w3_ref[...], preferred_element_type=jnp.float32) + b3_ref[...]
    out_ref[...] = out.reshape(B, Hc, Wc, half)


def _flow_coupling_kernel(x_ref, cond_ref, wc_ref, bc_ref, w1_ref, b1_ref,
                          w2_ref, b2_ref, zw_ref, zb_ref, zs_ref,
                          out_ref, ld_ref, cpad_scr, gpad_scr,
                          *, nb, H, W, C, fs):
    half = C // 2
    m = nb * H * W

    # Refill only the 1-pixel constant borders of the persistent pad scratches.
    # (Interior is overwritten every step; a fill-once guard on program_id==0 would
    #  be unsafe when the "parallel" batch grid is sharded over two TensorCores.)
    zrow = jnp.zeros((nb, 1, W + 2, C), jnp.float32)
    zcol = jnp.zeros((nb, H + 2, 1, C), jnp.float32)
    cpad_scr[:, pl.ds(0, 1), :, :] = zrow
    cpad_scr[:, pl.ds(H + 1, 1), :, :] = zrow
    cpad_scr[:, :, pl.ds(0, 1), :] = zcol
    cpad_scr[:, :, pl.ds(W + 1, 1), :] = zcol
    orow = jnp.ones((nb, 1, W + 2, fs), jnp.bfloat16)
    ocol = jnp.ones((nb, H + 2, 1, fs), jnp.bfloat16)
    gpad_scr[:, pl.ds(0, 1), :, :] = orow
    gpad_scr[:, pl.ds(H + 1, 1), :, :] = orow
    gpad_scr[:, :, pl.ds(0, 1), :] = ocol
    gpad_scr[:, :, pl.ds(W + 1, 1), :] = ocol

    # fused ActNorm affine + InvConv2dLU 1x1 (folded into one (C,C) weight + bias)
    x2d = x_ref[...].reshape(m, C)
    y = jnp.dot(x2d, wc_ref[...], preferred_element_type=jnp.float32) + bc_ref[...]
    in_a = y[:, :half]
    in_b = y[:, half:]

    # concat([in_a, cond], channel) written straight into the zero-padded interior
    cpad_scr[:, pl.ds(1, H), pl.ds(1, W), pl.ds(0, half)] = in_a.reshape(nb, H, W, half)
    cpad_scr[:, pl.ds(1, H), pl.ds(1, W), pl.ds(half, half)] = cond_ref[...]

    # conv3x3 (C -> fs) + ReLU: one K = 9*C im2col dot, bf16 operands, f32 accum
    g = jnp.dot(_im2col_3x3(cpad_scr[...], H, W, C).astype(jnp.bfloat16), w1_ref[...],
                preferred_element_type=jnp.float32) + b1_ref[...]
    g = jnp.maximum(g, 0.0)

    # conv1x1 (fs -> fs) + ReLU (bf16 operands, f32 accum)
    g = jnp.dot(g.astype(jnp.bfloat16), w2_ref[...],
                preferred_element_type=jnp.float32) + b2_ref[...]
    g = jnp.maximum(g, 0.0)

    # ZeroConv2d: spatial pad with value 1 (border prefilled above), conv3x3
    # (fs -> C), then * exp(3*scale).  K = fs per tap already fills the MXU,
    # so this stays as 9 accumulated bf16 dots from the bf16 scratch.
    gpad_scr[:, pl.ds(1, H), pl.ds(1, W), :] = g.astype(jnp.bfloat16).reshape(nb, H, W, fs)
    gpad = gpad_scr[...]
    acc = jnp.zeros((m, C), jnp.float32)
    for t in range(9):
        kh, kw = divmod(t, 3)
        patch = gpad[:, kh:kh + H, kw:kw + W, :].reshape(m, fs)
        acc = acc + jnp.dot(patch, zw_ref[t], preferred_element_type=jnp.float32)
    net = (acc + zb_ref[...]) * jnp.exp(zs_ref[...] * 3.0)

    # sigmoid affine coupling (clamp [-10, 10] matches torch.clamp) + per-sample logdet
    log_s = jnp.clip(net[:, :half], -10.0, 10.0)
    t_shift = net[:, half:]
    s = jax.nn.sigmoid(log_s + 2.0)
    out_b = (in_b + t_shift) * s

    out_ref[:, :, :, pl.ds(0, half)] = in_a.reshape(nb, H, W, half)
    out_ref[:, :, :, pl.ds(half, half)] = out_b.reshape(nb, H, W, half)

    # per-image logdet without awkward reshapes: selection-matrix dot + lane reduce
    col = jax.lax.broadcasted_iota(jnp.int32, (nb, m), 1)
    row = jax.lax.broadcasted_iota(jnp.int32, (nb, m), 0)
    lo = row * (H * W)
    sel = jnp.logical_and(col >= lo, col < lo + H * W).astype(jnp.float32)
    per_img = jnp.dot(sel, jnp.log(s), preferred_element_type=jnp.float32)   # (nb, half)
    ld2 = jnp.sum(per_img, axis=-1, keepdims=True)                           # (nb, 1)
    ld_ref[...] = jnp.broadcast_to(ld2.reshape(nb, 1, 1), ld_ref.shape)


# ------------------------------ kernel wrappers ------------------------------ #
def _coupling_vmem_bytes(nb, H, W, C, fs):
    m = nb * H * W
    half = C // 2
    hp, wp = H + 2, W + 2
    io = 2 * (m * C * 4 + m * half * 4 + m * C * 4) + 2 * nb * 8 * 128 * 4
    scratch = nb * hp * wp * C * 4 + nb * hp * wp * fs * 2
    weights = 2 * (C * C * 4 + C * 4 + 9 * C * fs * 2 + fs * 4
                   + fs * fs * 2 + fs * 4 + 9 * fs * C * 2 + 2 * C * 4)
    interm = 2 * m * fs * 4 + m * fs * 2 + m * 9 * C * 2 + 4 * m * C * 4
    return io + scratch + weights + interm


def _pick_nb(B, H, W, C, fs, budget_bytes=24 * 1024 * 1024, target_rows=256):
    """Largest images-per-step (divisor of B) fitting the VMEM budget; stop growing
    once the matmul M dimension reaches target_rows (fills the 256-deep MXU)."""
    nb = 1
    for d in range(1, B + 1):
        if B % d:
            continue
        if _coupling_vmem_bytes(d, H, W, C, fs) > budget_bytes:
            break
        nb = d
        if d * H * W >= target_rows:
            break
    return nb


def _clamp_vmem(nbytes):
    # explicit scoped-VMEM budget; cap at 40 MiB so v7x's 64 MiB physical VMEM
    # keeps headroom for double-buffers and compiler scratch.
    return int(min(max(nbytes, 16 * 1024 * 1024), 40 * 1024 * 1024))


def cond_net_forward(p, cond_nhwc):
    B, Hc, Wc, Cc = cond_nhwc.shape
    C = p["w1"].shape[0]
    half = p["w3"].shape[0]
    m = B * Hc * Wc
    est = (B * (Hc + 2) * (Wc + 2) * (Cc + C) * 4
           + m * (9 * Cc + 9 * C + 6 * C) * 4 + (2 << 20))
    return pl.pallas_call(
        functools.partial(_cond_net_kernel, B=B, Hc=Hc, Wc=Wc, Cc=Cc, C=C, eps=1e-5),
        out_shape=jax.ShapeDtypeStruct((B, Hc, Wc, half), jnp.float32),
        in_specs=[_VMEM] * 9,
        out_specs=_VMEM,
        scratch_shapes=[pltpu.VMEM((B, Hc + 2, Wc + 2, Cc), jnp.float32),
                        pltpu.VMEM((B, Hc + 2, Wc + 2, C), jnp.float32)],
        compiler_params=pltpu.CompilerParams(vmem_limit_bytes=_clamp_vmem(est)),
    )(cond_nhwc, _w3x3_to_im2col(p["w1"]), p["b1"].reshape(1, C),
      _w3x3_to_im2col(p["w2"]), p["b2"].reshape(1, C),
      p["bn_gamma"].reshape(1, C), p["bn_beta"].reshape(1, C),
      _w1x1_to_2d(p["w3"]), p["b3"].reshape(1, half))


def flow_coupling_forward(q, x_nhwc, cond_half, w_comb, b_comb):
    B, H, W, C = x_nhwc.shape
    half = C // 2
    fs = q["w1"].shape[0]
    nb = _pick_nb(B, H, W, C, fs)
    vmem_limit = _clamp_vmem(_coupling_vmem_bytes(nb, H, W, C, fs) + (4 << 20))

    out, ld = pl.pallas_call(
        functools.partial(_flow_coupling_kernel, nb=nb, H=H, W=W, C=C, fs=fs),
        out_shape=(jax.ShapeDtypeStruct((B, H, W, C), jnp.float32),
                   jax.ShapeDtypeStruct((B, 8, 128), jnp.float32)),
        grid=(B // nb,),
        in_specs=[
            pl.BlockSpec((nb, H, W, C), lambda i: (i, 0, 0, 0)),      # x (NHWC)
            pl.BlockSpec((nb, H, W, half), lambda i: (i, 0, 0, 0)),   # resized condition
            pl.BlockSpec((C, C), lambda i: (0, 0)),                   # actnorm+invconv fold
            pl.BlockSpec((1, C), lambda i: (0, 0)),
            pl.BlockSpec((9 * C, fs), lambda i: (0, 0)),              # w1 im2col (bf16)
            pl.BlockSpec((1, fs), lambda i: (0, 0)),
            pl.BlockSpec((fs, fs), lambda i: (0, 0)),                 # w2 (bf16)
            pl.BlockSpec((1, fs), lambda i: (0, 0)),
            pl.BlockSpec((9, fs, C), lambda i: (0, 0, 0)),            # zero-conv taps (bf16)
            pl.BlockSpec((1, C), lambda i: (0, 0)),
            pl.BlockSpec((1, C), lambda i: (0, 0)),
        ],
        out_specs=(pl.BlockSpec((nb, H, W, C), lambda i: (i, 0, 0, 0)),
                   pl.BlockSpec((nb, 8, 128), lambda i: (i, 0, 0))),
        scratch_shapes=[pltpu.VMEM((nb, H + 2, W + 2, C), jnp.float32),
                        pltpu.VMEM((nb, H + 2, W + 2, fs), jnp.bfloat16)],
        compiler_params=pltpu.CompilerParams(
            dimension_semantics=("parallel",),
            vmem_limit_bytes=vmem_limit),
    )(x_nhwc, cond_half, w_comb, b_comb.reshape(1, C),
      _w3x3_to_im2col(q["w1"]).astype(jnp.bfloat16), q["b1"].reshape(1, fs),
      _w1x1_to_2d(q["w2"]).astype(jnp.bfloat16), q["b2"].reshape(1, fs),
      _w3x3_to_taps(q["zw"]).astype(jnp.bfloat16), q["zb"].reshape(1, C),
      q["zscale"].reshape(1, C))
    return out, ld[:, 0, 0]


# --------------------------- parameter construction -------------------------- #
def init_params(key, in_channel, condition_channel, filter_size=512):
    c = in_channel
    ks = jax.random.split(key, 14)

    def conv_w(k, co, ci, kh, kw):
        return jax.random.normal(k, (co, ci, kh, kw), jnp.float32) / jnp.sqrt(ci * kh * kw)

    def bias(k, co):
        return 0.01 * jax.random.normal(k, (co,), jnp.float32)

    # InvConv2dLU init: QR of a random matrix, then LU factorisation (as in __init__)
    w0 = jax.random.normal(ks[0], (c, c), jnp.float32)
    q, _ = jnp.linalg.qr(w0)
    p_mat, l_mat, u_mat = jsp_linalg.lu(q)
    w_s = jnp.diag(u_mat)
    invconv = dict(
        w_p=p_mat.astype(jnp.float32),
        w_l=l_mat.astype(jnp.float32),
        w_u=jnp.triu(u_mat, 1).astype(jnp.float32),
        s_sign=jnp.sign(w_s).astype(jnp.float32),
        log_ws=jnp.log(jnp.abs(w_s)).astype(jnp.float32),
    )

    cond_net = dict(
        w1=conv_w(ks[1], c, condition_channel, 3, 3), b1=bias(ks[2], c),
        w2=conv_w(ks[3], c, c, 3, 3), b2=bias(ks[4], c),
        bn_gamma=jnp.ones((c,), jnp.float32), bn_beta=jnp.zeros((c,), jnp.float32),
        w3=conv_w(ks[5], c // 2, c, 1, 1), b3=bias(ks[6], c // 2),
    )

    # NOTE: ZeroConv2d is zero-initialised in PyTorch; small deterministic random
    # values are used so the hot path is non-trivially exercised (set zw/zb/zscale
    # to zeros to match an untrained checkpoint exactly).
    net = dict(
        w1=conv_w(ks[7], filter_size, c, 3, 3), b1=bias(ks[8], filter_size),
        w2=conv_w(ks[9], filter_size, filter_size, 1, 1), b2=bias(ks[10], filter_size),
        zw=0.01 * conv_w(ks[11], c, filter_size, 3, 3),
        zb=0.01 * jax.random.normal(ks[12], (c,), jnp.float32),
        zscale=0.01 * jax.random.normal(ks[13], (c,), jnp.float32),
    )
    return dict(invconv=invconv, cond_net=cond_net, net=net)


# ------------------------------- forward pass -------------------------------- #
def conditional_flow_forward(params, x_nchw, cond_nchw):
    B, C, H, W = x_nchw.shape
    half = C // 2

    # --- ActNorm: data-dependent init (first PyTorch forward call) + logdet ---
    mean = jnp.mean(x_nchw, axis=(0, 2, 3))
    std = jnp.std(x_nchw, axis=(0, 2, 3), ddof=1)           # torch.std is unbiased
    loc = -mean
    scale = 1.0 / (std + 1e-6)
    safe_scale = jnp.clip(scale, 1e-6, None)
    logdet_act = H * W * jnp.sum(jnp.log(jnp.abs(safe_scale)))
    # TODO(synk): NaN/Inf runtime warning+reset branches of the PyTorch code are omitted,
    #             and the data-dependent init only matches the first (untrained) call.

    # --- InvConv2dLU weight + logdet (parameter-only math, plain JAX) ---
    w_inv = _lu_calc_weight(params["invconv"])
    logdet_inv = H * W * jnp.sum(jnp.clip(params["invconv"]["log_ws"], -20.0, 20.0))

    # fold ActNorm affine into the 1x1 conv: y = x2d @ w_comb + b_comb
    w_comb = (scale[:, None] * w_inv.T).astype(jnp.float32)            # (Cin, Cout)
    b_comb = ((loc * scale)[None, :] @ w_inv.T).astype(jnp.float32)    # (1, Cout)

    x_nhwc = jnp.transpose(x_nchw, (0, 2, 3, 1))
    cond_nhwc = jnp.transpose(cond_nchw, (0, 2, 3, 1))

    # --- condition_net (single fused kernel) + bilinear resize ---
    cond_half = cond_net_forward(params["cond_net"], cond_nhwc)
    if cond_half.shape[1:3] != (H, W):
        # F.interpolate(mode='bilinear', align_corners=False): half-pixel, no antialias
        cond_half = jax.image.resize(cond_half, (B, H, W, half), method="bilinear",
                                     antialias=False)

    # --- fused ActNorm + InvConv2dLU + net + affine coupling + per-sample logdet ---
    out_nhwc, ld = flow_coupling_forward(params["net"], x_nhwc, cond_half, w_comb, b_comb)
    out_nchw = jnp.transpose(out_nhwc, (0, 3, 1, 2))
    logdet = logdet_act + logdet_inv + ld                    # shape (B,)
    return out_nchw, logdet


if __name__ == "__main__":
    key = jax.random.PRNGKey(0)
    B, C, Cc, H, W = 2, 4, 3, 8, 8
    kx, kc, kp = jax.random.split(key, 3)
    x = jax.random.normal(kx, (B, C, H, W), jnp.float32)
    cond = jax.random.normal(kc, (B, Cc, H, W), jnp.float32)
    params = init_params(kp, C, Cc, filter_size=512)

    fwd = jax.jit(conditional_flow_forward)
    out, logdet = fwd(params, x, cond)
    jax.block_until_ready((out, logdet))

    assert out.shape == (B, C, H, W), out.shape
    assert logdet.shape == (B,), logdet.shape
    assert bool(jnp.all(jnp.isfinite(out))) and bool(jnp.all(jnp.isfinite(logdet)))

    # pass-through half must equal ActNorm + InvConv2dLU of x (f32 path)
    mean = jnp.mean(x, axis=(0, 2, 3))
    std = jnp.std(x, axis=(0, 2, 3), ddof=1)
    y_ref = (x + (-mean)[None, :, None, None]) * (1.0 / (std + 1e-6))[None, :, None, None]
    w_inv = _lu_calc_weight(params["invconv"])
    y_ref = jnp.einsum("oc,bchw->bohw", w_inv, y_ref)
    assert bool(jnp.allclose(out[:, :C // 2], y_ref[:, :C // 2], atol=1e-2, rtol=1e-2))
    print("KERNEL_OK")
</pallas_src>

<mosaic_0001>
module attributes {stable_mosaic.version = 11 : i64} {
  func.func @_flow_coupling_kernel(%arg0: i32, %arg1: memref<2x8x8x4xf32, #tpu.memory_space<vmem>>, %arg2: memref<2x8x8x2xf32, #tpu.memory_space<vmem>>, %arg3: memref<4x4xf32, #tpu.memory_space<vmem>>, %arg4: memref<1x4xf32, #tpu.memory_space<vmem>>, %arg5: memref<36x512xbf16, #tpu.memory_space<vmem>>, %arg6: memref<1x512xf32, #tpu.memory_space<vmem>>, %arg7: memref<512x512xbf16, #tpu.memory_space<vmem>>, %arg8: memref<1x512xf32, #tpu.memory_space<vmem>>, %arg9: memref<9x512x4xbf16, #tpu.memory_space<vmem>>, %arg10: memref<1x4xf32, #tpu.memory_space<vmem>>, %arg11: memref<1x4xf32, #tpu.memory_space<vmem>>, %arg12: memref<2x8x8x4xf32, #tpu.memory_space<vmem>>, %arg13: memref<2x8x128xf32, #tpu.memory_space<vmem>>, %arg14: memref<2x10x10x4xf32, #tpu.memory_space<vmem>>, %arg15: memref<2x10x10x512xbf16, #tpu.memory_space<vmem>>) attributes {dimension_semantics = [#tpu.dimension_semantics<parallel>], iteration_bounds = array<i64: 1>, scalar_prefetch = 0 : i64, scratch_operands = 2 : i64, tpu.core_type = #tpu.core_type<tc>, window_params = [{transform_indices = @transform_0, window_bounds = array<i64: 2, 8, 8, 4>}, {transform_indices = @transform_1, window_bounds = array<i64: 2, 8, 8, 2>}, {pipeline_mode = #tpu.pipeline_mode<synchronous>, transform_indices = @transform_2, window_bounds = array<i64: 4, 4>}, {pipeline_mode = #tpu.pipeline_mode<synchronous>, transform_indices = @transform_3, window_bounds = array<i64: 1, 4>}, {pipeline_mode = #tpu.pipeline_mode<synchronous>, transform_indices = @transform_4, window_bounds = array<i64: 36, 512>}, {pipeline_mode = #tpu.pipeline_mode<synchronous>, transform_indices = @transform_5, window_bounds = array<i64: 1, 512>}, {pipeline_mode = #tpu.pipeline_mode<synchronous>, transform_indices = @transform_6, window_bounds = array<i64: 512, 512>}, {pipeline_mode = #tpu.pipeline_mode<synchronous>, transform_indices = @transform_7, window_bounds = array<i64: 1, 512>}, {pipeline_mode = #tpu.pipeline_mode<synchronous>, transform_indices = @transform_8, window_bounds = array<i64: 9, 512, 4>}, {pipeline_mode = #tpu.pipeline_mode<synchronous>, transform_indices = @transform_9, window_bounds = array<i64: 1, 4>}, {pipeline_mode = #tpu.pipeline_mode<synchronous>, transform_indices = @transform_10, window_bounds = array<i64: 1, 4>}, {transform_indices = @transform_11, window_bounds = array<i64: 2, 8, 8, 4>}, {transform_indices = @transform_12, window_bounds = array<i64: 2, 8, 128>}]} {
    %cst = arith.constant 0.000000e+00 : f32
    %0 = vector.broadcast %cst : f32 to vector<2x1x10x4xf32>
    %cst_0 = arith.constant 0.000000e+00 : f32
    %1 = vector.broadcast %cst_0 : f32 to vector<2x10x1x4xf32>
    %c0 = arith.constant 0 : index
    %c0_1 = arith.constant 0 : index
    %c0_2 = arith.constant 0 : index
    %c0_3 = arith.constant 0 : index
    %2 = vector.load %arg14[%c0, %c0_1, %c0_2, %c0_3] : memref<2x10x10x4xf32, #tpu.memory_space<vmem>>, vector<2x1x10x4xf32>
    tpu.vector_store %arg14[%c0, %c0_1, %c0_2, %c0_3], %0 {strides = array<i32>} : memref<2x10x10x4xf32, #tpu.memory_space<vmem>>, vector<2x1x10x4xf32>,
    %c0_4 = arith.constant 0 : index
    %c9 = arith.constant 9 : index
    %c0_5 = arith.constant 0 : index
    %c0_6 = arith.constant 0 : index
    %3 = vector.load %arg14[%c0_4, %c9, %c0_5, %c0_6] : memref<2x10x10x4xf32, #tpu.memory_space<vmem>>, vector<2x1x10x4xf32>
    tpu.vector_store %arg14[%c0_4, %c9, %c0_5, %c0_6], %0 {strides = array<i32>} : memref<2x10x10x4xf32, #tpu.memory_space<vmem>>, vector<2x1x10x4xf32>,
    %c0_7 = arith.constant 0 : index
    %c0_8 = arith.constant 0 : index
    %c0_9 = arith.constant 0 : index
    %c0_10 = arith.constant 0 : index
    %4 = vector.load %arg14[%c0_7, %c0_8, %c0_9, %c0_10] : memref<2x10x10x4xf32, #tpu.memory_space<vmem>>, vector<2x10x1x4xf32>
    tpu.vector_store %arg14[%c0_7, %c0_8, %c0_9, %c0_10], %1 {strides = array<i32>} : memref<2x10x10x4xf32, #tpu.memory_space<vmem>>, vector<2x10x1x4xf32>,
    %c0_11 = arith.constant 0 : index
    %c0_12 = arith.constant 0 : index
    %c9_13 = arith.constant 9 : index
    %c0_14 = arith.constant 0 : index
    %5 = vector.load %arg14[%c0_11, %c0_12, %c9_13, %c0_14] : memref<2x10x10x4xf32, #tpu.memory_space<vmem>>, vector<2x10x1x4xf32>
    tpu.vector_store %arg14[%c0_11, %c0_12, %c9_13, %c0_14], %1 {strides = array<i32>} : memref<2x10x10x4xf32, #tpu.memory_space<vmem>>, vector<2x10x1x4xf32>,
    %cst_15 = arith.constant 1.000000e+00 : bf16
    %6 = vector.broadcast %cst_15 : bf16 to vector<2x1x10x512xbf16>
    %cst_16 = arith.constant 1.000000e+00 : bf16
    %7 = vector.broadcast %cst_16 : bf16 to vector<2x10x1x512xbf16>
    %c0_17 = arith.constant 0 : index
    %c0_18 = arith.constant 0 : index
    %c0_19 = arith.constant 0 : index
    %c0_20 = arith.constant 0 : index
    %8 = vector.load %arg15[%c0_17, %c0_18, %c0_19, %c0_20] : memref<2x10x10x512xbf16, #tpu.memory_space<vmem>>, vector<2x1x10x512xbf16>
    tpu.vector_store %arg15[%c0_17, %c0_18, %c0_19, %c0_20], %6 {strides = array<i32>} : memref<2x10x10x512xbf16, #tpu.memory_space<vmem>>, vector<2x1x10x512xbf16>,
    %c0_21 = arith.constant 0 : index
    %c9_22 = arith.constant 9 : index
    %c0_23 = arith.constant 0 : index
    %c0_24 = arith.constant 0 : index
    %9 = vector.load %arg15[%c0_21, %c9_22, %c0_23, %c0_24] : memref<2x10x10x512xbf16, #tpu.memory_space<vmem>>, vector<2x1x10x512xbf16>
    tpu.vector_store %arg15[%c0_21, %c9_22, %c0_23, %c0_24], %6 {strides = array<i32>} : memref<2x10x10x512xbf16, #tpu.memory_space<vmem>>, vector<2x1x10x512xbf16>,
    %c0_25 = arith.constant 0 : index
    %c0_26 = arith.constant 0 : index
    %c0_27 = arith.constant 0 : index
    %c0_28 = arith.constant 0 : index
    %10 = vector.load %arg15[%c0_25, %c0_26, %c0_27, %c0_28] : memref<2x10x10x512xbf16, #tpu.memory_space<vmem>>, vector<2x10x1x512xbf16>
    tpu.vector_store %arg15[%c0_25, %c0_26, %c0_27, %c0_28], %7 {strides = array<i32>} : memref<2x10x10x512xbf16, #tpu.memory_space<vmem>>, vector<2x10x1x512xbf16>,
    %c0_29 = arith.constant 0 : index
    %c0_30 = arith.constant 0 : index
    %c9_31 = arith.constant 9 : index
    %c0_32 = arith.constant 0 : index
    %11 = vector.load %arg15[%c0_29, %c0_30, %c9_31, %c0_32] : memref<2x10x10x512xbf16, #tpu.memory_space<vmem>>, vector<2x10x1x512xbf16>
    tpu.vector_store %arg15[%c0_29, %c0_30, %c9_31, %c0_32], %7 {strides = array<i32>} : memref<2x10x10x512xbf16, #tpu.memory_space<vmem>>, vector<2x10x1x512xbf16>,
    %c0_33 = arith.constant 0 : index
    %c0_34 = arith.constant 0 : index
    %c0_35 = arith.constant 0 : index
    %c0_36 = arith.constant 0 : index
    %12 = vector.load %arg1[%c0_33, %c0_34, %c0_35, %c0_36] : memref<2x8x8x4xf32, #tpu.memory_space<vmem>>, vector<2x8x8x4xf32>
    %13 = vector.shape_cast %12 : vector<2x8x8x4xf32> to vector<128x4xf32>
    %c0_37 = arith.constant 0 : index
    %c0_38 = arith.constant 0 : index
    %14 = vector.load %arg3[%c0_37, %c0_38] : memref<4x4xf32, #tpu.memory_space<vmem>>, vector<4x4xf32>
    %cst_39 = arith.constant dense<0.000000e+00> : vector<128x4xf32>
    %15 = tpu.matmul %13, %14, %cst_39 {dimension_numbers = #tpu.dot_dimension_numbers<[1], [0], [0], [1], [0, 0, 1, 1], [], []>} : vector<128x4xf32>, vector<4x4xf32>, vector<128x4xf32> -> vector<128x4xf32>
    %c0_40 = arith.constant 0 : index
    %c0_41 = arith.constant 0 : index
    %16 = vector.load %arg4[%c0_40, %c0_41] : memref<1x4xf32, #tpu.memory_space<vmem>>, vector<1x4xf32>
    %17 = vector.broadcast %16 : vector<1x4xf32> to vector<128x4xf32>
    %18 = arith.addf %15, %17 : vector<128x4xf32>
    %19 = vector.extract_strided_slice %18 {offsets = [0, 0], sizes = [128, 2], strides = [1, 1]} : vector<128x4xf32> to vector<128x2xf32>
    %20 = vector.extract_strided_slice %18 {offsets = [0, 2], sizes = [128, 2], strides = [1, 1]} : vector<128x4xf32> to vector<128x2xf32>
    %21 = vector.shape_cast %19 : vector<128x2xf32> to vector<2x8x8x2xf32>
    %c0_42 = arith.constant 0 : index
    %c1 = arith.constant 1 : index
    %c1_43 = arith.constant 1 : index
    %c0_44 = arith.constant 0 : index
    %22 = vector.load %arg14[%c0_42, %c1, %c1_43, %c0_44] : memref<2x10x10x4xf32, #tpu.memory_space<vmem>>, vector<2x8x8x2xf32>
    tpu.vector_store %arg14[%c0_42, %c1, %c1_43, %c0_44], %21 {strides = array<i32>} : memref<2x10x10x4xf32, #tpu.memory_space<vmem>>, vector<2x8x8x2xf32>,
    %c0_45 = arith.constant 0 : index
    %c0_46 = arith.constant 0 : index
    %c0_47 = arith.constant 0 : index
    %c0_48 = arith.constant 0 : index
    %23 = vector.load %arg2[%c0_45, %c0_46, %c0_47, %c0_48] : memref<2x8x8x2xf32, #tpu.memory_space<vmem>>, vector<2x8x8x2xf32>
    %c0_49 = arith.constant 0 : index
    %c1_50 = arith.constant 1 : index
    %c1_51 = arith.constant 1 : index
    %c2 = arith.constant 2 : index
    %24 = vector.load %arg14[%c0_49, %c1_50, %c1_51, %c2] : memref<2x10x10x4xf32, #tpu.memory_space<vmem>>, vector<2x8x8x2xf32>
    tpu.vector_store %arg14[%c0_49, %c1_50, %c1_51, %c2], %23 {strides = array<i32>} : memref<2x10x10x4xf32, #tpu.memory_space<vmem>>, vector<2x8x8x2xf32>,
    %c0_52 = arith.constant 0 : index
    %c0_53 = arith.constant 0 : index
    %c0_54 = arith.constant 0 : index
    %c0_55 = arith.constant 0 : index
    %25 = vector.load %arg14[%c0_52, %c0_53, %c0_54, %c0_55] : memref<2x10x10x4xf32, #tpu.memory_space<vmem>>, vector<2x10x10x4xf32>
    %26 = vector.extract_strided_slice %25 {offsets = [0, 0, 0, 0], sizes = [2, 8, 8, 4], strides = [1, 1, 1, 1]} : vector<2x10x10x4xf32> to vector<2x8x8x4xf32>
    %27 = vector.shape_cast %26 : vector<2x8x8x4xf32> to vector<128x4xf32>
    %28 = vector.extract_strided_slice %25 {offsets = [0, 0, 1, 0], sizes = [2, 8, 8, 4], strides = [1, 1, 1, 1]} : vector<2x10x10x4xf32> to vector<2x8x8x4xf32>
    %29 = vector.shape_cast %28 : vector<2x8x8x4xf32> to vector<128x4xf32>
    %30 = vector.extract_strided_slice %25 {offsets = [0, 0, 2, 0], sizes = [2, 8, 8, 4], strides = [1, 1, 1, 1]} : vector<2x10x10x4xf32> to vector<2x8x8x4xf32>
    %31 = vector.shape_cast %30 : vector<2x8x8x4xf32> to vector<128x4xf32>
    %32 = vector.extract_strided_slice %25 {offsets = [0, 1, 0, 0], sizes = [2, 8, 8, 4], strides = [1, 1, 1, 1]} : vector<2x10x10x4xf32> to vector<2x8x8x4xf32>
    %33 = vector.shape_cast %32 : vector<2x8x8x4xf32> to vector<128x4xf32>
    %34 = vector.extract_strided_slice %25 {offsets = [0, 1, 1, 0], sizes = [2, 8, 8, 4], strides = [1, 1, 1, 1]} : vector<2x10x10x4xf32> to vector<2x8x8x4xf32>
    %35 = vector.shape_cast %34 : vector<2x8x8x4xf32> to vector<128x4xf32>
    %36 = vector.extract_strided_slice %25 {offsets = [0, 1, 2, 0], sizes = [2, 8, 8, 4], strides = [1, 1, 1, 1]} : vector<2x10x10x4xf32> to vector<2x8x8x4xf32>
    %37 = vector.shape_cast %36 : vector<2x8x8x4xf32> to vector<128x4xf32>
    %38 = vector.extract_strided_slice %25 {offsets = [0, 2, 0, 0], sizes = [2, 8, 8, 4], strides = [1, 1, 1, 1]} : vector<2x10x10x4xf32> to vector<2x8x8x4xf32>
    %39 = vector.shape_cast %38 : vector<2x8x8x4xf32> to vector<128x4xf32>
    %40 = vector.extract_strided_slice %25 {offsets = [0, 2, 1, 0], sizes = [2, 8, 8, 4], strides = [1, 1, 1, 1]} : vector<2x10x10x4xf32> to vector<2x8x8x4xf32>
    %41 = vector.shape_cast %40 : vector<2x8x8x4xf32> to vector<128x4xf32>
    %42 = vector.extract_strided_slice %25 {offsets = [0, 2, 2, 0], sizes = [2, 8, 8, 4], strides = [1, 1, 1, 1]} : vector<2x10x10x4xf32> to vector<2x8x8x4xf32>
    %43 = vector.shape_cast %42 : vector<2x8x8x4xf32> to vector<128x4xf32>
    %44 = tpu.concatenate %27, %29, %31, %33, %35, %37, %39, %41, %43 in 1 : vector<128x4xf32>, vector<128x4xf32>, vector<128x4xf32>, vector<128x4xf32>, vector<128x4xf32>, vector<128x4xf32>, vector<128x4xf32>, vector<128x4xf32>, vector<128x4xf32> -> vector<128x36xf32>
    %45 = arith.truncf %44 : vector<128x36xf32> to vector<128x36xbf16>
    %c0_56 = arith.constant 0 : index
    %c0_57 = arith.constant 0 : index
    %46 = vector.load %arg5[%c0_56, %c0_57] : memref<36x512xbf16, #tpu.memory_space<vmem>>, vector<36x512xbf16>
    %cst_58 = arith.constant dense<0.000000e+00> : vector<128x512xf32>
    %47 = tpu.matmul %45, %46, %cst_58 {dimension_numbers = #tpu.dot_dimension_numbers<[1], [0], [0], [1], [0, 0, 1, 1], [], []>} : vector<128x36xbf16>, vector<36x512xbf16>, vector<128x512xf32> -> vector<128x512xf32>
    %c0_59 = arith.constant 0 : index
    %c0_60 = arith.constant 0 : index
    %48 = vector.load %arg6[%c0_59, %c0_60] : memref<1x512xf32, #tpu.memory_space<vmem>>, vector<1x512xf32>
    %49 = vector.broadcast %48 : vector<1x512xf32> to vector<128x512xf32>
    %50 = arith.addf %47, %49 : vector<128x512xf32>
    %cst_61 = arith.constant 0.000000e+00 : f32
    %51 = vector.broadcast %cst_61 : f32 to vector<128x512xf32>
    %52 = arith.maximumf %50, %51 : vector<128x512xf32>
    %53 = arith.truncf %52 : vector<128x512xf32> to vector<128x512xbf16>
    %c0_62 = arith.constant 0 : index
    %c0_63 = arith.constant 0 : index
    %54 = vector.load %arg7[%c0_62, %c0_63] : memref<512x512xbf16, #tpu.memory_space<vmem>>, vector<512x512xbf16>
    %cst_64 = arith.constant dense<0.000000e+00> : vector<128x512xf32>
    %55 = tpu.matmul %53, %54, %cst_64 {dimension_numbers = #tpu.dot_dimension_numbers<[1], [0], [0], [1], [0, 0, 1, 1], [], []>} : vector<128x512xbf16>, vector<512x512xbf16>, vector<128x512xf32> -> vector<128x512xf32>
    %c0_65 = arith.constant 0 : index
    %c0_66 = arith.constant 0 : index
    %56 = vector.load %arg8[%c0_65, %c0_66] : memref<1x512xf32, #tpu.memory_space<vmem>>, vector<1x512xf32>
    %57 = vector.broadcast %56 : vector<1x512xf32> to vector<128x512xf32>
    %58 = arith.addf %55, %57 : vector<128x512xf32>
    %cst_67 = arith.constant 0.000000e+00 : f32
    %59 = vector.broadcast %cst_67 : f32 to vector<128x512xf32>
    %60 = arith.maximumf %58, %59 : vector<128x512xf32>
    %61 = arith.truncf %60 : vector<128x512xf32> to vector<128x512xbf16>
    %62 = vector.shape_cast %61 : vector<128x512xbf16> to vector<2x8x8x512xbf16>
    %c0_68 = arith.constant 0 : index
    %c1_69 = arith.constant 1 : index
    %c1_70 = arith.constant 1 : index
    %c0_71 = arith.constant 0 : index
    %63 = vector.load %arg15[%c0_68, %c1_69, %c1_70, %c0_71] : memref<2x10x10x512xbf16, #tpu.memory_space<vmem>>, vector<2x8x8x512xbf16>
    tpu.vector_store %arg15[%c0_68, %c1_69, %c1_70, %c0_71], %62 {strides = array<i32>} : memref<2x10x10x512xbf16, #tpu.memory_space<vmem>>, vector<2x8x8x512xbf16>,
    %c0_72 = arith.constant 0 : index
    %c0_73 = arith.constant 0 : index
    %c0_74 = arith.constant 0 : index
    %c0_75 = arith.constant 0 : index
    %64 = vector.load %arg15[%c0_72, %c0_73, %c0_74, %c0_75] : memref<2x10x10x512xbf16, #tpu.memory_space<vmem>>, vector<2x10x10x512xbf16>
    %cst_76 = arith.constant 0.000000e+00 : f32
    %65 = vector.broadcast %cst_76 : f32 to vector<128x4xf32>
    %66 = vector.extract_strided_slice %64 {offsets = [0, 0, 0, 0], sizes = [2, 8, 8, 512], strides = [1, 1, 1, 1]} : vector<2x10x10x512xbf16> to vector<2x8x8x512xbf16>
    %67 = vector.shape_cast %66 : vector<2x8x8x512xbf16> to vector<128x512xbf16>
    %c0_77 = arith.constant 0 : index
    %c0_78 = arith.constant 0 : index
    %c0_79 = arith.constant 0 : index
    %68 = vector.load %arg9[%c0_77, %c0_78, %c0_79] : memref<9x512x4xbf16, #tpu.memory_space<vmem>>, vector<1x512x4xbf16>
    %69 = vector.shape_cast %68 : vector<1x512x4xbf16> to vector<512x4xbf16>
    %cst_80 = arith.constant dense<0.000000e+00> : vector<128x4xf32>
    %70 = tpu.matmul %67, %69, %cst_80 {dimension_numbers = #tpu.dot_dimension_numbers<[1], [0], [0], [1], [0, 0, 1, 1], [], []>} : vector<128x512xbf16>, vector<512x4xbf16>, vector<128x4xf32> -> vector<128x4xf32>
    %71 = arith.addf %65, %70 : vector<128x4xf32>
    %72 = vector.extract_strided_slice %64 {offsets = [0, 0, 1, 0], sizes = [2, 8, 8, 512], strides = [1, 1, 1, 1]} : vector<2x10x10x512xbf16> to vector<2x8x8x512xbf16>
    %73 = vector.shape_cast %72 : vector<2x8x8x512xbf16> to vector<128x512xbf16>
    %c1_81 = arith.constant 1 : index
    %c0_82 = arith.constant 0 : index
    %c0_83 = arith.constant 0 : index
    %74 = vector.load %arg9[%c1_81, %c0_82, %c0_83] : memref<9x512x4xbf16, #tpu.memory_space<vmem>>, vector<1x512x4xbf16>
    %75 = vector.shape_cast %74 : vector<1x512x4xbf16> to vector<512x4xbf16>
    %cst_84 = arith.constant dense<0.000000e+00> : vector<128x4xf32>
    %76 = tpu.matmul %73, %75, %cst_84 {dimension_numbers = #tpu.dot_dimension_numbers<[1], [0], [0], [1], [0, 0, 1, 1], [], []>} : vector<128x512xbf16>, vector<512x4xbf16>, vector<128x4xf32> -> vector<128x4xf32>
    %77 = arith.addf %71, %76 : vector<128x4xf32>
    %78 = vector.extract_strided_slice %64 {offsets = [0, 0, 2, 0], sizes = [2, 8, 8, 512], strides = [1, 1, 1, 1]} : vector<2x10x10x512xbf16> to vector<2x8x8x512xbf16>
    %79 = vector.shape_cast %78 : vector<2x8x8x512xbf16> to vector<128x512xbf16>
    %c2_85 = arith.constant 2 : index
    %c0_86 = arith.constant 0 : index
    %c0_87 = arith.constant 0 : index
    %80 = vector.load %arg9[%c2_85, %c0_86, %c0_87] : memref<9x512x4xbf16, #tpu.memory_space<vmem>>, vector<1x512x4xbf16>
    %81 = vector.shape_cast %80 : vector<1x512x4xbf16> to vector<512x4xbf16>
    %cst_88 = arith.constant dense<0.000000e+00> : vector<128x4xf32>
    %82 = tpu.matmul %79, %81, %cst_88 {dimension_numbers = #tpu.dot_dimension_numbers<[1], [0], [0], [1], [0, 0, 1, 1], [], []>} : vector<128x512xbf16>, vector<512x4xbf16>, vector<128x4xf32> -> vector<128x4xf32>
    %83 = arith.addf %77, %82 : vector<128x4xf32>
    %84 = vector.extract_strided_slice %64 {offsets = [0, 1, 0, 0], sizes = [2, 8, 8, 512], strides = [1, 1, 1, 1]} : vector<2x10x10x512xbf16> to vector<2x8x8x512xbf16>
    %85 = vector.shape_cast %84 : vector<2x8x8x512xbf16> to vector<128x512xbf16>
    %c3 = arith.constant 3 : index
    %c0_89 = arith.constant 0 : index
    %c0_90 = arith.constant 0 : index
    %86 = vector.load %arg9[%c3, %c0_89, %c0_90] : memref<9x512x4xbf16, #tpu.memory_space<vmem>>, vector<1x512x4xbf16>
    %87 = vector.shape_cast %86 : vector<1x512x4xbf16> to vector<512x4xbf16>
    %cst_91 = arith.constant dense<0.000000e+00> : vector<128x4xf32>
    %88 = tpu.matmul %85, %87, %cst_91 {dimension_numbers = #tpu.dot_dimension_numbers<[1], [0], [0], [1], [0, 0, 1, 1], [], []>} : vector<128x512xbf16>, vector<512x4xbf16>, vector<128x4xf32> -> vector<128x4xf32>
    %89 = arith.addf %83, %88 : vector<128x4xf32>
    %90 = vector.extract_strided_slice %64 {offsets = [0, 1, 1, 0], sizes = [2, 8, 8, 512], strides = [1, 1, 1, 1]} : vector<2x10x10x512xbf16> to vector<2x8x8x512xbf16>
    %91 = vector.shape_cast %90 : vector<2x8x8x512xbf16> to vector<128x512xbf16>
    %c4 = arith.constant 4 : index
    %c0_92 = arith.constant 0 : index
    %c0_93 = arith.constant 0 : index
    %92 = vector.load %arg9[%c4, %c0_92, %c0_93] : memref<9x512x4xbf16, #tpu.memory_space<vmem>>, vector<1x512x4xbf16>
    %93 = vector.shape_cast %92 : vector<1x512x4xbf16> to vector<512x4xbf16>
    %cst_94 = arith.constant dense<0.000000e+00> : vector<128x4xf32>
    %94 = tpu.matmul %91, %93, %cst_94 {dimension_numbers = #tpu.dot_dimension_numbers<[1], [0], [0], [1], [0, 0, 1, 1], [], []>} : vector<128x512xbf16>, vector<512x4xbf16>, vector<128x4xf32> -> vector<128x4xf32>
    %95 = arith.addf %89, %94 : vector<128x4xf32>
    %96 = vector.extract_strided_slice %64 {offsets = [0, 1, 2, 0], sizes = [2, 8, 8, 512], strides = [1, 1, 1, 1]} : vector<2x10x10x512xbf16> to vector<2x8x8x512xbf16>
    %97 = vector.shape_cast %96 : vector<2x8x8x512xbf16> to vector<128x512xbf16>
    %c5 = arith.constant 5 : index
    %c0_95 = arith.constant 0 : index
    %c0_96 = arith.constant 0 : index
    %98 = vector.load %arg9[%c5, %c0_95, %c0_96] : memref<9x512x4xbf16, #tpu.memory_space<vmem>>, vector<1x512x4xbf16>
    %99 = vector.shape_cast %98 : vector<1x512x4xbf16> to vector<512x4xbf16>
    %cst_97 = arith.constant dense<0.000000e+00> : vector<128x4xf32>
    %100 = tpu.matmul %97, %99, %cst_97 {dimension_numbers = #tpu.dot_dimension_numbers<[1], [0], [0], [1], [0, 0, 1, 1], [], []>} : vector<128x512xbf16>, vector<512x4xbf16>, vector<128x4xf32> -> vector<128x4xf32>
    %101 = arith.addf %95, %100 : vector<128x4xf32>
    %102 = vector.extract_strided_slice %64 {offsets = [0, 2, 0, 0], sizes = [2, 8, 8, 512], strides = [1, 1, 1, 1]} : vector<2x10x10x512xbf16> to vector<2x8x8x512xbf16>
    %103 = vector.shape_cast %102 : vector<2x8x8x512xbf16> to vector<128x512xbf16>
    %c6 = arith.constant 6 : index
    %c0_98 = arith.constant 0 : index
    %c0_99 = arith.constant 0 : index
    %104 = vector.load %arg9[%c6, %c0_98, %c0_99] : memref<9x512x4xbf16, #tpu.memory_space<vmem>>, vector<1x512x4xbf16>
    %105 = vector.shape_cast %104 : vector<1x512x4xbf16> to vector<512x4xbf16>
    %cst_100 = arith.constant dense<0.000000e+00> : vector<128x4xf32>
    %106 = tpu.matmul %103, %105, %cst_100 {dimension_numbers = #tpu.dot_dimension_numbers<[1], [0], [0], [1], [0, 0, 1, 1], [], []>} : vector<128x512xbf16>, vector<512x4xbf16>, vector<128x4xf32> -> vector<128x4xf32>
    %107 = arith.addf %101, %106 : vector<128x4xf32>
    %108 = vector.extract_strided_slice %64 {offsets = [0, 2, 1, 0], sizes = [2, 8, 8, 512], strides = [1, 1, 1, 1]} : vector<2x10x10x512xbf16> to vector<2x8x8x512xbf16>
    %109 = vector.shape_cast %108 : vector<2x8x8x512xbf16> to vector<128x512xbf16>
    %c7 = arith.constant 7 : index
    %c0_101 = arith.constant 0 : index
    %c0_102 = arith.constant 0 : index
    %110 = vector.load %arg9[%c7, %c0_101, %c0_102] : memref<9x512x4xbf16, #tpu.memory_space<vmem>>, vector<1x512x4xbf16>
    %111 = vector.shape_cast %110 : vector<1x512x4xbf16> to vector<512x4xbf16>
    %cst_103 = arith.constant dense<0.000000e+00> : vector<128x4xf32>
    %112 = tpu.matmul %109, %111, %cst_103 {dimension_numbers = #tpu.dot_dimension_numbers<[1], [0], [0], [1], [0, 0, 1, 1], [], []>} : vector<128x512xbf16>, vector<512x4xbf16>, vector<128x4xf32> -> vector<128x4xf32>
    %113 = arith.addf %107, %112 : vector<128x4xf32>
    %114 = vector.extract_strided_slice %64 {offsets = [0, 2, 2, 0], sizes = [2, 8, 8, 512], strides = [1, 1, 1, 1]} : vector<2x10x10x512xbf16> to vector<2x8x8x512xbf16>
    %115 = vector.shape_cast %114 : vector<2x8x8x512xbf16> to vector<128x512xbf16>
    %c8 = arith.constant 8 : index
    %c0_104 = arith.constant 0 : index
    %c0_105 = arith.constant 0 : index
    %116 = vector.load %arg9[%c8, %c0_104, %c0_105] : memref<9x512x4xbf16, #tpu.memory_space<vmem>>, vector<1x512x4xbf16>
    %117 = vector.shape_cast %116 : vector<1x512x4xbf16> to vector<512x4xbf16>
    %cst_106 = arith.constant dense<0.000000e+00> : vector<128x4xf32>
    %118 = tpu.matmul %115, %117, %cst_106 {dimension_numbers = #tpu.dot_dimension_numbers<[1], [0], [0], [1], [0, 0, 1, 1], [], []>} : vector<128x512xbf16>, vector<512x4xbf16>, vector<128x4xf32> -> vector<128x4xf32>
    %119 = arith.addf %113, %118 : vector<128x4xf32>
    %c0_107 = arith.constant 0 : index
    %c0_108 = arith.constant 0 : index
    %120 = vector.load %arg10[%c0_107, %c0_108] : memref<1x4xf32, #tpu.memory_space<vmem>>, vector<1x4xf32>
    %121 = vector.broadcast %120 : vector<1x4xf32> to vector<128x4xf32>
    %122 = arith.addf %119, %121 : vector<128x4xf32>
    %c0_109 = arith.constant 0 : index
    %c0_110 = arith.constant 0 : index
    %123 = vector.load %arg11[%c0_109, %c0_110] : memref<1x4xf32, #tpu.memory_space<vmem>>, vector<1x4xf32>
    %cst_111 = arith.constant 3.000000e+00 : f32
    %124 = vector.broadcast %cst_111 : f32 to vector<1x4xf32>
    %125 = arith.mulf %123, %124 : vector<1x4xf32>
    %126 = math.exp %125 : vector<1x4xf32>
    %127 = vector.broadcast %126 : vector<1x4xf32> to vector<128x4xf32>
    %128 = arith.mulf %122, %127 : vector<128x4xf32>
    %129 = vector.extract_strided_slice %128 {offsets = [0, 0], sizes = [128, 2], strides = [1, 1]} : vector<128x4xf32> to vector<128x2xf32>
    %cst_112 = arith.constant -1.000000e+01 : f32
    %cst_113 = arith.constant 1.000000e+01 : f32
    %130 = vector.broadcast %cst_112 : f32 to vector<128x2xf32>
    %131 = arith.maximumf %130, %129 : vector<128x2xf32>
    %132 = vector.broadcast %cst_113 : f32 to vector<128x2xf32>
    %133 = arith.minimumf %132, %131 : vector<128x2xf32>
    %134 = vector.extract_strided_slice %128 {offsets = [0, 2], sizes = [128, 2], strides = [1, 1]} : vector<128x4xf32> to vector<128x2xf32>
    %cst_114 = arith.constant 2.000000e+00 : f32
    %135 = vector.broadcast %cst_114 : f32 to vector<128x2xf32>
    %136 = arith.addf %133, %135 : vector<128x2xf32>
    %137 = arith.negf %136 : vector<128x2xf32>
    %138 = math.exp %137 : vector<128x2xf32>
    %cst_115 = arith.constant 1.000000e+00 : f32
    %139 = vector.broadcast %cst_115 : f32 to vector<128x2xf32>
    %140 = arith.addf %139, %138 : vector<128x2xf32>
    %141 = arith.divf %139, %140 : vector<128x2xf32>
    %142 = arith.addf %20, %134 : vector<128x2xf32>
    %143 = arith.mulf %142, %141 : vector<128x2xf32>
    %144 = vector.shape_cast %19 : vector<128x2xf32> to vector<2x8x8x2xf32>
    %c0_116 = arith.constant 0 : index
    %c0_117 = arith.constant 0 : index
    %c0_118 = arith.constant 0 : index
    %c0_119 = arith.constant 0 : index
    %145 = vector.load %arg12[%c0_116, %c0_117, %c0_118, %c0_119] : memref<2x8x8x4xf32, #tpu.memory_space<vmem>>, vector<2x8x8x2xf32>
    tpu.vector_store %arg12[%c0_116, %c0_117, %c0_118, %c0_119], %144 {strides = array<i32>} : memref<2x8x8x4xf32, #tpu.memory_space<vmem>>, vector<2x8x8x2xf32>,
    %146 = vector.shape_cast %143 : vector<128x2xf32> to vector<2x8x8x2xf32>
    %c0_120 = arith.constant 0 : index
    %c0_121 = arith.constant 0 : index
    %c0_122 = arith.constant 0 : index
    %c2_123 = arith.constant 2 : index
    %147 = vector.load %arg12[%c0_120, %c0_121, %c0_122, %c2_123] : memref<2x8x8x4xf32, #tpu.memory_space<vmem>>, vector<2x8x8x2xf32>
    tpu.vector_store %arg12[%c0_120, %c0_121, %c0_122, %c2_123], %146 {strides = array<i32>} : memref<2x8x8x4xf32, #tpu.memory_space<vmem>>, vector<2x8x8x2xf32>,
    %148 = tpu.iota {dimensions = array<i32: 1>} : vector<2x128xi32>
    %149 = tpu.iota {dimensions = array<i32: 0>} : vector<2x128xi32>
    %c64_i32 = arith.constant 64 : i32
    %150 = vector.broadcast %c64_i32 : i32 to vector<2x128xi32>
    %151 = arith.muli %149, %150 : vector<2x128xi32>
    %152 = arith.cmpi sge, %148, %151 : vector<2x128xi32>
    %c64_i32_124 = arith.constant 64 : i32
    %153 = vector.broadcast %c64_i32_124 : i32 to vector<2x128xi32>
    %154 = arith.addi %151, %153 : vector<2x128xi32>
    %155 = arith.cmpi slt, %148, %154 : vector<2x128xi32>
    %156 = arith.andi %152, %155 : vector<2x128xi1>
    %157 = arith.extui %156 : vector<2x128xi1> to vector<2x128xi32>
    %158 = arith.sitofp %157 : vector<2x128xi32> to vector<2x128xf32>
    %159 = math.log %141 : vector<128x2xf32>
    %cst_125 = arith.constant dense<0.000000e+00> : vector<2x2xf32>
    %160 = tpu.matmul %158, %159, %cst_125 {dimension_numbers = #tpu.dot_dimension_numbers<[1], [0], [0], [1], [0, 0, 1, 1], [], []>} : vector<2x128xf32>, vector<128x2xf32>, vector<2x2xf32> -> vector<2x2xf32>
    %cst_126 = arith.constant dense<0.000000e+00> : vector<2xf32>
    %161 = vector.multi_reduction <add>, %160, %cst_126 [1] : vector<2x2xf32> to vector<2xf32>
    %162 = vector.shape_cast %161 : vector<2xf32> to vector<2x1xf32>
    %163 = vector.shape_cast %162 : vector<2x1xf32> to vector<2x1x1xf32>
    %164 = vector.shape_cast %163 : vector<2x1x1xf32> to vector<2x1x1xf32>
    %165 = vector.broadcast %164 : vector<2x1x1xf32> to vector<2x8x128xf32>
    %c0_127 = arith.constant 0 : index
    %c0_128 = arith.constant 0 : index
    %c0_129 = arith.constant 0 : index
    %166 = vector.load %arg13[%c0_127, %c0_128, %c0_129] : memref<2x8x128xf32, #tpu.memory_space<vmem>>, vector<2x8x128xf32>
    tpu.vector_store %arg13[%c0_127, %c0_128, %c0_129], %165 {strides = array<i32>} : memref<2x8x128xf32, #tpu.memory_space<vmem>>, vector<2x8x128xf32>,
    return
  }
  func.func @transform_0(%arg0: i32) -> (i32, i32, i32, i32) {
    %c0_i32 = arith.constant 0 : i32
    %c0_i32_0 = arith.constant 0 : i32
    %c0_i32_1 = arith.constant 0 : i32
    %c0_i32_2 = arith.constant 0 : i32
    return %arg0, %c0_i32, %c0_i32_0, %c0_i32_1 : i32, i32, i32, i32
  }
  func.func @transform_1(%arg0: i32) -> (i32, i32, i32, i32) {
    %c0_i32 = arith.constant 0 : i32
    %c0_i32_0 = arith.constant 0 : i32
    %c0_i32_1 = arith.constant 0 : i32
    %c0_i32_2 = arith.constant 0 : i32
    return %arg0, %c0_i32, %c0_i32_0, %c0_i32_1 : i32, i32, i32, i32
  }
  func.func @transform_2(%arg0: i32) -> (i32, i32) {
    %c0_i32 = arith.constant 0 : i32
    %c0_i32_0 = arith.constant 0 : i32
    %c0_i32_1 = arith.constant 0 : i32
    return %c0_i32, %c0_i32_0 : i32, i32
  }
  func.func @transform_3(%arg0: i32) -> (i32, i32) {
    %c0_i32 = arith.constant 0 : i32
    %c0_i32_0 = arith.constant 0 : i32
    %c0_i32_1 = arith.constant 0 : i32
    return %c0_i32, %c0_i32_0 : i32, i32
  }
  func.func @transform_4(%arg0: i32) -> (i32, i32) {
    %c0_i32 = arith.constant 0 : i32
    %c0_i32_0 = arith.constant 0 : i32
    %c0_i32_1 = arith.constant 0 : i32
    return %c0_i32, %c0_i32_0 : i32, i32
  }
  func.func @transform_5(%arg0: i32) -> (i32, i32) {
    %c0_i32 = arith.constant 0 : i32
    %c0_i32_0 = arith.constant 0 : i32
    %c0_i32_1 = arith.constant 0 : i32
    return %c0_i32, %c0_i32_0 : i32, i32
  }
  func.func @transform_6(%arg0: i32) -> (i32, i32) {
    %c0_i32 = arith.constant 0 : i32
    %c0_i32_0 = arith.constant 0 : i32
    %c0_i32_1 = arith.constant 0 : i32
    return %c0_i32, %c0_i32_0 : i32, i32
  }
  func.func @transform_7(%arg0: i32) -> (i32, i32) {
    %c0_i32 = arith.constant 0 : i32
    %c0_i32_0 = arith.constant 0 : i32
    %c0_i32_1 = arith.constant 0 : i32
    return %c0_i32, %c0_i32_0 : i32, i32
  }
  func.func @transform_8(%arg0: i32) -> (i32, i32, i32) {
    %c0_i32 = arith.constant 0 : i32
    %c0_i32_0 = arith.constant 0 : i32
    %c0_i32_1 = arith.constant 0 : i32
    %c0_i32_2 = arith.constant 0 : i32
    return %c0_i32, %c0_i32_0, %c0_i32_1 : i32, i32, i32
  }
  func.func @transform_9(%arg0: i32) -> (i32, i32) {
    %c0_i32 = arith.constant 0 : i32
    %c0_i32_0 = arith.constant 0 : i32
    %c0_i32_1 = arith.constant 0 : i32
    return %c0_i32, %c0_i32_0 : i32, i32
  }
  func.func @transform_10(%arg0: i32) -> (i32, i32) {
    %c0_i32 = arith.constant 0 : i32
    %c0_i32_0 = arith.constant 0 : i32
    %c0_i32_1 = arith.constant 0 : i32
    return %c0_i32, %c0_i32_0 : i32, i32
  }
  func.func @transform_11(%arg0: i32) -> (i32, i32, i32, i32) {
    %c0_i32 = arith.constant 0 : i32
    %c0_i32_0 = arith.constant 0 : i32
    %c0_i32_1 = arith.constant 0 : i32
    %c0_i32_2 = arith.constant 0 : i32
    return %arg0, %c0_i32, %c0_i32_0, %c0_i32_1 : i32, i32, i32, i32
  }
  func.func @transform_12(%arg0: i32) -> (i32, i32, i32) {
    %c0_i32 = arith.constant 0 : i32
    %c0_i32_0 = arith.constant 0 : i32
    %c0_i32_1 = arith.constant 0 : i32
    return %arg0, %c0_i32, %c0_i32_0 : i32, i32, i32
  }
}

module attributes {stable_mosaic.version = 11 : i64} {
  func.func @_cond_net_kernel(%arg0: memref<2x8x8x3xf32, #tpu.memory_space<vmem>>, %arg1: memref<27x4xf32, #tpu.memory_space<vmem>>, %arg2: memref<1x4xf32, #tpu.memory_space<vmem>>, %arg3: memref<36x4xf32, #tpu.memory_space<vmem>>, %arg4: memref<1x4xf32, #tpu.memory_space<vmem>>, %arg5: memref<1x4xf32, #tpu.memory_space<vmem>>, %arg6: memref<1x4xf32, #tpu.memory_space<vmem>>, %arg7: memref<4x2xf32, #tpu.memory_space<vmem>>, %arg8: memref<1x2xf32, #tpu.memory_space<vmem>>, %arg9: memref<2x8x8x2xf32, #tpu.memory_space<vmem>>, %arg10: memref<2x10x10x3xf32, #tpu.memory_space<vmem>>, %arg11: memref<2x10x10x4xf32, #tpu.memory_space<vmem>>) attributes {dimension_semantics = [], scalar_prefetch = 0 : i64, scratch_operands = 2 : i64, tpu.core_type = #tpu.core_type<tc>} {
    %cst = arith.constant 0.000000e+00 : f32
    %0 = vector.broadcast %cst : f32 to vector<2x10x10x3xf32>
    %c0 = arith.constant 0 : index
    %c0_0 = arith.constant 0 : index
    %c0_1 = arith.constant 0 : index
    %c0_2 = arith.constant 0 : index
    %1 = vector.load %arg10[%c0, %c0_0, %c0_1, %c0_2] : memref<2x10x10x3xf32, #tpu.memory_space<vmem>>, vector<2x10x10x3xf32>
    tpu.vector_store %arg10[%c0, %c0_0, %c0_1, %c0_2], %0 {strides = array<i32>} : memref<2x10x10x3xf32, #tpu.memory_space<vmem>>, vector<2x10x10x3xf32>,
    %c0_3 = arith.constant 0 : index
    %c0_4 = arith.constant 0 : index
    %c0_5 = arith.constant 0 : index
    %c0_6 = arith.constant 0 : index
    %2 = vector.load %arg0[%c0_3, %c0_4, %c0_5, %c0_6] : memref<2x8x8x3xf32, #tpu.memory_space<vmem>>, vector<2x8x8x3xf32>
    %c0_7 = arith.constant 0 : index
    %c1 = arith.constant 1 : index
    %c1_8 = arith.constant 1 : index
    %c0_9 = arith.constant 0 : index
    %3 = vector.load %arg10[%c0_7, %c1, %c1_8, %c0_9] : memref<2x10x10x3xf32, #tpu.memory_space<vmem>>, vector<2x8x8x3xf32>
    tpu.vector_store %arg10[%c0_7, %c1, %c1_8, %c0_9], %2 {strides = array<i32>} : memref<2x10x10x3xf32, #tpu.memory_space<vmem>>, vector<2x8x8x3xf32>,
    %c0_10 = arith.constant 0 : index
    %c0_11 = arith.constant 0 : index
    %c0_12 = arith.constant 0 : index
    %c0_13 = arith.constant 0 : index
    %4 = vector.load %arg10[%c0_10, %c0_11, %c0_12, %c0_13] : memref<2x10x10x3xf32, #tpu.memory_space<vmem>>, vector<2x10x10x3xf32>
    %5 = vector.extract_strided_slice %4 {offsets = [0, 0, 0, 0], sizes = [2, 8, 8, 3], strides = [1, 1, 1, 1]} : vector<2x10x10x3xf32> to vector<2x8x8x3xf32>
    %6 = vector.shape_cast %5 : vector<2x8x8x3xf32> to vector<128x3xf32>
    %7 = vector.extract_strided_slice %4 {offsets = [0, 0, 1, 0], sizes = [2, 8, 8, 3], strides = [1, 1, 1, 1]} : vector<2x10x10x3xf32> to vector<2x8x8x3xf32>
    %8 = vector.shape_cast %7 : vector<2x8x8x3xf32> to vector<128x3xf32>
    %9 = vector.extract_strided_slice %4 {offsets = [0, 0, 2, 0], sizes = [2, 8, 8, 3], strides = [1, 1, 1, 1]} : vector<2x10x10x3xf32> to vector<2x8x8x3xf32>
    %10 = vector.shape_cast %9 : vector<2x8x8x3xf32> to vector<128x3xf32>
    %11 = vector.extract_strided_slice %4 {offsets = [0, 1, 0, 0], sizes = [2, 8, 8, 3], strides = [1, 1, 1, 1]} : vector<2x10x10x3xf32> to vector<2x8x8x3xf32>
    %12 = vector.shape_cast %11 : vector<2x8x8x3xf32> to vector<128x3xf32>
    %13 = vector.extract_strided_slice %4 {offsets = [0, 1, 1, 0], sizes = [2, 8, 8, 3], strides = [1, 1, 1, 1]} : vector<2x10x10x3xf32> to vector<2x8x8x3xf32>
    %14 = vector.shape_cast %13 : vector<2x8x8x3xf32> to vector<128x3xf32>
    %15 = vector.extract_strided_slice %4 {offsets = [0, 1, 2, 0], sizes = [2, 8, 8, 3], strides = [1, 1, 1, 1]} : vector<2x10x10x3xf32> to vector<2x8x8x3xf32>
    %16 = vector.shape_cast %15 : vector<2x8x8x3xf32> to vector<128x3xf32>
    %17 = vector.extract_strided_slice %4 {offsets = [0, 2, 0, 0], sizes = [2, 8, 8, 3], strides = [1, 1, 1, 1]} : vector<2x10x10x3xf32> to vector<2x8x8x3xf32>
    %18 = vector.shape_cast %17 : vector<2x8x8x3xf32> to vector<128x3xf32>
    %19 = vector.extract_strided_slice %4 {offsets = [0, 2, 1, 0], sizes = [2, 8, 8, 3], strides = [1, 1, 1, 1]} : vector<2x10x10x3xf32> to vector<2x8x8x3xf32>
    %20 = vector.shape_cast %19 : vector<2x8x8x3xf32> to vector<128x3xf32>
    %21 = vector.extract_strided_slice %4 {offsets = [0, 2, 2, 0], sizes = [2, 8, 8, 3], strides = [1, 1, 1, 1]} : vector<2x10x10x3xf32> to vector<2x8x8x3xf32>
    %22 = vector.shape_cast %21 : vector<2x8x8x3xf32> to vector<128x3xf32>
    %23 = tpu.concatenate %6, %8, %10, %12, %14, %16, %18, %20, %22 in 1 : vector<128x3xf32>, vector<128x3xf32>, vector<128x3xf32>, vector<128x3xf32>, vector<128x3xf32>, vector<128x3xf32>, vector<128x3xf32>, vector<128x3xf32>, vector<128x3xf32> -> vector<128x27xf32>
    %c0_14 = arith.constant 0 : index
    %c0_15 = arith.constant 0 : index
    %24 = vector.load %arg1[%c0_14, %c0_15] : memref<27x4xf32, #tpu.memory_space<vmem>>, vector<27x4xf32>
    %cst_16 = arith.constant dense<0.000000e+00> : vector<128x4xf32>
    %25 = tpu.matmul %23, %24, %cst_16 {dimension_numbers = #tpu.dot_dimension_numbers<[1], [0], [0], [1], [0, 0, 1, 1], [], []>} : vector<128x27xf32>, vector<27x4xf32>, vector<128x4xf32> -> vector<128x4xf32>
    %c0_17 = arith.constant 0 : index
    %c0_18 = arith.constant 0 : index
    %26 = vector.load %arg2[%c0_17, %c0_18] : memref<1x4xf32, #tpu.memory_space<vmem>>, vector<1x4xf32>
    %27 = vector.broadcast %26 : vector<1x4xf32> to vector<128x4xf32>
    %28 = arith.addf %25, %27 : vector<128x4xf32>
    %cst_19 = arith.constant 0.000000e+00 : f32
    %29 = vector.broadcast %cst_19 : f32 to vector<128x4xf32>
    %30 = arith.cmpf oge, %28, %29 : vector<128x4xf32>
    %cst_20 = arith.constant 2.000000e-01 : f32
    %31 = vector.broadcast %cst_20 : f32 to vector<128x4xf32>
    %32 = arith.mulf %31, %28 : vector<128x4xf32>
    %33 = arith.select %30, %28, %32 : vector<128x4xi1>, vector<128x4xf32>
    %cst_21 = arith.constant 0.000000e+00 : f32
    %34 = vector.broadcast %cst_21 : f32 to vector<2x10x10x4xf32>
    %c0_22 = arith.constant 0 : index
    %c0_23 = arith.constant 0 : index
    %c0_24 = arith.constant 0 : index
    %c0_25 = arith.constant 0 : index
    %35 = vector.load %arg11[%c0_22, %c0_23, %c0_24, %c0_25] : memref<2x10x10x4xf32, #tpu.memory_space<vmem>>, vector<2x10x10x4xf32>
    tpu.vector_store %arg11[%c0_22, %c0_23, %c0_24, %c0_25], %34 {strides = array<i32>} : memref<2x10x10x4xf32, #tpu.memory_space<vmem>>, vector<2x10x10x4xf32>,
    %36 = vector.shape_cast %33 : vector<128x4xf32> to vector<2x8x8x4xf32>
    %c0_26 = arith.constant 0 : index
    %c1_27 = arith.constant 1 : index
    %c1_28 = arith.constant 1 : index
    %c0_29 = arith.constant 0 : index
    %37 = vector.load %arg11[%c0_26, %c1_27, %c1_28, %c0_29] : memref<2x10x10x4xf32, #tpu.memory_space<vmem>>, vector<2x8x8x4xf32>
    tpu.vector_store %arg11[%c0_26, %c1_27, %c1_28, %c0_29], %36 {strides = array<i32>} : memref<2x10x10x4xf32, #tpu.memory_space<vmem>>, vector<2x8x8x4xf32>,
    %c0_30 = arith.constant 0 : index
    %c0_31 = arith.constant 0 : index
    %c0_32 = arith.constant 0 : index
    %c0_33 = arith.constant 0 : index
    %38 = vector.load %arg11[%c0_30, %c0_31, %c0_32, %c0_33] : memref<2x10x10x4xf32, #tpu.memory_space<vmem>>, vector<2x10x10x4xf32>
    %39 = vector.extract_strided_slice %38 {offsets = [0, 0, 0, 0], sizes = [2, 8, 8, 4], strides = [1, 1, 1, 1]} : vector<2x10x10x4xf32> to vector<2x8x8x4xf32>
    %40 = vector.shape_cast %39 : vector<2x8x8x4xf32> to vector<128x4xf32>
    %41 = vector.extract_strided_slice %38 {offsets = [0, 0, 1, 0], sizes = [2, 8, 8, 4], strides = [1, 1, 1, 1]} : vector<2x10x10x4xf32> to vector<2x8x8x4xf32>
    %42 = vector.shape_cast %41 : vector<2x8x8x4xf32> to vector<128x4xf32>
    %43 = vector.extract_strided_slice %38 {offsets = [0, 0, 2, 0], sizes = [2, 8, 8, 4], strides = [1, 1, 1, 1]} : vector<2x10x10x4xf32> to vector<2x8x8x4xf32>
    %44 = vector.shape_cast %43 : vector<2x8x8x4xf32> to vector<128x4xf32>
    %45 = vector.extract_strided_slice %38 {offsets = [0, 1, 0, 0], sizes = [2, 8, 8, 4], strides = [1, 1, 1, 1]} : vector<2x10x10x4xf32> to vector<2x8x8x4xf32>
    %46 = vector.shape_cast %45 : vector<2x8x8x4xf32> to vector<128x4xf32>
    %47 = vector.extract_strided_slice %38 {offsets = [0, 1, 1, 0], sizes = [2, 8, 8, 4], strides = [1, 1, 1, 1]} : vector<2x10x10x4xf32> to vector<2x8x8x4xf32>
    %48 = vector.shape_cast %47 : vector<2x8x8x4xf32> to vector<128x4xf32>
    %49 = vector.extract_strided_slice %38 {offsets = [0, 1, 2, 0], sizes = [2, 8, 8, 4], strides = [1, 1, 1, 1]} : vector<2x10x10x4xf32> to vector<2x8x8x4xf32>
    %50 = vector.shape_cast %49 : vector<2x8x8x4xf32> to vector<128x4xf32>
    %51 = vector.extract_strided_slice %38 {offsets = [0, 2, 0, 0], sizes = [2, 8, 8, 4], strides = [1, 1, 1, 1]} : vector<2x10x10x4xf32> to vector<2x8x8x4xf32>
    %52 = vector.shape_cast %51 : vector<2x8x8x4xf32> to vector<128x4xf32>
    %53 = vector.extract_strided_slice %38 {offsets = [0, 2, 1, 0], sizes = [2, 8, 8, 4], strides = [1, 1, 1, 1]} : vector<2x10x10x4xf32> to vector<2x8x8x4xf32>
    %54 = vector.shape_cast %53 : vector<2x8x8x4xf32> to vector<128x4xf32>
    %55 = vector.extract_strided_slice %38 {offsets = [0, 2, 2, 0], sizes = [2, 8, 8, 4], strides = [1, 1, 1, 1]} : vector<2x10x10x4xf32> to vector<2x8x8x4xf32>
    %56 = vector.shape_cast %55 : vector<2x8x8x4xf32> to vector<128x4xf32>
    %57 = tpu.concatenate %40, %42, %44, %46, %48, %50, %52, %54, %56 in 1 : vector<128x4xf32>, vector<128x4xf32>, vector<128x4xf32>, vector<128x4xf32>, vector<128x4xf32>, vector<128x4xf32>, vector<128x4xf32>, vector<128x4xf32>, vector<128x4xf32> -> vector<128x36xf32>
    %c0_34 = arith.constant 0 : index
    %c0_35 = arith.constant 0 : index
    %58 = vector.load %arg3[%c0_34, %c0_35] : memref<36x4xf32, #tpu.memory_space<vmem>>, vector<36x4xf32>
    %cst_36 = arith.constant dense<0.000000e+00> : vector<128x4xf32>
    %59 = tpu.matmul %57, %58, %cst_36 {dimension_numbers = #tpu.dot_dimension_numbers<[1], [0], [0], [1], [0, 0, 1, 1], [], []>} : vector<128x36xf32>, vector<36x4xf32>, vector<128x4xf32> -> vector<128x4xf32>
    %c0_37 = arith.constant 0 : index
    %c0_38 = arith.constant 0 : index
    %60 = vector.load %arg4[%c0_37, %c0_38] : memref<1x4xf32, #tpu.memory_space<vmem>>, vector<1x4xf32>
    %61 = vector.broadcast %60 : vector<1x4xf32> to vector<128x4xf32>
    %62 = arith.addf %59, %61 : vector<128x4xf32>
    %cst_39 = arith.constant dense<0.000000e+00> : vector<4xf32>
    %63 = vector.multi_reduction <add>, %62, %cst_39 [0] : vector<128x4xf32> to vector<4xf32>
    %64 = vector.shape_cast %63 : vector<4xf32> to vector<1x4xf32>
    %cst_40 = arith.constant 7.812500e-03 : f32
    %65 = vector.broadcast %cst_40 : f32 to vector<1x4xf32>
    %66 = arith.mulf %64, %65 : vector<1x4xf32>
    %67 = vector.broadcast %66 : vector<1x4xf32> to vector<128x4xf32>
    %68 = arith.subf %62, %67 : vector<128x4xf32>
    %69 = arith.mulf %68, %68 : vector<128x4xf32>
    %cst_41 = arith.constant dense<0.000000e+00> : vector<4xf32>
    %70 = vector.multi_reduction <add>, %69, %cst_41 [0] : vector<128x4xf32> to vector<4xf32>
    %71 = vector.shape_cast %70 : vector<4xf32> to vector<1x4xf32>
    %cst_42 = arith.constant 7.812500e-03 : f32
    %72 = vector.broadcast %cst_42 : f32 to vector<1x4xf32>
    %73 = arith.mulf %71, %72 : vector<1x4xf32>
    %cst_43 = arith.constant 9.99999974E-6 : f32
    %74 = vector.broadcast %cst_43 : f32 to vector<1x4xf32>
    %75 = arith.addf %73, %74 : vector<1x4xf32>
    %76 = math.rsqrt %75 : vector<1x4xf32>
    %77 = vector.broadcast %76 : vector<1x4xf32> to vector<128x4xf32>
    %78 = arith.mulf %68, %77 : vector<128x4xf32>
    %c0_44 = arith.constant 0 : index
    %c0_45 = arith.constant 0 : index
    %79 = vector.load %arg5[%c0_44, %c0_45] : memref<1x4xf32, #tpu.memory_space<vmem>>, vector<1x4xf32>
    %80 = vector.broadcast %79 : vector<1x4xf32> to vector<128x4xf32>
    %81 = arith.mulf %78, %80 : vector<128x4xf32>
    %c0_46 = arith.constant 0 : index
    %c0_47 = arith.constant 0 : index
    %82 = vector.load %arg6[%c0_46, %c0_47] : memref<1x4xf32, #tpu.memory_space<vmem>>, vector<1x4xf32>
    %83 = vector.broadcast %82 : vector<1x4xf32> to vector<128x4xf32>
    %84 = arith.addf %81, %83 : vector<128x4xf32>
    %cst_48 = arith.constant 0.000000e+00 : f32
    %85 = vector.broadcast %cst_48 : f32 to vector<128x4xf32>
    %86 = arith.cmpf oge, %84, %85 : vector<128x4xf32>
    %cst_49 = arith.constant 2.000000e-01 : f32
    %87 = vector.broadcast %cst_49 : f32 to vector<128x4xf32>
    %88 = arith.mulf %87, %84 : vector<128x4xf32>
    %89 = arith.select %86, %84, %88 : vector<128x4xi1>, vector<128x4xf32>
    %c0_50 = arith.constant 0 : index
    %c0_51 = arith.constant 0 : index
    %90 = vector.load %arg7[%c0_50, %c0_51] : memref<4x2xf32, #tpu.memory_space<vmem>>, vector<4x2xf32>
    %cst_52 = arith.constant dense<0.000000e+00> : vector<128x2xf32>
    %91 = tpu.matmul %89, %90, %cst_52 {dimension_numbers = #tpu.dot_dimension_numbers<[1], [0], [0], [1], [0, 0, 1, 1], [], []>} : vector<128x4xf32>, vector<4x2xf32>, vector<128x2xf32> -> vector<128x2xf32>
    %c0_53 = arith.constant 0 : index
    %c0_54 = arith.constant 0 : index
    %92 = vector.load %arg8[%c0_53, %c0_54] : memref<1x2xf32, #tpu.memory_space<vmem>>, vector<1x2xf32>
    %93 = vector.broadcast %92 : vector<1x2xf32> to vector<128x2xf32>
    %94 = arith.addf %91, %93 : vector<128x2xf32>
    %95 = vector.shape_cast %94 : vector<128x2xf32> to vector<2x8x8x2xf32>
    %c0_55 = arith.constant 0 : index
    %c0_56 = arith.constant 0 : index
    %c0_57 = arith.constant 0 : index
    %c0_58 = arith.constant 0 : index
    %96 = vector.load %arg9[%c0_55, %c0_56, %c0_57, %c0_58] : memref<2x8x8x2xf32, #tpu.memory_space<vmem>>, vector<2x8x8x2xf32>
    tpu.vector_store %arg9[%c0_55, %c0_56, %c0_57, %c0_58], %95 {strides = array<i32>} : memref<2x8x8x2xf32, #tpu.memory_space<vmem>>, vector<2x8x8x2xf32>,
    return
  }
}

</mosaic_0001>

<llo_original>
// kernel: conditional_flow_forward.2
$region0: #{conditional_flow_forward.2}
  #allocation0 [shape = 'u32[]', space=smem, size = 0x4, offset = 0x4, fixed_abs, tag = 'smem constant byte address 0x4 - core index']
  #allocation1 [shape = 'u32[72,128]{1,0:T(1,128)}', space=vmem, size = 0x9000, scoped, tag = 'internal scratch']
  #allocation2 [shape = 'f32[2,10,10,3]{3,2,1,0:T(8,128)}', space=vmem, size = 0x28000, scoped, tag = 'scratch operand']
  #allocation3 [shape = 'f32[2,10,10,4]{3,2,1,0:T(8,128)}', space=vmem, size = 0x28000, scoped, tag = 'scratch operand']
  %s0 = inlined_call_operand.vmem [shape: f32[2,8,8,3], index: 0, kind: input, shape index: {}]
  %s1 = inlined_call_operand.vmem [shape: f32[27,4], index: 1, kind: input, shape index: {}]
  %s2 = inlined_call_operand.hbm [shape: f32[1,4], index: 2, kind: input, shape index: {}]
  %s3 = inlined_call_operand.vmem [shape: f32[36,4], index: 3, kind: input, shape index: {}]
  %s4 = inlined_call_operand.hbm [shape: f32[1,4], index: 4, kind: input, shape index: {}]
  %s5 = inlined_call_operand.hbm [shape: f32[1,4], index: 5, kind: input, shape index: {}]
  %s6 = inlined_call_operand.hbm [shape: f32[1,4], index: 6, kind: input, shape index: {}]
  %s7 = inlined_call_operand.vmem [shape: f32[4,2], index: 7, kind: input, shape index: {}]
  %s8 = inlined_call_operand.hbm [shape: f32[1,2], index: 8, kind: input, shape index: {}]
  %s9 = inlined_call_operand.vmem [shape: f32[2,8,8,2], index: 9, kind: output, shape index: {}]
  %s10 = sld [smem:[#allocation0]]
  $region66: #{conditional_flow_forward.2} parent=0
    _
  %s12 = ssub.s32 1, %s10
  %s13 = scalar_select 0, %s12, %s10
  $region1: #{conditional_flow_forward.2} parent=0
    #allocation4 [shape = 'u8[512]{0}', space=vmem, size = 0x400, scoped, tag = 'input window, operand 2, single buffered']
    #allocation5 [shape = 's32[1]{0}', space=sflag, size = 0x4, scoped, tag = 'scoped memory for conditional_flow_forward.2']
    #allocation6 [shape = 'u8[512]{0}', space=vmem, size = 0x400, scoped, tag = 'input window, operand 4, single buffered']
    #allocation7 [shape = 's32[1]{0}', space=sflag, size = 0x4, scoped, tag = 'scoped memory for conditional_flow_forward.2']
    #allocation8 [shape = 'u8[512]{0}', space=vmem, size = 0x400, scoped, tag = 'input window, operand 5, single buffered']
    #allocation9 [shape = 'u8[512]{0}', space=vmem, size = 0x400, scoped, tag = 'input window, operand 6, single buffered']
    #allocation10 [shape = 's32[1]{0}', space=sflag, size = 0x4, scoped, tag = 'scoped memory for conditional_flow_forward.2']
    #allocation11 [shape = 'u8[512]{0}', space=vmem, size = 0x400, scoped, tag = 'input window, operand 8, single buffered']
    %14 = vsyncpa [#allocation5], 0
    %15 = vsyncpa [#allocation7], 0
    %16 = vsyncpa [#allocation10], 0
    // Predicated region
    $region2: #{conditional_flow_forward.2} parent=1 // pred_check
      _
    $region3: #{conditional_flow_forward.2} parent=1 // pred_check_branch
      %18 = sbr.rel (0) target = $region5
    $region4: #{conditional_flow_forward.2} parent=1 // pred_region
      _
    $region5: #{conditional_flow_forward.2} parent=1 // pred_fallthru
      _
    // Predicated region
    $region6: #{conditional_flow_forward.2} parent=1 // pred_check
      _
    $region7: #{conditional_flow_forward.2} parent=1 // pred_check_branch
      %20 = sbr.rel (0) target = $region9
    $region8: #{conditional_flow_forward.2} parent=1 // pred_region
      _
    $region9: #{conditional_flow_forward.2} parent=1 // pred_fallthru
      _
    // Predicated region
    $region10: #{conditional_flow_forward.2} parent=1 // pred_check
      _
    $region11: #{conditional_flow_forward.2} parent=1 // pred_check_branch
      %22 = sbr.rel (0) target = $region13
    $region12: #{conditional_flow_forward.2} parent=1 // pred_region
      %24 = vsyncadd [#allocation5], 0
      %s26 = sshll.u32 %s2, 4
      %s27 = int_to_ptr.hbm [resolvable:$true] %s26
      %s28 = sshll.u32 [#allocation4], 4
      %s29 = int_to_ptr.vmem [resolvable:$true] %s28
      %31 = dma.hbm_to_vmem [thread:$0]  %s27, 16, %s29, [#allocation5]
    $region13: #{conditional_flow_forward.2} parent=1 // pred_fallthru
      _
    // Predicated region
    $region14: #{conditional_flow_forward.2} parent=1 // pred_check
      _
    $region15: #{conditional_flow_forward.2} parent=1 // pred_check_branch
      %33 = sbr.rel (0) target = $region17
    $region16: #{conditional_flow_forward.2} parent=1 // pred_region
      _
    $region17: #{conditional_flow_forward.2} parent=1 // pred_fallthru
      _
    // Predicated region
    $region18: #{conditional_flow_forward.2} parent=1 // pred_check
      _
    $region19: #{conditional_flow_forward.2} parent=1 // pred_check_branch
      %35 = sbr.rel (0) target = $region21
    $region20: #{conditional_flow_forward.2} parent=1 // pred_region
      %37 = vsyncadd [#allocation7], 0
      %s39 = sshll.u32 %s4, 4
      %s40 = int_to_ptr.hbm [resolvable:$true] %s39
      %s41 = sshll.u32 [#allocation6], 4
      %s42 = int_to_ptr.vmem [resolvable:$true] %s41
      %44 = dma.hbm_to_vmem [thread:$0]  %s40, 16, %s42, [#allocation7]
    $region21: #{conditional_flow_forward.2} parent=1 // pred_fallthru
      _
    // Predicated region
    $region22: #{conditional_flow_forward.2} parent=1 // pred_check
      _
    $region23: #{conditional_flow_forward.2} parent=1 // pred_check_branch
      %46 = sbr.rel (0) target = $region25
    $region24: #{conditional_flow_forward.2} parent=1 // pred_region
      %48 = vsyncadd [#allocation7], 0
      %s50 = sshll.u32 %s5, 4
      %s51 = int_to_ptr.hbm [resolvable:$true] %s50
      %s52 = sshll.u32 [#allocation8], 4
      %s53 = int_to_ptr.vmem [resolvable:$true] %s52
      %55 = dma.hbm_to_vmem [thread:$0]  %s51, 16, %s53, [#allocation7]
    $region25: #{conditional_flow_forward.2} parent=1 // pred_fallthru
      _
    // Predicated region
    $region26: #{conditional_flow_forward.2} parent=1 // pred_check
      _
    $region27: #{conditional_flow_forward.2} parent=1 // pred_check_branch
      %57 = sbr.rel (0) target = $region29
    $region28: #{conditional_flow_forward.2} parent=1 // pred_region
      %59 = vsyncadd [#allocation10], 0
      %s61 = sshll.u32 %s6, 4
      %s62 = int_to_ptr.hbm [resolvable:$true] %s61
      %s63 = sshll.u32 [#allocation9], 4
      %s64 = int_to_ptr.vmem [resolvable:$true] %s63
      %66 = dma.hbm_to_vmem [thread:$0]  %s62, 16, %s64, [#allocation10]
    $region29: #{conditional_flow_forward.2} parent=1 // pred_fallthru
      _
    // Predicated region
    $region30: #{conditional_flow_forward.2} parent=1 // pred_check
      _
    $region31: #{conditional_flow_forward.2} parent=1 // pred_check_branch
      %68 = sbr.rel (0) target = $region33
    $region32: #{conditional_flow_forward.2} parent=1 // pred_region
      _
    $region33: #{conditional_flow_forward.2} parent=1 // pred_fallthru
      _
    // Predicated region
    $region34: #{conditional_flow_forward.2} parent=1 // pred_check
      _
    $region35: #{conditional_flow_forward.2} parent=1 // pred_check_branch
      %70 = sbr.rel (0) target = $region37
    $region36: #{conditional_flow_forward.2} parent=1 // pred_region
      %72 = vsyncadd [#allocation10], 0
      %s74 = sshll.u32 %s8, 4
      %s75 = int_to_ptr.hbm [resolvable:$true] %s74
      %s76 = sshll.u32 [#allocation11], 4
      %s77 = int_to_ptr.vmem [resolvable:$true] %s76
      %79 = dma.hbm_to_vmem [thread:$0]  %s75, 16, %s77, [#allocation10]
    $region37: #{conditional_flow_forward.2} parent=1 // pred_fallthru
      _
    // Predicated region
    $region38: #{conditional_flow_forward.2} parent=1 // pred_check
      _
    $region39: #{conditional_flow_forward.2} parent=1 // pred_check_branch
      %81 = sbr.rel (0) target = $region41
    $region40: #{conditional_flow_forward.2} parent=1 // pred_region
      %83 = dma.done [#allocation5], 16
    $region41: #{conditional_flow_forward.2} parent=1 // pred_fallthru
      _
    // Predicated region
    $region42: #{conditional_flow_forward.2} parent=1 // pred_check
      _
    $region43: #{conditional_flow_forward.2} parent=1 // pred_check_branch
      %85 = sbr.rel (0) target = $region45
    $region44: #{conditional_flow_forward.2} parent=1 // pred_region
      %87 = dma.done [#allocation7], 16
    $region45: #{conditional_flow_forward.2} parent=1 // pred_fallthru
      _
    // Predicated region
    $region46: #{conditional_flow_forward.2} parent=1 // pred_check
      _
    $region47: #{conditional_flow_forward.2} parent=1 // pred_check_branch
      %89 = sbr.rel (0) target = $region49
    $region48: #{conditional_flow_forward.2} parent=1 // pred_region
      %91 = dma.done [#allocation7], 16
    $region49: #{conditional_flow_forward.2} parent=1 // pred_fallthru
      _
    // Predicated region
    $region50: #{conditional_flow_forward.2} parent=1 // pred_check
      _
    $region51: #{conditional_flow_forward.2} parent=1 // pred_check_branch
      %93 = sbr.rel (0) target = $region53
    $region52: #{conditional_flow_forward.2} parent=1 // pred_region
      %95 = dma.done [#allocation10], 16
    $region53: #{conditional_flow_forward.2} parent=1 // pred_fallthru
      _
    // Predicated region
    $region54: #{conditional_flow_forward.2} parent=1 // pred_check
      _
    $region55: #{conditional_flow_forward.2} parent=1 // pred_check_branch
      %97 = sbr.rel (0) target = $region57
    $region56: #{conditional_flow_forward.2} parent=1 // pred_region
      %99 = dma.done [#allocation10], 16
    $region57: #{conditional_flow_forward.2} parent=1 // pred_fallthru
      _
    %vm100 = vcmask 23552
    %101 = vst.msk [vmem:[#allocation2] sm:$0xff] %vm100, 0.0
    %vm102 = vcmask 17408
    %103 = vst.msk [vmem:[#allocation2 + $0x8] sm:$0x3] %vm102, 0.0
    %104 = vst.msk [vmem:[#allocation2 + $0x10] sm:$0xff] %vm100, 0.0
    %105 = vst.msk [vmem:[#allocation2 + $0x18] sm:$0x3] %vm102, 0.0
    %106 = vst.msk [vmem:[#allocation2 + $0x20] sm:$0xff] %vm100, 0.0
    %107 = vst.msk [vmem:[#allocation2 + $0x28] sm:$0x3] %vm102, 0.0
    %108 = vst.msk [vmem:[#allocation2 + $0x30] sm:$0xff] %vm100, 0.0
    %109 = vst.msk [vmem:[#allocation2 + $0x38] sm:$0x3] %vm102, 0.0
    %110 = vst.msk [vmem:[#allocation2 + $0x40] sm:$0xff] %vm100, 0.0
    %111 = vst.msk [vmem:[#allocation2 + $0x48] sm:$0x3] %vm102, 0.0
    %112 = vst.msk [vmem:[#allocation2 + $0x50] sm:$0xff] %vm100, 0.0
    %113 = vst.msk [vmem:[#allocation2 + $0x58] sm:$0x3] %vm102, 0.0
    %114 = vst.msk [vmem:[#allocation2 + $0x60] sm:$0xff] %vm100, 0.0
    %115 = vst.msk [vmem:[#allocation2 + $0x68] sm:$0x3] %vm102, 0.0
    %116 = vst.msk [vmem:[#allocation2 + $0x70] sm:$0xff] %vm100, 0.0
    %117 = vst.msk [vmem:[#allocation2 + $0x78] sm:$0x3] %vm102, 0.0
    %118 = vst.msk [vmem:[#allocation2 + $0x80] sm:$0xff] %vm100, 0.0
    %119 = vst.msk [vmem:[#allocation2 + $0x88] sm:$0x3] %vm102, 0.0
    %120 = vst.msk [vmem:[#allocation2 + $0x90] sm:$0xff] %vm100, 0.0
    %121 = vst.msk [vmem:[#allocation2 + $0x98] sm:$0x3] %vm102, 0.0
    %122 = vst.msk [vmem:[#allocation2 + $0xa0] sm:$0xff] %vm100, 0.0
    %123 = vst.msk [vmem:[#allocation2 + $0xa8] sm:$0x3] %vm102, 0.0
    %124 = vst.msk [vmem:[#allocation2 + $0xb0] sm:$0xff] %vm100, 0.0
    %125 = vst.msk [vmem:[#allocation2 + $0xb8] sm:$0x3] %vm102, 0.0
    %126 = vst.msk [vmem:[#allocation2 + $0xc0] sm:$0xff] %vm100, 0.0
    %127 = vst.msk [vmem:[#allocation2 + $0xc8] sm:$0x3] %vm102, 0.0
    %128 = vst.msk [vmem:[#allocation2 + $0xd0] sm:$0xff] %vm100, 0.0
    %129 = vst.msk [vmem:[#allocation2 + $0xd8] sm:$0x3] %vm102, 0.0
    %130 = vst.msk [vmem:[#allocation2 + $0xe0] sm:$0xff] %vm100, 0.0
    %131 = vst.msk [vmem:[#allocation2 + $0xe8] sm:$0x3] %vm102, 0.0
    %132 = vst.msk [vmem:[#allocation2 + $0xf0] sm:$0xff] %vm100, 0.0
    %133 = vst.msk [vmem:[#allocation2 + $0xf8] sm:$0x3] %vm102, 0.0
    %134 = vst.msk [vmem:[#allocation2 + $0x100] sm:$0xff] %vm100, 0.0
    %135 = vst.msk [vmem:[#allocation2 + $0x108] sm:$0x3] %vm102, 0.0
    %136 = vst.msk [vmem:[#allocation2 + $0x110] sm:$0xff] %vm100, 0.0
    %137 = vst.msk [vmem:[#allocation2 + $0x118] sm:$0x3] %vm102, 0.0
    %138 = vst.msk [vmem:[#allocation2 + $0x120] sm:$0xff] %vm100, 0.0
    %139 = vst.msk [vmem:[#allocation2 + $0x128] sm:$0x3] %vm102, 0.0
    %140 = vst.msk [vmem:[#allocation2 + $0x130] sm:$0xff] %vm100, 0.0
    %141 = vst.msk [vmem:[#allocation2 + $0x138] sm:$0x3] %vm102, 0.0
    %v142 = vld [vmem:[%s0] sm:$0xff]
    %v143 = vld [vmem:[%s0 + $0x8] sm:$0xff]
    %v144 = vld [vmem:[%s0 + $0x10] sm:$0xff]
    %v145 = vld [vmem:[%s0 + $0x18] sm:$0xff]
    %v146 = vld [vmem:[%s0 + $0x20] sm:$0xff]
    %v147 = vld [vmem:[%s0 + $0x28] sm:$0xff]
    %v148 = vld [vmem:[%s0 + $0x30] sm:$0xff]
    %v149 = vld [vmem:[%s0 + $0x38] sm:$0xff]
    %v150 = vld [vmem:[%s0 + $0x40] sm:$0xff]
    %v151 = vld [vmem:[%s0 + $0x48] sm:$0xff]
    %v152 = vld [vmem:[%s0 + $0x50] sm:$0xff]
    %v153 = vld [vmem:[%s0 + $0x58] sm:$0xff]
    %v154 = vld [vmem:[%s0 + $0x60] sm:$0xff]
    %v155 = vld [vmem:[%s0 + $0x68] sm:$0xff]
    %v156 = vld [vmem:[%s0 + $0x70] sm:$0xff]
    %v157 = vld [vmem:[%s0 + $0x78] sm:$0xff]
    %s158 = scalar_lea.vmem [#allocation2], 16
    %159 = vst.msk [vmem:[%s158 + $0x1] sm:$0xff] %vm100, %v142
    %160 = vst.msk [vmem:[%s158 + $0x11] sm:$0xff] %vm100, %v143
    %161 = vst.msk [vmem:[%s158 + $0x21] sm:$0xff] %vm100, %v144
    %162 = vst.msk [vmem:[%s158 + $0x31] sm:$0xff] %vm100, %v145
    %163 = vst.msk [vmem:[%s158 + $0x41] sm:$0xff] %vm100, %v146
    %164 = vst.msk [vmem:[%s158 + $0x51] sm:$0xff] %vm100, %v147
    %165 = vst.msk [vmem:[%s158 + $0x61] sm:$0xff] %vm100, %v148
    %166 = vst.msk [vmem:[%s158 + $0x71] sm:$0xff] %vm100, %v149
    %167 = vst.msk [vmem:[%s158 + $0xa1] sm:$0xff] %vm100, %v150
    %168 = vst.msk [vmem:[%s158 + $0xb1] sm:$0xff] %vm100, %v151
    %169 = vst.msk [vmem:[%s158 + $0xc1] sm:$0xff] %vm100, %v152
    %170 = vst.msk [vmem:[%s158 + $0xd1] sm:$0xff] %vm100, %v153
    %171 = vst.msk [vmem:[%s158 + $0xe1] sm:$0xff] %vm100, %v154
    %172 = vst.msk [vmem:[%s158 + $0xf1] sm:$0xff] %vm100, %v155
    %173 = vst.msk [vmem:[%s158 + $0x101] sm:$0xff] %vm100, %v156
    %174 = vst.msk [vmem:[%s158 + $0x111] sm:$0xff] %vm100, %v157
    %v175 = vld [vmem:[#allocation2] sm:$0xff]
    %v176 = vld [vmem:[#allocation2 + $0x8] sm:$0x3]
    %v177 = vld [vmem:[#allocation2 + $0x10] sm:$0xff]
    %v178 = vld [vmem:[#allocation2 + $0x18] sm:$0x3]
    %v179 = vld [vmem:[#allocation2 + $0x20] sm:$0xff]
    %v180 = vld [vmem:[#allocation2 + $0x28] sm:$0x3]
    %v181 = vld [vmem:[#allocation2 + $0x30] sm:$0xff]
    %v182 = vld [vmem:[#allocation2 + $0x38] sm:$0x3]
    %v183 = vld [vmem:[#allocation2 + $0x40] sm:$0xff]
    %v184 = vld [vmem:[#allocation2 + $0x48] sm:$0x3]
    %v185 = vld [vmem:[#allocation2 + $0x50] sm:$0xff]
    %v186 = vld [vmem:[#allocation2 + $0x58] sm:$0x3]
    %v187 = vld [vmem:[#allocation2 + $0x60] sm:$0xff]
    %v188 = vld [vmem:[#allocation2 + $0x68] sm:$0x3]
    %v189 = vld [vmem:[#allocation2 + $0x70] sm:$0xff]
    %v190 = vld [vmem:[#allocation2 + $0x78] sm:$0x3]
    %v191 = vld [vmem:[#allocation2 + $0x80] sm:$0xff]
    %v192 = vld [vmem:[#allocation2 + $0x88] sm:$0x3]
    %v193 = vld [vmem:[#allocation2 + $0x90] sm:$0xff]
    %v194 = vld [vmem:[#allocation2 + $0x98] sm:$0x3]
    %v195 = vld [vmem:[#allocation2 + $0xa0] sm:$0xff]
    %v196 = vld [vmem:[#allocation2 + $0xa8] sm:$0x3]
    %v197 = vld [vmem:[#allocation2 + $0xb0] sm:$0xff]
    %v198 = vld [vmem:[#allocation2 + $0xb8] sm:$0x3]
    %v199 = vld [vmem:[#allocation2 + $0xc0] sm:$0xff]
    %v200 = vld [vmem:[#allocation2 + $0xc8] sm:$0x3]
    %v201 = vld [vmem:[#allocation2 + $0xd0] sm:$0xff]
    %v202 = vld [vmem:[#allocation2 + $0xd8] sm:$0x3]
    %v203 = vld [vmem:[#allocation2 + $0xe0] sm:$0xff]
    %v204 = vld [vmem:[#allocation2 + $0xe8] sm:$0x3]
    %v205 = vld [vmem:[#allocation2 + $0xf0] sm:$0xff]
    %v206 = vld [vmem:[#allocation2 + $0xf8] sm:$0x3]
    %v207 = vld [vmem:[#allocation2 + $0x100] sm:$0xff]
    %v208 = vld [vmem:[#allocation2 + $0x108] sm:$0x3]
    %v209 = vld [vmem:[#allocation2 + $0x110] sm:$0xff]
    %v210 = vld [vmem:[#allocation2 + $0x118] sm:$0x3]
    %v211 = vld [vmem:[#allocation2 + $0x120] sm:$0xff]
    %v212 = vld [vmem:[#allocation2 + $0x128] sm:$0x3]
    %v213 = vld [vmem:[#allocation2 + $0x130] sm:$0xff]
    %v214 = vld [vmem:[#allocation2 + $0x138] sm:$0x3]
    %vm247 = vcmask 1046528
    %v248 = vrot.slane %v175, 1
    %v249 = vrot.slane %v176, 1
    %v250 = vsel %vm247, %v248, %v249
    %v251 = vrot.slane %v177, 1
    %v252 = vrot.slane %v178, 1
    %v253 = vsel %vm247, %v251, %v252
    %v254 = vrot.slane %v179, 1
    %v255 = vrot.slane %v180, 1
    %v256 = vsel %vm247, %v254, %v255
    %v257 = vrot.slane %v181, 1
    %v258 = vrot.slane %v182, 1
    %v259 = vsel %vm247, %v257, %v258
    %v260 = vrot.slane %v183, 1
    %v261 = vrot.slane %v184, 1
    %v262 = vsel %vm247, %v260, %v261
    %v263 = vrot.slane %v185, 1
    %v264 = vrot.slane %v186, 1
    %v265 = vsel %vm247, %v263, %v264
    %v266 = vrot.slane %v187, 1
    %v267 = vrot.slane %v188, 1
    %v268 = vsel %vm247, %v266, %v267
    %v269 = vrot.slane %v189, 1
    %v270 = vrot.slane %v190, 1
    %v271 = vsel %vm247, %v269, %v270
    %v272 = vrot.slane %v195, 1
    %v273 = vrot.slane %v196, 1
    %v274 = vsel %vm247, %v272, %v273
    %v275 = vrot.slane %v197, 1
    %v276 = vrot.slane %v198, 1
    %v277 = vsel %vm247, %v275, %v276
    %v278 = vrot.slane %v199, 1
    %v279 = vrot.slane %v200, 1
    %v280 = vsel %vm247, %v278, %v279
    %v281 = vrot.slane %v201, 1
    %v282 = vrot.slane %v202, 1
    %v283 = vsel %vm247, %v281, %v282
    %v284 = vrot.slane %v203, 1
    %v285 = vrot.slane %v204, 1
    %v286 = vsel %vm247, %v284, %v285
    %v287 = vrot.slane %v205, 1
    %v288 = vrot.slane %v206, 1
    %v289 = vsel %vm247, %v287, %v288
    %v290 = vrot.slane %v207, 1
    %v291 = vrot.slane %v208, 1
    %v292 = vsel %vm247, %v290, %v291
    %v293 = vrot.slane %v209, 1
    %v294 = vrot.slane %v210, 1
    %v295 = vsel %vm247, %v293, %v294
    %vm296 = vcmask 1045504
    %v297 = vrot.slane %v175, 2
    %v298 = vrot.slane %v176, 2
    %v299 = vsel %vm296, %v297, %v298
    %v300 = vrot.slane %v177, 2
    %v301 = vrot.slane %v178, 2
    %v302 = vsel %vm296, %v300, %v301
    %v303 = vrot.slane %v179, 2
    %v304 = vrot.slane %v180, 2
    %v305 = vsel %vm296, %v303, %v304
    %v306 = vrot.slane %v181, 2
    %v307 = vrot.slane %v182, 2
    %v308 = vsel %vm296, %v306, %v307
    %v309 = vrot.slane %v183, 2
    %v310 = vrot.slane %v184, 2
    %v311 = vsel %vm296, %v309, %v310
    %v312 = vrot.slane %v185, 2
    %v313 = vrot.slane %v186, 2
    %v314 = vsel %vm296, %v312, %v313
    %v315 = vrot.slane %v187, 2
    %v316 = vrot.slane %v188, 2
    %v317 = vsel %vm296, %v315, %v316
    %v318 = vrot.slane %v189, 2
    %v319 = vrot.slane %v190, 2
    %v320 = vsel %vm296, %v318, %v319
    %v321 = vrot.slane %v195, 2
    %v322 = vrot.slane %v196, 2
    %v323 = vsel %vm296, %v321, %v322
    %v324 = vrot.slane %v197, 2
    %v325 = vrot.slane %v198, 2
    %v326 = vsel %vm296, %v324, %v325
    %v327 = vrot.slane %v199, 2
    %v328 = vrot.slane %v200, 2
    %v329 = vsel %vm296, %v327, %v328
    %v330 = vrot.slane %v201, 2
    %v331 = vrot.slane %v202, 2
    %v332 = vsel %vm296, %v330, %v331
    %v333 = vrot.slane %v203, 2
    %v334 = vrot.slane %v204, 2
    %v335 = vsel %vm296, %v333, %v334
    %v336 = vrot.slane %v205, 2
    %v337 = vrot.slane %v206, 2
    %v338 = vsel %vm296, %v336, %v337
    %v339 = vrot.slane %v207, 2
    %v340 = vrot.slane %v208, 2
    %v341 = vsel %vm296, %v339, %v340
    %v342 = vrot.slane %v209, 2
    %v343 = vrot.slane %v210, 2
    %v344 = vsel %vm296, %v342, %v343
    %v349 = vrot.slane %v191, 1
    %v350 = vrot.slane %v192, 1
    %v351 = vsel %vm247, %v349, %v350
    %v352 = vrot.slane %v211, 1
    %v353 = vrot.slane %v212, 1
    %v354 = vsel %vm247, %v352, %v353
    %v355 = vrot.slane %v191, 2
    %v356 = vrot.slane %v192, 2
    %v357 = vsel %vm296, %v355, %v356
    %v358 = vrot.slane %v211, 2
    %v359 = vrot.slane %v212, 2
    %v360 = vsel %vm296, %v358, %v359
    %v365 = vrot.slane %v193, 1
    %v366 = vrot.slane %v194, 1
    %v367 = vsel %vm247, %v365, %v366
    %v368 = vrot.slane %v213, 1
    %v369 = vrot.slane %v214, 1
    %v370 = vsel %vm247, %v368, %v369
    %v371 = vrot.slane %v193, 2
    %v372 = vrot.slane %v194, 2
    %v373 = vsel %vm296, %v371, %v372
    %v374 = vrot.slane %v213, 2
    %v375 = vrot.slane %v214, 2
    %v376 = vsel %vm296, %v374, %v375
    %377 = vrot.lane.b32.xlu0 %v250, 3
    %v378 = vpop.permute.xlu0 %377
    %379 = vrot.lane.b32.xlu0 %v253, 3
    %v380 = vpop.permute.xlu0 %379
    %381 = vrot.lane.b32.xlu0 %v256, 3
    %v382 = vpop.permute.xlu0 %381
    %383 = vrot.lane.b32.xlu0 %v259, 3
    %v384 = vpop.permute.xlu0 %383
    %385 = vrot.lane.b32.xlu0 %v262, 3
    %v386 = vpop.permute.xlu0 %385
    %387 = vrot.lane.b32.xlu0 %v265, 3
    %v388 = vpop.permute.xlu0 %387
    %389 = vrot.lane.b32.xlu0 %v268, 3
    %v390 = vpop.permute.xlu0 %389
    %391 = vrot.lane.b32.xlu0 %v271, 3
    %v392 = vpop.permute.xlu0 %391
    %393 = vrot.lane.b32.xlu0 %v274, 3
    %v394 = vpop.permute.xlu0 %393
    %395 = vrot.lane.b32.xlu0 %v277, 3
    %v396 = vpop.permute.xlu0 %395
    %397 = vrot.lane.b32.xlu0 %v280, 3
    %v398 = vpop.permute.xlu0 %397
    %399 = vrot.lane.b32.xlu0 %v283, 3
    %v400 = vpop.permute.xlu0 %399
    %401 = vrot.lane.b32.xlu0 %v286, 3
    %v402 = vpop.permute.xlu0 %401
    %403 = vrot.lane.b32.xlu0 %v289, 3
    %v404 = vpop.permute.xlu0 %403
    %405 = vrot.lane.b32.xlu0 %v292, 3
    %v406 = vpop.permute.xlu0 %405
    %407 = vrot.lane.b32.xlu0 %v295, 3
    %v408 = vpop.permute.xlu0 %407
    %425 = vrot.lane.b32.xlu0 %v299, 6
    %v426 = vpop.permute.xlu0 %425
    %427 = vrot.lane.b32.xlu0 %v302, 6
    %v428 = vpop.permute.xlu0 %427
    %429 = vrot.lane.b32.xlu0 %v305, 6
    %v430 = vpop.permute.xlu0 %429
    %431 = vrot.lane.b32.xlu0 %v308, 6
    %v432 = vpop.permute.xlu0 %431
    %433 = vrot.lane.b32.xlu0 %v311, 6
    %v434 = vpop.permute.xlu0 %433
    %435 = vrot.lane.b32.xlu0 %v314, 6
    %v436 = vpop.permute.xlu0 %435
    %437 = vrot.lane.b32.xlu0 %v317, 6
    %v438 = vpop.permute.xlu0 %437
    %439 = vrot.lane.b32.xlu0 %v320, 6
    %v440 = vpop.permute.xlu0 %439
    %441 = vrot.lane.b32.xlu0 %v323, 6
    %v442 = vpop.permute.xlu0 %441
    %443 = vrot.lane.b32.xlu0 %v326, 6
    %v444 = vpop.permute.xlu0 %443
    %445 = vrot.lane.b32.xlu0 %v329, 6
    %v446 = vpop.permute.xlu0 %445
    %447 = vrot.lane.b32.xlu0 %v332, 6
    %v448 = vpop.permute.xlu0 %447
    %449 = vrot.lane.b32.xlu0 %v335, 6
    %v450 = vpop.permute.xlu0 %449
    %451 = vrot.lane.b32.xlu0 %v338, 6
    %v452 = vpop.permute.xlu0 %451
    %453 = vrot.lane.b32.xlu0 %v341, 6
    %v454 = vpop.permute.xlu0 %453
    %455 = vrot.lane.b32.xlu0 %v344, 6
    %v456 = vpop.permute.xlu0 %455
    %473 = vrot.lane.b32.xlu0 %v177, 9
    %v474 = vpop.permute.xlu0 %473
    %475 = vrot.lane.b32.xlu0 %v179, 9
    %v476 = vpop.permute.xlu0 %475
    %477 = vrot.lane.b32.xlu0 %v181, 9
    %v478 = vpop.permute.xlu0 %477
    %479 = vrot.lane.b32.xlu0 %v183, 9
    %v480 = vpop.permute.xlu0 %479
    %481 = vrot.lane.b32.xlu0 %v185, 9
    %v482 = vpop.permute.xlu0 %481
    %483 = vrot.lane.b32.xlu0 %v187, 9
    %v484 = vpop.permute.xlu0 %483
    %485 = vrot.lane.b32.xlu0 %v189, 9
    %v486 = vpop.permute.xlu0 %485
    %487 = vrot.lane.b32.xlu0 %v191, 9
    %v488 = vpop.permute.xlu0 %487
    %489 = vrot.lane.b32.xlu0 %v197, 9
    %v490 = vpop.permute.xlu0 %489
    %491 = vrot.lane.b32.xlu0 %v199, 9
    %v492 = vpop.permute.xlu0 %491
    %493 = vrot.lane.b32.xlu0 %v201, 9
    %v494 = vpop.permute.xlu0 %493
    %495 = vrot.lane.b32.xlu0 %v203, 9
    %v496 = vpop.permute.xlu0 %495
    %497 = vrot.lane.b32.xlu0 %v205, 9
    %v498 = vpop.permute.xlu0 %497
    %499 = vrot.lane.b32.xlu0 %v207, 9
    %v500 = vpop.permute.xlu0 %499
    %501 = vrot.lane.b32.xlu0 %v209, 9
    %v502 = vpop.permute.xlu0 %501
    %503 = vrot.lane.b32.xlu0 %v211, 9
    %v504 = vpop.permute.xlu0 %503
    %521 = vrot.lane.b32.xlu0 %v253, 12
    %v522 = vpop.permute.xlu0 %521
    %523 = vrot.lane.b32.xlu0 %v256, 12
    %v524 = vpop.permute.xlu0 %523
    %525 = vrot.lane.b32.xlu0 %v259, 12
    %v526 = vpop.permute.xlu0 %525
    %527 = vrot.lane.b32.xlu0 %v262, 12
    %v528 = vpop.permute.xlu0 %527
    %529 = vrot.lane.b32.xlu0 %v265, 12
    %v530 = vpop.permute.xlu0 %529
    %531 = vrot.lane.b32.xlu0 %v268, 12
    %v532 = vpop.permute.xlu0 %531
    %533 = vrot.lane.b32.xlu0 %v271, 12
    %v534 = vpop.permute.xlu0 %533
    %535 = vrot.lane.b32.xlu0 %v351, 12
    %v536 = vpop.permute.xlu0 %535
    %537 = vrot.lane.b32.xlu0 %v277, 12
    %v538 = vpop.permute.xlu0 %537
    %539 = vrot.lane.b32.xlu0 %v280, 12
    %v540 = vpop.permute.xlu0 %539
    %541 = vrot.lane.b32.xlu0 %v283, 12
    %v542 = vpop.permute.xlu0 %541
    %543 = vrot.lane.b32.xlu0 %v286, 12
    %v544 = vpop.permute.xlu0 %543
    %545 = vrot.lane.b32.xlu0 %v289, 12
    %v546 = vpop.permute.xlu0 %545
    %547 = vrot.lane.b32.xlu0 %v292, 12
    %v548 = vpop.permute.xlu0 %547
    %549 = vrot.lane.b32.xlu0 %v295, 12
    %v550 = vpop.permute.xlu0 %549
    %551 = vrot.lane.b32.xlu0 %v354, 12
    %v552 = vpop.permute.xlu0 %551
    %569 = vrot.lane.b32.xlu0 %v302, 15
    %v570 = vpop.permute.xlu0 %569
    %571 = vrot.lane.b32.xlu0 %v305, 15
    %v572 = vpop.permute.xlu0 %571
    %573 = vrot.lane.b32.xlu0 %v308, 15
    %v574 = vpop.permute.xlu0 %573
    %575 = vrot.lane.b32.xlu0 %v311, 15
    %v576 = vpop.permute.xlu0 %575
    %577 = vrot.lane.b32.xlu0 %v314, 15
    %v578 = vpop.permute.xlu0 %577
    %579 = vrot.lane.b32.xlu0 %v317, 15
    %v580 = vpop.permute.xlu0 %579
    %581 = vrot.lane.b32.xlu0 %v320, 15
    %v582 = vpop.permute.xlu0 %581
    %583 = vrot.lane.b32.xlu0 %v357, 15
    %v584 = vpop.permute.xlu0 %583
    %585 = vrot.lane.b32.xlu0 %v326, 15
    %v586 = vpop.permute.xlu0 %585
    %587 = vrot.lane.b32.xlu0 %v329, 15
    %v588 = vpop.permute.xlu0 %587
    %589 = vrot.lane.b32.xlu0 %v332, 15
    %v590 = vpop.permute.xlu0 %589
    %591 = vrot.lane.b32.xlu0 %v335, 15
    %v592 = vpop.permute.xlu0 %591
    %593 = vrot.lane.b32.xlu0 %v338, 15
    %v594 = vpop.permute.xlu0 %593
    %595 = vrot.lane.b32.xlu0 %v341, 15
    %v596 = vpop.permute.xlu0 %595
    %597 = vrot.lane.b32.xlu0 %v344, 15
    %v598 = vpop.permute.xlu0 %597
    %599 = vrot.lane.b32.xlu0 %v360, 15
    %v600 = vpop.permute.xlu0 %599
    %617 = vrot.lane.b32.xlu0 %v179, 18
    %v618 = vpop.permute.xlu0 %617
    %619 = vrot.lane.b32.xlu0 %v181, 18
    %v620 = vpop.permute.xlu0 %619
    %621 = vrot.lane.b32.xlu0 %v183, 18
    %v622 = vpop.permute.xlu0 %621
    %623 = vrot.lane.b32.xlu0 %v185, 18
    %v624 = vpop.permute.xlu0 %623
    %625 = vrot.lane.b32.xlu0 %v187, 18
    %v626 = vpop.permute.xlu0 %625
    %627 = vrot.lane.b32.xlu0 %v189, 18
    %v628 = vpop.permute.xlu0 %627
    %629 = vrot.lane.b32.xlu0 %v191, 18
    %v630 = vpop.permute.xlu0 %629
    %631 = vrot.lane.b32.xlu0 %v193, 18
    %v632 = vpop.permute.xlu0 %631
    %633 = vrot.lane.b32.xlu0 %v199, 18
    %v634 = vpop.permute.xlu0 %633
    %635 = vrot.lane.b32.xlu0 %v201, 18
    %v636 = vpop.permute.xlu0 %635
    %637 = vrot.lane.b32.xlu0 %v203, 18
    %v638 = vpop.permute.xlu0 %637
    %639 = vrot.lane.b32.xlu0 %v205, 18
    %v640 = vpop.permute.xlu0 %639
    %641 = vrot.lane.b32.xlu0 %v207, 18
    %v642 = vpop.permute.xlu0 %641
    %643 = vrot.lane.b32.xlu0 %v209, 18
    %v644 = vpop.permute.xlu0 %643
    %645 = vrot.lane.b32.xlu0 %v211, 18
    %v646 = vpop.permute.xlu0 %645
    %647 = vrot.lane.b32.xlu0 %v213, 18
    %v648 = vpop.permute.xlu0 %647
    %665 = vrot.lane.b32.xlu0 %v256, 21
    %v666 = vpop.permute.xlu0 %665
    %667 = vrot.lane.b32.xlu0 %v259, 21
    %v668 = vpop.permute.xlu0 %667
    %669 = vrot.lane.b32.xlu0 %v262, 21
    %v670 = vpop.permute.xlu0 %669
    %671 = vrot.lane.b32.xlu0 %v265, 21
    %v672 = vpop.permute.xlu0 %671
    %673 = vrot.lane.b32.xlu0 %v268, 21
    %v674 = vpop.permute.xlu0 %673
    %675 = vrot.lane.b32.xlu0 %v271, 21
    %v676 = vpop.permute.xlu0 %675
    %677 = vrot.lane.b32.xlu0 %v351, 21
    %v678 = vpop.permute.xlu0 %677
    %679 = vrot.lane.b32.xlu0 %v367, 21
    %v680 = vpop.permute.xlu0 %679
    %681 = vrot.lane.b32.xlu0 %v280, 21
    %v682 = vpop.permute.xlu0 %681
    %683 = vrot.lane.b32.xlu0 %v283, 21
    %v684 = vpop.permute.xlu0 %683
    %685 = vrot.lane.b32.xlu0 %v286, 21
    %v686 = vpop.permute.xlu0 %685
    %687 = vrot.lane.b32.xlu0 %v289, 21
    %v688 = vpop.permute.xlu0 %687
    %689 = vrot.lane.b32.xlu0 %v292, 21
    %v690 = vpop.permute.xlu0 %689
    %691 = vrot.lane.b32.xlu0 %v295, 21
    %v692 = vpop.permute.xlu0 %691
    %693 = vrot.lane.b32.xlu0 %v354, 21
    %v694 = vpop.permute.xlu0 %693
    %695 = vrot.lane.b32.xlu0 %v370, 21
    %v696 = vpop.permute.xlu0 %695
    %713 = vrot.lane.b32.xlu0 %v305, 24
    %v714 = vpop.permute.xlu0 %713
    %715 = vrot.lane.b32.xlu0 %v308, 24
    %v716 = vpop.permute.xlu0 %715
    %717 = vrot.lane.b32.xlu0 %v311, 24
    %v718 = vpop.permute.xlu0 %717
    %719 = vrot.lane.b32.xlu0 %v314, 24
    %v720 = vpop.permute.xlu0 %719
    %721 = vrot.lane.b32.xlu0 %v317, 24
    %v722 = vpop.permute.xlu0 %721
    %723 = vrot.lane.b32.xlu0 %v320, 24
    %v724 = vpop.permute.xlu0 %723
    %725 = vrot.lane.b32.xlu0 %v357, 24
    %v726 = vpop.permute.xlu0 %725
    %727 = vrot.lane.b32.xlu0 %v373, 24
    %v728 = vpop.permute.xlu0 %727
    %729 = vrot.lane.b32.xlu0 %v329, 24
    %v730 = vpop.permute.xlu0 %729
    %731 = vrot.lane.b32.xlu0 %v332, 24
    %v732 = vpop.permute.xlu0 %731
    %733 = vrot.lane.b32.xlu0 %v335, 24
    %v734 = vpop.permute.xlu0 %733
    %735 = vrot.lane.b32.xlu0 %v338, 24
    %v736 = vpop.permute.xlu0 %735
    %737 = vrot.lane.b32.xlu0 %v341, 24
    %v738 = vpop.permute.xlu0 %737
    %739 = vrot.lane.b32.xlu0 %v344, 24
    %v740 = vpop.permute.xlu0 %739
    %741 = vrot.lane.b32.xlu0 %v360, 24
    %v742 = vpop.permute.xlu0 %741
    %743 = vrot.lane.b32.xlu0 %v376, 24
    %v744 = vpop.permute.xlu0 %743
    %v761 = vsel %vm100, %v175, %v378
    %v762 = vsel %vm100, %v177, %v380
    %v763 = vsel %vm100, %v179, %v382
    %v764 = vsel %vm100, %v181, %v384
    %v765 = vsel %vm100, %v183, %v386
    %v766 = vsel %vm100, %v185, %v388
    %v767 = vsel %vm100, %v187, %v390
    %v768 = vsel %vm100, %v189, %v392
    %v769 = vsel %vm100, %v195, %v394
    %v770 = vsel %vm100, %v197, %v396
    %v771 = vsel %vm100, %v199, %v398
    %v772 = vsel %vm100, %v201, %v400
    %v773 = vsel %vm100, %v203, %v402
    %v774 = vsel %vm100, %v205, %v404
    %v775 = vsel %vm100, %v207, %v406
    %v776 = vsel %vm100, %v209, %v408
    %vm777 = vcmask 48128
    %v778 = vsel %vm777, %v761, %v426
    %v779 = vsel %vm777, %v762, %v428
    %v780 = vsel %vm777, %v763, %v430
    %v781 = vsel %vm777, %v764, %v432
    %v782 = vsel %vm777, %v765, %v434
    %v783 = vsel %vm777, %v766, %v436
    %v784 = vsel %vm777, %v767, %v438
    %v785 = vsel %vm777, %v768, %v440
    %v786 = vsel %vm777, %v769, %v442
    %v787 = vsel %vm777, %v770, %v444
    %v788 = vsel %vm777, %v771, %v446
    %v789 = vsel %vm777, %v772, %v448
    %v790 = vsel %vm777, %v773, %v450
    %v791 = vsel %vm777, %v774, %v452
    %v792 = vsel %vm777, %v775, %v454
    %v793 = vsel %vm777, %v776, %v456
    %vm794 = vcmask 72704
    %v795 = vsel %vm794, %v778, %v474
    %v796 = vsel %vm794, %v779, %v476
    %v797 = vsel %vm794, %v780, %v478
    %v798 = vsel %vm794, %v781, %v480
    %v799 = vsel %vm794, %v782, %v482
    %v800 = vsel %vm794, %v783, %v484
    %v801 = vsel %vm794, %v784, %v486
    %v802 = vsel %vm794, %v785, %v488
    %v803 = vsel %vm794, %v786, %v490
    %v804 = vsel %vm794, %v787, %v492
    %v805 = vsel %vm794, %v788, %v494
    %v806 = vsel %vm794, %v789, %v496
    %v807 = vsel %vm794, %v790, %v498
    %v808 = vsel %vm794, %v791, %v500
    %v809 = vsel %vm794, %v792, %v502
    %v810 = vsel %vm794, %v793, %v504
    %vm811 = vcmask 97280
    %v812 = vsel %vm811, %v795, %v522
    %v813 = vsel %vm811, %v796, %v524
    %v814 = vsel %vm811, %v797, %v526
    %v815 = vsel %vm811, %v798, %v528
    %v816 = vsel %vm811, %v799, %v530
    %v817 = vsel %vm811, %v800, %v532
    %v818 = vsel %vm811, %v801, %v534
    %v819 = vsel %vm811, %v802, %v536
    %v820 = vsel %vm811, %v803, %v538
    %v821 = vsel %vm811, %v804, %v540
    %v822 = vsel %vm811, %v805, %v542
    %v823 = vsel %vm811, %v806, %v544
    %v824 = vsel %vm811, %v807, %v546
    %v825 = vsel %vm811, %v808, %v548
    %v826 = vsel %vm811, %v809, %v550
    %v827 = vsel %vm811, %v810, %v552
    %vm828 = vcmask 121856
    %v829 = vsel %vm828, %v812, %v570
    %v830 = vsel %vm828, %v813, %v572
    %v831 = vsel %vm828, %v814, %v574
    %v832 = vsel %vm828, %v815, %v576
    %v833 = vsel %vm828, %v816, %v578
    %v834 = vsel %vm828, %v817, %v580
    %v835 = vsel %vm828, %v818, %v582
    %v836 = vsel %vm828, %v819, %v584
    %v837 = vsel %vm828, %v820, %v586
    %v838 = vsel %vm828, %v821, %v588
    %v839 = vsel %vm828, %v822, %v590
    %v840 = vsel %vm828, %v823, %v592
    %v841 = vsel %vm828, %v824, %v594
    %v842 = vsel %vm828, %v825, %v596
    %v843 = vsel %vm828, %v826, %v598
    %v844 = vsel %vm828, %v827, %v600
    %vm845 = vcmask 146432
    %v846 = vsel %vm845, %v829, %v618
    %v847 = vsel %vm845, %v830, %v620
    %v848 = vsel %vm845, %v831, %v622
    %v849 = vsel %vm845, %v832, %v624
    %v850 = vsel %vm845, %v833, %v626
    %v851 = vsel %vm845, %v834, %v628
    %v852 = vsel %vm845, %v835, %v630
    %v853 = vsel %vm845, %v836, %v632
    %v854 = vsel %vm845, %v837, %v634
    %v855 = vsel %vm845, %v838, %v636
    %v856 = vsel %vm845, %v839, %v638
    %v857 = vsel %vm845, %v840, %v640
    %v858 = vsel %vm845, %v841, %v642
    %v859 = vsel %vm845, %v842, %v644
    %v860 = vsel %vm845, %v843, %v646
    %v861 = vsel %vm845, %v844, %v648
    %vm862 = vcmask 171008
    %v863 = vsel %vm862, %v846, %v666
    %v864 = vsel %vm862, %v847, %v668
    %v865 = vsel %vm862, %v848, %v670
    %v866 = vsel %vm862, %v849, %v672
    %v867 = vsel %vm862, %v850, %v674
    %v868 = vsel %vm862, %v851, %v676
    %v869 = vsel %vm862, %v852, %v678
    %v870 = vsel %vm862, %v853, %v680
    %v871 = vsel %vm862, %v854, %v682
    %v872 = vsel %vm862, %v855, %v684
    %v873 = vsel %vm862, %v856, %v686
    %v874 = vsel %vm862, %v857, %v688
    %v875 = vsel %vm862, %v858, %v690
    %v876 = vsel %vm862, %v859, %v692
    %v877 = vsel %vm862, %v860, %v694
    %v878 = vsel %vm862, %v861, %v696
    %vm879 = vcmask 195584
    %v880 = vsel %vm879, %v863, %v714
    %v881 = vsel %vm879, %v864, %v716
    %v882 = vsel %vm879, %v865, %v718
    %v883 = vsel %vm879, %v866, %v720
    %v884 = vsel %vm879, %v867, %v722
    %v885 = vsel %vm879, %v868, %v724
    %v886 = vsel %vm879, %v869, %v726
    %v887 = vsel %vm879, %v870, %v728
    %v888 = vsel %vm879, %v871, %v730
    %v889 = vsel %vm879, %v872, %v732
    %v890 = vsel %vm879, %v873, %v734
    %v891 = vsel %vm879, %v874, %v736
    %v892 = vsel %vm879, %v875, %v738
    %v893 = vsel %vm879, %v876, %v740
    %v894 = vsel %vm879, %v877, %v742
    %v895 = vsel %vm879, %v878, %v744
    %v896 = vld [vmem:[%s1] sm:$0xff]
    %v897 = vld [vmem:[%s1 + $0x8] sm:$0xff]
    %v898 = vld [vmem:[%s1 + $0x10] sm:$0xff]
    %v899 = vld [vmem:[%s1 + $0x18] sm:$0x7]
    %v900 = vld [vmem:[#allocation4] sm:$0x1]
    %v902 = vperm.slane %v900, 0
    %vm904 = vcmask 220160
    %v906 = vsel %vm904, %v880, 0
    %v909 = vsel %vm904, %v881, 0
    %v912 = vsel %vm904, %v882, 0
    %v915 = vsel %vm904, %v883, 0
    %v918 = vsel %vm904, %v884, 0
    %v921 = vsel %vm904, %v885, 0
    %v924 = vsel %vm904, %v886, 0
    %v927 = vsel %vm904, %v887, 0
    %v930 = vsel %vm904, %v888, 0
    %v933 = vsel %vm904, %v889, 0
    %v936 = vsel %vm904, %v890, 0
    %v939 = vsel %vm904, %v891, 0
    %v942 = vsel %vm904, %v892, 0
    %v945 = vsel %vm904, %v893, 0
    %v948 = vsel %vm904, %v894, 0
    %v951 = vsel %vm904, %v895, 0
    %vm953 = vcmask 1042432
    %v955 = vsel %vm953, %v899, 0
    %957 = vmatpush.msra.mxu0 0.0
    %958 = vmatpush.msra.mxu0 0.0
    %959 = vmatpush.msra.mxu0 0.0
    %960 = vmatpush.msra.mxu0 0.0
    %961 = vmatpush.msra.mxu0 0.0
    %962 = vmatpush.msra.mxu0 0.0
    %963 = vmatpush.msra.mxu0 0.0
    %964 = vmatpush.msra.mxu0 0.0
    %965 = vmatpush.msra.mxu0 0.0
    %966 = vmatpush.msra.mxu0 0.0
    %967 = vmatpush.msra.mxu0 0.0
    %968 = vmatpush.msra.mxu0 0.0
    %969 = vmatpush.msra.mxu0 %v955
    %970 = vmatpush.msra.mxu0 %v898
    %971 = vmatpush.msra.mxu0 %v897
    %972 = vmatpush.msra.mxu0 %v896
    %973 = vmatmul.f32.gmra.mxu0 %v906
    %v974 = vpop.f32.mrf.mxu0
    %v975 = vadd.f32 %v902, %v974
    %976 = vmatmul.f32.gmra.mxu0 %v909
    %v977 = vpop.f32.mrf.mxu0
    %v978 = vadd.f32 %v902, %v977
    %979 = vmatmul.f32.gmra.mxu0 %v912
    %v980 = vpop.f32.mrf.mxu0
    %v981 = vadd.f32 %v902, %v980
    %982 = vmatmul.f32.gmra.mxu0 %v915
    %v983 = vpop.f32.mrf.mxu0
    %v984 = vadd.f32 %v902, %v983
    %985 = vmatmul.f32.gmra.mxu0 %v918
    %v986 = vpop.f32.mrf.mxu0
    %v987 = vadd.f32 %v902, %v986
    %988 = vmatmul.f32.gmra.mxu0 %v921
    %v989 = vpop.f32.mrf.mxu0
    %v990 = vadd.f32 %v902, %v989
    %991 = vmatmul.f32.gmra.mxu0 %v924
    %v992 = vpop.f32.mrf.mxu0
    %v993 = vadd.f32 %v902, %v992
    %994 = vmatmul.f32.gmra.mxu0 %v927
    %v995 = vpop.f32.mrf.mxu0
    %v996 = vadd.f32 %v902, %v995
    %997 = vmatmul.f32.gmra.mxu0 %v930
    %v998 = vpop.f32.mrf.mxu0
    %v999 = vadd.f32 %v902, %v998
    %1000 = vmatmul.f32.gmra.mxu0 %v933
    %v1001 = vpop.f32.mrf.mxu0
    %v1002 = vadd.f32 %v902, %v1001
    %1003 = vmatmul.f32.gmra.mxu0 %v936
    %v1004 = vpop.f32.mrf.mxu0
    %v1005 = vadd.f32 %v902, %v1004
    %1006 = vmatmul.f32.gmra.mxu0 %v939
    %v1007 = vpop.f32.mrf.mxu0
    %v1008 = vadd.f32 %v902, %v1007
    %1009 = vmatmul.f32.gmra.mxu0 %v942
    %v1010 = vpop.f32.mrf.mxu0
    %v1011 = vadd.f32 %v902, %v1010
    %1012 = vmatmul.f32.gmra.mxu0 %v945
    %v1013 = vpop.f32.mrf.mxu0
    %v1014 = vadd.f32 %v902, %v1013
    %1015 = vmatmul.f32.gmra.mxu0 %v948
    %v1016 = vpop.f32.mrf.mxu0
    %v1017 = vadd.f32 %v902, %v1016
    %1018 = vmatmul.f32.gmra.mxu0 %v951
    %v1019 = vpop.f32.mrf.mxu0
    %v1020 = vadd.f32 %v902, %v1019
    %1021 = vdwg.mxu0
    %vm1022 = vcmp.ge.f32.partialorder %v975, 0.0
    %vm1023 = vcmp.ge.f32.partialorder %v978, 0.0
    %vm1024 = vcmp.ge.f32.partialorder %v981, 0.0
    %vm1025 = vcmp.ge.f32.partialorder %v984, 0.0
    %vm1026 = vcmp.ge.f32.partialorder %v987, 0.0
    %vm1027 = vcmp.ge.f32.partialorder %v990, 0.0
    %vm1028 = vcmp.ge.f32.partialorder %v993, 0.0
    %vm1029 = vcmp.ge.f32.partialorder %v996, 0.0
    %vm1030 = vcmp.ge.f32.partialorder %v999, 0.0
    %vm1031 = vcmp.ge.f32.partialorder %v1002, 0.0
    %vm1032 = vcmp.ge.f32.partialorder %v1005, 0.0
    %vm1033 = vcmp.ge.f32.partialorder %v1008, 0.0
    %vm1034 = vcmp.ge.f32.partialorder %v1011, 0.0
    %vm1035 = vcmp.ge.f32.partialorder %v1014, 0.0
    %vm1036 = vcmp.ge.f32.partialorder %v1017, 0.0
    %vm1037 = vcmp.ge.f32.partialorder %v1020, 0.0
    %v1038 = vmul.f32 %v975, 0.2
    %v1039 = vmul.f32 %v978, 0.2
    %v1040 = vmul.f32 %v981, 0.2
    %v1041 = vmul.f32 %v984, 0.2
    %v1042 = vmul.f32 %v987, 0.2
    %v1043 = vmul.f32 %v990, 0.2
    %v1044 = vmul.f32 %v993, 0.2
    %v1045 = vmul.f32 %v996, 0.2
    %v1046 = vmul.f32 %v999, 0.2
    %v1047 = vmul.f32 %v1002, 0.2
    %v1048 = vmul.f32 %v1005, 0.2
    %v1049 = vmul.f32 %v1008, 0.2
    %v1050 = vmul.f32 %v1011, 0.2
    %v1051 = vmul.f32 %v1014, 0.2
    %v1052 = vmul.f32 %v1017, 0.2
    %v1053 = vmul.f32 %v1020, 0.2
    %v1054 = vsel %vm1022, %v975, %v1038
    %v1055 = vsel %vm1023, %v978, %v1039
    %v1056 = vsel %vm1024, %v981, %v1040
    %v1057 = vsel %vm1025, %v984, %v1041
    %v1058 = vsel %vm1026, %v987, %v1042
    %v1059 = vsel %vm1027, %v990, %v1043
    %v1060 = vsel %vm1028, %v993, %v1044
    %v1061 = vsel %vm1029, %v996, %v1045
    %v1062 = vsel %vm1030, %v999, %v1046
    %v1063 = vsel %vm1031, %v1002, %v1047
    %v1064 = vsel %vm1032, %v1005, %v1048
    %v1065 = vsel %vm1033, %v1008, %v1049
    %v1066 = vsel %vm1034, %v1011, %v1050
    %v1067 = vsel %vm1035, %v1014, %v1051
    %v1068 = vsel %vm1036, %v1017, %v1052
    %v1069 = vsel %vm1037, %v1020, %v1053
    %vm1070 = vcmask 31744
    %1071 = vst.msk [vmem:[#allocation3] sm:$0xff] %vm1070, 0.0
    %vm1072 = vcmask 25600
    %1073 = vst.msk [vmem:[#allocation3 + $0x8] sm:$0x3] %vm1072, 0.0
    %1074 = vst.msk [vmem:[#allocation3 + $0x10] sm:$0xff] %vm1070, 0.0
    %1075 = vst.msk [vmem:[#allocation3 + $0x18] sm:$0x3] %vm1072, 0.0
    %1076 = vst.msk [vmem:[#allocation3 + $0x20] sm:$0xff] %vm1070, 0.0
    %1077 = vst.msk [vmem:[#allocation3 + $0x28] sm:$0x3] %vm1072, 0.0
    %1078 = vst.msk [vmem:[#allocation3 + $0x30] sm:$0xff] %vm1070, 0.0
    %1079 = vst.msk [vmem:[#allocation3 + $0x38] sm:$0x3] %vm1072, 0.0
    %1080 = vst.msk [vmem:[#allocation3 + $0x40] sm:$0xff] %vm1070, 0.0
    %1081 = vst.msk [vmem:[#allocation3 + $0x48] sm:$0x3] %vm1072, 0.0
    %1082 = vst.msk [vmem:[#allocation3 + $0x50] sm:$0xff] %vm1070, 0.0
    %1083 = vst.msk [vmem:[#allocation3 + $0x58] sm:$0x3] %vm1072, 0.0
    %1084 = vst.msk [vmem:[#allocation3 + $0x60] sm:$0xff] %vm1070, 0.0
    %1085 = vst.msk [vmem:[#allocation3 + $0x68] sm:$0x3] %vm1072, 0.0
    %1086 = vst.msk [vmem:[#allocation3 + $0x70] sm:$0xff] %vm1070, 0.0
    %1087 = vst.msk [vmem:[#allocation3 + $0x78] sm:$0x3] %vm1072, 0.0
    %1088 = vst.msk [vmem:[#allocation3 + $0x80] sm:$0xff] %vm1070, 0.0
    %1089 = vst.msk [vmem:[#allocation3 + $0x88] sm:$0x3] %vm1072, 0.0
    %1090 = vst.msk [vmem:[#allocation3 + $0x90] sm:$0xff] %vm1070, 0.0
    %1091 = vst.msk [vmem:[#allocation3 + $0x98] sm:$0x3] %vm1072, 0.0
    %1092 = vst.msk [vmem:[#allocation3 + $0xa0] sm:$0xff] %vm1070, 0.0
    %1093 = vst.msk [vmem:[#allocation3 + $0xa8] sm:$0x3] %vm1072, 0.0
    %1094 = vst.msk [vmem:[#allocation3 + $0xb0] sm:$0xff] %vm1070, 0.0
    %1095 = vst.msk [vmem:[#allocation3 + $0xb8] sm:$0x3] %vm1072, 0.0
    %1096 = vst.msk [vmem:[#allocation3 + $0xc0] sm:$0xff] %vm1070, 0.0
    %1097 = vst.msk [vmem:[#allocation3 + $0xc8] sm:$0x3] %vm1072, 0.0
    %1098 = vst.msk [vmem:[#allocation3 + $0xd0] sm:$0xff] %vm1070, 0.0
    %1099 = vst.msk [vmem:[#allocation3 + $0xd8] sm:$0x3] %vm1072, 0.0
    %1100 = vst.msk [vmem:[#allocation3 + $0xe0] sm:$0xff] %vm1070, 0.0
    %1101 = vst.msk [vmem:[#allocation3 + $0xe8] sm:$0x3] %vm1072, 0.0
    %1102 = vst.msk [vmem:[#allocation3 + $0xf0] sm:$0xff] %vm1070, 0.0
    %1103 = vst.msk [vmem:[#allocation3 + $0xf8] sm:$0x3] %vm1072, 0.0
    %1104 = vst.msk [vmem:[#allocation3 + $0x100] sm:$0xff] %vm1070, 0.0
    %1105 = vst.msk [vmem:[#allocation3 + $0x108] sm:$0x3] %vm1072, 0.0
    %1106 = vst.msk [vmem:[#allocation3 + $0x110] sm:$0xff] %vm1070, 0.0
    %1107 = vst.msk [vmem:[#allocation3 + $0x118] sm:$0x3] %vm1072, 0.0
    %1108 = vst.msk [vmem:[#allocation3 + $0x120] sm:$0xff] %vm1070, 0.0
    %1109 = vst.msk [vmem:[#allocation3 + $0x128] sm:$0x3] %vm1072, 0.0
    %1110 = vst.msk [vmem:[#allocation3 + $0x130] sm:$0xff] %vm1070, 0.0
    %1111 = vst.msk [vmem:[#allocation3 + $0x138] sm:$0x3] %vm1072, 0.0
    %s1112 = scalar_lea.vmem [#allocation3], 16
    %1113 = vst.msk [vmem:[%s1112 + $0x1] sm:$0xff] %vm1070, %v1054
    %1114 = vst.msk [vmem:[%s1112 + $0x11] sm:$0xff] %vm1070, %v1055
    %1115 = vst.msk [vmem:[%s1112 + $0x21] sm:$0xff] %vm1070, %v1056
    %1116 = vst.msk [vmem:[%s1112 + $0x31] sm:$0xff] %vm1070, %v1057
    %1117 = vst.msk [vmem:[%s1112 + $0x41] sm:$0xff] %vm1070, %v1058
    %1118 = vst.msk [vmem:[%s1112 + $0x51] sm:$0xff] %vm1070, %v1059
    %1119 = vst.msk [vmem:[%s1112 + $0x61] sm:$0xff] %vm1070, %v1060
    %1120 = vst.msk [vmem:[%s1112 + $0x71] sm:$0xff] %vm1070, %v1061
    %1121 = vst.msk [vmem:[%s1112 + $0xa1] sm:$0xff] %vm1070, %v1062
    %1122 = vst.msk [vmem:[%s1112 + $0xb1] sm:$0xff] %vm1070, %v1063
    %1123 = vst.msk [vmem:[%s1112 + $0xc1] sm:$0xff] %vm1070, %v1064
    %1124 = vst.msk [vmem:[%s1112 + $0xd1] sm:$0xff] %vm1070, %v1065
    %1125 = vst.msk [vmem:[%s1112 + $0xe1] sm:$0xff] %vm1070, %v1066
    %1126 = vst.msk [vmem:[%s1112 + $0xf1] sm:$0xff] %vm1070, %v1067
    %1127 = vst.msk [vmem:[%s1112 + $0x101] sm:$0xff] %vm1070, %v1068
    %1128 = vst.msk [vmem:[%s1112 + $0x111] sm:$0xff] %vm1070, %v1069
    %v1129 = vld [vmem:[#allocation3] sm:$0xff]
    %v1130 = vld [vmem:[#allocation3 + $0x8] sm:$0x3]
    %v1131 = vld [vmem:[#allocation3 + $0x10] sm:$0xff]
    %v1132 = vld [vmem:[#allocation3 + $0x18] sm:$0x3]
    %v1133 = vld [vmem:[#allocation3 + $0x20] sm:$0xff]
    %v1134 = vld [vmem:[#allocation3 + $0x28] sm:$0x3]
    %v1135 = vld [vmem:[#allocation3 + $0x30] sm:$0xff]
    %v1136 = vld [vmem:[#allocation3 + $0x38] sm:$0x3]
    %v1137 = vld [vmem:[#allocation3 + $0x40] sm:$0xff]
    %v1138 = vld [vmem:[#allocation3 + $0x48] sm:$0x3]
    %v1139 = vld [vmem:[#allocation3 + $0x50] sm:$0xff]
    %v1140 = vld [vmem:[#allocation3 + $0x58] sm:$0x3]
    %v1141 = vld [vmem:[#allocation3 + $0x60] sm:$0xff]
    %v1142 = vld [vmem:[#allocation3 + $0x68] sm:$0x3]
    %v1143 = vld [vmem:[#allocation3 + $0x70] sm:$0xff]
    %v1144 = vld [vmem:[#allocation3 + $0x78] sm:$0x3]
    %v1145 = vld [vmem:[#allocation3 + $0x80] sm:$0xff]
    %v1146 = vld [vmem:[#allocation3 + $0x88] sm:$0x3]
    %v1147 = vld [vmem:[#allocation3 + $0x90] sm:$0xff]
    %v1148 = vld [vmem:[#allocation3 + $0x98] sm:$0x3]
    %v1149 = vld [vmem:[#allocation3 + $0xa0] sm:$0xff]
    %v1150 = vld [vmem:[#allocation3 + $0xa8] sm:$0x3]
    %v1151 = vld [vmem:[#allocation3 + $0xb0] sm:$0xff]
    %v1152 = vld [vmem:[#allocation3 + $0xb8] sm:$0x3]
    %v1153 = vld [vmem:[#allocation3 + $0xc0] sm:$0xff]
    %v1154 = vld [vmem:[#allocation3 + $0xc8] sm:$0x3]
    %v1155 = vld [vmem:[#allocation3 + $0xd0] sm:$0xff]
    %v1156 = vld [vmem:[#allocation3 + $0xd8] sm:$0x3]
    %v1157 = vld [vmem:[#allocation3 + $0xe0] sm:$0xff]
    %v1158 = vld [vmem:[#allocation3 + $0xe8] sm:$0x3]
    %v1159 = vld [vmem:[#allocation3 + $0xf0] sm:$0xff]
    %v1160 = vld [vmem:[#allocation3 + $0xf8] sm:$0x3]
    %v1161 = vld [vmem:[#allocation3 + $0x100] sm:$0xff]
    %v1162 = vld [vmem:[#allocation3 + $0x108] sm:$0x3]
    %v1163 = vld [vmem:[#allocation3 + $0x110] sm:$0xff]
    %v1164 = vld [vmem:[#allocation3 + $0x118] sm:$0x3]
    %v1165 = vld [vmem:[#allocation3 + $0x120] sm:$0xff]
    %v1166 = vld [vmem:[#allocation3 + $0x128] sm:$0x3]
    %v1167 = vld [vmem:[#allocation3 + $0x130] sm:$0xff]
    %v1168 = vld [vmem:[#allocation3 + $0x138] sm:$0x3]
    %v1201 = vrot.slane %v1129, 1
    %v1202 = vrot.slane %v1130, 1
    %v1203 = vsel %vm247, %v1201, %v1202
    %v1204 = vrot.slane %v1131, 1
    %v1205 = vrot.slane %v1132, 1
    %v1206 = vsel %vm247, %v1204, %v1205
    %v1207 = vrot.slane %v1133, 1
    %v1208 = vrot.slane %v1134, 1
    %v1209 = vsel %vm247, %v1207, %v1208
    %v1210 = vrot.slane %v1135, 1
    %v1211 = vrot.slane %v1136, 1
    %v1212 = vsel %vm247, %v1210, %v1211
    %v1213 = vrot.slane %v1137, 1
    %v1214 = vrot.slane %v1138, 1
    %v1215 = vsel %vm247, %v1213, %v1214
    %v1216 = vrot.slane %v1139, 1
    %v1217 = vrot.slane %v1140, 1
    %v1218 = vsel %vm247, %v1216, %v1217
    %v1219 = vrot.slane %v1141, 1
    %v1220 = vrot.slane %v1142, 1
    %v1221 = vsel %vm247, %v1219, %v1220
    %v1222 = vrot.slane %v1143, 1
    %v1223 = vrot.slane %v1144, 1
    %v1224 = vsel %vm247, %v1222, %v1223
    %v1225 = vrot.slane %v1149, 1
    %v1226 = vrot.slane %v1150, 1
    %v1227 = vsel %vm247, %v1225, %v1226
    %v1228 = vrot.slane %v1151, 1
    %v1229 = vrot.slane %v1152, 1
    %v1230 = vsel %vm247, %v1228, %v1229
    %v1231 = vrot.slane %v1153, 1
    %v1232 = vrot.slane %v1154, 1
    %v1233 = vsel %vm247, %v1231, %v1232
    %v1234 = vrot.slane %v1155, 1
    %v1235 = vrot.slane %v1156, 1
    %v1236 = vsel %vm247, %v1234, %v1235
    %v1237 = vrot.slane %v1157, 1
    %v1238 = vrot.slane %v1158, 1
    %v1239 = vsel %vm247, %v1237, %v1238
    %v1240 = vrot.slane %v1159, 1
    %v1241 = vrot.slane %v1160, 1
    %v1242 = vsel %vm247, %v1240, %v1241
    %v1243 = vrot.slane %v1161, 1
    %v1244 = vrot.slane %v1162, 1
    %v1245 = vsel %vm247, %v1243, %v1244
    %v1246 = vrot.slane %v1163, 1
    %v1247 = vrot.slane %v1164, 1
    %v1248 = vsel %vm247, %v1246, %v1247
    %v1249 = vrot.slane %v1129, 2
    %v1250 = vrot.slane %v1130, 2
    %v1251 = vsel %vm296, %v1249, %v1250
    %v1252 = vrot.slane %v1131, 2
    %v1253 = vrot.slane %v1132, 2
    %v1254 = vsel %vm296, %v1252, %v1253
    %v1255 = vrot.slane %v1133, 2
    %v1256 = vrot.slane %v1134, 2
    %v1257 = vsel %vm296, %v1255, %v1256
    %v1258 = vrot.slane %v1135, 2
    %v1259 = vrot.slane %v1136, 2
    %v1260 = vsel %vm296, %v1258, %v1259
    %v1261 = vrot.slane %v1137, 2
    %v1262 = vrot.slane %v1138, 2
    %v1263 = vsel %vm296, %v1261, %v1262
    %v1264 = vrot.slane %v1139, 2
    %v1265 = vrot.slane %v1140, 2
    %v1266 = vsel %vm296, %v1264, %v1265
    %v1267 = vrot.slane %v1141, 2
    %v1268 = vrot.slane %v1142, 2
    %v1269 = vsel %vm296, %v1267, %v1268
    %v1270 = vrot.slane %v1143, 2
    %v1271 = vrot.slane %v1144, 2
    %v1272 = vsel %vm296, %v1270, %v1271
    %v1273 = vrot.slane %v1149, 2
    %v1274 = vrot.slane %v1150, 2
    %v1275 = vsel %vm296, %v1273, %v1274
    %v1276 = vrot.slane %v1151, 2
    %v1277 = vrot.slane %v1152, 2
    %v1278 = vsel %vm296, %v1276, %v1277
    %v1279 = vrot.slane %v1153, 2
    %v1280 = vrot.slane %v1154, 2
    %v1281 = vsel %vm296, %v1279, %v1280
    %v1282 = vrot.slane %v1155, 2
    %v1283 = vrot.slane %v1156, 2
    %v1284 = vsel %vm296, %v1282, %v1283
    %v1285 = vrot.slane %v1157, 2
    %v1286 = vrot.slane %v1158, 2
    %v1287 = vsel %vm296, %v1285, %v1286
    %v1288 = vrot.slane %v1159, 2
    %v1289 = vrot.slane %v1160, 2
    %v1290 = vsel %vm296, %v1288, %v1289
    %v1291 = vrot.slane %v1161, 2
    %v1292 = vrot.slane %v1162, 2
    %v1293 = vsel %vm296, %v1291, %v1292
    %v1294 = vrot.slane %v1163, 2
    %v1295 = vrot.slane %v1164, 2
    %v1296 = vsel %vm296, %v1294, %v1295
    %v1301 = vrot.slane %v1145, 1
    %v1302 = vrot.slane %v1146, 1
    %v1303 = vsel %vm247, %v1301, %v1302
    %v1304 = vrot.slane %v1165, 1
    %v1305 = vrot.slane %v1166, 1
    %v1306 = vsel %vm247, %v1304, %v1305
    %v1307 = vrot.slane %v1145, 2
    %v1308 = vrot.slane %v1146, 2
    %v1309 = vsel %vm296, %v1307, %v1308
    %v1310 = vrot.slane %v1165, 2
    %v1311 = vrot.slane %v1166, 2
    %v1312 = vsel %vm296, %v1310, %v1311
    %v1317 = vrot.slane %v1147, 1
    %v1318 = vrot.slane %v1148, 1
    %v1319 = vsel %vm247, %v1317, %v1318
    %v1320 = vrot.slane %v1167, 1
    %v1321 = vrot.slane %v1168, 1
    %v1322 = vsel %vm247, %v1320, %v1321
    %v1323 = vrot.slane %v1147, 2
    %v1324 = vrot.slane %v1148, 2
    %v1325 = vsel %vm296, %v1323, %v1324
    %v1326 = vrot.slane %v1167, 2
    %v1327 = vrot.slane %v1168, 2
    %v1328 = vsel %vm296, %v1326, %v1327
    %1329 = vrot.lane.b32.xlu0 %v1203, 4
    %v1330 = vpop.permute.xlu0 %1329
    %1331 = vrot.lane.b32.xlu0 %v1206, 4
    %v1332 = vpop.permute.xlu0 %1331
    %1333 = vrot.lane.b32.xlu0 %v1209, 4
    %v1334 = vpop.permute.xlu0 %1333
    %1335 = vrot.lane.b32.xlu0 %v1212, 4
    %v1336 = vpop.permute.xlu0 %1335
    %1337 = vrot.lane.b32.xlu0 %v1215, 4
    %v1338 = vpop.permute.xlu0 %1337
    %1339 = vrot.lane.b32.xlu0 %v1218, 4
    %v1340 = vpop.permute.xlu0 %1339
    %1341 = vrot.lane.b32.xlu0 %v1221, 4
    %v1342 = vpop.permute.xlu0 %1341
    %1343 = vrot.lane.b32.xlu0 %v1224, 4
    %v1344 = vpop.permute.xlu0 %1343
    %1345 = vrot.lane.b32.xlu0 %v1227, 4
    %v1346 = vpop.permute.xlu0 %1345
    %1347 = vrot.lane.b32.xlu0 %v1230, 4
    %v1348 = vpop.permute.xlu0 %1347
    %1349 = vrot.lane.b32.xlu0 %v1233, 4
    %v1350 = vpop.permute.xlu0 %1349
    %1351 = vrot.lane.b32.xlu0 %v1236, 4
    %v1352 = vpop.permute.xlu0 %1351
    %1353 = vrot.lane.b32.xlu0 %v1239, 4
    %v1354 = vpop.permute.xlu0 %1353
    %1355 = vrot.lane.b32.xlu0 %v1242, 4
    %v1356 = vpop.permute.xlu0 %1355
    %1357 = vrot.lane.b32.xlu0 %v1245, 4
    %v1358 = vpop.permute.xlu0 %1357
    %1359 = vrot.lane.b32.xlu0 %v1248, 4
    %v1360 = vpop.permute.xlu0 %1359
    %1377 = vrot.lane.b32.xlu0 %v1251, 8
    %v1378 = vpop.permute.xlu0 %1377
    %1379 = vrot.lane.b32.xlu0 %v1254, 8
    %v1380 = vpop.permute.xlu0 %1379
    %1381 = vrot.lane.b32.xlu0 %v1257, 8
    %v1382 = vpop.permute.xlu0 %1381
    %1383 = vrot.lane.b32.xlu0 %v1260, 8
    %v1384 = vpop.permute.xlu0 %1383
    %1385 = vrot.lane.b32.xlu0 %v1263, 8
    %v1386 = vpop.permute.xlu0 %1385
    %1387 = vrot.lane.b32.xlu0 %v1266, 8
    %v1388 = vpop.permute.xlu0 %1387
    %1389 = vrot.lane.b32.xlu0 %v1269, 8
    %v1390 = vpop.permute.xlu0 %1389
    %1391 = vrot.lane.b32.xlu0 %v1272, 8
    %v1392 = vpop.permute.xlu0 %1391
    %1393 = vrot.lane.b32.xlu0 %v1275, 8
    %v1394 = vpop.permute.xlu0 %1393
    %1395 = vrot.lane.b32.xlu0 %v1278, 8
    %v1396 = vpop.permute.xlu0 %1395
    %1397 = vrot.lane.b32.xlu0 %v1281, 8
    %v1398 = vpop.permute.xlu0 %1397
    %1399 = vrot.lane.b32.xlu0 %v1284, 8
    %v1400 = vpop.permute.xlu0 %1399
    %1401 = vrot.lane.b32.xlu0 %v1287, 8
    %v1402 = vpop.permute.xlu0 %1401
    %1403 = vrot.lane.b32.xlu0 %v1290, 8
    %v1404 = vpop.permute.xlu0 %1403
    %1405 = vrot.lane.b32.xlu0 %v1293, 8
    %v1406 = vpop.permute.xlu0 %1405
    %1407 = vrot.lane.b32.xlu0 %v1296, 8
    %v1408 = vpop.permute.xlu0 %1407
    %1425 = vrot.lane.b32.xlu0 %v1131, 12
    %v1426 = vpop.permute.xlu0 %1425
    %1427 = vrot.lane.b32.xlu0 %v1133, 12
    %v1428 = vpop.permute.xlu0 %1427
    %1429 = vrot.lane.b32.xlu0 %v1135, 12
    %v1430 = vpop.permute.xlu0 %1429
    %1431 = vrot.lane.b32.xlu0 %v1137, 12
    %v1432 = vpop.permute.xlu0 %1431
    %1433 = vrot.lane.b32.xlu0 %v1139, 12
    %v1434 = vpop.permute.xlu0 %1433
    %1435 = vrot.lane.b32.xlu0 %v1141, 12
    %v1436 = vpop.permute.xlu0 %1435
    %1437 = vrot.lane.b32.xlu0 %v1143, 12
    %v1438 = vpop.permute.xlu0 %1437
    %1439 = vrot.lane.b32.xlu0 %v1145, 12
    %v1440 = vpop.permute.xlu0 %1439
    %1441 = vrot.lane.b32.xlu0 %v1151, 12
    %v1442 = vpop.permute.xlu0 %1441
    %1443 = vrot.lane.b32.xlu0 %v1153, 12
    %v1444 = vpop.permute.xlu0 %1443
    %1445 = vrot.lane.b32.xlu0 %v1155, 12
    %v1446 = vpop.permute.xlu0 %1445
    %1447 = vrot.lane.b32.xlu0 %v1157, 12
    %v1448 = vpop.permute.xlu0 %1447
    %1449 = vrot.lane.b32.xlu0 %v1159, 12
    %v1450 = vpop.permute.xlu0 %1449
    %1451 = vrot.lane.b32.xlu0 %v1161, 12
    %v1452 = vpop.permute.xlu0 %1451
    %1453 = vrot.lane.b32.xlu0 %v1163, 12
    %v1454 = vpop.permute.xlu0 %1453
    %1455 = vrot.lane.b32.xlu0 %v1165, 12
    %v1456 = vpop.permute.xlu0 %1455
    %1473 = vrot.lane.b32.xlu0 %v1206, 16
    %v1474 = vpop.permute.xlu0 %1473
    %1475 = vrot.lane.b32.xlu0 %v1209, 16
    %v1476 = vpop.permute.xlu0 %1475
    %1477 = vrot.lane.b32.xlu0 %v1212, 16
    %v1478 = vpop.permute.xlu0 %1477
    %1479 = vrot.lane.b32.xlu0 %v1215, 16
    %v1480 = vpop.permute.xlu0 %1479
    %1481 = vrot.lane.b32.xlu0 %v1218, 16
    %v1482 = vpop.permute.xlu0 %1481
    %1483 = vrot.lane.b32.xlu0 %v1221, 16
    %v1484 = vpop.permute.xlu0 %1483
    %1485 = vrot.lane.b32.xlu0 %v1224, 16
    %v1486 = vpop.permute.xlu0 %1485
    %1487 = vrot.lane.b32.xlu0 %v1303, 16
    %v1488 = vpop.permute.xlu0 %1487
    %1489 = vrot.lane.b32.xlu0 %v1230, 16
    %v1490 = vpop.permute.xlu0 %1489
    %1491 = vrot.lane.b32.xlu0 %v1233, 16
    %v1492 = vpop.permute.xlu0 %1491
    %1493 = vrot.lane.b32.xlu0 %v1236, 16
    %v1494 = vpop.permute.xlu0 %1493
    %1495 = vrot.lane.b32.xlu0 %v1239, 16
    %v1496 = vpop.permute.xlu0 %1495
    %1497 = vrot.lane.b32.xlu0 %v1242, 16
    %v1498 = vpop.permute.xlu0 %1497
    %1499 = vrot.lane.b32.xlu0 %v1245, 16
    %v1500 = vpop.permute.xlu0 %1499
    %1501 = vrot.lane.b32.xlu0 %v1248, 16
    %v1502 = vpop.permute.xlu0 %1501
    %1503 = vrot.lane.b32.xlu0 %v1306, 16
    %v1504 = vpop.permute.xlu0 %1503
    %1521 = vrot.lane.b32.xlu0 %v1254, 20
    %v1522 = vpop.permute.xlu0 %1521
    %1523 = vrot.lane.b32.xlu0 %v1257, 20
    %v1524 = vpop.permute.xlu0 %1523
    %1525 = vrot.lane.b32.xlu0 %v1260, 20
    %v1526 = vpop.permute.xlu0 %1525
    %1527 = vrot.lane.b32.xlu0 %v1263, 20
    %v1528 = vpop.permute.xlu0 %1527
    %1529 = vrot.lane.b32.xlu0 %v1266, 20
    %v1530 = vpop.permute.xlu0 %1529
    %1531 = vrot.lane.b32.xlu0 %v1269, 20
    %v1532 = vpop.permute.xlu0 %1531
    %1533 = vrot.lane.b32.xlu0 %v1272, 20
    %v1534 = vpop.permute.xlu0 %1533
    %1535 = vrot.lane.b32.xlu0 %v1309, 20
    %v1536 = vpop.permute.xlu0 %1535
    %1537 = vrot.lane.b32.xlu0 %v1278, 20
    %v1538 = vpop.permute.xlu0 %1537
    %1539 = vrot.lane.b32.xlu0 %v1281, 20
    %v1540 = vpop.permute.xlu0 %1539
    %1541 = vrot.lane.b32.xlu0 %v1284, 20
    %v1542 = vpop.permute.xlu0 %1541
    %1543 = vrot.lane.b32.xlu0 %v1287, 20
    %v1544 = vpop.permute.xlu0 %1543
    %1545 = vrot.lane.b32.xlu0 %v1290, 20
    %v1546 = vpop.permute.xlu0 %1545
    %1547 = vrot.lane.b32.xlu0 %v1293, 20
    %v1548 = vpop.permute.xlu0 %1547
    %1549 = vrot.lane.b32.xlu0 %v1296, 20
    %v1550 = vpop.permute.xlu0 %1549
    %1551 = vrot.lane.b32.xlu0 %v1312, 20
    %v1552 = vpop.permute.xlu0 %1551
    %1569 = vrot.lane.b32.xlu0 %v1133, 24
    %v1570 = vpop.permute.xlu0 %1569
    %1571 = vrot.lane.b32.xlu0 %v1135, 24
    %v1572 = vpop.permute.xlu0 %1571
    %1573 = vrot.lane.b32.xlu0 %v1137, 24
    %v1574 = vpop.permute.xlu0 %1573
    %1575 = vrot.lane.b32.xlu0 %v1139, 24
    %v1576 = vpop.permute.xlu0 %1575
    %1577 = vrot.lane.b32.xlu0 %v1141, 24
    %v1578 = vpop.permute.xlu0 %1577
    %1579 = vrot.lane.b32.xlu0 %v1143, 24
    %v1580 = vpop.permute.xlu0 %1579
    %1581 = vrot.lane.b32.xlu0 %v1145, 24
    %v1582 = vpop.permute.xlu0 %1581
    %1583 = vrot.lane.b32.xlu0 %v1147, 24
    %v1584 = vpop.permute.xlu0 %1583
    %1585 = vrot.lane.b32.xlu0 %v1153, 24
    %v1586 = vpop.permute.xlu0 %1585
    %1587 = vrot.lane.b32.xlu0 %v1155, 24
    %v1588 = vpop.permute.xlu0 %1587
    %1589 = vrot.lane.b32.xlu0 %v1157, 24
    %v1590 = vpop.permute.xlu0 %1589
    %1591 = vrot.lane.b32.xlu0 %v1159, 24
    %v1592 = vpop.permute.xlu0 %1591
    %1593 = vrot.lane.b32.xlu0 %v1161, 24
    %v1594 = vpop.permute.xlu0 %1593
    %1595 = vrot.lane.b32.xlu0 %v1163, 24
    %v1596 = vpop.permute.xlu0 %1595
    %1597 = vrot.lane.b32.xlu0 %v1165, 24
    %v1598 = vpop.permute.xlu0 %1597
    %1599 = vrot.lane.b32.xlu0 %v1167, 24
    %v1600 = vpop.permute.xlu0 %1599
    %1617 = vrot.lane.b32.xlu0 %v1209, 28
    %v1618 = vpop.permute.xlu0 %1617
    %1619 = vrot.lane.b32.xlu0 %v1212, 28
    %v1620 = vpop.permute.xlu0 %1619
    %1621 = vrot.lane.b32.xlu0 %v1215, 28
    %v1622 = vpop.permute.xlu0 %1621
    %1623 = vrot.lane.b32.xlu0 %v1218, 28
    %v1624 = vpop.permute.xlu0 %1623
    %1625 = vrot.lane.b32.xlu0 %v1221, 28
    %v1626 = vpop.permute.xlu0 %1625
    %1627 = vrot.lane.b32.xlu0 %v1224, 28
    %v1628 = vpop.permute.xlu0 %1627
    %1629 = vrot.lane.b32.xlu0 %v1303, 28
    %v1630 = vpop.permute.xlu0 %1629
    %1631 = vrot.lane.b32.xlu0 %v1319, 28
    %v1632 = vpop.permute.xlu0 %1631
    %1633 = vrot.lane.b32.xlu0 %v1233, 28
    %v1634 = vpop.permute.xlu0 %1633
    %1635 = vrot.lane.b32.xlu0 %v1236, 28
    %v1636 = vpop.permute.xlu0 %1635
    %1637 = vrot.lane.b32.xlu0 %v1239, 28
    %v1638 = vpop.permute.xlu0 %1637
    %1639 = vrot.lane.b32.xlu0 %v1242, 28
    %v1640 = vpop.permute.xlu0 %1639
    %1641 = vrot.lane.b32.xlu0 %v1245, 28
    %v1642 = vpop.permute.xlu0 %1641
    %1643 = vrot.lane.b32.xlu0 %v1248, 28
    %v1644 = vpop.permute.xlu0 %1643
    %1645 = vrot.lane.b32.xlu0 %v1306, 28
    %v1646 = vpop.permute.xlu0 %1645
    %1647 = vrot.lane.b32.xlu0 %v1322, 28
    %v1648 = vpop.permute.xlu0 %1647
    %1665 = vrot.lane.b32.xlu0 %v1257, 32
    %v1666 = vpop.permute.xlu0 %1665
    %1667 = vrot.lane.b32.xlu0 %v1260, 32
    %v1668 = vpop.permute.xlu0 %1667
    %1669 = vrot.lane.b32.xlu0 %v1263, 32
    %v1670 = vpop.permute.xlu0 %1669
    %1671 = vrot.lane.b32.xlu0 %v1266, 32
    %v1672 = vpop.permute.xlu0 %1671
    %1673 = vrot.lane.b32.xlu0 %v1269, 32
    %v1674 = vpop.permute.xlu0 %1673
    %1675 = vrot.lane.b32.xlu0 %v1272, 32
    %v1676 = vpop.permute.xlu0 %1675
    %1677 = vrot.lane.b32.xlu0 %v1309, 32
    %v1678 = vpop.permute.xlu0 %1677
    %1679 = vrot.lane.b32.xlu0 %v1325, 32
    %v1680 = vpop.permute.xlu0 %1679
    %1681 = vrot.lane.b32.xlu0 %v1281, 32
    %v1682 = vpop.permute.xlu0 %1681
    %1683 = vrot.lane.b32.xlu0 %v1284, 32
    %v1684 = vpop.permute.xlu0 %1683
    %1685 = vrot.lane.b32.xlu0 %v1287, 32
    %v1686 = vpop.permute.xlu0 %1685
    %1687 = vrot.lane.b32.xlu0 %v1290, 32
    %v1688 = vpop.permute.xlu0 %1687
    %1689 = vrot.lane.b32.xlu0 %v1293, 32
    %v1690 = vpop.permute.xlu0 %1689
    %1691 = vrot.lane.b32.xlu0 %v1296, 32
    %v1692 = vpop.permute.xlu0 %1691
    %1693 = vrot.lane.b32.xlu0 %v1312, 32
    %v1694 = vpop.permute.xlu0 %1693
    %1695 = vrot.lane.b32.xlu0 %v1328, 32
    %v1696 = vpop.permute.xlu0 %1695
    %v1713 = vsel %vm1070, %v1129, %v1330
    %v1714 = vsel %vm1070, %v1131, %v1332
    %v1715 = vsel %vm1070, %v1133, %v1334
    %v1716 = vsel %vm1070, %v1135, %v1336
    %v1717 = vsel %vm1070, %v1137, %v1338
    %v1718 = vsel %vm1070, %v1139, %v1340
    %v1719 = vsel %vm1070, %v1141, %v1342
    %v1720 = vsel %vm1070, %v1143, %v1344
    %v1721 = vsel %vm1070, %v1149, %v1346
    %v1722 = vsel %vm1070, %v1151, %v1348
    %v1723 = vsel %vm1070, %v1153, %v1350
    %v1724 = vsel %vm1070, %v1155, %v1352
    %v1725 = vsel %vm1070, %v1157, %v1354
    %v1726 = vsel %vm1070, %v1159, %v1356
    %v1727 = vsel %vm1070, %v1161, %v1358
    %v1728 = vsel %vm1070, %v1163, %v1360
    %vm1729 = vcmask 64512
    %v1730 = vsel %vm1729, %v1713, %v1378
    %v1731 = vsel %vm1729, %v1714, %v1380
    %v1732 = vsel %vm1729, %v1715, %v1382
    %v1733 = vsel %vm1729, %v1716, %v1384
    %v1734 = vsel %vm1729, %v1717, %v1386
    %v1735 = vsel %vm1729, %v1718, %v1388
    %v1736 = vsel %vm1729, %v1719, %v1390
    %v1737 = vsel %vm1729, %v1720, %v1392
    %v1738 = vsel %vm1729, %v1721, %v1394
    %v1739 = vsel %vm1729, %v1722, %v1396
    %v1740 = vsel %vm1729, %v1723, %v1398
    %v1741 = vsel %vm1729, %v1724, %v1400
    %v1742 = vsel %vm1729, %v1725, %v1402
    %v1743 = vsel %vm1729, %v1726, %v1404
    %v1744 = vsel %vm1729, %v1727, %v1406
    %v1745 = vsel %vm1729, %v1728, %v1408
    %v1746 = vsel %vm811, %v1730, %v1426
    %v1747 = vsel %vm811, %v1731, %v1428
    %v1748 = vsel %vm811, %v1732, %v1430
    %v1749 = vsel %vm811, %v1733, %v1432
    %v1750 = vsel %vm811, %v1734, %v1434
    %v1751 = vsel %vm811, %v1735, %v1436
    %v1752 = vsel %vm811, %v1736, %v1438
    %v1753 = vsel %vm811, %v1737, %v1440
    %v1754 = vsel %vm811, %v1738, %v1442
    %v1755 = vsel %vm811, %v1739, %v1444
    %v1756 = vsel %vm811, %v1740, %v1446
    %v1757 = vsel %vm811, %v1741, %v1448
    %v1758 = vsel %vm811, %v1742, %v1450
    %v1759 = vsel %vm811, %v1743, %v1452
    %v1760 = vsel %vm811, %v1744, %v1454
    %v1761 = vsel %vm811, %v1745, %v1456
    %vm1762 = vcmask 130048
    %v1763 = vsel %vm1762, %v1746, %v1474
    %v1764 = vsel %vm1762, %v1747, %v1476
    %v1765 = vsel %vm1762, %v1748, %v1478
    %v1766 = vsel %vm1762, %v1749, %v1480
    %v1767 = vsel %vm1762, %v1750, %v1482
    %v1768 = vsel %vm1762, %v1751, %v1484
    %v1769 = vsel %vm1762, %v1752, %v1486
    %v1770 = vsel %vm1762, %v1753, %v1488
    %v1771 = vsel %vm1762, %v1754, %v1490
    %v1772 = vsel %vm1762, %v1755, %v1492
    %v1773 = vsel %vm1762, %v1756, %v1494
    %v1774 = vsel %vm1762, %v1757, %v1496
    %v1775 = vsel %vm1762, %v1758, %v1498
    %v1776 = vsel %vm1762, %v1759, %v1500
    %v1777 = vsel %vm1762, %v1760, %v1502
    %v1778 = vsel %vm1762, %v1761, %v1504
    %vm1779 = vcmask 162816
    %v1780 = vsel %vm1779, %v1763, %v1522
    %v1781 = vsel %vm1779, %v1764, %v1524
    %v1782 = vsel %vm1779, %v1765, %v1526
    %v1783 = vsel %vm1779, %v1766, %v1528
    %v1784 = vsel %vm1779, %v1767, %v1530
    %v1785 = vsel %vm1779, %v1768, %v1532
    %v1786 = vsel %vm1779, %v1769, %v1534
    %v1787 = vsel %vm1779, %v1770, %v1536
    %v1788 = vsel %vm1779, %v1771, %v1538
    %v1789 = vsel %vm1779, %v1772, %v1540
    %v1790 = vsel %vm1779, %v1773, %v1542
    %v1791 = vsel %vm1779, %v1774, %v1544
    %v1792 = vsel %vm1779, %v1775, %v1546
    %v1793 = vsel %vm1779, %v1776, %v1548
    %v1794 = vsel %vm1779, %v1777, %v1550
    %v1795 = vsel %vm1779, %v1778, %v1552
    %v1796 = vsel %vm879, %v1780, %v1570
    %v1797 = vsel %vm879, %v1781, %v1572
    %v1798 = vsel %vm879, %v1782, %v1574
    %v1799 = vsel %vm879, %v1783, %v1576
    %v1800 = vsel %vm879, %v1784, %v1578
    %v1801 = vsel %vm879, %v1785, %v1580
    %v1802 = vsel %vm879, %v1786, %v1582
    %v1803 = vsel %vm879, %v1787, %v1584
    %v1804 = vsel %vm879, %v1788, %v1586
    %v1805 = vsel %vm879, %v1789, %v1588
    %v1806 = vsel %vm879, %v1790, %v1590
    %v1807 = vsel %vm879, %v1791, %v1592
    %v1808 = vsel %vm879, %v1792, %v1594
    %v1809 = vsel %vm879, %v1793, %v1596
    %v1810 = vsel %vm879, %v1794, %v1598
    %v1811 = vsel %vm879, %v1795, %v1600
    %vm1812 = vcmask 228352
    %v1813 = vsel %vm1812, %v1796, %v1618
    %v1814 = vsel %vm1812, %v1797, %v1620
    %v1815 = vsel %vm1812, %v1798, %v1622
    %v1816 = vsel %vm1812, %v1799, %v1624
    %v1817 = vsel %vm1812, %v1800, %v1626
    %v1818 = vsel %vm1812, %v1801, %v1628
    %v1819 = vsel %vm1812, %v1802, %v1630
    %v1820 = vsel %vm1812, %v1803, %v1632
    %v1821 = vsel %vm1812, %v1804, %v1634
    %v1822 = vsel %vm1812, %v1805, %v1636
    %v1823 = vsel %vm1812, %v1806, %v1638
    %v1824 = vsel %vm1812, %v1807, %v1640
    %v1825 = vsel %vm1812, %v1808, %v1642
    %v1826 = vsel %vm1812, %v1809, %v1644
    %v1827 = vsel %vm1812, %v1810, %v1646
    %v1828 = vsel %vm1812, %v1811, %v1648
    %vm1829 = vcmask 261120
    %v1830 = vsel %vm1829, %v1813, %v1666
    %v1831 = vsel %vm1829, %v1814, %v1668
    %v1832 = vsel %vm1829, %v1815, %v1670
    %v1833 = vsel %vm1829, %v1816, %v1672
    %v1834 = vsel %vm1829, %v1817, %v1674
    %v1835 = vsel %vm1829, %v1818, %v1676
    %v1836 = vsel %vm1829, %v1819, %v1678
    %v1837 = vsel %vm1829, %v1820, %v1680
    %v1838 = vsel %vm1829, %v1821, %v1682
    %v1839 = vsel %vm1829, %v1822, %v1684
    %v1840 = vsel %vm1829, %v1823, %v1686
    %v1841 = vsel %vm1829, %v1824, %v1688
    %v1842 = vsel %vm1829, %v1825, %v1690
    %v1843 = vsel %vm1829, %v1826, %v1692
    %v1844 = vsel %vm1829, %v1827, %v1694
    %v1845 = vsel %vm1829, %v1828, %v1696
    %v1846 = vld [vmem:[%s3] sm:$0xff]
    %v1847 = vld [vmem:[%s3 + $0x8] sm:$0xff]
    %v1848 = vld [vmem:[%s3 + $0x10] sm:$0xff]
    %v1849 = vld [vmem:[%s3 + $0x18] sm:$0xff]
    %v1850 = vld [vmem:[%s3 + $0x20] sm:$0xf]
    %v1851 = vld [vmem:[#allocation6] sm:$0x1]
    %v1853 = vperm.slane %v1851, 0
    %vm1855 = vcmask 293888
    %v1857 = vsel %vm1855, %v1830, 0
    %v1860 = vsel %vm1855, %v1831, 0
    %v1863 = vsel %vm1855, %v1832, 0
    %v1866 = vsel %vm1855, %v1833, 0
    %v1869 = vsel %vm1855, %v1834, 0
    %v1872 = vsel %vm1855, %v1835, 0
    %v1875 = vsel %vm1855, %v1836, 0
    %v1878 = vsel %vm1855, %v1837, 0
    %v1881 = vsel %vm1855, %v1838, 0
    %v1884 = vsel %vm1855, %v1839, 0
    %v1887 = vsel %vm1855, %v1840, 0
    %v1890 = vsel %vm1855, %v1841, 0
    %v1893 = vsel %vm1855, %v1842, 0
    %v1896 = vsel %vm1855, %v1843, 0
    %v1899 = vsel %vm1855, %v1844, 0
    %v1902 = vsel %vm1855, %v1845, 0
    %vm1904 = vcmask 1043456
    %v1906 = vsel %vm1904, %v1850, 0
    %1908 = vmatpush.msra.mxu0 0.0
    %1909 = vmatpush.msra.mxu0 0.0
    %1910 = vmatpush.msra.mxu0 0.0
    %1911 = vmatpush.msra.mxu0 0.0
    %1912 = vmatpush.msra.mxu0 0.0
    %1913 = vmatpush.msra.mxu0 0.0
    %1914 = vmatpush.msra.mxu0 0.0
    %1915 = vmatpush.msra.mxu0 0.0
    %1916 = vmatpush.msra.mxu0 0.0
    %1917 = vmatpush.msra.mxu0 0.0
    %1918 = vmatpush.msra.mxu0 0.0
    %1919 = vmatpush.msra.mxu0 %v1906
    %1920 = vmatpush.msra.mxu0 %v1849
    %1921 = vmatpush.msra.mxu0 %v1848
    %1922 = vmatpush.msra.mxu0 %v1847
    %1923 = vmatpush.msra.mxu0 %v1846
    %1924 = vmatmul.f32.gmra.mxu0 %v1857
    %v1925 = vpop.f32.mrf.mxu0
    %v1926 = vadd.f32 %v1853, %v1925
    %1927 = vmatmul.f32.gmra.mxu0 %v1860
    %v1928 = vpop.f32.mrf.mxu0
    %v1929 = vadd.f32 %v1853, %v1928
    %1930 = vmatmul.f32.gmra.mxu0 %v1863
    %v1931 = vpop.f32.mrf.mxu0
    %v1932 = vadd.f32 %v1853, %v1931
    %1933 = vmatmul.f32.gmra.mxu0 %v1866
    %v1934 = vpop.f32.mrf.mxu0
    %v1935 = vadd.f32 %v1853, %v1934
    %1936 = vmatmul.f32.gmra.mxu0 %v1869
    %v1937 = vpop.f32.mrf.mxu0
    %v1938 = vadd.f32 %v1853, %v1937
    %1939 = vmatmul.f32.gmra.mxu0 %v1872
    %v1940 = vpop.f32.mrf.mxu0
    %v1941 = vadd.f32 %v1853, %v1940
    %1942 = vmatmul.f32.gmra.mxu0 %v1875
    %v1943 = vpop.f32.mrf.mxu0
    %v1944 = vadd.f32 %v1853, %v1943
    %1945 = vmatmul.f32.gmra.mxu0 %v1878
    %v1946 = vpop.f32.mrf.mxu0
    %v1947 = vadd.f32 %v1853, %v1946
    %1948 = vmatmul.f32.gmra.mxu0 %v1881
    %v1949 = vpop.f32.mrf.mxu0
    %v1950 = vadd.f32 %v1853, %v1949
    %1951 = vmatmul.f32.gmra.mxu0 %v1884
    %v1952 = vpop.f32.mrf.mxu0
    %v1953 = vadd.f32 %v1853, %v1952
    %1954 = vmatmul.f32.gmra.mxu0 %v1887
    %v1955 = vpop.f32.mrf.mxu0
    %v1956 = vadd.f32 %v1853, %v1955
    %1957 = vmatmul.f32.gmra.mxu0 %v1890
    %v1958 = vpop.f32.mrf.mxu0
    %v1959 = vadd.f32 %v1853, %v1958
    %1960 = vmatmul.f32.gmra.mxu0 %v1893
    %v1961 = vpop.f32.mrf.mxu0
    %v1962 = vadd.f32 %v1853, %v1961
    %1963 = vmatmul.f32.gmra.mxu0 %v1896
    %v1964 = vpop.f32.mrf.mxu0
    %v1965 = vadd.f32 %v1853, %v1964
    %1966 = vmatmul.f32.gmra.mxu0 %v1899
    %v1967 = vpop.f32.mrf.mxu0
    %v1968 = vadd.f32 %v1853, %v1967
    %1969 = vmatmul.f32.gmra.mxu0 %v1902
    %v1970 = vpop.f32.mrf.mxu0
    %v1971 = vadd.f32 %v1853, %v1970
    %1972 = vdwg.mxu0
    %v1973 = vsel %vm1070, %v1926, 0.0
    %v1974 = vsel %vm1070, %v1929, 0.0
    %v1975 = vadd.f32 %v1973, %v1974
    %v1976 = vsel %vm1070, %v1932, 0.0
    %v1977 = vadd.f32 %v1975, %v1976
    %v1978 = vsel %vm1070, %v1935, 0.0
    %v1979 = vadd.f32 %v1977, %v1978
    %v1980 = vsel %vm1070, %v1938, 0.0
    %v1981 = vadd.f32 %v1979, %v1980
    %v1982 = vsel %vm1070, %v1941, 0.0
    %v1983 = vadd.f32 %v1981, %v1982
    %v1984 = vsel %vm1070, %v1944, 0.0
    %v1985 = vadd.f32 %v1983, %v1984
    %v1986 = vsel %vm1070, %v1947, 0.0
    %v1987 = vadd.f32 %v1985, %v1986
    %v1988 = vsel %vm1070, %v1950, 0.0
    %v1989 = vadd.f32 %v1987, %v1988
    %v1990 = vsel %vm1070, %v1953, 0.0
    %v1991 = vadd.f32 %v1989, %v1990
    %v1992 = vsel %vm1070, %v1956, 0.0
    %v1993 = vadd.f32 %v1991, %v1992
    %v1994 = vsel %vm1070, %v1959, 0.0
    %v1995 = vadd.f32 %v1993, %v1994
    %v1996 = vsel %vm1070, %v1962, 0.0
    %v1997 = vadd.f32 %v1995, %v1996
    %v1998 = vsel %vm1070, %v1965, 0.0
    %v1999 = vadd.f32 %v1997, %v1998
    %v2000 = vsel %vm1070, %v1968, 0.0
    %v2001 = vadd.f32 %v1999, %v2000
    %v2002 = vsel %vm1070, %v1971, 0.0
    %v2003 = vadd.f32 %v2001, %v2002
    %v2004 = vrot.slane %v2003, 4
    %v2005 = vadd.f32 %v2003, %v2004
    %v2006 = vrot.slane %v2005, 2
    %v2007 = vadd.f32 %v2005, %v2006
    %v2008 = vrot.slane %v2007, 1
    %v2009 = vadd.f32 %v2007, %v2008
    %v2010 = vmul.f32 %v2009, 0.0078125
    %v2011 = vsub.f32 %v1926, %v2010
    %v2012 = vsub.f32 %v1929, %v2010
    %v2013 = vsub.f32 %v1932, %v2010
    %v2014 = vsub.f32 %v1935, %v2010
    %v2015 = vsub.f32 %v1938, %v2010
    %v2016 = vsub.f32 %v1941, %v2010
    %v2017 = vsub.f32 %v1944, %v2010
    %v2018 = vsub.f32 %v1947, %v2010
    %v2019 = vsub.f32 %v1950, %v2010
    %v2020 = vsub.f32 %v1953, %v2010
    %v2021 = vsub.f32 %v1956, %v2010
    %v2022 = vsub.f32 %v1959, %v2010
    %v2023 = vsub.f32 %v1962, %v2010
    %v2024 = vsub.f32 %v1965, %v2010
    %v2025 = vsub.f32 %v1968, %v2010
    %v2026 = vsub.f32 %v1971, %v2010
    %v2027 = vmul.f32 %v2011, %v2011
    %v2028 = vmul.f32 %v2012, %v2012
    %v2029 = vmul.f32 %v2013, %v2013
    %v2030 = vmul.f32 %v2014, %v2014
    %v2031 = vmul.f32 %v2015, %v2015
    %v2032 = vmul.f32 %v2016, %v2016
    %v2033 = vmul.f32 %v2017, %v2017
    %v2034 = vmul.f32 %v2018, %v2018
    %v2035 = vmul.f32 %v2019, %v2019
    %v2036 = vmul.f32 %v2020, %v2020
    %v2037 = vmul.f32 %v2021, %v2021
    %v2038 = vmul.f32 %v2022, %v2022
    %v2039 = vmul.f32 %v2023, %v2023
    %v2040 = vmul.f32 %v2024, %v2024
    %v2041 = vmul.f32 %v2025, %v2025
    %v2042 = vmul.f32 %v2026, %v2026
    %v2043 = vsel %vm1070, %v2027, 0.0
    %v2044 = vsel %vm1070, %v2028, 0.0
    %v2045 = vadd.f32 %v2043, %v2044
    %v2046 = vsel %vm1070, %v2029, 0.0
    %v2047 = vadd.f32 %v2045, %v2046
    %v2048 = vsel %vm1070, %v2030, 0.0
    %v2049 = vadd.f32 %v2047, %v2048
    %v2050 = vsel %vm1070, %v2031, 0.0
    %v2051 = vadd.f32 %v2049, %v2050
    %v2052 = vsel %vm1070, %v2032, 0.0
    %v2053 = vadd.f32 %v2051, %v2052
    %v2054 = vsel %vm1070, %v2033, 0.0
    %v2055 = vadd.f32 %v2053, %v2054
    %v2056 = vsel %vm1070, %v2034, 0.0
    %v2057 = vadd.f32 %v2055, %v2056
    %v2058 = vsel %vm1070, %v2035, 0.0
    %v2059 = vadd.f32 %v2057, %v2058
    %v2060 = vsel %vm1070, %v2036, 0.0
    %v2061 = vadd.f32 %v2059, %v2060
    %v2062 = vsel %vm1070, %v2037, 0.0
    %v2063 = vadd.f32 %v2061, %v2062
    %v2064 = vsel %vm1070, %v2038, 0.0
    %v2065 = vadd.f32 %v2063, %v2064
    %v2066 = vsel %vm1070, %v2039, 0.0
    %v2067 = vadd.f32 %v2065, %v2066
    %v2068 = vsel %vm1070, %v2040, 0.0
    %v2069 = vadd.f32 %v2067, %v2068
    %v2070 = vsel %vm1070, %v2041, 0.0
    %v2071 = vadd.f32 %v2069, %v2070
    %v2072 = vsel %vm1070, %v2042, 0.0
    %v2073 = vadd.f32 %v2071, %v2072
    %v2074 = vrot.slane %v2073, 4
    %v2075 = vadd.f32 %v2073, %v2074
    %v2076 = vrot.slane %v2075, 2
    %v2077 = vadd.f32 %v2075, %v2076
    %v2078 = vrot.slane %v2077, 1
    %v2079 = vadd.f32 %v2077, %v2078
    %v2080 = vmul.f32 %v2079, 0.0078125
    %v2081 = vadd.f32 %v2080, 1e-05
    %v2082 = vrsqrt.pop %v2081
    %v2083 = vmul.f32 %v2082, %v2081
    %v2084 = vmul.f32 %v2083, %v2082
    %v2085 = vmul.f32 0.5, %v2084
    %v2086 = vsub.f32 1.5, %v2085
    %v2087 = vmul.f32 %v2082, %v2086
    %vm2088 = vweird.f32 %v2081
    %vm2089 = vweird.f32 %v2082
    %vm2090 = vmor %vm2088, %vm2089
    %v2091 = vsel %vm2090, %v2082, %v2087
    %v2092 = vmul.f32 %v2011, %v2091
    %v2093 = vmul.f32 %v2012, %v2091
    %v2094 = vmul.f32 %v2013, %v2091
    %v2095 = vmul.f32 %v2014, %v2091
    %v2096 = vmul.f32 %v2015, %v2091
    %v2097 = vmul.f32 %v2016, %v2091
    %v2098 = vmul.f32 %v2017, %v2091
    %v2099 = vmul.f32 %v2018, %v2091
    %v2100 = vmul.f32 %v2019, %v2091
    %v2101 = vmul.f32 %v2020, %v2091
    %v2102 = vmul.f32 %v2021, %v2091
    %v2103 = vmul.f32 %v2022, %v2091
    %v2104 = vmul.f32 %v2023, %v2091
    %v2105 = vmul.f32 %v2024, %v2091
    %v2106 = vmul.f32 %v2025, %v2091
    %v2107 = vmul.f32 %v2026, %v2091
    %v2108 = vld [vmem:[#allocation8] sm:$0x1]
    %v2110 = vperm.slane %v2108, 0
    %v2112 = vmul.f32 %v2092, %v2110
    %v2113 = vmul.f32 %v2093, %v2110
    %v2114 = vmul.f32 %v2094, %v2110
    %v2115 = vmul.f32 %v2095, %v2110
    %v2116 = vmul.f32 %v2096, %v2110
    %v2117 = vmul.f32 %v2097, %v2110
    %v2118 = vmul.f32 %v2098, %v2110
    %v2119 = vmul.f32 %v2099, %v2110
    %v2120 = vmul.f32 %v2100, %v2110
    %v2121 = vmul.f32 %v2101, %v2110
    %v2122 = vmul.f32 %v2102, %v2110
    %v2123 = vmul.f32 %v2103, %v2110
    %v2124 = vmul.f32 %v2104, %v2110
    %v2125 = vmul.f32 %v2105, %v2110
    %v2126 = vmul.f32 %v2106, %v2110
    %v2127 = vmul.f32 %v2107, %v2110
    %v2128 = vld [vmem:[#allocation9] sm:$0x1]
    %v2130 = vperm.slane %v2128, 0
    %v2132 = vadd.f32 %v2112, %v2130
    %v2133 = vadd.f32 %v2113, %v2130
    %v2134 = vadd.f32 %v2114, %v2130
    %v2135 = vadd.f32 %v2115, %v2130
    %v2136 = vadd.f32 %v2116, %v2130
    %v2137 = vadd.f32 %v2117, %v2130
    %v2138 = vadd.f32 %v2118, %v2130
    %v2139 = vadd.f32 %v2119, %v2130
    %v2140 = vadd.f32 %v2120, %v2130
    %v2141 = vadd.f32 %v2121, %v2130
    %v2142 = vadd.f32 %v2122, %v2130
    %v2143 = vadd.f32 %v2123, %v2130
    %v2144 = vadd.f32 %v2124, %v2130
    %v2145 = vadd.f32 %v2125, %v2130
    %v2146 = vadd.f32 %v2126, %v2130
    %v2147 = vadd.f32 %v2127, %v2130
    %vm2148 = vcmp.ge.f32.partialorder %v2132, 0.0
    %vm2149 = vcmp.ge.f32.partialorder %v2133, 0.0
    %vm2150 = vcmp.ge.f32.partialorder %v2134, 0.0
    %vm2151 = vcmp.ge.f32.partialorder %v2135, 0.0
    %vm2152 = vcmp.ge.f32.partialorder %v2136, 0.0
    %vm2153 = vcmp.ge.f32.partialorder %v2137, 0.0
    %vm2154 = vcmp.ge.f32.partialorder %v2138, 0.0
    %vm2155 = vcmp.ge.f32.partialorder %v2139, 0.0
    %vm2156 = vcmp.ge.f32.partialorder %v2140, 0.0
    %vm2157 = vcmp.ge.f32.partialorder %v2141, 0.0
    %vm2158 = vcmp.ge.f32.partialorder %v2142, 0.0
    %vm2159 = vcmp.ge.f32.partialorder %v2143, 0.0
    %vm2160 = vcmp.ge.f32.partialorder %v2144, 0.0
    %vm2161 = vcmp.ge.f32.partialorder %v2145, 0.0
    %vm2162 = vcmp.ge.f32.partialorder %v2146, 0.0
    %vm2163 = vcmp.ge.f32.partialorder %v2147, 0.0
    %v2164 = vmul.f32 %v2132, 0.2
    %v2165 = vmul.f32 %v2133, 0.2
    %v2166 = vmul.f32 %v2134, 0.2
    %v2167 = vmul.f32 %v2135, 0.2
    %v2168 = vmul.f32 %v2136, 0.2
    %v2169 = vmul.f32 %v2137, 0.2
    %v2170 = vmul.f32 %v2138, 0.2
    %v2171 = vmul.f32 %v2139, 0.2
    %v2172 = vmul.f32 %v2140, 0.2
    %v2173 = vmul.f32 %v2141, 0.2
    %v2174 = vmul.f32 %v2142, 0.2
    %v2175 = vmul.f32 %v2143, 0.2
    %v2176 = vmul.f32 %v2144, 0.2
    %v2177 = vmul.f32 %v2145, 0.2
    %v2178 = vmul.f32 %v2146, 0.2
    %v2179 = vmul.f32 %v2147, 0.2
    %v2180 = vsel %vm2148, %v2132, %v2164
    %v2181 = vsel %vm2149, %v2133, %v2165
    %v2182 = vsel %vm2150, %v2134, %v2166
    %v2183 = vsel %vm2151, %v2135, %v2167
    %v2184 = vsel %vm2152, %v2136, %v2168
    %v2185 = vsel %vm2153, %v2137, %v2169
    %v2186 = vsel %vm2154, %v2138, %v2170
    %v2187 = vsel %vm2155, %v2139, %v2171
    %v2188 = vsel %vm2156, %v2140, %v2172
    %v2189 = vsel %vm2157, %v2141, %v2173
    %v2190 = vsel %vm2158, %v2142, %v2174
    %v2191 = vsel %vm2159, %v2143, %v2175
    %v2192 = vsel %vm2160, %v2144, %v2176
    %v2193 = vsel %vm2161, %v2145, %v2177
    %v2194 = vsel %vm2162, %v2146, %v2178
    %v2195 = vsel %vm2163, %v2147, %v2179
    %v2196 = vld [vmem:[%s7] sm:$0xf]
    %v2197 = vld [vmem:[#allocation11] sm:$0x1]
    %v2199 = vperm.slane %v2197, 0
    %v2202 = vsel %vm1070, %v2180, 0
    %v2205 = vsel %vm1070, %v2181, 0
    %v2208 = vsel %vm1070, %v2182, 0
    %v2211 = vsel %vm1070, %v2183, 0
    %v2214 = vsel %vm1070, %v2184, 0
    %v2217 = vsel %vm1070, %v2185, 0
    %v2220 = vsel %vm1070, %v2186, 0
    %v2223 = vsel %vm1070, %v2187, 0
    %v2226 = vsel %vm1070, %v2188, 0
    %v2229 = vsel %vm1070, %v2189, 0
    %v2232 = vsel %vm1070, %v2190, 0
    %v2235 = vsel %vm1070, %v2191, 0
    %v2238 = vsel %vm1070, %v2192, 0
    %v2241 = vsel %vm1070, %v2193, 0
    %v2244 = vsel %vm1070, %v2194, 0
    %v2247 = vsel %vm1070, %v2195, 0
    %v2250 = vsel %vm1904, %v2196, 0
    %2252 = vmatpush.msra.mxu0 0.0
    %2253 = vmatpush.msra.mxu0 0.0
    %2254 = vmatpush.msra.mxu0 0.0
    %2255 = vmatpush.msra.mxu0 0.0
    %2256 = vmatpush.msra.mxu0 0.0
    %2257 = vmatpush.msra.mxu0 0.0
    %2258 = vmatpush.msra.mxu0 0.0
    %2259 = vmatpush.msra.mxu0 0.0
    %2260 = vmatpush.msra.mxu0 0.0
    %2261 = vmatpush.msra.mxu0 0.0
    %2262 = vmatpush.msra.mxu0 0.0
    %2263 = vmatpush.msra.mxu0 0.0
    %2264 = vmatpush.msra.mxu0 0.0
    %2265 = vmatpush.msra.mxu0 0.0
    %2266 = vmatpush.msra.mxu0 0.0
    %2267 = vmatpush.msra.mxu0 %v2250
    %2268 = vmatmul.f32.gmra.mxu0 %v2202
    %v2269 = vpop.f32.mrf.mxu0
    %v2270 = vadd.f32 %v2199, %v2269
    %2271 = vmatmul.f32.gmra.mxu0 %v2205
    %v2272 = vpop.f32.mrf.mxu0
    %v2273 = vadd.f32 %v2199, %v2272
    %2274 = vmatmul.f32.gmra.mxu0 %v2208
    %v2275 = vpop.f32.mrf.mxu0
    %v2276 = vadd.f32 %v2199, %v2275
    %2277 = vmatmul.f32.gmra.mxu0 %v2211
    %v2278 = vpop.f32.mrf.mxu0
    %v2279 = vadd.f32 %v2199, %v2278
    %2280 = vmatmul.f32.gmra.mxu0 %v2214
    %v2281 = vpop.f32.mrf.mxu0
    %v2282 = vadd.f32 %v2199, %v2281
    %2283 = vmatmul.f32.gmra.mxu0 %v2217
    %v2284 = vpop.f32.mrf.mxu0
    %v2285 = vadd.f32 %v2199, %v2284
    %2286 = vmatmul.f32.gmra.mxu0 %v2220
    %v2287 = vpop.f32.mrf.mxu0
    %v2288 = vadd.f32 %v2199, %v2287
    %2289 = vmatmul.f32.gmra.mxu0 %v2223
    %v2290 = vpop.f32.mrf.mxu0
    %v2291 = vadd.f32 %v2199, %v2290
    %2292 = vmatmul.f32.gmra.mxu0 %v2226
    %v2293 = vpop.f32.mrf.mxu0
    %v2294 = vadd.f32 %v2199, %v2293
    %2295 = vmatmul.f32.gmra.mxu0 %v2229
    %v2296 = vpop.f32.mrf.mxu0
    %v2297 = vadd.f32 %v2199, %v2296
    %2298 = vmatmul.f32.gmra.mxu0 %v2232
    %v2299 = vpop.f32.mrf.mxu0
    %v2300 = vadd.f32 %v2199, %v2299
    %2301 = vmatmul.f32.gmra.mxu0 %v2235
    %v2302 = vpop.f32.mrf.mxu0
    %v2303 = vadd.f32 %v2199, %v2302
    %2304 = vmatmul.f32.gmra.mxu0 %v2238
    %v2305 = vpop.f32.mrf.mxu0
    %v2306 = vadd.f32 %v2199, %v2305
    %2307 = vmatmul.f32.gmra.mxu0 %v2241
    %v2308 = vpop.f32.mrf.mxu0
    %v2309 = vadd.f32 %v2199, %v2308
    %2310 = vmatmul.f32.gmra.mxu0 %v2244
    %v2311 = vpop.f32.mrf.mxu0
    %v2312 = vadd.f32 %v2199, %v2311
    %2313 = vmatmul.f32.gmra.mxu0 %v2247
    %v2314 = vpop.f32.mrf.mxu0
    %v2315 = vadd.f32 %v2199, %v2314
    %2316 = vdwg.mxu0
    %vm2317 = vcmask 15360
    %2318 = vst.msk [vmem:[%s9] sm:$0xff] %vm2317, %v2270
    %2319 = vst.msk [vmem:[%s9 + $0x8] sm:$0xff] %vm2317, %v2273
    %2320 = vst.msk [vmem:[%s9 + $0x10] sm:$0xff] %vm2317, %v2276
    %2321 = vst.msk [vmem:[%s9 + $0x18] sm:$0xff] %vm2317, %v2279
    %2322 = vst.msk [vmem:[%s9 + $0x20] sm:$0xff] %vm2317, %v2282
    %2323 = vst.msk [vmem:[%s9 + $0x28] sm:$0xff] %vm2317, %v2285
    %2324 = vst.msk [vmem:[%s9 + $0x30] sm:$0xff] %vm2317, %v2288
    %2325 = vst.msk [vmem:[%s9 + $0x38] sm:$0xff] %vm2317, %v2291
    %2326 = vst.msk [vmem:[%s9 + $0x40] sm:$0xff] %vm2317, %v2294
    %2327 = vst.msk [vmem:[%s9 + $0x48] sm:$0xff] %vm2317, %v2297
    %2328 = vst.msk [vmem:[%s9 + $0x50] sm:$0xff] %vm2317, %v2300
    %2329 = vst.msk [vmem:[%s9 + $0x58] sm:$0xff] %vm2317, %v2303
    %2330 = vst.msk [vmem:[%s9 + $0x60] sm:$0xff] %vm2317, %v2306
    %2331 = vst.msk [vmem:[%s9 + $0x68] sm:$0xff] %vm2317, %v2309
    %2332 = vst.msk [vmem:[%s9 + $0x70] sm:$0xff] %vm2317, %v2312
    %2333 = vst.msk [vmem:[%s9 + $0x78] sm:$0xff] %vm2317, %v2315
    // Predicated region
    $region58: #{conditional_flow_forward.2} parent=1 // pred_check
      _
    $region59: #{conditional_flow_forward.2} parent=1 // pred_check_branch
      %2335 = sbr.rel (0) target = $region61
    $region60: #{conditional_flow_forward.2} parent=1 // pred_region
      _
    $region61: #{conditional_flow_forward.2} parent=1 // pred_fallthru
      _
    // Predicated region
    $region62: #{conditional_flow_forward.2} parent=1 // pred_check
      _
    $region63: #{conditional_flow_forward.2} parent=1 // pred_check_branch
      %2337 = sbr.rel (0) target = $region65
    $region64: #{conditional_flow_forward.2} parent=1 // pred_region
      _
    $region65: #{conditional_flow_forward.2} parent=1 // pred_fallthru
      _
    %2338 = vsyncpa [#allocation5], 1
    %2339 = vsyncpa [#allocation7], 1
    %2340 = vsyncpa [#allocation10], 1

// kernel: conditional_flow_forward.3
$region0: #{conditional_flow_forward.3}
  #allocation0 [shape = 'u32[]', space=smem, size = 0x4, offset = 0x4, fixed_abs, tag = 'smem constant byte address 0x4 - core index']
  #allocation1 [shape = 'u32[72,128]{1,0:T(1,128)}', space=vmem, size = 0x9000, scoped, tag = 'internal scratch']
  #allocation2 [shape = 'f32[2,10,10,4]{3,2,1,0:T(8,128)}', space=vmem, size = 0x28000, scoped, tag = 'scratch operand']
  #allocation3 [shape = 'bf16[2,10,10,512]{3,2,1,0:T(8,128)(2,1)}', space=vmem, size = 0x50000, scoped, tag = 'scratch operand']
  %s0 = inlined_call_operand.vmem [shape: f32[2,8,8,4], index: 0, kind: input, shape index: {}]
  %s1 = inlined_call_operand.vmem [shape: f32[2,8,8,2], index: 1, kind: input, shape index: {}]
  %s2 = inlined_call_operand.vmem [shape: f32[4,4], index: 2, kind: input, shape index: {}]
  %s3 = inlined_call_operand.vmem [shape: f32[1,4], index: 3, kind: input, shape index: {}]
  %s4 = inlined_call_operand.vmem [shape: bf16[36,512], index: 4, kind: input, shape index: {}]
  %s5 = inlined_call_operand.vmem [shape: f32[1,512], index: 5, kind: input, shape index: {}]
  %s6 = inlined_call_operand.vmem [shape: bf16[512,512], index: 6, kind: input, shape index: {}]
  %s7 = inlined_call_operand.vmem [shape: f32[1,512], index: 7, kind: input, shape index: {}]
  %s8 = inlined_call_operand.vmem [shape: bf16[9,512,4], index: 8, kind: input, shape index: {}]
  %s9 = inlined_call_operand.vmem [shape: f32[1,4], index: 9, kind: input, shape index: {}]
  %s10 = inlined_call_operand.vmem [shape: f32[1,4], index: 10, kind: input, shape index: {}]
  %s11 = inlined_call_operand.vmem [shape: f32[2,8,8,4], index: 11, kind: output, shape index: {0}]
  %s12 = inlined_call_operand.vmem [shape: f32[2,8,128], index: 12, kind: output, shape index: {1}]
  %13 = xla_tuple %s11, %s12
  %s14 = sld [smem:[#allocation0]]
  $region62: #{conditional_flow_forward.3} parent=0
    _
  %s16 = ssub.s32 1, %s14
  %s17 = scalar_select 0, %s16, %s14
  // Predicated region
  $region2: #{conditional_flow_forward.3} parent=0 // pred_check
    _
  $region3: #{conditional_flow_forward.3} parent=0 // pred_check_branch
    %19 = sbr.rel (0) target = $region5
  $region4: #{conditional_flow_forward.3} parent=0 // pred_region
    _
  $region5: #{conditional_flow_forward.3} parent=0 // pred_fallthru
    _
  // Predicated region
  $region6: #{conditional_flow_forward.3} parent=0 // pred_check
    _
  $region7: #{conditional_flow_forward.3} parent=0 // pred_check_branch
    %21 = sbr.rel (0) target = $region9
  $region8: #{conditional_flow_forward.3} parent=0 // pred_region
    _
  $region9: #{conditional_flow_forward.3} parent=0 // pred_fallthru
    _
  // Predicated region
  $region10: #{conditional_flow_forward.3} parent=0 // pred_check
    _
  $region11: #{conditional_flow_forward.3} parent=0 // pred_check_branch
    %23 = sbr.rel (0) target = $region13
  $region12: #{conditional_flow_forward.3} parent=0 // pred_region
    _
  $region13: #{conditional_flow_forward.3} parent=0 // pred_fallthru
    _
  // Predicated region
  $region14: #{conditional_flow_forward.3} parent=0 // pred_check
    _
  $region15: #{conditional_flow_forward.3} parent=0 // pred_check_branch
    %25 = sbr.rel (0) target = $region17
  $region16: #{conditional_flow_forward.3} parent=0 // pred_region
    _
  $region17: #{conditional_flow_forward.3} parent=0 // pred_fallthru
    _
  // Predicated region
  $region18: #{conditional_flow_forward.3} parent=0 // pred_check
    _
  $region19: #{conditional_flow_forward.3} parent=0 // pred_check_branch
    %27 = sbr.rel (0) target = $region21
  $region20: #{conditional_flow_forward.3} parent=0 // pred_region
    _
  $region21: #{conditional_flow_forward.3} parent=0 // pred_fallthru
    _
  // Predicated region
  $region22: #{conditional_flow_forward.3} parent=0 // pred_check
    _
  $region23: #{conditional_flow_forward.3} parent=0 // pred_check_branch
    %29 = sbr.rel (0) target = $region25
  $region24: #{conditional_flow_forward.3} parent=0 // pred_region
    _
  $region25: #{conditional_flow_forward.3} parent=0 // pred_fallthru
    _
  // Predicated region
  $region26: #{conditional_flow_forward.3} parent=0 // pred_check
    _
  $region27: #{conditional_flow_forward.3} parent=0 // pred_check_branch
    %31 = sbr.rel (0) target = $region29
  $region28: #{conditional_flow_forward.3} parent=0 // pred_region
    _
  $region29: #{conditional_flow_forward.3} parent=0 // pred_fallthru
    _
  // Predicated region
  $region30: #{conditional_flow_forward.3} parent=0 // pred_check
    _
  $region31: #{conditional_flow_forward.3} parent=0 // pred_check_branch
    %33 = sbr.rel (0) target = $region33
  $region32: #{conditional_flow_forward.3} parent=0 // pred_region
    _
  $region33: #{conditional_flow_forward.3} parent=0 // pred_fallthru
    _
  // Predicated region
  $region34: #{conditional_flow_forward.3} parent=0 // pred_check
    _
  $region35: #{conditional_flow_forward.3} parent=0 // pred_check_branch
    %35 = sbr.rel (0) target = $region37
  $region36: #{conditional_flow_forward.3} parent=0 // pred_region
    _
  $region37: #{conditional_flow_forward.3} parent=0 // pred_fallthru
    _
  // Predicated region
  $region38: #{conditional_flow_forward.3} parent=0 // pred_check
    _
  $region39: #{conditional_flow_forward.3} parent=0 // pred_check_branch
    %37 = sbr.rel (0) target = $region41
  $region40: #{conditional_flow_forward.3} parent=0 // pred_region
    _
  $region41: #{conditional_flow_forward.3} parent=0 // pred_fallthru
    _
  // Predicated region
  $region42: #{conditional_flow_forward.3} parent=0 // pred_check
    _
  $region43: #{conditional_flow_forward.3} parent=0 // pred_check_branch
    %39 = sbr.rel (0) target = $region45
  $region44: #{conditional_flow_forward.3} parent=0 // pred_region
    _
  $region45: #{conditional_flow_forward.3} parent=0 // pred_fallthru
    _
  %vm42 = vcmask 31744
  %43 = vst.msk [vmem:[#allocation2] sm:$0xff] %vm42, 0.0
  %vm44 = vcmask 25600
  %45 = vst.msk [vmem:[#allocation2 + $0x8] sm:$0x3] %vm44, 0.0
  %46 = vst.msk [vmem:[#allocation2 + $0xa0] sm:$0xff] %vm42, 0.0
  %47 = vst.msk [vmem:[#allocation2 + $0xa8] sm:$0x3] %vm44, 0.0
  %s48 = scalar_lea.vmem [#allocation2], 144
  %49 = vst.msk [vmem:[%s48] sm:$0xff] %vm42, 0.0
  %50 = vst.msk [vmem:[%s48 + $0x8] sm:$0x3] %vm44, 0.0
  %51 = vst.msk [vmem:[%s48 + $0xa0] sm:$0xff] %vm42, 0.0
  %52 = vst.msk [vmem:[%s48 + $0xa8] sm:$0x3] %vm44, 0.0
  %vm53 = vcmask 24576
  %54 = vst.msk [vmem:[#allocation2] sm:$0x1] %vm53, 0.0
  %55 = vst.msk [vmem:[#allocation2 + $0x10] sm:$0x1] %vm53, 0.0
  %56 = vst.msk [vmem:[#allocation2 + $0x20] sm:$0x1] %vm53, 0.0
  %57 = vst.msk [vmem:[#allocation2 + $0x30] sm:$0x1] %vm53, 0.0
  %58 = vst.msk [vmem:[#allocation2 + $0x40] sm:$0x1] %vm53, 0.0
  %59 = vst.msk [vmem:[#allocation2 + $0x50] sm:$0x1] %vm53, 0.0
  %60 = vst.msk [vmem:[#allocation2 + $0x60] sm:$0x1] %vm53, 0.0
  %61 = vst.msk [vmem:[#allocation2 + $0x70] sm:$0x1] %vm53, 0.0
  %62 = vst.msk [vmem:[#allocation2 + $0x80] sm:$0x1] %vm53, 0.0
  %63 = vst.msk [vmem:[#allocation2 + $0x90] sm:$0x1] %vm53, 0.0
  %64 = vst.msk [vmem:[#allocation2 + $0xa0] sm:$0x1] %vm53, 0.0
  %65 = vst.msk [vmem:[#allocation2 + $0xb0] sm:$0x1] %vm53, 0.0
  %66 = vst.msk [vmem:[#allocation2 + $0xc0] sm:$0x1] %vm53, 0.0
  %67 = vst.msk [vmem:[#allocation2 + $0xd0] sm:$0x1] %vm53, 0.0
  %68 = vst.msk [vmem:[#allocation2 + $0xe0] sm:$0x1] %vm53, 0.0
  %69 = vst.msk [vmem:[#allocation2 + $0xf0] sm:$0x1] %vm53, 0.0
  %70 = vst.msk [vmem:[#allocation2 + $0x100] sm:$0x1] %vm53, 0.0
  %71 = vst.msk [vmem:[#allocation2 + $0x110] sm:$0x1] %vm53, 0.0
  %72 = vst.msk [vmem:[#allocation2 + $0x120] sm:$0x1] %vm53, 0.0
  %73 = vst.msk [vmem:[#allocation2 + $0x130] sm:$0x1] %vm53, 0.0
  %74 = vst.msk [vmem:[#allocation2 + $0x9] sm:$0x1] %vm53, 0.0
  %75 = vst.msk [vmem:[#allocation2 + $0x19] sm:$0x1] %vm53, 0.0
  %76 = vst.msk [vmem:[#allocation2 + $0x29] sm:$0x1] %vm53, 0.0
  %77 = vst.msk [vmem:[#allocation2 + $0x39] sm:$0x1] %vm53, 0.0
  %78 = vst.msk [vmem:[#allocation2 + $0x49] sm:$0x1] %vm53, 0.0
  %79 = vst.msk [vmem:[#allocation2 + $0x59] sm:$0x1] %vm53, 0.0
  %80 = vst.msk [vmem:[#allocation2 + $0x69] sm:$0x1] %vm53, 0.0
  %81 = vst.msk [vmem:[#allocation2 + $0x79] sm:$0x1] %vm53, 0.0
  %82 = vst.msk [vmem:[#allocation2 + $0x89] sm:$0x1] %vm53, 0.0
  %83 = vst.msk [vmem:[#allocation2 + $0x99] sm:$0x1] %vm53, 0.0
  %84 = vst.msk [vmem:[#allocation2 + $0xa9] sm:$0x1] %vm53, 0.0
  %85 = vst.msk [vmem:[#allocation2 + $0xb9] sm:$0x1] %vm53, 0.0
  %86 = vst.msk [vmem:[#allocation2 + $0xc9] sm:$0x1] %vm53, 0.0
  %87 = vst.msk [vmem:[#allocation2 + $0xd9] sm:$0x1] %vm53, 0.0
  %88 = vst.msk [vmem:[#allocation2 + $0xe9] sm:$0x1] %vm53, 0.0
  %89 = vst.msk [vmem:[#allocation2 + $0xf9] sm:$0x1] %vm53, 0.0
  %90 = vst.msk [vmem:[#allocation2 + $0x109] sm:$0x1] %vm53, 0.0
  %91 = vst.msk [vmem:[#allocation2 + $0x119] sm:$0x1] %vm53, 0.0
  %92 = vst.msk [vmem:[#allocation2 + $0x129] sm:$0x1] %vm53, 0.0
  %93 = vst.msk [vmem:[#allocation2 + $0x139] sm:$0x1] %vm53, 0.0
  %94 = vst [vmem:[#allocation3] sm:$0xff] 1065369472
  %95 = vst [vmem:[#allocation3 + $0x8] sm:$0xff] 1065369472
  %96 = vst [vmem:[#allocation3 + $0x10] sm:$0x11] 1065369472
  %97 = vst [vmem:[#allocation3 + $0x18] sm:$0x11] 1065369472
  %98 = vst [vmem:[#allocation3 + $0x140] sm:$0xff] 1065369472
  %99 = vst [vmem:[#allocation3 + $0x148] sm:$0xff] 1065369472
  %100 = vst [vmem:[#allocation3 + $0x150] sm:$0x11] 1065369472
  %101 = vst [vmem:[#allocation3 + $0x158] sm:$0x11] 1065369472
  %s102 = scalar_lea.vmem [#allocation3], 288
  %103 = vst [vmem:[%s102] sm:$0xff] 1065369472
  %104 = vst [vmem:[%s102 + $0x8] sm:$0xff] 1065369472
  %105 = vst [vmem:[%s102 + $0x10] sm:$0x11] 1065369472
  %106 = vst [vmem:[%s102 + $0x18] sm:$0x11] 1065369472
  %107 = vst [vmem:[%s102 + $0x140] sm:$0xff] 1065369472
  %108 = vst [vmem:[%s102 + $0x148] sm:$0xff] 1065369472
  %109 = vst [vmem:[%s102 + $0x150] sm:$0x11] 1065369472
  %110 = vst [vmem:[%s102 + $0x158] sm:$0x11] 1065369472
  %vm111 = vcmask 1040384
  %vm112 = vsmask.f32 256
  %vm113 = vmand %vm111, %vm112
  %vm114 = vcmask 1044484
  %vm115 = vsmask.f32 4352
  %vm116 = vmand %vm114, %vm115
  %vm117 = vmor %vm116, %vm113
  %v118 = vld [vmem:[#allocation3] sm:$0x11]
  %v119 = vsel %vm117, 1065369472, %v118
  %120 = vst [vmem:[#allocation3] sm:$0x11] %v119
  %v121 = vld [vmem:[#allocation3 + $0x8] sm:$0x11]
  %v122 = vsel %vm117, 1065369472, %v121
  %123 = vst [vmem:[#allocation3 + $0x8] sm:$0x11] %v122
  %v124 = vld [vmem:[#allocation3 + $0x20] sm:$0x11]
  %v125 = vsel %vm117, 1065369472, %v124
  %126 = vst [vmem:[#allocation3 + $0x20] sm:$0x11] %v125
  %v127 = vld [vmem:[#allocation3 + $0x28] sm:$0x11]
  %v128 = vsel %vm117, 1065369472, %v127
  %129 = vst [vmem:[#allocation3 + $0x28] sm:$0x11] %v128
  %v130 = vld [vmem:[#allocation3 + $0x40] sm:$0x11]
  %v131 = vsel %vm117, 1065369472, %v130
  %132 = vst [vmem:[#allocation3 + $0x40] sm:$0x11] %v131
  %v133 = vld [vmem:[#allocation3 + $0x48] sm:$0x11]
  %v134 = vsel %vm117, 1065369472, %v133
  %135 = vst [vmem:[#allocation3 + $0x48] sm:$0x11] %v134
  %v136 = vld [vmem:[#allocation3 + $0x60] sm:$0x11]
  %v137 = vsel %vm117, 1065369472, %v136
  %138 = vst [vmem:[#allocation3 + $0x60] sm:$0x11] %v137
  %v139 = vld [vmem:[#allocation3 + $0x68] sm:$0x11]
  %v140 = vsel %vm117, 1065369472, %v139
  %141 = vst [vmem:[#allocation3 + $0x68] sm:$0x11] %v140
  %v142 = vld [vmem:[#allocation3 + $0x80] sm:$0x11]
  %v143 = vsel %vm117, 1065369472, %v142
  %144 = vst [vmem:[#allocation3 + $0x80] sm:$0x11] %v143
  %v145 = vld [vmem:[#allocation3 + $0x88] sm:$0x11]
  %v146 = vsel %vm117, 1065369472, %v145
  %147 = vst [vmem:[#allocation3 + $0x88] sm:$0x11] %v146
  %v148 = vld [vmem:[#allocation3 + $0xa0] sm:$0x11]
  %v149 = vsel %vm117, 1065369472, %v148
  %150 = vst [vmem:[#allocation3 + $0xa0] sm:$0x11] %v149
  %v151 = vld [vmem:[#allocation3 + $0xa8] sm:$0x11]
  %v152 = vsel %vm117, 1065369472, %v151
  %153 = vst [vmem:[#allocation3 + $0xa8] sm:$0x11] %v152
  %v154 = vld [vmem:[#allocation3 + $0xc0] sm:$0x11]
  %v155 = vsel %vm117, 1065369472, %v154
  %156 = vst [vmem:[#allocation3 + $0xc0] sm:$0x11] %v155
  %v157 = vld [vmem:[#allocation3 + $0xc8] sm:$0x11]
  %v158 = vsel %vm117, 1065369472, %v157
  %159 = vst [vmem:[#allocation3 + $0xc8] sm:$0x11] %v158
  %v160 = vld [vmem:[#allocation3 + $0xe0] sm:$0x11]
  %v161 = vsel %vm117, 1065369472, %v160
  %162 = vst [vmem:[#allocation3 + $0xe0] sm:$0x11] %v161
  %v163 = vld [vmem:[#allocation3 + $0xe8] sm:$0x11]
  %v164 = vsel %vm117, 1065369472, %v163
  %165 = vst [vmem:[#allocation3 + $0xe8] sm:$0x11] %v164
  %v166 = vld [vmem:[#allocation3 + $0x100] sm:$0x11]
  %v167 = vsel %vm117, 1065369472, %v166
  %168 = vst [vmem:[#allocation3 + $0x100] sm:$0x11] %v167
  %v169 = vld [vmem:[#allocation3 + $0x108] sm:$0x11]
  %v170 = vsel %vm117, 1065369472, %v169
  %171 = vst [vmem:[#allocation3 + $0x108] sm:$0x11] %v170
  %v172 = vld [vmem:[#allocation3 + $0x120] sm:$0x11]
  %v173 = vsel %vm117, 1065369472, %v172
  %174 = vst [vmem:[#allocation3 + $0x120] sm:$0x11] %v173
  %v175 = vld [vmem:[#allocation3 + $0x128] sm:$0x11]
  %v176 = vsel %vm117, 1065369472, %v175
  %177 = vst [vmem:[#allocation3 + $0x128] sm:$0x11] %v176
  %v178 = vld [vmem:[#allocation3 + $0x140] sm:$0x11]
  %v179 = vsel %vm117, 1065369472, %v178
  %180 = vst [vmem:[#allocation3 + $0x140] sm:$0x11] %v179
  %v181 = vld [vmem:[#allocation3 + $0x148] sm:$0x11]
  %v182 = vsel %vm117, 1065369472, %v181
  %183 = vst [vmem:[#allocation3 + $0x148] sm:$0x11] %v182
  %v184 = vld [vmem:[#allocation3 + $0x160] sm:$0x11]
  %v185 = vsel %vm117, 1065369472, %v184
  %186 = vst [vmem:[#allocation3 + $0x160] sm:$0x11] %v185
  %v187 = vld [vmem:[#allocation3 + $0x168] sm:$0x11]
  %v188 = vsel %vm117, 1065369472, %v187
  %189 = vst [vmem:[#allocation3 + $0x168] sm:$0x11] %v188
  %v190 = vld [vmem:[#allocation3 + $0x180] sm:$0x11]
  %v191 = vsel %vm117, 1065369472, %v190
  %192 = vst [vmem:[#allocation3 + $0x180] sm:$0x11] %v191
  %v193 = vld [vmem:[#allocation3 + $0x188] sm:$0x11]
  %v194 = vsel %vm117, 1065369472, %v193
  %195 = vst [vmem:[#allocation3 + $0x188] sm:$0x11] %v194
  %v196 = vld [vmem:[#allocation3 + $0x1a0] sm:$0x11]
  %v197 = vsel %vm117, 1065369472, %v196
  %198 = vst [vmem:[#allocation3 + $0x1a0] sm:$0x11] %v197
  %v199 = vld [vmem:[#allocation3 + $0x1a8] sm:$0x11]
  %v200 = vsel %vm117, 1065369472, %v199
  %201 = vst [vmem:[#allocation3 + $0x1a8] sm:$0x11] %v200
  %v202 = vld [vmem:[#allocation3 + $0x1c0] sm:$0x11]
  %v203 = vsel %vm117, 1065369472, %v202
  %204 = vst [vmem:[#allocation3 + $0x1c0] sm:$0x11] %v203
  %v205 = vld [vmem:[#allocation3 + $0x1c8] sm:$0x11]
  %v206 = vsel %vm117, 1065369472, %v205
  %207 = vst [vmem:[#allocation3 + $0x1c8] sm:$0x11] %v206
  %v208 = vld [vmem:[#allocation3 + $0x1e0] sm:$0x11]
  %v209 = vsel %vm117, 1065369472, %v208
  %210 = vst [vmem:[#allocation3 + $0x1e0] sm:$0x11] %v209
  %v211 = vld [vmem:[#allocation3 + $0x1e8] sm:$0x11]
  %v212 = vsel %vm117, 1065369472, %v211
  %213 = vst [vmem:[#allocation3 + $0x1e8] sm:$0x11] %v212
  %v214 = vld [vmem:[#allocation3 + $0x200] sm:$0x11]
  %v215 = vsel %vm117, 1065369472, %v214
  %216 = vst [vmem:[#allocation3 + $0x200] sm:$0x11] %v215
  %v217 = vld [vmem:[#allocation3 + $0x208] sm:$0x11]
  %v218 = vsel %vm117, 1065369472, %v217
  %219 = vst [vmem:[#allocation3 + $0x208] sm:$0x11] %v218
  %v220 = vld [vmem:[#allocation3 + $0x220] sm:$0x11]
  %v221 = vsel %vm117, 1065369472, %v220
  %222 = vst [vmem:[#allocation3 + $0x220] sm:$0x11] %v221
  %v223 = vld [vmem:[#allocation3 + $0x228] sm:$0x11]
  %v224 = vsel %vm117, 1065369472, %v223
  %225 = vst [vmem:[#allocation3 + $0x228] sm:$0x11] %v224
  %v226 = vld [vmem:[#allocation3 + $0x240] sm:$0x11]
  %v227 = vsel %vm117, 1065369472, %v226
  %228 = vst [vmem:[#allocation3 + $0x240] sm:$0x11] %v227
  %v229 = vld [vmem:[#allocation3 + $0x248] sm:$0x11]
  %v230 = vsel %vm117, 1065369472, %v229
  %231 = vst [vmem:[#allocation3 + $0x248] sm:$0x11] %v230
  %v232 = vld [vmem:[#allocation3 + $0x260] sm:$0x11]
  %v233 = vsel %vm117, 1065369472, %v232
  %234 = vst [vmem:[#allocation3 + $0x260] sm:$0x11] %v233
  %v235 = vld [vmem:[#allocation3 + $0x268] sm:$0x11]
  %v236 = vsel %vm117, 1065369472, %v235
  %237 = vst [vmem:[#allocation3 + $0x268] sm:$0x11] %v236
  %vm238 = vsmask.f32 7938
  %vm239 = vmand %vm111, %vm238
  %vm240 = vsmask.f32 7954
  %vm241 = vmand %vm114, %vm240
  %vm242 = vmor %vm241, %vm239
  %v243 = vld [vmem:[#allocation3 + $0x10] sm:$0x11]
  %v244 = vsel %vm242, 1065369472, %v243
  %245 = vst [vmem:[#allocation3 + $0x10] sm:$0x11] %v244
  %v246 = vld [vmem:[#allocation3 + $0x18] sm:$0x11]
  %v247 = vsel %vm242, 1065369472, %v246
  %248 = vst [vmem:[#allocation3 + $0x18] sm:$0x11] %v247
  %v249 = vld [vmem:[#allocation3 + $0x30] sm:$0x11]
  %v250 = vsel %vm242, 1065369472, %v249
  %251 = vst [vmem:[#allocation3 + $0x30] sm:$0x11] %v250
  %v252 = vld [vmem:[#allocation3 + $0x38] sm:$0x11]
  %v253 = vsel %vm242, 1065369472, %v252
  %254 = vst [vmem:[#allocation3 + $0x38] sm:$0x11] %v253
  %v255 = vld [vmem:[#allocation3 + $0x50] sm:$0x11]
  %v256 = vsel %vm242, 1065369472, %v255
  %257 = vst [vmem:[#allocation3 + $0x50] sm:$0x11] %v256
  %v258 = vld [vmem:[#allocation3 + $0x58] sm:$0x11]
  %v259 = vsel %vm242, 1065369472, %v258
  %260 = vst [vmem:[#allocation3 + $0x58] sm:$0x11] %v259
  %v261 = vld [vmem:[#allocation3 + $0x70] sm:$0x11]
  %v262 = vsel %vm242, 1065369472, %v261
  %263 = vst [vmem:[#allocation3 + $0x70] sm:$0x11] %v262
  %v264 = vld [vmem:[#allocation3 + $0x78] sm:$0x11]
  %v265 = vsel %vm242, 1065369472, %v264
  %266 = vst [vmem:[#allocation3 + $0x78] sm:$0x11] %v265
  %v267 = vld [vmem:[#allocation3 + $0x90] sm:$0x11]
  %v268 = vsel %vm242, 1065369472, %v267
  %269 = vst [vmem:[#allocation3 + $0x90] sm:$0x11] %v268
  %v270 = vld [vmem:[#allocation3 + $0x98] sm:$0x11]
  %v271 = vsel %vm242, 1065369472, %v270
  %272 = vst [vmem:[#allocation3 + $0x98] sm:$0x11] %v271
  %v273 = vld [vmem:[#allocation3 + $0xb0] sm:$0x11]
  %v274 = vsel %vm242, 1065369472, %v273
  %275 = vst [vmem:[#allocation3 + $0xb0] sm:$0x11] %v274
  %v276 = vld [vmem:[#allocation3 + $0xb8] sm:$0x11]
  %v277 = vsel %vm242, 1065369472, %v276
  %278 = vst [vmem:[#allocation3 + $0xb8] sm:$0x11] %v277
  %v279 = vld [vmem:[#allocation3 + $0xd0] sm:$0x11]
  %v280 = vsel %vm242, 1065369472, %v279
  %281 = vst [vmem:[#allocation3 + $0xd0] sm:$0x11] %v280
  %v282 = vld [vmem:[#allocation3 + $0xd8] sm:$0x11]
  %v283 = vsel %vm242, 1065369472, %v282
  %284 = vst [vmem:[#allocation3 + $0xd8] sm:$0x11] %v283
  %v285 = vld [vmem:[#allocation3 + $0xf0] sm:$0x11]
  %v286 = vsel %vm242, 1065369472, %v285
  %287 = vst [vmem:[#allocation3 + $0xf0] sm:$0x11] %v286
  %v288 = vld [vmem:[#allocation3 + $0xf8] sm:$0x11]
  %v289 = vsel %vm242, 1065369472, %v288
  %290 = vst [vmem:[#allocation3 + $0xf8] sm:$0x11] %v289
  %v291 = vld [vmem:[#allocation3 + $0x110] sm:$0x11]
  %v292 = vsel %vm242, 1065369472, %v291
  %293 = vst [vmem:[#allocation3 + $0x110] sm:$0x11] %v292
  %v294 = vld [vmem:[#allocation3 + $0x118] sm:$0x11]
  %v295 = vsel %vm242, 1065369472, %v294
  %296 = vst [vmem:[#allocation3 + $0x118] sm:$0x11] %v295
  %v297 = vld [vmem:[#allocation3 + $0x130] sm:$0x11]
  %v298 = vsel %vm242, 1065369472, %v297
  %299 = vst [vmem:[#allocation3 + $0x130] sm:$0x11] %v298
  %v300 = vld [vmem:[#allocation3 + $0x138] sm:$0x11]
  %v301 = vsel %vm242, 1065369472, %v300
  %302 = vst [vmem:[#allocation3 + $0x138] sm:$0x11] %v301
  %v303 = vld [vmem:[#allocation3 + $0x150] sm:$0x11]
  %v304 = vsel %vm242, 1065369472, %v303
  %305 = vst [vmem:[#allocation3 + $0x150] sm:$0x11] %v304
  %v306 = vld [vmem:[#allocation3 + $0x158] sm:$0x11]
  %v307 = vsel %vm242, 1065369472, %v306
  %308 = vst [vmem:[#allocation3 + $0x158] sm:$0x11] %v307
  %v309 = vld [vmem:[#allocation3 + $0x170] sm:$0x11]
  %v310 = vsel %vm242, 1065369472, %v309
  %311 = vst [vmem:[#allocation3 + $0x170] sm:$0x11] %v310
  %v312 = vld [vmem:[#allocation3 + $0x178] sm:$0x11]
  %v313 = vsel %vm242, 1065369472, %v312
  %314 = vst [vmem:[#allocation3 + $0x178] sm:$0x11] %v313
  %v315 = vld [vmem:[#allocation3 + $0x190] sm:$0x11]
  %v316 = vsel %vm242, 1065369472, %v315
  %317 = vst [vmem:[#allocation3 + $0x190] sm:$0x11] %v316
  %v318 = vld [vmem:[#allocation3 + $0x198] sm:$0x11]
  %v319 = vsel %vm242, 1065369472, %v318
  %320 = vst [vmem:[#allocation3 + $0x198] sm:$0x11] %v319
  %v321 = vld [vmem:[#allocation3 + $0x1b0] sm:$0x11]
  %v322 = vsel %vm242, 1065369472, %v321
  %323 = vst [vmem:[#allocation3 + $0x1b0] sm:$0x11] %v322
  %v324 = vld [vmem:[#allocation3 + $0x1b8] sm:$0x11]
  %v325 = vsel %vm242, 1065369472, %v324
  %326 = vst [vmem:[#allocation3 + $0x1b8] sm:$0x11] %v325
  %v327 = vld [vmem:[#allocation3 + $0x1d0] sm:$0x11]
  %v328 = vsel %vm242, 1065369472, %v327
  %329 = vst [vmem:[#allocation3 + $0x1d0] sm:$0x11] %v328
  %v330 = vld [vmem:[#allocation3 + $0x1d8] sm:$0x11]
  %v331 = vsel %vm242, 1065369472, %v330
  %332 = vst [vmem:[#allocation3 + $0x1d8] sm:$0x11] %v331
  %v333 = vld [vmem:[#allocation3 + $0x1f0] sm:$0x11]
  %v334 = vsel %vm242, 1065369472, %v333
  %335 = vst [vmem:[#allocation3 + $0x1f0] sm:$0x11] %v334
  %v336 = vld [vmem:[#allocation3 + $0x1f8] sm:$0x11]
  %v337 = vsel %vm242, 1065369472, %v336
  %338 = vst [vmem:[#allocation3 + $0x1f8] sm:$0x11] %v337
  %v339 = vld [vmem:[#allocation3 + $0x210] sm:$0x11]
  %v340 = vsel %vm242, 1065369472, %v339
  %341 = vst [vmem:[#allocation3 + $0x210] sm:$0x11] %v340
  %v342 = vld [vmem:[#allocation3 + $0x218] sm:$0x11]
  %v343 = vsel %vm242, 1065369472, %v342
  %344 = vst [vmem:[#allocation3 + $0x218] sm:$0x11] %v343
  %v345 = vld [vmem:[#allocation3 + $0x230] sm:$0x11]
  %v346 = vsel %vm242, 1065369472, %v345
  %347 = vst [vmem:[#allocation3 + $0x230] sm:$0x11] %v346
  %v348 = vld [vmem:[#allocation3 + $0x238] sm:$0x11]
  %v349 = vsel %vm242, 1065369472, %v348
  %350 = vst [vmem:[#allocation3 + $0x238] sm:$0x11] %v349
  %v351 = vld [vmem:[#allocation3 + $0x250] sm:$0x11]
  %v352 = vsel %vm242, 1065369472, %v351
  %353 = vst [vmem:[#allocation3 + $0x250] sm:$0x11] %v352
  %v354 = vld [vmem:[#allocation3 + $0x258] sm:$0x11]
  %v355 = vsel %vm242, 1065369472, %v354
  %356 = vst [vmem:[#allocation3 + $0x258] sm:$0x11] %v355
  %v357 = vld [vmem:[#allocation3 + $0x270] sm:$0x11]
  %v358 = vsel %vm242, 1065369472, %v357
  %359 = vst [vmem:[#allocation3 + $0x270] sm:$0x11] %v358
  %v360 = vld [vmem:[#allocation3 + $0x278] sm:$0x11]
  %v361 = vsel %vm242, 1065369472, %v360
  %362 = vst [vmem:[#allocation3 + $0x278] sm:$0x11] %v361
  %v363 = vld [vmem:[%s0] sm:$0xff]
  %v364 = vld [vmem:[%s0 + $0x8] sm:$0xff]
  %v365 = vld [vmem:[%s0 + $0x10] sm:$0xff]
  %v366 = vld [vmem:[%s0 + $0x18] sm:$0xff]
  %v367 = vld [vmem:[%s0 + $0x20] sm:$0xff]
  %v368 = vld [vmem:[%s0 + $0x28] sm:$0xff]
  %v369 = vld [vmem:[%s0 + $0x30] sm:$0xff]
  %v370 = vld [vmem:[%s0 + $0x38] sm:$0xff]
  %v371 = vld [vmem:[%s0 + $0x40] sm:$0xff]
  %v372 = vld [vmem:[%s0 + $0x48] sm:$0xff]
  %v373 = vld [vmem:[%s0 + $0x50] sm:$0xff]
  %v374 = vld [vmem:[%s0 + $0x58] sm:$0xff]
  %v375 = vld [vmem:[%s0 + $0x60] sm:$0xff]
  %v376 = vld [vmem:[%s0 + $0x68] sm:$0xff]
  %v377 = vld [vmem:[%s0 + $0x70] sm:$0xff]
  %v378 = vld [vmem:[%s0 + $0x78] sm:$0xff]
  %v379 = vld [vmem:[%s2] sm:$0xf]
  %v380 = vld [vmem:[%s3] sm:$0x1]
  %v382 = vperm.slane %v380, 0
  %v385 = vsel %vm42, %v363, 0
  %v388 = vsel %vm42, %v364, 0
  %v391 = vsel %vm42, %v365, 0
  %v394 = vsel %vm42, %v366, 0
  %v397 = vsel %vm42, %v367, 0
  %v400 = vsel %vm42, %v368, 0
  %v403 = vsel %vm42, %v369, 0
  %v406 = vsel %vm42, %v370, 0
  %v409 = vsel %vm42, %v371, 0
  %v412 = vsel %vm42, %v372, 0
  %v415 = vsel %vm42, %v373, 0
  %v418 = vsel %vm42, %v374, 0
  %v421 = vsel %vm42, %v375, 0
  %v424 = vsel %vm42, %v376, 0
  %v427 = vsel %vm42, %v377, 0
  %v430 = vsel %vm42, %v378, 0
  %vm432 = vcmask 1043456
  %v434 = vsel %vm432, %v379, 0
  %436 = vmatpush.msra.mxu0 0.0
  %437 = vmatpush.msra.mxu0 0.0
  %438 = vmatpush.msra.mxu0 0.0
  %439 = vmatpush.msra.mxu0 0.0
  %440 = vmatpush.msra.mxu0 0.0
  %441 = vmatpush.msra.mxu0 0.0
  %442 = vmatpush.msra.mxu0 0.0
  %443 = vmatpush.msra.mxu0 0.0
  %444 = vmatpush.msra.mxu0 0.0
  %445 = vmatpush.msra.mxu0 0.0
  %446 = vmatpush.msra.mxu0 0.0
  %447 = vmatpush.msra.mxu0 0.0
  %448 = vmatpush.msra.mxu0 0.0
  %449 = vmatpush.msra.mxu0 0.0
  %450 = vmatpush.msra.mxu0 0.0
  %451 = vmatpush.msra.mxu0 %v434
  %452 = vmatmul.f32.gmra.mxu0 %v385
  %v453 = vpop.f32.mrf.mxu0
  %v454 = vadd.f32 %v382, %v453
  %455 = vmatmul.f32.gmra.mxu0 %v388
  %v456 = vpop.f32.mrf.mxu0
  %v457 = vadd.f32 %v382, %v456
  %458 = vmatmul.f32.gmra.mxu0 %v391
  %v459 = vpop.f32.mrf.mxu0
  %v460 = vadd.f32 %v382, %v459
  %461 = vmatmul.f32.gmra.mxu0 %v394
  %v462 = vpop.f32.mrf.mxu0
  %v463 = vadd.f32 %v382, %v462
  %464 = vmatmul.f32.gmra.mxu0 %v397
  %v465 = vpop.f32.mrf.mxu0
  %v466 = vadd.f32 %v382, %v465
  %467 = vmatmul.f32.gmra.mxu0 %v400
  %v468 = vpop.f32.mrf.mxu0
  %v469 = vadd.f32 %v382, %v468
  %470 = vmatmul.f32.gmra.mxu0 %v403
  %v471 = vpop.f32.mrf.mxu0
  %v472 = vadd.f32 %v382, %v471
  %473 = vmatmul.f32.gmra.mxu0 %v406
  %v474 = vpop.f32.mrf.mxu0
  %v475 = vadd.f32 %v382, %v474
  %476 = vmatmul.f32.gmra.mxu0 %v409
  %v477 = vpop.f32.mrf.mxu0
  %v478 = vadd.f32 %v382, %v477
  %479 = vmatmul.f32.gmra.mxu0 %v412
  %v480 = vpop.f32.mrf.mxu0
  %v481 = vadd.f32 %v382, %v480
  %482 = vmatmul.f32.gmra.mxu0 %v415
  %v483 = vpop.f32.mrf.mxu0
  %v484 = vadd.f32 %v382, %v483
  %485 = vmatmul.f32.gmra.mxu0 %v418
  %v486 = vpop.f32.mrf.mxu0
  %v487 = vadd.f32 %v382, %v486
  %488 = vmatmul.f32.gmra.mxu0 %v421
  %v489 = vpop.f32.mrf.mxu0
  %v490 = vadd.f32 %v382, %v489
  %491 = vmatmul.f32.gmra.mxu0 %v424
  %v492 = vpop.f32.mrf.mxu0
  %v493 = vadd.f32 %v382, %v492
  %494 = vmatmul.f32.gmra.mxu0 %v427
  %v495 = vpop.f32.mrf.mxu0
  %v496 = vadd.f32 %v382, %v495
  %497 = vmatmul.f32.gmra.mxu0 %v430
  %v498 = vpop.f32.mrf.mxu0
  %v499 = vadd.f32 %v382, %v498
  %500 = vdwg.mxu0
  %s501 = scalar_lea.vmem [#allocation2], 16
  %vm502 = vcmask 15360
  %503 = vst.msk [vmem:[%s501 + $0x1] sm:$0xff] %vm502, %v454
  %504 = vst.msk [vmem:[%s501 + $0x11] sm:$0xff] %vm502, %v457
  %505 = vst.msk [vmem:[%s501 + $0x21] sm:$0xff] %vm502, %v460
  %506 = vst.msk [vmem:[%s501 + $0x31] sm:$0xff] %vm502, %v463
  %507 = vst.msk [vmem:[%s501 + $0x41] sm:$0xff] %vm502, %v466
  %508 = vst.msk [vmem:[%s501 + $0x51] sm:$0xff] %vm502, %v469
  %509 = vst.msk [vmem:[%s501 + $0x61] sm:$0xff] %vm502, %v472
  %510 = vst.msk [vmem:[%s501 + $0x71] sm:$0xff] %vm502, %v475
  %511 = vst.msk [vmem:[%s501 + $0xa1] sm:$0xff] %vm502, %v478
  %512 = vst.msk [vmem:[%s501 + $0xb1] sm:$0xff] %vm502, %v481
  %513 = vst.msk [vmem:[%s501 + $0xc1] sm:$0xff] %vm502, %v484
  %514 = vst.msk [vmem:[%s501 + $0xd1] sm:$0xff] %vm502, %v487
  %515 = vst.msk [vmem:[%s501 + $0xe1] sm:$0xff] %vm502, %v490
  %516 = vst.msk [vmem:[%s501 + $0xf1] sm:$0xff] %vm502, %v493
  %517 = vst.msk [vmem:[%s501 + $0x101] sm:$0xff] %vm502, %v496
  %518 = vst.msk [vmem:[%s501 + $0x111] sm:$0xff] %vm502, %v499
  %v519 = vld [vmem:[%s1] sm:$0xff]
  %v520 = vld [vmem:[%s1 + $0x8] sm:$0xff]
  %v521 = vld [vmem:[%s1 + $0x10] sm:$0xff]
  %v522 = vld [vmem:[%s1 + $0x18] sm:$0xff]
  %v523 = vld [vmem:[%s1 + $0x20] sm:$0xff]
  %v524 = vld [vmem:[%s1 + $0x28] sm:$0xff]
  %v525 = vld [vmem:[%s1 + $0x30] sm:$0xff]
  %v526 = vld [vmem:[%s1 + $0x38] sm:$0xff]
  %v527 = vld [vmem:[%s1 + $0x40] sm:$0xff]
  %v528 = vld [vmem:[%s1 + $0x48] sm:$0xff]
  %v529 = vld [vmem:[%s1 + $0x50] sm:$0xff]
  %v530 = vld [vmem:[%s1 + $0x58] sm:$0xff]
  %v531 = vld [vmem:[%s1 + $0x60] sm:$0xff]
  %v532 = vld [vmem:[%s1 + $0x68] sm:$0xff]
  %v533 = vld [vmem:[%s1 + $0x70] sm:$0xff]
  %v534 = vld [vmem:[%s1 + $0x78] sm:$0xff]
  %551 = vrot.lane.b32.xlu0 %v519, 2
  %v552 = vpop.permute.xlu0 %551
  %553 = vrot.lane.b32.xlu0 %v520, 2
  %v554 = vpop.permute.xlu0 %553
  %555 = vrot.lane.b32.xlu0 %v521, 2
  %v556 = vpop.permute.xlu0 %555
  %557 = vrot.lane.b32.xlu0 %v522, 2
  %v558 = vpop.permute.xlu0 %557
  %559 = vrot.lane.b32.xlu0 %v523, 2
  %v560 = vpop.permute.xlu0 %559
  %561 = vrot.lane.b32.xlu0 %v524, 2
  %v562 = vpop.permute.xlu0 %561
  %563 = vrot.lane.b32.xlu0 %v525, 2
  %v564 = vpop.permute.xlu0 %563
  %565 = vrot.lane.b32.xlu0 %v526, 2
  %v566 = vpop.permute.xlu0 %565
  %567 = vrot.lane.b32.xlu0 %v527, 2
  %v568 = vpop.permute.xlu0 %567
  %569 = vrot.lane.b32.xlu0 %v528, 2
  %v570 = vpop.permute.xlu0 %569
  %571 = vrot.lane.b32.xlu0 %v529, 2
  %v572 = vpop.permute.xlu0 %571
  %573 = vrot.lane.b32.xlu0 %v530, 2
  %v574 = vpop.permute.xlu0 %573
  %575 = vrot.lane.b32.xlu0 %v531, 2
  %v576 = vpop.permute.xlu0 %575
  %577 = vrot.lane.b32.xlu0 %v532, 2
  %v578 = vpop.permute.xlu0 %577
  %579 = vrot.lane.b32.xlu0 %v533, 2
  %v580 = vpop.permute.xlu0 %579
  %581 = vrot.lane.b32.xlu0 %v534, 2
  %v582 = vpop.permute.xlu0 %581
  %vm599 = vcmask 31760
  %600 = vst.msk [vmem:[%s501 + $0x1] sm:$0xff] %vm599, %v552
  %601 = vst.msk [vmem:[%s501 + $0x11] sm:$0xff] %vm599, %v554
  %602 = vst.msk [vmem:[%s501 + $0x21] sm:$0xff] %vm599, %v556
  %603 = vst.msk [vmem:[%s501 + $0x31] sm:$0xff] %vm599, %v558
  %604 = vst.msk [vmem:[%s501 + $0x41] sm:$0xff] %vm599, %v560
  %605 = vst.msk [vmem:[%s501 + $0x51] sm:$0xff] %vm599, %v562
  %606 = vst.msk [vmem:[%s501 + $0x61] sm:$0xff] %vm599, %v564
  %607 = vst.msk [vmem:[%s501 + $0x71] sm:$0xff] %vm599, %v566
  %608 = vst.msk [vmem:[%s501 + $0xa1] sm:$0xff] %vm599, %v568
  %609 = vst.msk [vmem:[%s501 + $0xb1] sm:$0xff] %vm599, %v570
  %610 = vst.msk [vmem:[%s501 + $0xc1] sm:$0xff] %vm599, %v572
  %611 = vst.msk [vmem:[%s501 + $0xd1] sm:$0xff] %vm599, %v574
  %612 = vst.msk [vmem:[%s501 + $0xe1] sm:$0xff] %vm599, %v576
  %613 = vst.msk [vmem:[%s501 + $0xf1] sm:$0xff] %vm599, %v578
  %614 = vst.msk [vmem:[%s501 + $0x101] sm:$0xff] %vm599, %v580
  %615 = vst.msk [vmem:[%s501 + $0x111] sm:$0xff] %vm599, %v582
  %v616 = vld [vmem:[#allocation2] sm:$0xff]
  %v617 = vld [vmem:[#allocation2 + $0x8] sm:$0x3]
  %v618 = vld [vmem:[#allocation2 + $0x10] sm:$0xff]
  %v619 = vld [vmem:[#allocation2 + $0x18] sm:$0x3]
  %v620 = vld [vmem:[#allocation2 + $0x20] sm:$0xff]
  %v621 = vld [vmem:[#allocation2 + $0x28] sm:$0x3]
  %v622 = vld [vmem:[#allocation2 + $0x30] sm:$0xff]
  %v623 = vld [vmem:[#allocation2 + $0x38] sm:$0x3]
  %v624 = vld [vmem:[#allocation2 + $0x40] sm:$0xff]
  %v625 = vld [vmem:[#allocation2 + $0x48] sm:$0x3]
  %v626 = vld [vmem:[#allocation2 + $0x50] sm:$0xff]
  %v627 = vld [vmem:[#allocation2 + $0x58] sm:$0x3]
  %v628 = vld [vmem:[#allocation2 + $0x60] sm:$0xff]
  %v629 = vld [vmem:[#allocation2 + $0x68] sm:$0x3]
  %v630 = vld [vmem:[#allocation2 + $0x70] sm:$0xff]
  %v631 = vld [vmem:[#allocation2 + $0x78] sm:$0x3]
  %v632 = vld [vmem:[#allocation2 + $0x80] sm:$0xff]
  %v633 = vld [vmem:[#allocation2 + $0x88] sm:$0x3]
  %v634 = vld [vmem:[#allocation2 + $0x90] sm:$0xff]
  %v635 = vld [vmem:[#allocation2 + $0x98] sm:$0x3]
  %v636 = vld [vmem:[#allocation2 + $0xa0] sm:$0xff]
  %v637 = vld [vmem:[#allocation2 + $0xa8] sm:$0x3]
  %v638 = vld [vmem:[#allocation2 + $0xb0] sm:$0xff]
  %v639 = vld [vmem:[#allocation2 + $0xb8] sm:$0x3]
  %v640 = vld [vmem:[#allocation2 + $0xc0] sm:$0xff]
  %v641 = vld [vmem:[#allocation2 + $0xc8] sm:$0x3]
  %v642 = vld [vmem:[#allocation2 + $0xd0] sm:$0xff]
  %v643 = vld [vmem:[#allocation2 + $0xd8] sm:$0x3]
  %v644 = vld [vmem:[#allocation2 + $0xe0] sm:$0xff]
  %v645 = vld [vmem:[#allocation2 + $0xe8] sm:$0x3]
  %v646 = vld [vmem:[#allocation2 + $0xf0] sm:$0xff]
  %v647 = vld [vmem:[#allocation2 + $0xf8] sm:$0x3]
  %v648 = vld [vmem:[#allocation2 + $0x100] sm:$0xff]
  %v649 = vld [vmem:[#allocation2 + $0x108] sm:$0x3]
  %v650 = vld [vmem:[#allocation2 + $0x110] sm:$0xff]
  %v651 = vld [vmem:[#allocation2 + $0x118] sm:$0x3]
  %v652 = vld [vmem:[#allocation2 + $0x120] sm:$0xff]
  %v653 = vld [vmem:[#allocation2 + $0x128] sm:$0x3]
  %v654 = vld [vmem:[#allocation2 + $0x130] sm:$0xff]
  %v655 = vld [vmem:[#allocation2 + $0x138] sm:$0x3]
  %vm688 = vcmask 1046528
  %v689 = vrot.slane %v616, 1
  %v690 = vrot.slane %v617, 1
  %v691 = vsel %vm688, %v689, %v690
  %v692 = vrot.slane %v618, 1
  %v693 = vrot.slane %v619, 1
  %v694 = vsel %vm688, %v692, %v693
  %v695 = vrot.slane %v620, 1
  %v696 = vrot.slane %v621, 1
  %v697 = vsel %vm688, %v695, %v696
  %v698 = vrot.slane %v622, 1
  %v699 = vrot.slane %v623, 1
  %v700 = vsel %vm688, %v698, %v699
  %v701 = vrot.slane %v624, 1
  %v702 = vrot.slane %v625, 1
  %v703 = vsel %vm688, %v701, %v702
  %v704 = vrot.slane %v626, 1
  %v705 = vrot.slane %v627, 1
  %v706 = vsel %vm688, %v704, %v705
  %v707 = vrot.slane %v628, 1
  %v708 = vrot.slane %v629, 1
  %v709 = vsel %vm688, %v707, %v708
  %v710 = vrot.slane %v630, 1
  %v711 = vrot.slane %v631, 1
  %v712 = vsel %vm688, %v710, %v711
  %v713 = vrot.slane %v636, 1
  %v714 = vrot.slane %v637, 1
  %v715 = vsel %vm688, %v713, %v714
  %v716 = vrot.slane %v638, 1
  %v717 = vrot.slane %v639, 1
  %v718 = vsel %vm688, %v716, %v717
  %v719 = vrot.slane %v640, 1
  %v720 = vrot.slane %v641, 1
  %v721 = vsel %vm688, %v719, %v720
  %v722 = vrot.slane %v642, 1
  %v723 = vrot.slane %v643, 1
  %v724 = vsel %vm688, %v722, %v723
  %v725 = vrot.slane %v644, 1
  %v726 = vrot.slane %v645, 1
  %v727 = vsel %vm688, %v725, %v726
  %v728 = vrot.slane %v646, 1
  %v729 = vrot.slane %v647, 1
  %v730 = vsel %vm688, %v728, %v729
  %v731 = vrot.slane %v648, 1
  %v732 = vrot.slane %v649, 1
  %v733 = vsel %vm688, %v731, %v732
  %v734 = vrot.slane %v650, 1
  %v735 = vrot.slane %v651, 1
  %v736 = vsel %vm688, %v734, %v735
  %vm737 = vcmask 1045504
  %v738 = vrot.slane %v616, 2
  %v739 = vrot.slane %v617, 2
  %v740 = vsel %vm737, %v738, %v739
  %v741 = vrot.slane %v618, 2
  %v742 = vrot.slane %v619, 2
  %v743 = vsel %vm737, %v741, %v742
  %v744 = vrot.slane %v620, 2
  %v745 = vrot.slane %v621, 2
  %v746 = vsel %vm737, %v744, %v745
  %v747 = vrot.slane %v622, 2
  %v748 = vrot.slane %v623, 2
  %v749 = vsel %vm737, %v747, %v748
  %v750 = vrot.slane %v624, 2
  %v751 = vrot.slane %v625, 2
  %v752 = vsel %vm737, %v750, %v751
  %v753 = vrot.slane %v626, 2
  %v754 = vrot.slane %v627, 2
  %v755 = vsel %vm737, %v753, %v754
  %v756 = vrot.slane %v628, 2
  %v757 = vrot.slane %v629, 2
  %v758 = vsel %vm737, %v756, %v757
  %v759 = vrot.slane %v630, 2
  %v760 = vrot.slane %v631, 2
  %v761 = vsel %vm737, %v759, %v760
  %v762 = vrot.slane %v636, 2
  %v763 = vrot.slane %v637, 2
  %v764 = vsel %vm737, %v762, %v763
  %v765 = vrot.slane %v638, 2
  %v766 = vrot.slane %v639, 2
  %v767 = vsel %vm737, %v765, %v766
  %v768 = vrot.slane %v640, 2
  %v769 = vrot.slane %v641, 2
  %v770 = vsel %vm737, %v768, %v769
  %v771 = vrot.slane %v642, 2
  %v772 = vrot.slane %v643, 2
  %v773 = vsel %vm737, %v771, %v772
  %v774 = vrot.slane %v644, 2
  %v775 = vrot.slane %v645, 2
  %v776 = vsel %vm737, %v774, %v775
  %v777 = vrot.slane %v646, 2
  %v778 = vrot.slane %v647, 2
  %v779 = vsel %vm737, %v777, %v778
  %v780 = vrot.slane %v648, 2
  %v781 = vrot.slane %v649, 2
  %v782 = vsel %vm737, %v780, %v781
  %v783 = vrot.slane %v650, 2
  %v784 = vrot.slane %v651, 2
  %v785 = vsel %vm737, %v783, %v784
  %v790 = vrot.slane %v632, 1
  %v791 = vrot.slane %v633, 1
  %v792 = vsel %vm688, %v790, %v791
  %v793 = vrot.slane %v652, 1
  %v794 = vrot.slane %v653, 1
  %v795 = vsel %vm688, %v793, %v794
  %v796 = vrot.slane %v632, 2
  %v797 = vrot.slane %v633, 2
  %v798 = vsel %vm737, %v796, %v797
  %v799 = vrot.slane %v652, 2
  %v800 = vrot.slane %v653, 2
  %v801 = vsel %vm737, %v799, %v800
  %v806 = vrot.slane %v634, 1
  %v807 = vrot.slane %v635, 1
  %v808 = vsel %vm688, %v806, %v807
  %v809 = vrot.slane %v654, 1
  %v810 = vrot.slane %v655, 1
  %v811 = vsel %vm688, %v809, %v810
  %v812 = vrot.slane %v634, 2
  %v813 = vrot.slane %v635, 2
  %v814 = vsel %vm737, %v812, %v813
  %v815 = vrot.slane %v654, 2
  %v816 = vrot.slane %v655, 2
  %v817 = vsel %vm737, %v815, %v816
  %818 = vrot.lane.b32.xlu0 %v691, 4
  %v819 = vpop.permute.xlu0 %818
  %820 = vrot.lane.b32.xlu0 %v694, 4
  %v821 = vpop.permute.xlu0 %820
  %822 = vrot.lane.b32.xlu0 %v697, 4
  %v823 = vpop.permute.xlu0 %822
  %824 = vrot.lane.b32.xlu0 %v700, 4
  %v825 = vpop.permute.xlu0 %824
  %826 = vrot.lane.b32.xlu0 %v703, 4
  %v827 = vpop.permute.xlu0 %826
  %828 = vrot.lane.b32.xlu0 %v706, 4
  %v829 = vpop.permute.xlu0 %828
  %830 = vrot.lane.b32.xlu0 %v709, 4
  %v831 = vpop.permute.xlu0 %830
  %832 = vrot.lane.b32.xlu0 %v712, 4
  %v833 = vpop.permute.xlu0 %832
  %834 = vrot.lane.b32.xlu0 %v715, 4
  %v835 = vpop.permute.xlu0 %834
  %836 = vrot.lane.b32.xlu0 %v718, 4
  %v837 = vpop.permute.xlu0 %836
  %838 = vrot.lane.b32.xlu0 %v721, 4
  %v839 = vpop.permute.xlu0 %838
  %840 = vrot.lane.b32.xlu0 %v724, 4
  %v841 = vpop.permute.xlu0 %840
  %842 = vrot.lane.b32.xlu0 %v727, 4
  %v843 = vpop.permute.xlu0 %842
  %844 = vrot.lane.b32.xlu0 %v730, 4
  %v845 = vpop.permute.xlu0 %844
  %846 = vrot.lane.b32.xlu0 %v733, 4
  %v847 = vpop.permute.xlu0 %846
  %848 = vrot.lane.b32.xlu0 %v736, 4
  %v849 = vpop.permute.xlu0 %848
  %866 = vrot.lane.b32.xlu0 %v740, 8
  %v867 = vpop.permute.xlu0 %866
  %868 = vrot.lane.b32.xlu0 %v743, 8
  %v869 = vpop.permute.xlu0 %868
  %870 = vrot.lane.b32.xlu0 %v746, 8
  %v871 = vpop.permute.xlu0 %870
  %872 = vrot.lane.b32.xlu0 %v749, 8
  %v873 = vpop.permute.xlu0 %872
  %874 = vrot.lane.b32.xlu0 %v752, 8
  %v875 = vpop.permute.xlu0 %874
  %876 = vrot.lane.b32.xlu0 %v755, 8
  %v877 = vpop.permute.xlu0 %876
  %878 = vrot.lane.b32.xlu0 %v758, 8
  %v879 = vpop.permute.xlu0 %878
  %880 = vrot.lane.b32.xlu0 %v761, 8
  %v881 = vpop.permute.xlu0 %880
  %882 = vrot.lane.b32.xlu0 %v764, 8
  %v883 = vpop.permute.xlu0 %882
  %884 = vrot.lane.b32.xlu0 %v767, 8
  %v885 = vpop.permute.xlu0 %884
  %886 = vrot.lane.b32.xlu0 %v770, 8
  %v887 = vpop.permute.xlu0 %886
  %888 = vrot.lane.b32.xlu0 %v773, 8
  %v889 = vpop.permute.xlu0 %888
  %890 = vrot.lane.b32.xlu0 %v776, 8
  %v891 = vpop.permute.xlu0 %890
  %892 = vrot.lane.b32.xlu0 %v779, 8
  %v893 = vpop.permute.xlu0 %892
  %894 = vrot.lane.b32.xlu0 %v782, 8
  %v895 = vpop.permute.xlu0 %894
  %896 = vrot.lane.b32.xlu0 %v785, 8
  %v897 = vpop.permute.xlu0 %896
  %914 = vrot.lane.b32.xlu0 %v618, 12
  %v915 = vpop.permute.xlu0 %914
  %916 = vrot.lane.b32.xlu0 %v620, 12
  %v917 = vpop.permute.xlu0 %916
  %918 = vrot.lane.b32.xlu0 %v622, 12
  %v919 = vpop.permute.xlu0 %918
  %920 = vrot.lane.b32.xlu0 %v624, 12
  %v921 = vpop.permute.xlu0 %920
  %922 = vrot.lane.b32.xlu0 %v626, 12
  %v923 = vpop.permute.xlu0 %922
  %924 = vrot.lane.b32.xlu0 %v628, 12
  %v925 = vpop.permute.xlu0 %924
  %926 = vrot.lane.b32.xlu0 %v630, 12
  %v927 = vpop.permute.xlu0 %926
  %928 = vrot.lane.b32.xlu0 %v632, 12
  %v929 = vpop.permute.xlu0 %928
  %930 = vrot.lane.b32.xlu0 %v638, 12
  %v931 = vpop.permute.xlu0 %930
  %932 = vrot.lane.b32.xlu0 %v640, 12
  %v933 = vpop.permute.xlu0 %932
  %934 = vrot.lane.b32.xlu0 %v642, 12
  %v935 = vpop.permute.xlu0 %934
  %936 = vrot.lane.b32.xlu0 %v644, 12
  %v937 = vpop.permute.xlu0 %936
  %938 = vrot.lane.b32.xlu0 %v646, 12
  %v939 = vpop.permute.xlu0 %938
  %940 = vrot.lane.b32.xlu0 %v648, 12
  %v941 = vpop.permute.xlu0 %940
  %942 = vrot.lane.b32.xlu0 %v650, 12
  %v943 = vpop.permute.xlu0 %942
  %944 = vrot.lane.b32.xlu0 %v652, 12
  %v945 = vpop.permute.xlu0 %944
  %962 = vrot.lane.b32.xlu0 %v694, 16
  %v963 = vpop.permute.xlu0 %962
  %964 = vrot.lane.b32.xlu0 %v697, 16
  %v965 = vpop.permute.xlu0 %964
  %966 = vrot.lane.b32.xlu0 %v700, 16
  %v967 = vpop.permute.xlu0 %966
  %968 = vrot.lane.b32.xlu0 %v703, 16
  %v969 = vpop.permute.xlu0 %968
  %970 = vrot.lane.b32.xlu0 %v706, 16
  %v971 = vpop.permute.xlu0 %970
  %972 = vrot.lane.b32.xlu0 %v709, 16
  %v973 = vpop.permute.xlu0 %972
  %974 = vrot.lane.b32.xlu0 %v712, 16
  %v975 = vpop.permute.xlu0 %974
  %976 = vrot.lane.b32.xlu0 %v792, 16
  %v977 = vpop.permute.xlu0 %976
  %978 = vrot.lane.b32.xlu0 %v718, 16
  %v979 = vpop.permute.xlu0 %978
  %980 = vrot.lane.b32.xlu0 %v721, 16
  %v981 = vpop.permute.xlu0 %980
  %982 = vrot.lane.b32.xlu0 %v724, 16
  %v983 = vpop.permute.xlu0 %982
  %984 = vrot.lane.b32.xlu0 %v727, 16
  %v985 = vpop.permute.xlu0 %984
  %986 = vrot.lane.b32.xlu0 %v730, 16
  %v987 = vpop.permute.xlu0 %986
  %988 = vrot.lane.b32.xlu0 %v733, 16
  %v989 = vpop.permute.xlu0 %988
  %990 = vrot.lane.b32.xlu0 %v736, 16
  %v991 = vpop.permute.xlu0 %990
  %992 = vrot.lane.b32.xlu0 %v795, 16
  %v993 = vpop.permute.xlu0 %992
  %1010 = vrot.lane.b32.xlu0 %v743, 20
  %v1011 = vpop.permute.xlu0 %1010
  %1012 = vrot.lane.b32.xlu0 %v746, 20
  %v1013 = vpop.permute.xlu0 %1012
  %1014 = vrot.lane.b32.xlu0 %v749, 20
  %v1015 = vpop.permute.xlu0 %1014
  %1016 = vrot.lane.b32.xlu0 %v752, 20
  %v1017 = vpop.permute.xlu0 %1016
  %1018 = vrot.lane.b32.xlu0 %v755, 20
  %v1019 = vpop.permute.xlu0 %1018
  %1020 = vrot.lane.b32.xlu0 %v758, 20
  %v1021 = vpop.permute.xlu0 %1020
  %1022 = vrot.lane.b32.xlu0 %v761, 20
  %v1023 = vpop.permute.xlu0 %1022
  %1024 = vrot.lane.b32.xlu0 %v798, 20
  %v1025 = vpop.permute.xlu0 %1024
  %1026 = vrot.lane.b32.xlu0 %v767, 20
  %v1027 = vpop.permute.xlu0 %1026
  %1028 = vrot.lane.b32.xlu0 %v770, 20
  %v1029 = vpop.permute.xlu0 %1028
  %1030 = vrot.lane.b32.xlu0 %v773, 20
  %v1031 = vpop.permute.xlu0 %1030
  %1032 = vrot.lane.b32.xlu0 %v776, 20
  %v1033 = vpop.permute.xlu0 %1032
  %1034 = vrot.lane.b32.xlu0 %v779, 20
  %v1035 = vpop.permute.xlu0 %1034
  %1036 = vrot.lane.b32.xlu0 %v782, 20
  %v1037 = vpop.permute.xlu0 %1036
  %1038 = vrot.lane.b32.xlu0 %v785, 20
  %v1039 = vpop.permute.xlu0 %1038
  %1040 = vrot.lane.b32.xlu0 %v801, 20
  %v1041 = vpop.permute.xlu0 %1040
  %1058 = vrot.lane.b32.xlu0 %v620, 24
  %v1059 = vpop.permute.xlu0 %1058
  %1060 = vrot.lane.b32.xlu0 %v622, 24
  %v1061 = vpop.permute.xlu0 %1060
  %1062 = vrot.lane.b32.xlu0 %v624, 24
  %v1063 = vpop.permute.xlu0 %1062
  %1064 = vrot.lane.b32.xlu0 %v626, 24
  %v1065 = vpop.permute.xlu0 %1064
  %1066 = vrot.lane.b32.xlu0 %v628, 24
  %v1067 = vpop.permute.xlu0 %1066
  %1068 = vrot.lane.b32.xlu0 %v630, 24
  %v1069 = vpop.permute.xlu0 %1068
  %1070 = vrot.lane.b32.xlu0 %v632, 24
  %v1071 = vpop.permute.xlu0 %1070
  %1072 = vrot.lane.b32.xlu0 %v634, 24
  %v1073 = vpop.permute.xlu0 %1072
  %1074 = vrot.lane.b32.xlu0 %v640, 24
  %v1075 = vpop.permute.xlu0 %1074
  %1076 = vrot.lane.b32.xlu0 %v642, 24
  %v1077 = vpop.permute.xlu0 %1076
  %1078 = vrot.lane.b32.xlu0 %v644, 24
  %v1079 = vpop.permute.xlu0 %1078
  %1080 = vrot.lane.b32.xlu0 %v646, 24
  %v1081 = vpop.permute.xlu0 %1080
  %1082 = vrot.lane.b32.xlu0 %v648, 24
  %v1083 = vpop.permute.xlu0 %1082
  %1084 = vrot.lane.b32.xlu0 %v650, 24
  %v1085 = vpop.permute.xlu0 %1084
  %1086 = vrot.lane.b32.xlu0 %v652, 24
  %v1087 = vpop.permute.xlu0 %1086
  %1088 = vrot.lane.b32.xlu0 %v654, 24
  %v1089 = vpop.permute.xlu0 %1088
  %1106 = vrot.lane.b32.xlu0 %v697, 28
  %v1107 = vpop.permute.xlu0 %1106
  %1108 = vrot.lane.b32.xlu0 %v700, 28
  %v1109 = vpop.permute.xlu0 %1108
  %1110 = vrot.lane.b32.xlu0 %v703, 28
  %v1111 = vpop.permute.xlu0 %1110
  %1112 = vrot.lane.b32.xlu0 %v706, 28
  %v1113 = vpop.permute.xlu0 %1112
  %1114 = vrot.lane.b32.xlu0 %v709, 28
  %v1115 = vpop.permute.xlu0 %1114
  %1116 = vrot.lane.b32.xlu0 %v712, 28
  %v1117 = vpop.permute.xlu0 %1116
  %1118 = vrot.lane.b32.xlu0 %v792, 28
  %v1119 = vpop.permute.xlu0 %1118
  %1120 = vrot.lane.b32.xlu0 %v808, 28
  %v1121 = vpop.permute.xlu0 %1120
  %1122 = vrot.lane.b32.xlu0 %v721, 28
  %v1123 = vpop.permute.xlu0 %1122
  %1124 = vrot.lane.b32.xlu0 %v724, 28
  %v1125 = vpop.permute.xlu0 %1124
  %1126 = vrot.lane.b32.xlu0 %v727, 28
  %v1127 = vpop.permute.xlu0 %1126
  %1128 = vrot.lane.b32.xlu0 %v730, 28
  %v1129 = vpop.permute.xlu0 %1128
  %1130 = vrot.lane.b32.xlu0 %v733, 28
  %v1131 = vpop.permute.xlu0 %1130
  %1132 = vrot.lane.b32.xlu0 %v736, 28
  %v1133 = vpop.permute.xlu0 %1132
  %1134 = vrot.lane.b32.xlu0 %v795, 28
  %v1135 = vpop.permute.xlu0 %1134
  %1136 = vrot.lane.b32.xlu0 %v811, 28
  %v1137 = vpop.permute.xlu0 %1136
  %1154 = vrot.lane.b32.xlu0 %v746, 32
  %v1155 = vpop.permute.xlu0 %1154
  %1156 = vrot.lane.b32.xlu0 %v749, 32
  %v1157 = vpop.permute.xlu0 %1156
  %1158 = vrot.lane.b32.xlu0 %v752, 32
  %v1159 = vpop.permute.xlu0 %1158
  %1160 = vrot.lane.b32.xlu0 %v755, 32
  %v1161 = vpop.permute.xlu0 %1160
  %1162 = vrot.lane.b32.xlu0 %v758, 32
  %v1163 = vpop.permute.xlu0 %1162
  %1164 = vrot.lane.b32.xlu0 %v761, 32
  %v1165 = vpop.permute.xlu0 %1164
  %1166 = vrot.lane.b32.xlu0 %v798, 32
  %v1167 = vpop.permute.xlu0 %1166
  %1168 = vrot.lane.b32.xlu0 %v814, 32
  %v1169 = vpop.permute.xlu0 %1168
  %1170 = vrot.lane.b32.xlu0 %v770, 32
  %v1171 = vpop.permute.xlu0 %1170
  %1172 = vrot.lane.b32.xlu0 %v773, 32
  %v1173 = vpop.permute.xlu0 %1172
  %1174 = vrot.lane.b32.xlu0 %v776, 32
  %v1175 = vpop.permute.xlu0 %1174
  %1176 = vrot.lane.b32.xlu0 %v779, 32
  %v1177 = vpop.permute.xlu0 %1176
  %1178 = vrot.lane.b32.xlu0 %v782, 32
  %v1179 = vpop.permute.xlu0 %1178
  %1180 = vrot.lane.b32.xlu0 %v785, 32
  %v1181 = vpop.permute.xlu0 %1180
  %1182 = vrot.lane.b32.xlu0 %v801, 32
  %v1183 = vpop.permute.xlu0 %1182
  %1184 = vrot.lane.b32.xlu0 %v817, 32
  %v1185 = vpop.permute.xlu0 %1184
  %v1202 = vsel %vm42, %v616, %v819
  %v1203 = vsel %vm42, %v618, %v821
  %v1204 = vsel %vm42, %v620, %v823
  %v1205 = vsel %vm42, %v622, %v825
  %v1206 = vsel %vm42, %v624, %v827
  %v1207 = vsel %vm42, %v626, %v829
  %v1208 = vsel %vm42, %v628, %v831
  %v1209 = vsel %vm42, %v630, %v833
  %v1210 = vsel %vm42, %v636, %v835
  %v1211 = vsel %vm42, %v638, %v837
  %v1212 = vsel %vm42, %v640, %v839
  %v1213 = vsel %vm42, %v642, %v841
  %v1214 = vsel %vm42, %v644, %v843
  %v1215 = vsel %vm42, %v646, %v845
  %v1216 = vsel %vm42, %v648, %v847
  %v1217 = vsel %vm42, %v650, %v849
  %vm1218 = vcmask 64512
  %v1219 = vsel %vm1218, %v1202, %v867
  %v1220 = vsel %vm1218, %v1203, %v869
  %v1221 = vsel %vm1218, %v1204, %v871
  %v1222 = vsel %vm1218, %v1205, %v873
  %v1223 = vsel %vm1218, %v1206, %v875
  %v1224 = vsel %vm1218, %v1207, %v877
  %v1225 = vsel %vm1218, %v1208, %v879
  %v1226 = vsel %vm1218, %v1209, %v881
  %v1227 = vsel %vm1218, %v1210, %v883
  %v1228 = vsel %vm1218, %v1211, %v885
  %v1229 = vsel %vm1218, %v1212, %v887
  %v1230 = vsel %vm1218, %v1213, %v889
  %v1231 = vsel %vm1218, %v1214, %v891
  %v1232 = vsel %vm1218, %v1215, %v893
  %v1233 = vsel %vm1218, %v1216, %v895
  %v1234 = vsel %vm1218, %v1217, %v897
  %vm1235 = vcmask 97280
  %v1236 = vsel %vm1235, %v1219, %v915
  %v1237 = vsel %vm1235, %v1220, %v917
  %v1238 = vsel %vm1235, %v1221, %v919
  %v1239 = vsel %vm1235, %v1222, %v921
  %v1240 = vsel %vm1235, %v1223, %v923
  %v1241 = vsel %vm1235, %v1224, %v925
  %v1242 = vsel %vm1235, %v1225, %v927
  %v1243 = vsel %vm1235, %v1226, %v929
  %v1244 = vsel %vm1235, %v1227, %v931
  %v1245 = vsel %vm1235, %v1228, %v933
  %v1246 = vsel %vm1235, %v1229, %v935
  %v1247 = vsel %vm1235, %v1230, %v937
  %v1248 = vsel %vm1235, %v1231, %v939
  %v1249 = vsel %vm1235, %v1232, %v941
  %v1250 = vsel %vm1235, %v1233, %v943
  %v1251 = vsel %vm1235, %v1234, %v945
  %vm1252 = vcmask 130048
  %v1253 = vsel %vm1252, %v1236, %v963
  %v1254 = vsel %vm1252, %v1237, %v965
  %v1255 = vsel %vm1252, %v1238, %v967
  %v1256 = vsel %vm1252, %v1239, %v969
  %v1257 = vsel %vm1252, %v1240, %v971
  %v1258 = vsel %vm1252, %v1241, %v973
  %v1259 = vsel %vm1252, %v1242, %v975
  %v1260 = vsel %vm1252, %v1243, %v977
  %v1261 = vsel %vm1252, %v1244, %v979
  %v1262 = vsel %vm1252, %v1245, %v981
  %v1263 = vsel %vm1252, %v1246, %v983
  %v1264 = vsel %vm1252, %v1247, %v985
  %v1265 = vsel %vm1252, %v1248, %v987
  %v1266 = vsel %vm1252, %v1249, %v989
  %v1267 = vsel %vm1252, %v1250, %v991
  %v1268 = vsel %vm1252, %v1251, %v993
  %vm1269 = vcmask 162816
  %v1270 = vsel %vm1269, %v1253, %v1011
  %v1271 = vsel %vm1269, %v1254, %v1013
  %v1272 = vsel %vm1269, %v1255, %v1015
  %v1273 = vsel %vm1269, %v1256, %v1017
  %v1274 = vsel %vm1269, %v1257, %v1019
  %v1275 = vsel %vm1269, %v1258, %v1021
  %v1276 = vsel %vm1269, %v1259, %v1023
  %v1277 = vsel %vm1269, %v1260, %v1025
  %v1278 = vsel %vm1269, %v1261, %v1027
  %v1279 = vsel %vm1269, %v1262, %v1029
  %v1280 = vsel %vm1269, %v1263, %v1031
  %v1281 = vsel %vm1269, %v1264, %v1033
  %v1282 = vsel %vm1269, %v1265, %v1035
  %v1283 = vsel %vm1269, %v1266, %v1037
  %v1284 = vsel %vm1269, %v1267, %v1039
  %v1285 = vsel %vm1269, %v1268, %v1041
  %vm1286 = vcmask 195584
  %v1287 = vsel %vm1286, %v1270, %v1059
  %v1288 = vsel %vm1286, %v1271, %v1061
  %v1289 = vsel %vm1286, %v1272, %v1063
  %v1290 = vsel %vm1286, %v1273, %v1065
  %v1291 = vsel %vm1286, %v1274, %v1067
  %v1292 = vsel %vm1286, %v1275, %v1069
  %v1293 = vsel %vm1286, %v1276, %v1071
  %v1294 = vsel %vm1286, %v1277, %v1073
  %v1295 = vsel %vm1286, %v1278, %v1075
  %v1296 = vsel %vm1286, %v1279, %v1077
  %v1297 = vsel %vm1286, %v1280, %v1079
  %v1298 = vsel %vm1286, %v1281, %v1081
  %v1299 = vsel %vm1286, %v1282, %v1083
  %v1300 = vsel %vm1286, %v1283, %v1085
  %v1301 = vsel %vm1286, %v1284, %v1087
  %v1302 = vsel %vm1286, %v1285, %v1089
  %vm1303 = vcmask 228352
  %v1304 = vsel %vm1303, %v1287, %v1107
  %v1305 = vsel %vm1303, %v1288, %v1109
  %v1306 = vsel %vm1303, %v1289, %v1111
  %v1307 = vsel %vm1303, %v1290, %v1113
  %v1308 = vsel %vm1303, %v1291, %v1115
  %v1309 = vsel %vm1303, %v1292, %v1117
  %v1310 = vsel %vm1303, %v1293, %v1119
  %v1311 = vsel %vm1303, %v1294, %v1121
  %v1312 = vsel %vm1303, %v1295, %v1123
  %v1313 = vsel %vm1303, %v1296, %v1125
  %v1314 = vsel %vm1303, %v1297, %v1127
  %v1315 = vsel %vm1303, %v1298, %v1129
  %v1316 = vsel %vm1303, %v1299, %v1131
  %v1317 = vsel %vm1303, %v1300, %v1133
  %v1318 = vsel %vm1303, %v1301, %v1135
  %v1319 = vsel %vm1303, %v1302, %v1137
  %vm1320 = vcmask 261120
  %v1321 = vsel %vm1320, %v1304, %v1155
  %v1322 = vsel %vm1320, %v1305, %v1157
  %v1323 = vsel %vm1320, %v1306, %v1159
  %v1324 = vsel %vm1320, %v1307, %v1161
  %v1325 = vsel %vm1320, %v1308, %v1163
  %v1326 = vsel %vm1320, %v1309, %v1165
  %v1327 = vsel %vm1320, %v1310, %v1167
  %v1328 = vsel %vm1320, %v1311, %v1169
  %v1329 = vsel %vm1320, %v1312, %v1171
  %v1330 = vsel %vm1320, %v1313, %v1173
  %v1331 = vsel %vm1320, %v1314, %v1175
  %v1332 = vsel %vm1320, %v1315, %v1177
  %v1333 = vsel %vm1320, %v1316, %v1179
  %v1334 = vsel %vm1320, %v1317, %v1181
  %v1335 = vsel %vm1320, %v1318, %v1183
  %v1336 = vsel %vm1320, %v1319, %v1185
  %v1337 = vpack.c.bf16 %v1322, %v1321
  %v1338 = vpack.c.bf16 %v1324, %v1323
  %v1339 = vpack.c.bf16 %v1326, %v1325
  %v1340 = vpack.c.bf16 %v1328, %v1327
  %v1341 = vpack.c.bf16 %v1330, %v1329
  %v1342 = vpack.c.bf16 %v1332, %v1331
  %v1343 = vpack.c.bf16 %v1334, %v1333
  %v1344 = vpack.c.bf16 %v1336, %v1335
  %v1345 = vld [vmem:[%s4] sm:$0xff]
  %v1346 = vld [vmem:[%s4 + $0x8] sm:$0xff]
  %v1347 = vld [vmem:[%s4 + $0x10] sm:$0xff]
  %v1348 = vld [vmem:[%s4 + $0x18] sm:$0xff]
  %v1349 = vld [vmem:[%s4 + $0x20] sm:$0xff]
  %v1350 = vld [vmem:[%s4 + $0x28] sm:$0xff]
  %v1351 = vld [vmem:[%s4 + $0x30] sm:$0xff]
  %v1352 = vld [vmem:[%s4 + $0x38] sm:$0xff]
  %v1353 = vld [vmem:[%s4 + $0x40] sm:$0x33]
  %v1354 = vld [vmem:[%s4 + $0x48] sm:$0x33]
  %v1355 = vld [vmem:[%s5] sm:$0xf]
  %v1357 = vperm.slane %v1355, 0
  %v1358 = vperm.slane %v1355, 1
  %v1359 = vperm.slane %v1355, 2
  %v1360 = vperm.slane %v1355, 3
  %v1375 = vunpack.c.l.b16 %v1345
  %v1376 = vunpack.c.h.b16 %v1345
  %v1377 = vunpack.c.l.b16 %v1346
  %v1378 = vunpack.c.h.b16 %v1346
  %v1379 = vunpack.c.l.b16 %v1347
  %v1380 = vunpack.c.h.b16 %v1347
  %v1381 = vunpack.c.l.b16 %v1348
  %v1382 = vunpack.c.h.b16 %v1348
  %v1383 = vunpack.c.l.b16 %v1349
  %v1384 = vunpack.c.h.b16 %v1349
  %v1385 = vunpack.c.l.b16 %v1350
  %v1386 = vunpack.c.h.b16 %v1350
  %v1387 = vunpack.c.l.b16 %v1351
  %v1388 = vunpack.c.h.b16 %v1351
  %v1389 = vunpack.c.l.b16 %v1352
  %v1390 = vunpack.c.h.b16 %v1352
  %v1391 = vunpack.c.l.b16 %v1353
  %v1392 = vunpack.c.h.b16 %v1353
  %v1393 = vunpack.c.l.b16 %v1354
  %v1394 = vunpack.c.h.b16 %v1354
  %v1395 = vpack.c.b16 %v1379, %v1375
  %v1396 = vpack.c.b16 %v1380, %v1376
  %v1397 = vpack.c.b16 %v1381, %v1377
  %v1398 = vpack.c.b16 %v1382, %v1378
  %v1399 = vpack.c.b16 %v1387, %v1383
  %v1400 = vpack.c.b16 %v1388, %v1384
  %v1401 = vpack.c.b16 %v1389, %v1385
  %v1402 = vpack.c.b16 %v1390, %v1386
  %v1403 = vpack.c.b16 %v1391, %v1391
  %v1404 = vpack.c.b16 %v1392, %v1392
  %v1405 = vpack.c.b16 %v1393, %v1393
  %v1406 = vpack.c.b16 %v1394, %v1394
  %vm1415 = vcmask 293888
  %v1417 = vsel %vm1415, %v1337, 0
  %v1420 = vsel %vm1415, %v1338, 0
  %v1423 = vsel %vm1415, %v1339, 0
  %v1426 = vsel %vm1415, %v1340, 0
  %v1429 = vsel %vm1415, %v1341, 0
  %v1432 = vsel %vm1415, %v1342, 0
  %v1435 = vsel %vm1415, %v1343, 0
  %v1438 = vsel %vm1415, %v1344, 0
  %vm1440 = vcmask 1041408
  %v1442 = vsel %vm1440, %v1403, 0
  %v1445 = vsel %vm1440, %v1404, 0
  %v1448 = vsel %vm1440, %v1405, 0
  %v1451 = vsel %vm1440, %v1406, 0
  %1453 = vmatpush.bf16.msra.mxu0 0
  %1454 = vmatpush.bf16.msra.mxu0 0
  %1455 = vmatpush.bf16.msra.mxu0 0
  %1456 = vmatpush.bf16.msra.mxu0 0
  %1457 = vmatpush.bf16.msra.mxu0 0
  %1458 = vmatpush.bf16.msra.mxu0 %v1442
  %1459 = vmatpush.bf16.msra.mxu0 %v1399
  %1460 = vmatpush.bf16.msra.mxu0 %v1395
  %1461 = vmatmul.bf16.gmra.mxu0 %v1417
  %v1462 = vpop.f32.mrf.mxu0
  %v1463 = vadd.f32 %v1357, %v1462
  %v1464 = vpop.f32.mrf.mxu0
  %v1465 = vadd.f32 %v1357, %v1464
  %1466 = vmatmul.bf16.gmra.mxu0 %v1420
  %v1467 = vpop.f32.mrf.mxu0
  %v1468 = vadd.f32 %v1357, %v1467
  %v1469 = vpop.f32.mrf.mxu0
  %v1470 = vadd.f32 %v1357, %v1469
  %1471 = vmatmul.bf16.gmra.mxu0 %v1423
  %v1472 = vpop.f32.mrf.mxu0
  %v1473 = vadd.f32 %v1357, %v1472
  %v1474 = vpop.f32.mrf.mxu0
  %v1475 = vadd.f32 %v1357, %v1474
  %1476 = vmatmul.bf16.gmra.mxu0 %v1426
  %v1477 = vpop.f32.mrf.mxu0
  %v1478 = vadd.f32 %v1357, %v1477
  %v1479 = vpop.f32.mrf.mxu0
  %v1480 = vadd.f32 %v1357, %v1479
  %1481 = vmatmul.bf16.gmra.mxu0 %v1429
  %v1482 = vpop.f32.mrf.mxu0
  %v1483 = vadd.f32 %v1357, %v1482
  %v1484 = vpop.f32.mrf.mxu0
  %v1485 = vadd.f32 %v1357, %v1484
  %1486 = vmatmul.bf16.gmra.mxu0 %v1432
  %v1487 = vpop.f32.mrf.mxu0
  %v1488 = vadd.f32 %v1357, %v1487
  %v1489 = vpop.f32.mrf.mxu0
  %v1490 = vadd.f32 %v1357, %v1489
  %1491 = vmatmul.bf16.gmra.mxu0 %v1435
  %v1492 = vpop.f32.mrf.mxu0
  %v1493 = vadd.f32 %v1357, %v1492
  %v1494 = vpop.f32.mrf.mxu0
  %v1495 = vadd.f32 %v1357, %v1494
  %1496 = vmatmul.bf16.gmra.mxu0 %v1438
  %v1497 = vpop.f32.mrf.mxu0
  %v1498 = vadd.f32 %v1357, %v1497
  %v1499 = vpop.f32.mrf.mxu0
  %v1500 = vadd.f32 %v1357, %v1499
  %1501 = vdwg.mxu0
  %1502 = vmatpush.bf16.msra.mxu0 0
  %1503 = vmatpush.bf16.msra.mxu0 0
  %1504 = vmatpush.bf16.msra.mxu0 0
  %1505 = vmatpush.bf16.msra.mxu0 0
  %1506 = vmatpush.bf16.msra.mxu0 0
  %1507 = vmatpush.bf16.msra.mxu0 %v1445
  %1508 = vmatpush.bf16.msra.mxu0 %v1400
  %1509 = vmatpush.bf16.msra.mxu0 %v1396
  %1510 = vmatmul.bf16.gmra.mxu0 %v1417
  %v1511 = vpop.f32.mrf.mxu0
  %v1512 = vadd.f32 %v1358, %v1511
  %v1513 = vpop.f32.mrf.mxu0
  %v1514 = vadd.f32 %v1358, %v1513
  %1515 = vmatmul.bf16.gmra.mxu0 %v1420
  %v1516 = vpop.f32.mrf.mxu0
  %v1517 = vadd.f32 %v1358, %v1516
  %v1518 = vpop.f32.mrf.mxu0
  %v1519 = vadd.f32 %v1358, %v1518
  %1520 = vmatmul.bf16.gmra.mxu0 %v1423
  %v1521 = vpop.f32.mrf.mxu0
  %v1522 = vadd.f32 %v1358, %v1521
  %v1523 = vpop.f32.mrf.mxu0
  %v1524 = vadd.f32 %v1358, %v1523
  %1525 = vmatmul.bf16.gmra.mxu0 %v1426
  %v1526 = vpop.f32.mrf.mxu0
  %v1527 = vadd.f32 %v1358, %v1526
  %v1528 = vpop.f32.mrf.mxu0
  %v1529 = vadd.f32 %v1358, %v1528
  %1530 = vmatmul.bf16.gmra.mxu0 %v1429
  %v1531 = vpop.f32.mrf.mxu0
  %v1532 = vadd.f32 %v1358, %v1531
  %v1533 = vpop.f32.mrf.mxu0
  %v1534 = vadd.f32 %v1358, %v1533
  %1535 = vmatmul.bf16.gmra.mxu0 %v1432
  %v1536 = vpop.f32.mrf.mxu0
  %v1537 = vadd.f32 %v1358, %v1536
  %v1538 = vpop.f32.mrf.mxu0
  %v1539 = vadd.f32 %v1358, %v1538
  %1540 = vmatmul.bf16.gmra.mxu0 %v1435
  %v1541 = vpop.f32.mrf.mxu0
  %v1542 = vadd.f32 %v1358, %v1541
  %v1543 = vpop.f32.mrf.mxu0
  %v1544 = vadd.f32 %v1358, %v1543
  %1545 = vmatmul.bf16.gmra.mxu0 %v1438
  %v1546 = vpop.f32.mrf.mxu0
  %v1547 = vadd.f32 %v1358, %v1546
  %v1548 = vpop.f32.mrf.mxu0
  %v1549 = vadd.f32 %v1358, %v1548
  %1550 = vdwg.mxu0
  %1551 = vmatpush.bf16.msra.mxu0 0
  %1552 = vmatpush.bf16.msra.mxu0 0
  %1553 = vmatpush.bf16.msra.mxu0 0
  %1554 = vmatpush.bf16.msra.mxu0 0
  %1555 = vmatpush.bf16.msra.mxu0 0
  %1556 = vmatpush.bf16.msra.mxu0 %v1448
  %1557 = vmatpush.bf16.msra.mxu0 %v1401
  %1558 = vmatpush.bf16.msra.mxu0 %v1397
  %1559 = vmatmul.bf16.gmra.mxu0 %v1417
  %v1560 = vpop.f32.mrf.mxu0
  %v1561 = vadd.f32 %v1359, %v1560
  %v1562 = vpop.f32.mrf.mxu0
  %v1563 = vadd.f32 %v1359, %v1562
  %1564 = vmatmul.bf16.gmra.mxu0 %v1420
  %v1565 = vpop.f32.mrf.mxu0
  %v1566 = vadd.f32 %v1359, %v1565
  %v1567 = vpop.f32.mrf.mxu0
  %v1568 = vadd.f32 %v1359, %v1567
  %1569 = vmatmul.bf16.gmra.mxu0 %v1423
  %v1570 = vpop.f32.mrf.mxu0
  %v1571 = vadd.f32 %v1359, %v1570
  %v1572 = vpop.f32.mrf.mxu0
  %v1573 = vadd.f32 %v1359, %v1572
  %1574 = vmatmul.bf16.gmra.mxu0 %v1426
  %v1575 = vpop.f32.mrf.mxu0
  %v1576 = vadd.f32 %v1359, %v1575
  %v1577 = vpop.f32.mrf.mxu0
  %v1578 = vadd.f32 %v1359, %v1577
  %1579 = vmatmul.bf16.gmra.mxu0 %v1429
  %v1580 = vpop.f32.mrf.mxu0
  %v1581 = vadd.f32 %v1359, %v1580
  %v1582 = vpop.f32.mrf.mxu0
  %v1583 = vadd.f32 %v1359, %v1582
  %1584 = vmatmul.bf16.gmra.mxu0 %v1432
  %v1585 = vpop.f32.mrf.mxu0
  %v1586 = vadd.f32 %v1359, %v1585
  %v1587 = vpop.f32.mrf.mxu0
  %v1588 = vadd.f32 %v1359, %v1587
  %1589 = vmatmul.bf16.gmra.mxu0 %v1435
  %v1590 = vpop.f32.mrf.mxu0
  %v1591 = vadd.f32 %v1359, %v1590
  %v1592 = vpop.f32.mrf.mxu0
  %v1593 = vadd.f32 %v1359, %v1592
  %1594 = vmatmul.bf16.gmra.mxu0 %v1438
  %v1595 = vpop.f32.mrf.mxu0
  %v1596 = vadd.f32 %v1359, %v1595
  %v1597 = vpop.f32.mrf.mxu0
  %v1598 = vadd.f32 %v1359, %v1597
  %1599 = vdwg.mxu0
  %1600 = vmatpush.bf16.msra.mxu0 0
  %1601 = vmatpush.bf16.msra.mxu0 0
  %1602 = vmatpush.bf16.msra.mxu0 0
  %1603 = vmatpush.bf16.msra.mxu0 0
  %1604 = vmatpush.bf16.msra.mxu0 0
  %1605 = vmatpush.bf16.msra.mxu0 %v1451
  %1606 = vmatpush.bf16.msra.mxu0 %v1402
  %1607 = vmatpush.bf16.msra.mxu0 %v1398
  %1608 = vmatmul.bf16.gmra.mxu0 %v1417
  %v1609 = vpop.f32.mrf.mxu0
  %v1610 = vadd.f32 %v1360, %v1609
  %v1611 = vpop.f32.mrf.mxu0
  %v1612 = vadd.f32 %v1360, %v1611
  %1613 = vmatmul.bf16.gmra.mxu0 %v1420
  %v1614 = vpop.f32.mrf.mxu0
  %v1615 = vadd.f32 %v1360, %v1614
  %v1616 = vpop.f32.mrf.mxu0
  %v1617 = vadd.f32 %v1360, %v1616
  %1618 = vmatmul.bf16.gmra.mxu0 %v1423
  %v1619 = vpop.f32.mrf.mxu0
  %v1620 = vadd.f32 %v1360, %v1619
  %v1621 = vpop.f32.mrf.mxu0
  %v1622 = vadd.f32 %v1360, %v1621
  %1623 = vmatmul.bf16.gmra.mxu0 %v1426
  %v1624 = vpop.f32.mrf.mxu0
  %v1625 = vadd.f32 %v1360, %v1624
  %v1626 = vpop.f32.mrf.mxu0
  %v1627 = vadd.f32 %v1360, %v1626
  %1628 = vmatmul.bf16.gmra.mxu0 %v1429
  %v1629 = vpop.f32.mrf.mxu0
  %v1630 = vadd.f32 %v1360, %v1629
  %v1631 = vpop.f32.mrf.mxu0
  %v1632 = vadd.f32 %v1360, %v1631
  %1633 = vmatmul.bf16.gmra.mxu0 %v1432
  %v1634 = vpop.f32.mrf.mxu0
  %v1635 = vadd.f32 %v1360, %v1634
  %v1636 = vpop.f32.mrf.mxu0
  %v1637 = vadd.f32 %v1360, %v1636
  %1638 = vmatmul.bf16.gmra.mxu0 %v1435
  %v1639 = vpop.f32.mrf.mxu0
  %v1640 = vadd.f32 %v1360, %v1639
  %v1641 = vpop.f32.mrf.mxu0
  %v1642 = vadd.f32 %v1360, %v1641
  %1643 = vmatmul.bf16.gmra.mxu0 %v1438
  %v1644 = vpop.f32.mrf.mxu0
  %v1645 = vadd.f32 %v1360, %v1644
  %v1646 = vpop.f32.mrf.mxu0
  %v1647 = vadd.f32 %v1360, %v1646
  %1648 = vdwg.mxu0
  %v1649 = vmax.f32 %v1463, 0.0
  %v1650 = vmax.f32 %v1512, 0.0
  %v1651 = vmax.f32 %v1561, 0.0
  %v1652 = vmax.f32 %v1610, 0.0
  %v1653 = vmax.f32 %v1465, 0.0
  %v1654 = vmax.f32 %v1514, 0.0
  %v1655 = vmax.f32 %v1563, 0.0
  %v1656 = vmax.f32 %v1612, 0.0
  %v1657 = vmax.f32 %v1468, 0.0
  %v1658 = vmax.f32 %v1517, 0.0
  %v1659 = vmax.f32 %v1566, 0.0
  %v1660 = vmax.f32 %v1615, 0.0
  %v1661 = vmax.f32 %v1470, 0.0
  %v1662 = vmax.f32 %v1519, 0.0
  %v1663 = vmax.f32 %v1568, 0.0
  %v1664 = vmax.f32 %v1617, 0.0
  %v1665 = vmax.f32 %v1473, 0.0
  %v1666 = vmax.f32 %v1522, 0.0
  %v1667 = vmax.f32 %v1571, 0.0
  %v1668 = vmax.f32 %v1620, 0.0
  %v1669 = vmax.f32 %v1475, 0.0
  %v1670 = vmax.f32 %v1524, 0.0
  %v1671 = vmax.f32 %v1573, 0.0
  %v1672 = vmax.f32 %v1622, 0.0
  %v1673 = vmax.f32 %v1478, 0.0
  %v1674 = vmax.f32 %v1527, 0.0
  %v1675 = vmax.f32 %v1576, 0.0
  %v1676 = vmax.f32 %v1625, 0.0
  %v1677 = vmax.f32 %v1480, 0.0
  %v1678 = vmax.f32 %v1529, 0.0
  %v1679 = vmax.f32 %v1578, 0.0
  %v1680 = vmax.f32 %v1627, 0.0
  %v1681 = vmax.f32 %v1483, 0.0
  %v1682 = vmax.f32 %v1532, 0.0
  %v1683 = vmax.f32 %v1581, 0.0
  %v1684 = vmax.f32 %v1630, 0.0
  %v1685 = vmax.f32 %v1485, 0.0
  %v1686 = vmax.f32 %v1534, 0.0
  %v1687 = vmax.f32 %v1583, 0.0
  %v1688 = vmax.f32 %v1632, 0.0
  %v1689 = vmax.f32 %v1488, 0.0
  %v1690 = vmax.f32 %v1537, 0.0
  %v1691 = vmax.f32 %v1586, 0.0
  %v1692 = vmax.f32 %v1635, 0.0
  %v1693 = vmax.f32 %v1490, 0.0
  %v1694 = vmax.f32 %v1539, 0.0
  %v1695 = vmax.f32 %v1588, 0.0
  %v1696 = vmax.f32 %v1637, 0.0
  %v1697 = vmax.f32 %v1493, 0.0
  %v1698 = vmax.f32 %v1542, 0.0
  %v1699 = vmax.f32 %v1591, 0.0
  %v1700 = vmax.f32 %v1640, 0.0
  %v1701 = vmax.f32 %v1495, 0.0
  %v1702 = vmax.f32 %v1544, 0.0
  %v1703 = vmax.f32 %v1593, 0.0
  %v1704 = vmax.f32 %v1642, 0.0
  %v1705 = vmax.f32 %v1498, 0.0
  %v1706 = vmax.f32 %v1547, 0.0
  %v1707 = vmax.f32 %v1596, 0.0
  %v1708 = vmax.f32 %v1645, 0.0
  %v1709 = vmax.f32 %v1500, 0.0
  %v1710 = vmax.f32 %v1549, 0.0
  %v1711 = vmax.f32 %v1598, 0.0
  %v1712 = vmax.f32 %v1647, 0.0
  %v1713 = vpack.c.bf16 %v1653, %v1649
  %v1714 = vpack.c.bf16 %v1654, %v1650
  %v1715 = vpack.c.bf16 %v1655, %v1651
  %v1716 = vpack.c.bf16 %v1656, %v1652
  %v1717 = vpack.c.bf16 %v1661, %v1657
  %v1718 = vpack.c.bf16 %v1662, %v1658
  %v1719 = vpack.c.bf16 %v1663, %v1659
  %v1720 = vpack.c.bf16 %v1664, %v1660
  %v1721 = vpack.c.bf16 %v1669, %v1665
  %v1722 = vpack.c.bf16 %v1670, %v1666
  %v1723 = vpack.c.bf16 %v1671, %v1667
  %v1724 = vpack.c.bf16 %v1672, %v1668
  %v1725 = vpack.c.bf16 %v1677, %v1673
  %v1726 = vpack.c.bf16 %v1678, %v1674
  %v1727 = vpack.c.bf16 %v1679, %v1675
  %v1728 = vpack.c.bf16 %v1680, %v1676
  %v1729 = vpack.c.bf16 %v1685, %v1681
  %v1730 = vpack.c.bf16 %v1686, %v1682
  %v1731 = vpack.c.bf16 %v1687, %v1683
  %v1732 = vpack.c.bf16 %v1688, %v1684
  %v1733 = vpack.c.bf16 %v1693, %v1689
  %v1734 = vpack.c.bf16 %v1694, %v1690
  %v1735 = vpack.c.bf16 %v1695, %v1691
  %v1736 = vpack.c.bf16 %v1696, %v1692
  %v1737 = vpack.c.bf16 %v1701, %v1697
  %v1738 = vpack.c.bf16 %v1702, %v1698
  %v1739 = vpack.c.bf16 %v1703, %v1699
  %v1740 = vpack.c.bf16 %v1704, %v1700
  %v1741 = vpack.c.bf16 %v1709, %v1705
  %v1742 = vpack.c.bf16 %v1710, %v1706
  %v1743 = vpack.c.bf16 %v1711, %v1707
  %v1744 = vpack.c.bf16 %v1712, %v1708
  %v1745 = vld [vmem:[%s6] sm:$0xff]
  %v1746 = vld [vmem:[%s6 + $0x8] sm:$0xff]
  %v1747 = vld [vmem:[%s6 + $0x10] sm:$0xff]
  %v1748 = vld [vmem:[%s6 + $0x18] sm:$0xff]
  %v1749 = vld [vmem:[%s6 + $0x20] sm:$0xff]
  %v1750 = vld [vmem:[%s6 + $0x28] sm:$0xff]
  %v1751 = vld [vmem:[%s6 + $0x30] sm:$0xff]
  %v1752 = vld [vmem:[%s6 + $0x38] sm:$0xff]
  %v1753 = vld [vmem:[%s6 + $0x40] sm:$0xff]
  %v1754 = vld [vmem:[%s6 + $0x48] sm:$0xff]
  %v1755 = vld [vmem:[%s6 + $0x50] sm:$0xff]
  %v1756 = vld [vmem:[%s6 + $0x58] sm:$0xff]
  %v1757 = vld [vmem:[%s6 + $0x60] sm:$0xff]
  %v1758 = vld [vmem:[%s6 + $0x68] sm:$0xff]
  %v1759 = vld [vmem:[%s6 + $0x70] sm:$0xff]
  %v1760 = vld [vmem:[%s6 + $0x78] sm:$0xff]
  %v1761 = vld [vmem:[%s6 + $0x80] sm:$0xff]
  %v1762 = vld [vmem:[%s6 + $0x88] sm:$0xff]
  %v1763 = vld [vmem:[%s6 + $0x90] sm:$0xff]
  %v1764 = vld [vmem:[%s6 + $0x98] sm:$0xff]
  %v1765 = vld [vmem:[%s6 + $0xa0] sm:$0xff]
  %v1766 = vld [vmem:[%s6 + $0xa8] sm:$0xff]
  %v1767 = vld [vmem:[%s6 + $0xb0] sm:$0xff]
  %v1768 = vld [vmem:[%s6 + $0xb8] sm:$0xff]
  %v1769 = vld [vmem:[%s6 + $0xc0] sm:$0xff]
  %v1770 = vld [vmem:[%s6 + $0xc8] sm:$0xff]
  %v1771 = vld [vmem:[%s6 + $0xd0] sm:$0xff]
  %v1772 = vld [vmem:[%s6 + $0xd8] sm:$0xff]
  %v1773 = vld [vmem:[%s6 + $0xe0] sm:$0xff]
  %v1774 = vld [vmem:[%s6 + $0xe8] sm:$0xff]
  %v1775 = vld [vmem:[%s6 + $0xf0] sm:$0xff]
  %v1776 = vld [vmem:[%s6 + $0xf8] sm:$0xff]
  %v1777 = vld [vmem:[%s6 + $0x100] sm:$0xff]
  %v1778 = vld [vmem:[%s6 + $0x108] sm:$0xff]
  %v1779 = vld [vmem:[%s6 + $0x110] sm:$0xff]
  %v1780 = vld [vmem:[%s6 + $0x118] sm:$0xff]
  %v1781 = vld [vmem:[%s6 + $0x120] sm:$0xff]
  %v1782 = vld [vmem:[%s6 + $0x128] sm:$0xff]
  %v1783 = vld [vmem:[%s6 + $0x130] sm:$0xff]
  %v1784 = vld [vmem:[%s6 + $0x138] sm:$0xff]
  %v1785 = vld [vmem:[%s6 + $0x140] sm:$0xff]
  %v1786 = vld [vmem:[%s6 + $0x148] sm:$0xff]
  %v1787 = vld [vmem:[%s6 + $0x150] sm:$0xff]
  %v1788 = vld [vmem:[%s6 + $0x158] sm:$0xff]
  %v1789 = vld [vmem:[%s6 + $0x160] sm:$0xff]
  %v1790 = vld [vmem:[%s6 + $0x168] sm:$0xff]
  %v1791 = vld [vmem:[%s6 + $0x170] sm:$0xff]
  %v1792 = vld [vmem:[%s6 + $0x178] sm:$0xff]
  %v1793 = vld [vmem:[%s6 + $0x180] sm:$0xff]
  %v1794 = vld [vmem:[%s6 + $0x188] sm:$0xff]
  %v1795 = vld [vmem:[%s6 + $0x190] sm:$0xff]
  %v1796 = vld [vmem:[%s6 + $0x198] sm:$0xff]
  %v1797 = vld [vmem:[%s6 + $0x1a0] sm:$0xff]
  %v1798 = vld [vmem:[%s6 + $0x1a8] sm:$0xff]
  %v1799 = vld [vmem:[%s6 + $0x1b0] sm:$0xff]
  %v1800 = vld [vmem:[%s6 + $0x1b8] sm:$0xff]
  %v1801 = vld [vmem:[%s6 + $0x1c0] sm:$0xff]
  %v1802 = vld [vmem:[%s6 + $0x1c8] sm:$0xff]
  %v1803 = vld [vmem:[%s6 + $0x1d0] sm:$0xff]
  %v1804 = vld [vmem:[%s6 + $0x1d8] sm:$0xff]
  %v1805 = vld [vmem:[%s6 + $0x1e0] sm:$0xff]
  %v1806 = vld [vmem:[%s6 + $0x1e8] sm:$0xff]
  %v1807 = vld [vmem:[%s6 + $0x1f0] sm:$0xff]
  %v1808 = vld [vmem:[%s6 + $0x1f8] sm:$0xff]
  %v1809 = vld [vmem:[%s6 + $0x200] sm:$0xff]
  %v1810 = vld [vmem:[%s6 + $0x208] sm:$0xff]
  %v1811 = vld [vmem:[%s6 + $0x210] sm:$0xff]
  %v1812 = vld [vmem:[%s6 + $0x218] sm:$0xff]
  %v1813 = vld [vmem:[%s6 + $0x220] sm:$0xff]
  %v1814 = vld [vmem:[%s6 + $0x228] sm:$0xff]
  %v1815 = vld [vmem:[%s6 + $0x230] sm:$0xff]
  %v1816 = vld [vmem:[%s6 + $0x238] sm:$0xff]
  %v1817 = vld [vmem:[%s6 + $0x240] sm:$0xff]
  %v1818 = vld [vmem:[%s6 + $0x248] sm:$0xff]
  %v1819 = vld [vmem:[%s6 + $0x250] sm:$0xff]
  %v1820 = vld [vmem:[%s6 + $0x258] sm:$0xff]
  %v1821 = vld [vmem:[%s6 + $0x260] sm:$0xff]
  %v1822 = vld [vmem:[%s6 + $0x268] sm:$0xff]
  %v1823 = vld [vmem:[%s6 + $0x270] sm:$0xff]
  %v1824 = vld [vmem:[%s6 + $0x278] sm:$0xff]
  %v1825 = vld [vmem:[%s6 + $0x280] sm:$0xff]
  %v1826 = vld [vmem:[%s6 + $0x288] sm:$0xff]
  %v1827 = vld [vmem:[%s6 + $0x290] sm:$0xff]
  %v1828 = vld [vmem:[%s6 + $0x298] sm:$0xff]
  %v1829 = vld [vmem:[%s6 + $0x2a0] sm:$0xff]
  %v1830 = vld [vmem:[%s6 + $0x2a8] sm:$0xff]
  %v1831 = vld [vmem:[%s6 + $0x2b0] sm:$0xff]
  %v1832 = vld [vmem:[%s6 + $0x2b8] sm:$0xff]
  %v1833 = vld [vmem:[%s6 + $0x2c0] sm:$0xff]
  %v1834 = vld [vmem:[%s6 + $0x2c8] sm:$0xff]
  %v1835 = vld [vmem:[%s6 + $0x2d0] sm:$0xff]
  %v1836 = vld [vmem:[%s6 + $0x2d8] sm:$0xff]
  %v1837 = vld [vmem:[%s6 + $0x2e0] sm:$0xff]
  %v1838 = vld [vmem:[%s6 + $0x2e8] sm:$0xff]
  %v1839 = vld [vmem:[%s6 + $0x2f0] sm:$0xff]
  %v1840 = vld [vmem:[%s6 + $0x2f8] sm:$0xff]
  %v1841 = vld [vmem:[%s6 + $0x300] sm:$0xff]
  %v1842 = vld [vmem:[%s6 + $0x308] sm:$0xff]
  %v1843 = vld [vmem:[%s6 + $0x310] sm:$0xff]
  %v1844 = vld [vmem:[%s6 + $0x318] sm:$0xff]
  %v1845 = vld [vmem:[%s6 + $0x320] sm:$0xff]
  %v1846 = vld [vmem:[%s6 + $0x328] sm:$0xff]
  %v1847 = vld [vmem:[%s6 + $0x330] sm:$0xff]
  %v1848 = vld [vmem:[%s6 + $0x338] sm:$0xff]
  %v1849 = vld [vmem:[%s6 + $0x340] sm:$0xff]
  %v1850 = vld [vmem:[%s6 + $0x348] sm:$0xff]
  %v1851 = vld [vmem:[%s6 + $0x350] sm:$0xff]
  %v1852 = vld [vmem:[%s6 + $0x358] sm:$0xff]
  %v1853 = vld [vmem:[%s6 + $0x360] sm:$0xff]
  %v1854 = vld [vmem:[%s6 + $0x368] sm:$0xff]
  %v1855 = vld [vmem:[%s6 + $0x370] sm:$0xff]
  %v1856 = vld [vmem:[%s6 + $0x378] sm:$0xff]
  %v1857 = vld [vmem:[%s6 + $0x380] sm:$0xff]
  %v1858 = vld [vmem:[%s6 + $0x388] sm:$0xff]
  %v1859 = vld [vmem:[%s6 + $0x390] sm:$0xff]
  %v1860 = vld [vmem:[%s6 + $0x398] sm:$0xff]
  %v1861 = vld [vmem:[%s6 + $0x3a0] sm:$0xff]
  %v1862 = vld [vmem:[%s6 + $0x3a8] sm:$0xff]
  %v1863 = vld [vmem:[%s6 + $0x3b0] sm:$0xff]
  %v1864 = vld [vmem:[%s6 + $0x3b8] sm:$0xff]
  %v1865 = vld [vmem:[%s6 + $0x3c0] sm:$0xff]
  %v1866 = vld [vmem:[%s6 + $0x3c8] sm:$0xff]
  %v1867 = vld [vmem:[%s6 + $0x3d0] sm:$0xff]
  %v1868 = vld [vmem:[%s6 + $0x3d8] sm:$0xff]
  %v1869 = vld [vmem:[%s6 + $0x3e0] sm:$0xff]
  %v1870 = vld [vmem:[%s6 + $0x3e8] sm:$0xff]
  %v1871 = vld [vmem:[%s6 + $0x3f0] sm:$0xff]
  %v1872 = vld [vmem:[%s6 + $0x3f8] sm:$0xff]
  %v1873 = vld [vmem:[%s7] sm:$0xf]
  %v1875 = vperm.slane %v1873, 0
  %v1876 = vperm.slane %v1873, 1
  %v1877 = vperm.slane %v1873, 2
  %v1878 = vperm.slane %v1873, 3
  %v2011 = vunpack.c.l.b16 %v1745
  %v2012 = vunpack.c.h.b16 %v1745
  %v2013 = vunpack.c.l.b16 %v1746
  %v2014 = vunpack.c.h.b16 %v1746
  %v2015 = vunpack.c.l.b16 %v1747
  %v2016 = vunpack.c.h.b16 %v1747
  %v2017 = vunpack.c.l.b16 %v1748
  %v2018 = vunpack.c.h.b16 %v1748
  %v2019 = vunpack.c.l.b16 %v1749
  %v2020 = vunpack.c.h.b16 %v1749
  %v2021 = vunpack.c.l.b16 %v1750
  %v2022 = vunpack.c.h.b16 %v1750
  %v2023 = vunpack.c.l.b16 %v1751
  %v2024 = vunpack.c.h.b16 %v1751
  %v2025 = vunpack.c.l.b16 %v1752
  %v2026 = vunpack.c.h.b16 %v1752
  %v2027 = vunpack.c.l.b16 %v1753
  %v2028 = vunpack.c.h.b16 %v1753
  %v2029 = vunpack.c.l.b16 %v1754
  %v2030 = vunpack.c.h.b16 %v1754
  %v2031 = vunpack.c.l.b16 %v1755
  %v2032 = vunpack.c.h.b16 %v1755
  %v2033 = vunpack.c.l.b16 %v1756
  %v2034 = vunpack.c.h.b16 %v1756
  %v2035 = vunpack.c.l.b16 %v1757
  %v2036 = vunpack.c.h.b16 %v1757
  %v2037 = vunpack.c.l.b16 %v1758
  %v2038 = vunpack.c.h.b16 %v1758
  %v2039 = vunpack.c.l.b16 %v1759
  %v2040 = vunpack.c.h.b16 %v1759
  %v2041 = vunpack.c.l.b16 %v1760
  %v2042 = vunpack.c.h.b16 %v1760
  %v2043 = vunpack.c.l.b16 %v1761
  %v2044 = vunpack.c.h.b16 %v1761
  %v2045 = vunpack.c.l.b16 %v1762
  %v2046 = vunpack.c.h.b16 %v1762
  %v2047 = vunpack.c.l.b16 %v1763
  %v2048 = vunpack.c.h.b16 %v1763
  %v2049 = vunpack.c.l.b16 %v1764
  %v2050 = vunpack.c.h.b16 %v1764
  %v2051 = vunpack.c.l.b16 %v1765
  %v2052 = vunpack.c.h.b16 %v1765
  %v2053 = vunpack.c.l.b16 %v1766
  %v2054 = vunpack.c.h.b16 %v1766
  %v2055 = vunpack.c.l.b16 %v1767
  %v2056 = vunpack.c.h.b16 %v1767
  %v2057 = vunpack.c.l.b16 %v1768
  %v2058 = vunpack.c.h.b16 %v1768
  %v2059 = vunpack.c.l.b16 %v1769
  %v2060 = vunpack.c.h.b16 %v1769
  %v2061 = vunpack.c.l.b16 %v1770
  %v2062 = vunpack.c.h.b16 %v1770
  %v2063 = vunpack.c.l.b16 %v1771
  %v2064 = vunpack.c.h.b16 %v1771
  %v2065 = vunpack.c.l.b16 %v1772
  %v2066 = vunpack.c.h.b16 %v1772
  %v2067 = vunpack.c.l.b16 %v1773
  %v2068 = vunpack.c.h.b16 %v1773
  %v2069 = vunpack.c.l.b16 %v1774
  %v2070 = vunpack.c.h.b16 %v1774
  %v2071 = vunpack.c.l.b16 %v1775
  %v2072 = vunpack.c.h.b16 %v1775
  %v2073 = vunpack.c.l.b16 %v1776
  %v2074 = vunpack.c.h.b16 %v1776
  %v2075 = vunpack.c.l.b16 %v1777
  %v2076 = vunpack.c.h.b16 %v1777
  %v2077 = vunpack.c.l.b16 %v1778
  %v2078 = vunpack.c.h.b16 %v1778
  %v2079 = vunpack.c.l.b16 %v1779
  %v2080 = vunpack.c.h.b16 %v1779
  %v2081 = vunpack.c.l.b16 %v1780
  %v2082 = vunpack.c.h.b16 %v1780
  %v2083 = vunpack.c.l.b16 %v1781
  %v2084 = vunpack.c.h.b16 %v1781
  %v2085 = vunpack.c.l.b16 %v1782
  %v2086 = vunpack.c.h.b16 %v1782
  %v2087 = vunpack.c.l.b16 %v1783
  %v2088 = vunpack.c.h.b16 %v1783
  %v2089 = vunpack.c.l.b16 %v1784
  %v2090 = vunpack.c.h.b16 %v1784
  %v2091 = vunpack.c.l.b16 %v1785
  %v2092 = vunpack.c.h.b16 %v1785
  %v2093 = vunpack.c.l.b16 %v1786
  %v2094 = vunpack.c.h.b16 %v1786
  %v2095 = vunpack.c.l.b16 %v1787
  %v2096 = vunpack.c.h.b16 %v1787
  %v2097 = vunpack.c.l.b16 %v1788
  %v2098 = vunpack.c.h.b16 %v1788
  %v2099 = vunpack.c.l.b16 %v1789
  %v2100 = vunpack.c.h.b16 %v1789
  %v2101 = vunpack.c.l.b16 %v1790
  %v2102 = vunpack.c.h.b16 %v1790
  %v2103 = vunpack.c.l.b16 %v1791
  %v2104 = vunpack.c.h.b16 %v1791
  %v2105 = vunpack.c.l.b16 %v1792
  %v2106 = vunpack.c.h.b16 %v1792
  %v2107 = vunpack.c.l.b16 %v1793
  %v2108 = vunpack.c.h.b16 %v1793
  %v2109 = vunpack.c.l.b16 %v1794
  %v2110 = vunpack.c.h.b16 %v1794
  %v2111 = vunpack.c.l.b16 %v1795
  %v2112 = vunpack.c.h.b16 %v1795
  %v2113 = vunpack.c.l.b16 %v1796
  %v2114 = vunpack.c.h.b16 %v1796
  %v2115 = vunpack.c.l.b16 %v1797
  %v2116 = vunpack.c.h.b16 %v1797
  %v2117 = vunpack.c.l.b16 %v1798
  %v2118 = vunpack.c.h.b16 %v1798
  %v2119 = vunpack.c.l.b16 %v1799
  %v2120 = vunpack.c.h.b16 %v1799
  %v2121 = vunpack.c.l.b16 %v1800
  %v2122 = vunpack.c.h.b16 %v1800
  %v2123 = vunpack.c.l.b16 %v1801
  %v2124 = vunpack.c.h.b16 %v1801
  %v2125 = vunpack.c.l.b16 %v1802
  %v2126 = vunpack.c.h.b16 %v1802
  %v2127 = vunpack.c.l.b16 %v1803
  %v2128 = vunpack.c.h.b16 %v1803
  %v2129 = vunpack.c.l.b16 %v1804
  %v2130 = vunpack.c.h.b16 %v1804
  %v2131 = vunpack.c.l.b16 %v1805
  %v2132 = vunpack.c.h.b16 %v1805
  %v2133 = vunpack.c.l.b16 %v1806
  %v2134 = vunpack.c.h.b16 %v1806
  %v2135 = vunpack.c.l.b16 %v1807
  %v2136 = vunpack.c.h.b16 %v1807
  %v2137 = vunpack.c.l.b16 %v1808
  %v2138 = vunpack.c.h.b16 %v1808
  %v2139 = vunpack.c.l.b16 %v1809
  %v2140 = vunpack.c.h.b16 %v1809
  %v2141 = vunpack.c.l.b16 %v1810
  %v2142 = vunpack.c.h.b16 %v1810
  %v2143 = vunpack.c.l.b16 %v1811
  %v2144 = vunpack.c.h.b16 %v1811
  %v2145 = vunpack.c.l.b16 %v1812
  %v2146 = vunpack.c.h.b16 %v1812
  %v2147 = vunpack.c.l.b16 %v1813
  %v2148 = vunpack.c.h.b16 %v1813
  %v2149 = vunpack.c.l.b16 %v1814
  %v2150 = vunpack.c.h.b16 %v1814
  %v2151 = vunpack.c.l.b16 %v1815
  %v2152 = vunpack.c.h.b16 %v1815
  %v2153 = vunpack.c.l.b16 %v1816
  %v2154 = vunpack.c.h.b16 %v1816
  %v2155 = vunpack.c.l.b16 %v1817
  %v2156 = vunpack.c.h.b16 %v1817
  %v2157 = vunpack.c.l.b16 %v1818
  %v2158 = vunpack.c.h.b16 %v1818
  %v2159 = vunpack.c.l.b16 %v1819
  %v2160 = vunpack.c.h.b16 %v1819
  %v2161 = vunpack.c.l.b16 %v1820
  %v2162 = vunpack.c.h.b16 %v1820
  %v2163 = vunpack.c.l.b16 %v1821
  %v2164 = vunpack.c.h.b16 %v1821
  %v2165 = vunpack.c.l.b16 %v1822
  %v2166 = vunpack.c.h.b16 %v1822
  %v2167 = vunpack.c.l.b16 %v1823
  %v2168 = vunpack.c.h.b16 %v1823
  %v2169 = vunpack.c.l.b16 %v1824
  %v2170 = vunpack.c.h.b16 %v1824
  %v2171 = vunpack.c.l.b16 %v1825
  %v2172 = vunpack.c.h.b16 %v1825
  %v2173 = vunpack.c.l.b16 %v1826
  %v2174 = vunpack.c.h.b16 %v1826
  %v2175 = vunpack.c.l.b16 %v1827
  %v2176 = vunpack.c.h.b16 %v1827
  %v2177 = vunpack.c.l.b16 %v1828
  %v2178 = vunpack.c.h.b16 %v1828
  %v2179 = vunpack.c.l.b16 %v1829
  %v2180 = vunpack.c.h.b16 %v1829
  %v2181 = vunpack.c.l.b16 %v1830
  %v2182 = vunpack.c.h.b16 %v1830
  %v2183 = vunpack.c.l.b16 %v1831
  %v2184 = vunpack.c.h.b16 %v1831
  %v2185 = vunpack.c.l.b16 %v1832
  %v2186 = vunpack.c.h.b16 %v1832
  %v2187 = vunpack.c.l.b16 %v1833
  %v2188 = vunpack.c.h.b16 %v1833
  %v2189 = vunpack.c.l.b16 %v1834
  %v2190 = vunpack.c.h.b16 %v1834
  %v2191 = vunpack.c.l.b16 %v1835
  %v2192 = vunpack.c.h.b16 %v1835
  %v2193 = vunpack.c.l.b16 %v1836
  %v2194 = vunpack.c.h.b16 %v1836
  %v2195 = vunpack.c.l.b16 %v1837
  %v2196 = vunpack.c.h.b16 %v1837
  %v2197 = vunpack.c.l.b16 %v1838
  %v2198 = vunpack.c.h.b16 %v1838
  %v2199 = vunpack.c.l.b16 %v1839
  %v2200 = vunpack.c.h.b16 %v1839
  %v2201 = vunpack.c.l.b16 %v1840
  %v2202 = vunpack.c.h.b16 %v1840
  %v2203 = vunpack.c.l.b16 %v1841
  %v2204 = vunpack.c.h.b16 %v1841
  %v2205 = vunpack.c.l.b16 %v1842
  %v2206 = vunpack.c.h.b16 %v1842
  %v2207 = vunpack.c.l.b16 %v1843
  %v2208 = vunpack.c.h.b16 %v1843
  %v2209 = vunpack.c.l.b16 %v1844
  %v2210 = vunpack.c.h.b16 %v1844
  %v2211 = vunpack.c.l.b16 %v1845
  %v2212 = vunpack.c.h.b16 %v1845
  %v2213 = vunpack.c.l.b16 %v1846
  %v2214 = vunpack.c.h.b16 %v1846
  %v2215 = vunpack.c.l.b16 %v1847
  %v2216 = vunpack.c.h.b16 %v1847
  %v2217 = vunpack.c.l.b16 %v1848
  %v2218 = vunpack.c.h.b16 %v1848
  %v2219 = vunpack.c.l.b16 %v1849
  %v2220 = vunpack.c.h.b16 %v1849
  %v2221 = vunpack.c.l.b16 %v1850
  %v2222 = vunpack.c.h.b16 %v1850
  %v2223 = vunpack.c.l.b16 %v1851
  %v2224 = vunpack.c.h.b16 %v1851
  %v2225 = vunpack.c.l.b16 %v1852
  %v2226 = vunpack.c.h.b16 %v1852
  %v2227 = vunpack.c.l.b16 %v1853
  %v2228 = vunpack.c.h.b16 %v1853
  %v2229 = vunpack.c.l.b16 %v1854
  %v2230 = vunpack.c.h.b16 %v1854
  %v2231 = vunpack.c.l.b16 %v1855
  %v2232 = vunpack.c.h.b16 %v1855
  %v2233 = vunpack.c.l.b16 %v1856
  %v2234 = vunpack.c.h.b16 %v1856
  %v2235 = vunpack.c.l.b16 %v1857
  %v2236 = vunpack.c.h.b16 %v1857
  %v2237 = vunpack.c.l.b16 %v1858
  %v2238 = vunpack.c.h.b16 %v1858
  %v2239 = vunpack.c.l.b16 %v1859
  %v2240 = vunpack.c.h.b16 %v1859
  %v2241 = vunpack.c.l.b16 %v1860
  %v2242 = vunpack.c.h.b16 %v1860
  %v2243 = vunpack.c.l.b16 %v1861
  %v2244 = vunpack.c.h.b16 %v1861
  %v2245 = vunpack.c.l.b16 %v1862
  %v2246 = vunpack.c.h.b16 %v1862
  %v2247 = vunpack.c.l.b16 %v1863
  %v2248 = vunpack.c.h.b16 %v1863
  %v2249 = vunpack.c.l.b16 %v1864
  %v2250 = vunpack.c.h.b16 %v1864
  %v2251 = vunpack.c.l.b16 %v1865
  %v2252 = vunpack.c.h.b16 %v1865
  %v2253 = vunpack.c.l.b16 %v1866
  %v2254 = vunpack.c.h.b16 %v1866
  %v2255 = vunpack.c.l.b16 %v1867
  %v2256 = vunpack.c.h.b16 %v1867
  %v2257 = vunpack.c.l.b16 %v1868
  %v2258 = vunpack.c.h.b16 %v1868
  %v2259 = vunpack.c.l.b16 %v1869
  %v2260 = vunpack.c.h.b16 %v1869
  %v2261 = vunpack.c.l.b16 %v1870
  %v2262 = vunpack.c.h.b16 %v1870
  %v2263 = vunpack.c.l.b16 %v1871
  %v2264 = vunpack.c.h.b16 %v1871
  %v2265 = vunpack.c.l.b16 %v1872
  %v2266 = vunpack.c.h.b16 %v1872
  %v2267 = vpack.c.b16 %v2015, %v2011
  %v2268 = vpack.c.b16 %v2016, %v2012
  %v2269 = vpack.c.b16 %v2017, %v2013
  %v2270 = vpack.c.b16 %v2018, %v2014
  %v2271 = vpack.c.b16 %v2023, %v2019
  %v2272 = vpack.c.b16 %v2024, %v2020
  %v2273 = vpack.c.b16 %v2025, %v2021
  %v2274 = vpack.c.b16 %v2026, %v2022
  %v2275 = vpack.c.b16 %v2031, %v2027
  %v2276 = vpack.c.b16 %v2032, %v2028
  %v2277 = vpack.c.b16 %v2033, %v2029
  %v2278 = vpack.c.b16 %v2034, %v2030
  %v2279 = vpack.c.b16 %v2039, %v2035
  %v2280 = vpack.c.b16 %v2040, %v2036
  %v2281 = vpack.c.b16 %v2041, %v2037
  %v2282 = vpack.c.b16 %v2042, %v2038
  %v2283 = vpack.c.b16 %v2047, %v2043
  %v2284 = vpack.c.b16 %v2048, %v2044
  %v2285 = vpack.c.b16 %v2049, %v2045
  %v2286 = vpack.c.b16 %v2050, %v2046
  %v2287 = vpack.c.b16 %v2055, %v2051
  %v2288 = vpack.c.b16 %v2056, %v2052
  %v2289 = vpack.c.b16 %v2057, %v2053
  %v2290 = vpack.c.b16 %v2058, %v2054
  %v2291 = vpack.c.b16 %v2063, %v2059
  %v2292 = vpack.c.b16 %v2064, %v2060
  %v2293 = vpack.c.b16 %v2065, %v2061
  %v2294 = vpack.c.b16 %v2066, %v2062
  %v2295 = vpack.c.b16 %v2071, %v2067
  %v2296 = vpack.c.b16 %v2072, %v2068
  %v2297 = vpack.c.b16 %v2073, %v2069
  %v2298 = vpack.c.b16 %v2074, %v2070
  %v2299 = vpack.c.b16 %v2079, %v2075
  %v2300 = vpack.c.b16 %v2080, %v2076
  %v2301 = vpack.c.b16 %v2081, %v2077
  %v2302 = vpack.c.b16 %v2082, %v2078
  %v2303 = vpack.c.b16 %v2087, %v2083
  %v2304 = vpack.c.b16 %v2088, %v2084
  %v2305 = vpack.c.b16 %v2089, %v2085
  %v2306 = vpack.c.b16 %v2090, %v2086
  %v2307 = vpack.c.b16 %v2095, %v2091
  %v2308 = vpack.c.b16 %v2096, %v2092
  %v2309 = vpack.c.b16 %v2097, %v2093
  %v2310 = vpack.c.b16 %v2098, %v2094
  %v2311 = vpack.c.b16 %v2103, %v2099
  %v2312 = vpack.c.b16 %v2104, %v2100
  %v2313 = vpack.c.b16 %v2105, %v2101
  %v2314 = vpack.c.b16 %v2106, %v2102
  %v2315 = vpack.c.b16 %v2111, %v2107
  %v2316 = vpack.c.b16 %v2112, %v2108
  %v2317 = vpack.c.b16 %v2113, %v2109
  %v2318 = vpack.c.b16 %v2114, %v2110
  %v2319 = vpack.c.b16 %v2119, %v2115
  %v2320 = vpack.c.b16 %v2120, %v2116
  %v2321 = vpack.c.b16 %v2121, %v2117
  %v2322 = vpack.c.b16 %v2122, %v2118
  %v2323 = vpack.c.b16 %v2127, %v2123
  %v2324 = vpack.c.b16 %v2128, %v2124
  %v2325 = vpack.c.b16 %v2129, %v2125
  %v2326 = vpack.c.b16 %v2130, %v2126
  %v2327 = vpack.c.b16 %v2135, %v2131
  %v2328 = vpack.c.b16 %v2136, %v2132
  %v2329 = vpack.c.b16 %v2137, %v2133
  %v2330 = vpack.c.b16 %v2138, %v2134
  %v2331 = vpack.c.b16 %v2143, %v2139
  %v2332 = vpack.c.b16 %v2144, %v2140
  %v2333 = vpack.c.b16 %v2145, %v2141
  %v2334 = vpack.c.b16 %v2146, %v2142
  %v2335 = vpack.c.b16 %v2151, %v2147
  %v2336 = vpack.c.b16 %v2152, %v2148
  %v2337 = vpack.c.b16 %v2153, %v2149
  %v2338 = vpack.c.b16 %v2154, %v2150
  %v2339 = vpack.c.b16 %v2159, %v2155
  %v2340 = vpack.c.b16 %v2160, %v2156
  %v2341 = vpack.c.b16 %v2161, %v2157
  %v2342 = vpack.c.b16 %v2162, %v2158
  %v2343 = vpack.c.b16 %v2167, %v2163
  %v2344 = vpack.c.b16 %v2168, %v2164
  %v2345 = vpack.c.b16 %v2169, %v2165
  %v2346 = vpack.c.b16 %v2170, %v2166
  %v2347 = vpack.c.b16 %v2175, %v2171
  %v2348 = vpack.c.b16 %v2176, %v2172
  %v2349 = vpack.c.b16 %v2177, %v2173
  %v2350 = vpack.c.b16 %v2178, %v2174
  %v2351 = vpack.c.b16 %v2183, %v2179
  %v2352 = vpack.c.b16 %v2184, %v2180
  %v2353 = vpack.c.b16 %v2185, %v2181
  %v2354 = vpack.c.b16 %v2186, %v2182
  %v2355 = vpack.c.b16 %v2191, %v2187
  %v2356 = vpack.c.b16 %v2192, %v2188
  %v2357 = vpack.c.b16 %v2193, %v2189
  %v2358 = vpack.c.b16 %v2194, %v2190
  %v2359 = vpack.c.b16 %v2199, %v2195
  %v2360 = vpack.c.b16 %v2200, %v2196
  %v2361 = vpack.c.b16 %v2201, %v2197
  %v2362 = vpack.c.b16 %v2202, %v2198
  %v2363 = vpack.c.b16 %v2207, %v2203
  %v2364 = vpack.c.b16 %v2208, %v2204
  %v2365 = vpack.c.b16 %v2209, %v2205
  %v2366 = vpack.c.b16 %v2210, %v2206
  %v2367 = vpack.c.b16 %v2215, %v2211
  %v2368 = vpack.c.b16 %v2216, %v2212
  %v2369 = vpack.c.b16 %v2217, %v2213
  %v2370 = vpack.c.b16 %v2218, %v2214
  %v2371 = vpack.c.b16 %v2223, %v2219
  %v2372 = vpack.c.b16 %v2224, %v2220
  %v2373 = vpack.c.b16 %v2225, %v2221
  %v2374 = vpack.c.b16 %v2226, %v2222
  %v2375 = vpack.c.b16 %v2231, %v2227
  %v2376 = vpack.c.b16 %v2232, %v2228
  %v2377 = vpack.c.b16 %v2233, %v2229
  %v2378 = vpack.c.b16 %v2234, %v2230
  %v2379 = vpack.c.b16 %v2239, %v2235
  %v2380 = vpack.c.b16 %v2240, %v2236
  %v2381 = vpack.c.b16 %v2241, %v2237
  %v2382 = vpack.c.b16 %v2242, %v2238
  %v2383 = vpack.c.b16 %v2247, %v2243
  %v2384 = vpack.c.b16 %v2248, %v2244
  %v2385 = vpack.c.b16 %v2249, %v2245
  %v2386 = vpack.c.b16 %v2250, %v2246
  %v2387 = vpack.c.b16 %v2255, %v2251
  %v2388 = vpack.c.b16 %v2256, %v2252
  %v2389 = vpack.c.b16 %v2257, %v2253
  %v2390 = vpack.c.b16 %v2258, %v2254
  %v2391 = vpack.c.b16 %v2263, %v2259
  %v2392 = vpack.c.b16 %v2264, %v2260
  %v2393 = vpack.c.b16 %v2265, %v2261
  %v2394 = vpack.c.b16 %v2266, %v2262
  %2523 = vmatpush.bf16.msra.mxu0 %v2295
  %2524 = vmatpush.bf16.msra.mxu0 %v2291
  %2525 = vmatpush.bf16.msra.mxu0 %v2287
  %2526 = vmatpush.bf16.msra.mxu0 %v2283
  %2527 = vmatpush.bf16.msra.mxu0 %v2279
  %2528 = vmatpush.bf16.msra.mxu0 %v2275
  %2529 = vmatpush.bf16.msra.mxu0 %v2271
  %2530 = vmatpush.bf16.msra.mxu0 %v2267
  %2531 = vmatmul.bf16.gmra.mxu0 %v1713
  %v2532 = vpop.f32.mrf.mxu0
  %v2533 = vadd.f32 %v1875, %v2532
  %v2534 = vpop.f32.mrf.mxu0
  %v2535 = vadd.f32 %v1875, %v2534
  %2536 = vmatmul.bf16.gmra.mxu0 %v1717
  %v2537 = vpop.f32.mrf.mxu0
  %v2538 = vadd.f32 %v1875, %v2537
  %v2539 = vpop.f32.mrf.mxu0
  %v2540 = vadd.f32 %v1875, %v2539
  %2541 = vmatmul.bf16.gmra.mxu0 %v1721
  %v2542 = vpop.f32.mrf.mxu0
  %v2543 = vadd.f32 %v1875, %v2542
  %v2544 = vpop.f32.mrf.mxu0
  %v2545 = vadd.f32 %v1875, %v2544
  %2546 = vmatmul.bf16.gmra.mxu0 %v1725
  %v2547 = vpop.f32.mrf.mxu0
  %v2548 = vadd.f32 %v1875, %v2547
  %v2549 = vpop.f32.mrf.mxu0
  %v2550 = vadd.f32 %v1875, %v2549
  %2551 = vmatmul.bf16.gmra.mxu0 %v1729
  %v2552 = vpop.f32.mrf.mxu0
  %v2553 = vadd.f32 %v1875, %v2552
  %v2554 = vpop.f32.mrf.mxu0
  %v2555 = vadd.f32 %v1875, %v2554
  %2556 = vmatmul.bf16.gmra.mxu0 %v1733
  %v2557 = vpop.f32.mrf.mxu0
  %v2558 = vadd.f32 %v1875, %v2557
  %v2559 = vpop.f32.mrf.mxu0
  %v2560 = vadd.f32 %v1875, %v2559
  %2561 = vmatmul.bf16.gmra.mxu0 %v1737
  %v2562 = vpop.f32.mrf.mxu0
  %v2563 = vadd.f32 %v1875, %v2562
  %v2564 = vpop.f32.mrf.mxu0
  %v2565 = vadd.f32 %v1875, %v2564
  %2566 = vmatmul.bf16.gmra.mxu0 %v1741
  %v2567 = vpop.f32.mrf.mxu0
  %v2568 = vadd.f32 %v1875, %v2567
  %v2569 = vpop.f32.mrf.mxu0
  %v2570 = vadd.f32 %v1875, %v2569
  %2571 = vdwg.mxu0
  %2572 = vmatpush.bf16.msra.mxu0 %v2327
  %2573 = vmatpush.bf16.msra.mxu0 %v2323
  %2574 = vmatpush.bf16.msra.mxu0 %v2319
  %2575 = vmatpush.bf16.msra.mxu0 %v2315
  %2576 = vmatpush.bf16.msra.mxu0 %v2311
  %2577 = vmatpush.bf16.msra.mxu0 %v2307
  %2578 = vmatpush.bf16.msra.mxu0 %v2303
  %2579 = vmatpush.bf16.msra.mxu0 %v2299
  %2580 = vmatmul.bf16.gmra.mxu0 %v1714
  %v2581 = vpop.f32.mrf.mxu0
  %v2582 = vadd.f32 %v2533, %v2581
  %v2583 = vpop.f32.mrf.mxu0
  %v2584 = vadd.f32 %v2535, %v2583
  %2585 = vmatmul.bf16.gmra.mxu0 %v1718
  %v2586 = vpop.f32.mrf.mxu0
  %v2587 = vadd.f32 %v2538, %v2586
  %v2588 = vpop.f32.mrf.mxu0
  %v2589 = vadd.f32 %v2540, %v2588
  %2590 = vmatmul.bf16.gmra.mxu0 %v1722
  %v2591 = vpop.f32.mrf.mxu0
  %v2592 = vadd.f32 %v2543, %v2591
  %v2593 = vpop.f32.mrf.mxu0
  %v2594 = vadd.f32 %v2545, %v2593
  %2595 = vmatmul.bf16.gmra.mxu0 %v1726
  %v2596 = vpop.f32.mrf.mxu0
  %v2597 = vadd.f32 %v2548, %v2596
  %v2598 = vpop.f32.mrf.mxu0
  %v2599 = vadd.f32 %v2550, %v2598
  %2600 = vmatmul.bf16.gmra.mxu0 %v1730
  %v2601 = vpop.f32.mrf.mxu0
  %v2602 = vadd.f32 %v2553, %v2601
  %v2603 = vpop.f32.mrf.mxu0
  %v2604 = vadd.f32 %v2555, %v2603
  %2605 = vmatmul.bf16.gmra.mxu0 %v1734
  %v2606 = vpop.f32.mrf.mxu0
  %v2607 = vadd.f32 %v2558, %v2606
  %v2608 = vpop.f32.mrf.mxu0
  %v2609 = vadd.f32 %v2560, %v2608
  %2610 = vmatmul.bf16.gmra.mxu0 %v1738
  %v2611 = vpop.f32.mrf.mxu0
  %v2612 = vadd.f32 %v2563, %v2611
  %v2613 = vpop.f32.mrf.mxu0
  %v2614 = vadd.f32 %v2565, %v2613
  %2615 = vmatmul.bf16.gmra.mxu0 %v1742
  %v2616 = vpop.f32.mrf.mxu0
  %v2617 = vadd.f32 %v2568, %v2616
  %v2618 = vpop.f32.mrf.mxu0
  %v2619 = vadd.f32 %v2570, %v2618
  %2620 = vdwg.mxu0
  %2621 = vmatpush.bf16.msra.mxu0 %v2359
  %2622 = vmatpush.bf16.msra.mxu0 %v2355
  %2623 = vmatpush.bf16.msra.mxu0 %v2351
  %2624 = vmatpush.bf16.msra.mxu0 %v2347
  %2625 = vmatpush.bf16.msra.mxu0 %v2343
  %2626 = vmatpush.bf16.msra.mxu0 %v2339
  %2627 = vmatpush.bf16.msra.mxu0 %v2335
  %2628 = vmatpush.bf16.msra.mxu0 %v2331
  %2629 = vmatmul.bf16.gmra.mxu0 %v1715
  %v2630 = vpop.f32.mrf.mxu0
  %v2631 = vadd.f32 %v2582, %v2630
  %v2632 = vpop.f32.mrf.mxu0
  %v2633 = vadd.f32 %v2584, %v2632
  %2634 = vmatmul.bf16.gmra.mxu0 %v1719
  %v2635 = vpop.f32.mrf.mxu0
  %v2636 = vadd.f32 %v2587, %v2635
  %v2637 = vpop.f32.mrf.mxu0
  %v2638 = vadd.f32 %v2589, %v2637
  %2639 = vmatmul.bf16.gmra.mxu0 %v1723
  %v2640 = vpop.f32.mrf.mxu0
  %v2641 = vadd.f32 %v2592, %v2640
  %v2642 = vpop.f32.mrf.mxu0
  %v2643 = vadd.f32 %v2594, %v2642
  %2644 = vmatmul.bf16.gmra.mxu0 %v1727
  %v2645 = vpop.f32.mrf.mxu0
  %v2646 = vadd.f32 %v2597, %v2645
  %v2647 = vpop.f32.mrf.mxu0
  %v2648 = vadd.f32 %v2599, %v2647
  %2649 = vmatmul.bf16.gmra.mxu0 %v1731
  %v2650 = vpop.f32.mrf.mxu0
  %v2651 = vadd.f32 %v2602, %v2650
  %v2652 = vpop.f32.mrf.mxu0
  %v2653 = vadd.f32 %v2604, %v2652
  %2654 = vmatmul.bf16.gmra.mxu0 %v1735
  %v2655 = vpop.f32.mrf.mxu0
  %v2656 = vadd.f32 %v2607, %v2655
  %v2657 = vpop.f32.mrf.mxu0
  %v2658 = vadd.f32 %v2609, %v2657
  %2659 = vmatmul.bf16.gmra.mxu0 %v1739
  %v2660 = vpop.f32.mrf.mxu0
  %v2661 = vadd.f32 %v2612, %v2660
  %v2662 = vpop.f32.mrf.mxu0
  %v2663 = vadd.f32 %v2614, %v2662
  %2664 = vmatmul.bf16.gmra.mxu0 %v1743
  %v2665 = vpop.f32.mrf.mxu0
  %v2666 = vadd.f32 %v2617, %v2665
  %v2667 = vpop.f32.mrf.mxu0
  %v2668 = vadd.f32 %v2619, %v2667
  %2669 = vdwg.mxu0
  %2670 = vmatpush.bf16.msra.mxu0 %v2391
  %2671 = vmatpush.bf16.msra.mxu0 %v2387
  %2672 = vmatpush.bf16.msra.mxu0 %v2383
  %2673 = vmatpush.bf16.msra.mxu0 %v2379
  %2674 = vmatpush.bf16.msra.mxu0 %v2375
  %2675 = vmatpush.bf16.msra.mxu0 %v2371
  %2676 = vmatpush.bf16.msra.mxu0 %v2367
  %2677 = vmatpush.bf16.msra.mxu0 %v2363
  %2678 = vmatmul.bf16.gmra.mxu0 %v1716
  %v2679 = vpop.f32.mrf.mxu0
  %v2680 = vadd.f32 %v2631, %v2679
  %v2681 = vpop.f32.mrf.mxu0
  %v2682 = vadd.f32 %v2633, %v2681
  %2683 = vmatmul.bf16.gmra.mxu0 %v1720
  %v2684 = vpop.f32.mrf.mxu0
  %v2685 = vadd.f32 %v2636, %v2684
  %v2686 = vpop.f32.mrf.mxu0
  %v2687 = vadd.f32 %v2638, %v2686
  %2688 = vmatmul.bf16.gmra.mxu0 %v1724
  %v2689 = vpop.f32.mrf.mxu0
  %v2690 = vadd.f32 %v2641, %v2689
  %v2691 = vpop.f32.mrf.mxu0
  %v2692 = vadd.f32 %v2643, %v2691
  %2693 = vmatmul.bf16.gmra.mxu0 %v1728
  %v2694 = vpop.f32.mrf.mxu0
  %v2695 = vadd.f32 %v2646, %v2694
  %v2696 = vpop.f32.mrf.mxu0
  %v2697 = vadd.f32 %v2648, %v2696
  %2698 = vmatmul.bf16.gmra.mxu0 %v1732
  %v2699 = vpop.f32.mrf.mxu0
  %v2700 = vadd.f32 %v2651, %v2699
  %v2701 = vpop.f32.mrf.mxu0
  %v2702 = vadd.f32 %v2653, %v2701
  %2703 = vmatmul.bf16.gmra.mxu0 %v1736
  %v2704 = vpop.f32.mrf.mxu0
  %v2705 = vadd.f32 %v2656, %v2704
  %v2706 = vpop.f32.mrf.mxu0
  %v2707 = vadd.f32 %v2658, %v2706
  %2708 = vmatmul.bf16.gmra.mxu0 %v1740
  %v2709 = vpop.f32.mrf.mxu0
  %v2710 = vadd.f32 %v2661, %v2709
  %v2711 = vpop.f32.mrf.mxu0
  %v2712 = vadd.f32 %v2663, %v2711
  %2713 = vmatmul.bf16.gmra.mxu0 %v1744
  %v2714 = vpop.f32.mrf.mxu0
  %v2715 = vadd.f32 %v2666, %v2714
  %v2716 = vpop.f32.mrf.mxu0
  %v2717 = vadd.f32 %v2668, %v2716
  %2718 = vdwg.mxu0
  %2719 = vmatpush.bf16.msra.mxu0 %v2296
  %2720 = vmatpush.bf16.msra.mxu0 %v2292
  %2721 = vmatpush.bf16.msra.mxu0 %v2288
  %2722 = vmatpush.bf16.msra.mxu0 %v2284
  %2723 = vmatpush.bf16.msra.mxu0 %v2280
  %2724 = vmatpush.bf16.msra.mxu0 %v2276
  %2725 = vmatpush.bf16.msra.mxu0 %v2272
  %2726 = vmatpush.bf16.msra.mxu0 %v2268
  %2727 = vmatmul.bf16.gmra.mxu0 %v1713
  %v2728 = vpop.f32.mrf.mxu0
  %v2729 = vadd.f32 %v1876, %v2728
  %v2730 = vpop.f32.mrf.mxu0
  %v2731 = vadd.f32 %v1876, %v2730
  %2732 = vmatmul.bf16.gmra.mxu0 %v1717
  %v2733 = vpop.f32.mrf.mxu0
  %v2734 = vadd.f32 %v1876, %v2733
  %v2735 = vpop.f32.mrf.mxu0
  %v2736 = vadd.f32 %v1876, %v2735
  %2737 = vmatmul.bf16.gmra.mxu0 %v1721
  %v2738 = vpop.f32.mrf.mxu0
  %v2739 = vadd.f32 %v1876, %v2738
  %v2740 = vpop.f32.mrf.mxu0
  %v2741 = vadd.f32 %v1876, %v2740
  %2742 = vmatmul.bf16.gmra.mxu0 %v1725
  %v2743 = vpop.f32.mrf.mxu0
  %v2744 = vadd.f32 %v1876, %v2743
  %v2745 = vpop.f32.mrf.mxu0
  %v2746 = vadd.f32 %v1876, %v2745
  %2747 = vmatmul.bf16.gmra.mxu0 %v1729
  %v2748 = vpop.f32.mrf.mxu0
  %v2749 = vadd.f32 %v1876, %v2748
  %v2750 = vpop.f32.mrf.mxu0
  %v2751 = vadd.f32 %v1876, %v2750
  %2752 = vmatmul.bf16.gmra.mxu0 %v1733
  %v2753 = vpop.f32.mrf.mxu0
  %v2754 = vadd.f32 %v1876, %v2753
  %v2755 = vpop.f32.mrf.mxu0
  %v2756 = vadd.f32 %v1876, %v2755
  %2757 = vmatmul.bf16.gmra.mxu0 %v1737
  %v2758 = vpop.f32.mrf.mxu0
  %v2759 = vadd.f32 %v1876, %v2758
  %v2760 = vpop.f32.mrf.mxu0
  %v2761 = vadd.f32 %v1876, %v2760
  %2762 = vmatmul.bf16.gmra.mxu0 %v1741
  %v2763 = vpop.f32.mrf.mxu0
  %v2764 = vadd.f32 %v1876, %v2763
  %v2765 = vpop.f32.mrf.mxu0
  %v2766 = vadd.f32 %v1876, %v2765
  %2767 = vdwg.mxu0
  %2768 = vmatpush.bf16.msra.mxu0 %v2328
  %2769 = vmatpush.bf16.msra.mxu0 %v2324
  %2770 = vmatpush.bf16.msra.mxu0 %v2320
  %2771 = vmatpush.bf16.msra.mxu0 %v2316
  %2772 = vmatpush.bf16.msra.mxu0 %v2312
  %2773 = vmatpush.bf16.msra.mxu0 %v2308
  %2774 = vmatpush.bf16.msra.mxu0 %v2304
  %2775 = vmatpush.bf16.msra.mxu0 %v2300
  %2776 = vmatmul.bf16.gmra.mxu0 %v1714
  %v2777 = vpop.f32.mrf.mxu0
  %v2778 = vadd.f32 %v2729, %v2777
  %v2779 = vpop.f32.mrf.mxu0
  %v2780 = vadd.f32 %v2731, %v2779
  %2781 = vmatmul.bf16.gmra.mxu0 %v1718
  %v2782 = vpop.f32.mrf.mxu0
  %v2783 = vadd.f32 %v2734, %v2782
  %v2784 = vpop.f32.mrf.mxu0
  %v2785 = vadd.f32 %v2736, %v2784
  %2786 = vmatmul.bf16.gmra.mxu0 %v1722
  %v2787 = vpop.f32.mrf.mxu0
  %v2788 = vadd.f32 %v2739, %v2787
  %v2789 = vpop.f32.mrf.mxu0
  %v2790 = vadd.f32 %v2741, %v2789
  %2791 = vmatmul.bf16.gmra.mxu0 %v1726
  %v2792 = vpop.f32.mrf.mxu0
  %v2793 = vadd.f32 %v2744, %v2792
  %v2794 = vpop.f32.mrf.mxu0
  %v2795 = vadd.f32 %v2746, %v2794
  %2796 = vmatmul.bf16.gmra.mxu0 %v1730
  %v2797 = vpop.f32.mrf.mxu0
  %v2798 = vadd.f32 %v2749, %v2797
  %v2799 = vpop.f32.mrf.mxu0
  %v2800 = vadd.f32 %v2751, %v2799
  %2801 = vmatmul.bf16.gmra.mxu0 %v1734
  %v2802 = vpop.f32.mrf.mxu0
  %v2803 = vadd.f32 %v2754, %v2802
  %v2804 = vpop.f32.mrf.mxu0
  %v2805 = vadd.f32 %v2756, %v2804
  %2806 = vmatmul.bf16.gmra.mxu0 %v1738
  %v2807 = vpop.f32.mrf.mxu0
  %v2808 = vadd.f32 %v2759, %v2807
  %v2809 = vpop.f32.mrf.mxu0
  %v2810 = vadd.f32 %v2761, %v2809
  %2811 = vmatmul.bf16.gmra.mxu0 %v1742
  %v2812 = vpop.f32.mrf.mxu0
  %v2813 = vadd.f32 %v2764, %v2812
  %v2814 = vpop.f32.mrf.mxu0
  %v2815 = vadd.f32 %v2766, %v2814
  %2816 = vdwg.mxu0
  %2817 = vmatpush.bf16.msra.mxu0 %v2360
  %2818 = vmatpush.bf16.msra.mxu0 %v2356
  %2819 = vmatpush.bf16.msra.mxu0 %v2352
  %2820 = vmatpush.bf16.msra.mxu0 %v2348
  %2821 = vmatpush.bf16.msra.mxu0 %v2344
  %2822 = vmatpush.bf16.msra.mxu0 %v2340
  %2823 = vmatpush.bf16.msra.mxu0 %v2336
  %2824 = vmatpush.bf16.msra.mxu0 %v2332
  %2825 = vmatmul.bf16.gmra.mxu0 %v1715
  %v2826 = vpop.f32.mrf.mxu0
  %v2827 = vadd.f32 %v2778, %v2826
  %v2828 = vpop.f32.mrf.mxu0
  %v2829 = vadd.f32 %v2780, %v2828
  %2830 = vmatmul.bf16.gmra.mxu0 %v1719
  %v2831 = vpop.f32.mrf.mxu0
  %v2832 = vadd.f32 %v2783, %v2831
  %v2833 = vpop.f32.mrf.mxu0
  %v2834 = vadd.f32 %v2785, %v2833
  %2835 = vmatmul.bf16.gmra.mxu0 %v1723
  %v2836 = vpop.f32.mrf.mxu0
  %v2837 = vadd.f32 %v2788, %v2836
  %v2838 = vpop.f32.mrf.mxu0
  %v2839 = vadd.f32 %v2790, %v2838
  %2840 = vmatmul.bf16.gmra.mxu0 %v1727
  %v2841 = vpop.f32.mrf.mxu0
  %v2842 = vadd.f32 %v2793, %v2841
  %v2843 = vpop.f32.mrf.mxu0
  %v2844 = vadd.f32 %v2795, %v2843
  %2845 = vmatmul.bf16.gmra.mxu0 %v1731
  %v2846 = vpop.f32.mrf.mxu0
  %v2847 = vadd.f32 %v2798, %v2846
  %v2848 = vpop.f32.mrf.mxu0
  %v2849 = vadd.f32 %v2800, %v2848
  %2850 = vmatmul.bf16.gmra.mxu0 %v1735
  %v2851 = vpop.f32.mrf.mxu0
  %v2852 = vadd.f32 %v2803, %v2851
  %v2853 = vpop.f32.mrf.mxu0
  %v2854 = vadd.f32 %v2805, %v2853
  %2855 = vmatmul.bf16.gmra.mxu0 %v1739
  %v2856 = vpop.f32.mrf.mxu0
  %v2857 = vadd.f32 %v2808, %v2856
  %v2858 = vpop.f32.mrf.mxu0
  %v2859 = vadd.f32 %v2810, %v2858
  %2860 = vmatmul.bf16.gmra.mxu0 %v1743
  %v2861 = vpop.f32.mrf.mxu0
  %v2862 = vadd.f32 %v2813, %v2861
  %v2863 = vpop.f32.mrf.mxu0
  %v2864 = vadd.f32 %v2815, %v2863
  %2865 = vdwg.mxu0
  %2866 = vmatpush.bf16.msra.mxu0 %v2392
  %2867 = vmatpush.bf16.msra.mxu0 %v2388
  %2868 = vmatpush.bf16.msra.mxu0 %v2384
  %2869 = vmatpush.bf16.msra.mxu0 %v2380
  %2870 = vmatpush.bf16.msra.mxu0 %v2376
  %2871 = vmatpush.bf16.msra.mxu0 %v2372
  %2872 = vmatpush.bf16.msra.mxu0 %v2368
  %2873 = vmatpush.bf16.msra.mxu0 %v2364
  %2874 = vmatmul.bf16.gmra.mxu0 %v1716
  %v2875 = vpop.f32.mrf.mxu0
  %v2876 = vadd.f32 %v2827, %v2875
  %v2877 = vpop.f32.mrf.mxu0
  %v2878 = vadd.f32 %v2829, %v2877
  %2879 = vmatmul.bf16.gmra.mxu0 %v1720
  %v2880 = vpop.f32.mrf.mxu0
  %v2881 = vadd.f32 %v2832, %v2880
  %v2882 = vpop.f32.mrf.mxu0
  %v2883 = vadd.f32 %v2834, %v2882
  %2884 = vmatmul.bf16.gmra.mxu0 %v1724
  %v2885 = vpop.f32.mrf.mxu0
  %v2886 = vadd.f32 %v2837, %v2885
  %v2887 = vpop.f32.mrf.mxu0
  %v2888 = vadd.f32 %v2839, %v2887
  %2889 = vmatmul.bf16.gmra.mxu0 %v1728
  %v2890 = vpop.f32.mrf.mxu0
  %v2891 = vadd.f32 %v2842, %v2890
  %v2892 = vpop.f32.mrf.mxu0
  %v2893 = vadd.f32 %v2844, %v2892
  %2894 = vmatmul.bf16.gmra.mxu0 %v1732
  %v2895 = vpop.f32.mrf.mxu0
  %v2896 = vadd.f32 %v2847, %v2895
  %v2897 = vpop.f32.mrf.mxu0
  %v2898 = vadd.f32 %v2849, %v2897
  %2899 = vmatmul.bf16.gmra.mxu0 %v1736
  %v2900 = vpop.f32.mrf.mxu0
  %v2901 = vadd.f32 %v2852, %v2900
  %v2902 = vpop.f32.mrf.mxu0
  %v2903 = vadd.f32 %v2854, %v2902
  %2904 = vmatmul.bf16.gmra.mxu0 %v1740
  %v2905 = vpop.f32.mrf.mxu0
  %v2906 = vadd.f32 %v2857, %v2905
  %v2907 = vpop.f32.mrf.mxu0
  %v2908 = vadd.f32 %v2859, %v2907
  %2909 = vmatmul.bf16.gmra.mxu0 %v1744
  %v2910 = vpop.f32.mrf.mxu0
  %v2911 = vadd.f32 %v2862, %v2910
  %v2912 = vpop.f32.mrf.mxu0
  %v2913 = vadd.f32 %v2864, %v2912
  %2914 = vdwg.mxu0
  %2915 = vmatpush.bf16.msra.mxu0 %v2297
  %2916 = vmatpush.bf16.msra.mxu0 %v2293
  %2917 = vmatpush.bf16.msra.mxu0 %v2289
  %2918 = vmatpush.bf16.msra.mxu0 %v2285
  %2919 = vmatpush.bf16.msra.mxu0 %v2281
  %2920 = vmatpush.bf16.msra.mxu0 %v2277
  %2921 = vmatpush.bf16.msra.mxu0 %v2273
  %2922 = vmatpush.bf16.msra.mxu0 %v2269
  %2923 = vmatmul.bf16.gmra.mxu0 %v1713
  %v2924 = vpop.f32.mrf.mxu0
  %v2925 = vadd.f32 %v1877, %v2924
  %v2926 = vpop.f32.mrf.mxu0
  %v2927 = vadd.f32 %v1877, %v2926
  %2928 = vmatmul.bf16.gmra.mxu0 %v1717
  %v2929 = vpop.f32.mrf.mxu0
  %v2930 = vadd.f32 %v1877, %v2929
  %v2931 = vpop.f32.mrf.mxu0
  %v2932 = vadd.f32 %v1877, %v2931
  %2933 = vmatmul.bf16.gmra.mxu0 %v1721
  %v2934 = vpop.f32.mrf.mxu0
  %v2935 = vadd.f32 %v1877, %v2934
  %v2936 = vpop.f32.mrf.mxu0
  %v2937 = vadd.f32 %v1877, %v2936
  %2938 = vmatmul.bf16.gmra.mxu0 %v1725
  %v2939 = vpop.f32.mrf.mxu0
  %v2940 = vadd.f32 %v1877, %v2939
  %v2941 = vpop.f32.mrf.mxu0
  %v2942 = vadd.f32 %v1877, %v2941
  %2943 = vmatmul.bf16.gmra.mxu0 %v1729
  %v2944 = vpop.f32.mrf.mxu0
  %v2945 = vadd.f32 %v1877, %v2944
  %v2946 = vpop.f32.mrf.mxu0
  %v2947 = vadd.f32 %v1877, %v2946
  %2948 = vmatmul.bf16.gmra.mxu0 %v1733
  %v2949 = vpop.f32.mrf.mxu0
  %v2950 = vadd.f32 %v1877, %v2949
  %v2951 = vpop.f32.mrf.mxu0
  %v2952 = vadd.f32 %v1877, %v2951
  %2953 = vmatmul.bf16.gmra.mxu0 %v1737
  %v2954 = vpop.f32.mrf.mxu0
  %v2955 = vadd.f32 %v1877, %v2954
  %v2956 = vpop.f32.mrf.mxu0
  %v2957 = vadd.f32 %v1877, %v2956
  %2958 = vmatmul.bf16.gmra.mxu0 %v1741
  %v2959 = vpop.f32.mrf.mxu0
  %v2960 = vadd.f32 %v1877, %v2959
  %v2961 = vpop.f32.mrf.mxu0
  %v2962 = vadd.f32 %v1877, %v2961
  %2963 = vdwg.mxu0
  %2964 = vmatpush.bf16.msra.mxu0 %v2329
  %2965 = vmatpush.bf16.msra.mxu0 %v2325
  %2966 = vmatpush.bf16.msra.mxu0 %v2321
  %2967 = vmatpush.bf16.msra.mxu0 %v2317
  %2968 = vmatpush.bf16.msra.mxu0 %v2313
  %2969 = vmatpush.bf16.msra.mxu0 %v2309
  %2970 = vmatpush.bf16.msra.mxu0 %v2305
  %2971 = vmatpush.bf16.msra.mxu0 %v2301
  %2972 = vmatmul.bf16.gmra.mxu0 %v1714
  %v2973 = vpop.f32.mrf.mxu0
  %v2974 = vadd.f32 %v2925, %v2973
  %v2975 = vpop.f32.mrf.mxu0
  %v2976 = vadd.f32 %v2927, %v2975
  %2977 = vmatmul.bf16.gmra.mxu0 %v1718
  %v2978 = vpop.f32.mrf.mxu0
  %v2979 = vadd.f32 %v2930, %v2978
  %v2980 = vpop.f32.mrf.mxu0
  %v2981 = vadd.f32 %v2932, %v2980
  %2982 = vmatmul.bf16.gmra.mxu0 %v1722
  %v2983 = vpop.f32.mrf.mxu0
  %v2984 = vadd.f32 %v2935, %v2983
  %v2985 = vpop.f32.mrf.mxu0
  %v2986 = vadd.f32 %v2937, %v2985
  %2987 = vmatmul.bf16.gmra.mxu0 %v1726
  %v2988 = vpop.f32.mrf.mxu0
  %v2989 = vadd.f32 %v2940, %v2988
  %v2990 = vpop.f32.mrf.mxu0
  %v2991 = vadd.f32 %v2942, %v2990
  %2992 = vmatmul.bf16.gmra.mxu0 %v1730
  %v2993 = vpop.f32.mrf.mxu0
  %v2994 = vadd.f32 %v2945, %v2993
  %v2995 = vpop.f32.mrf.mxu0
  %v2996 = vadd.f32 %v2947, %v2995
  %2997 = vmatmul.bf16.gmra.mxu0 %v1734
  %v2998 = vpop.f32.mrf.mxu0
  %v2999 = vadd.f32 %v2950, %v2998
  %v3000 = vpop.f32.mrf.mxu0
  %v3001 = vadd.f32 %v2952, %v3000
  %3002 = vmatmul.bf16.gmra.mxu0 %v1738
  %v3003 = vpop.f32.mrf.mxu0
  %v3004 = vadd.f32 %v2955, %v3003
  %v3005 = vpop.f32.mrf.mxu0
  %v3006 = vadd.f32 %v2957, %v3005
  %3007 = vmatmul.bf16.gmra.mxu0 %v1742
  %v3008 = vpop.f32.mrf.mxu0
  %v3009 = vadd.f32 %v2960, %v3008
  %v3010 = vpop.f32.mrf.mxu0
  %v3011 = vadd.f32 %v2962, %v3010
  %3012 = vdwg.mxu0
  %3013 = vmatpush.bf16.msra.mxu0 %v2361
  %3014 = vmatpush.bf16.msra.mxu0 %v2357
  %3015 = vmatpush.bf16.msra.mxu0 %v2353
  %3016 = vmatpush.bf16.msra.mxu0 %v2349
  %3017 = vmatpush.bf16.msra.mxu0 %v2345
  %3018 = vmatpush.bf16.msra.mxu0 %v2341
  %3019 = vmatpush.bf16.msra.mxu0 %v2337
  %3020 = vmatpush.bf16.msra.mxu0 %v2333
  %3021 = vmatmul.bf16.gmra.mxu0 %v1715
  %v3022 = vpop.f32.mrf.mxu0
  %v3023 = vadd.f32 %v2974, %v3022
  %v3024 = vpop.f32.mrf.mxu0
  %v3025 = vadd.f32 %v2976, %v3024
  %3026 = vmatmul.bf16.gmra.mxu0 %v1719
  %v3027 = vpop.f32.mrf.mxu0
  %v3028 = vadd.f32 %v2979, %v3027
  %v3029 = vpop.f32.mrf.mxu0
  %v3030 = vadd.f32 %v2981, %v3029
  %3031 = vmatmul.bf16.gmra.mxu0 %v1723
  %v3032 = vpop.f32.mrf.mxu0
  %v3033 = vadd.f32 %v2984, %v3032
  %v3034 = vpop.f32.mrf.mxu0
  %v3035 = vadd.f32 %v2986, %v3034
  %3036 = vmatmul.bf16.gmra.mxu0 %v1727
  %v3037 = vpop.f32.mrf.mxu0
  %v3038 = vadd.f32 %v2989, %v3037
  %v3039 = vpop.f32.mrf.mxu0
  %v3040 = vadd.f32 %v2991, %v3039
  %3041 = vmatmul.bf16.gmra.mxu0 %v1731
  %v3042 = vpop.f32.mrf.mxu0
  %v3043 = vadd.f32 %v2994, %v3042
  %v3044 = vpop.f32.mrf.mxu0
  %v3045 = vadd.f32 %v2996, %v3044
  %3046 = vmatmul.bf16.gmra.mxu0 %v1735
  %v3047 = vpop.f32.mrf.mxu0
  %v3048 = vadd.f32 %v2999, %v3047
  %v3049 = vpop.f32.mrf.mxu0
  %v3050 = vadd.f32 %v3001, %v3049
  %3051 = vmatmul.bf16.gmra.mxu0 %v1739
  %v3052 = vpop.f32.mrf.mxu0
  %v3053 = vadd.f32 %v3004, %v3052
  %v3054 = vpop.f32.mrf.mxu0
  %v3055 = vadd.f32 %v3006, %v3054
  %3056 = vmatmul.bf16.gmra.mxu0 %v1743
  %v3057 = vpop.f32.mrf.mxu0
  %v3058 = vadd.f32 %v3009, %v3057
  %v3059 = vpop.f32.mrf.mxu0
  %v3060 = vadd.f32 %v3011, %v3059
  %3061 = vdwg.mxu0
  %3062 = vmatpush.bf16.msra.mxu0 %v2393
  %3063 = vmatpush.bf16.msra.mxu0 %v2389
  %3064 = vmatpush.bf16.msra.mxu0 %v2385
  %3065 = vmatpush.bf16.msra.mxu0 %v2381
  %3066 = vmatpush.bf16.msra.mxu0 %v2377
  %3067 = vmatpush.bf16.msra.mxu0 %v2373
  %3068 = vmatpush.bf16.msra.mxu0 %v2369
  %3069 = vmatpush.bf16.msra.mxu0 %v2365
  %3070 = vmatmul.bf16.gmra.mxu0 %v1716
  %v3071 = vpop.f32.mrf.mxu0
  %v3072 = vadd.f32 %v3023, %v3071
  %v3073 = vpop.f32.mrf.mxu0
  %v3074 = vadd.f32 %v3025, %v3073
  %3075 = vmatmul.bf16.gmra.mxu0 %v1720
  %v3076 = vpop.f32.mrf.mxu0
  %v3077 = vadd.f32 %v3028, %v3076
  %v3078 = vpop.f32.mrf.mxu0
  %v3079 = vadd.f32 %v3030, %v3078
  %3080 = vmatmul.bf16.gmra.mxu0 %v1724
  %v3081 = vpop.f32.mrf.mxu0
  %v3082 = vadd.f32 %v3033, %v3081
  %v3083 = vpop.f32.mrf.mxu0
  %v3084 = vadd.f32 %v3035, %v3083
  %3085 = vmatmul.bf16.gmra.mxu0 %v1728
  %v3086 = vpop.f32.mrf.mxu0
  %v3087 = vadd.f32 %v3038, %v3086
  %v3088 = vpop.f32.mrf.mxu0
  %v3089 = vadd.f32 %v3040, %v3088
  %3090 = vmatmul.bf16.gmra.mxu0 %v1732
  %v3091 = vpop.f32.mrf.mxu0
  %v3092 = vadd.f32 %v3043, %v3091
  %v3093 = vpop.f32.mrf.mxu0
  %v3094 = vadd.f32 %v3045, %v3093
  %3095 = vmatmul.bf16.gmra.mxu0 %v1736
  %v3096 = vpop.f32.mrf.mxu0
  %v3097 = vadd.f32 %v3048, %v3096
  %v3098 = vpop.f32.mrf.mxu0
  %v3099 = vadd.f32 %v3050, %v3098
  %3100 = vmatmul.bf16.gmra.mxu0 %v1740
  %v3101 = vpop.f32.mrf.mxu0
  %v3102 = vadd.f32 %v3053, %v3101
  %v3103 = vpop.f32.mrf.mxu0
  %v3104 = vadd.f32 %v3055, %v3103
  %3105 = vmatmul.bf16.gmra.mxu0 %v1744
  %v3106 = vpop.f32.mrf.mxu0
  %v3107 = vadd.f32 %v3058, %v3106
  %v3108 = vpop.f32.mrf.mxu0
  %v3109 = vadd.f32 %v3060, %v3108
  %3110 = vdwg.mxu0
  %3111 = vmatpush.bf16.msra.mxu0 %v2298
  %3112 = vmatpush.bf16.msra.mxu0 %v2294
  %3113 = vmatpush.bf16.msra.mxu0 %v2290
  %3114 = vmatpush.bf16.msra.mxu0 %v2286
  %3115 = vmatpush.bf16.msra.mxu0 %v2282
  %3116 = vmatpush.bf16.msra.mxu0 %v2278
  %3117 = vmatpush.bf16.msra.mxu0 %v2274
  %3118 = vmatpush.bf16.msra.mxu0 %v2270
  %3119 = vmatmul.bf16.gmra.mxu0 %v1713
  %v3120 = vpop.f32.mrf.mxu0
  %v3121 = vadd.f32 %v1878, %v3120
  %v3122 = vpop.f32.mrf.mxu0
  %v3123 = vadd.f32 %v1878, %v3122
  %3124 = vmatmul.bf16.gmra.mxu0 %v1717
  %v3125 = vpop.f32.mrf.mxu0
  %v3126 = vadd.f32 %v1878, %v3125
  %v3127 = vpop.f32.mrf.mxu0
  %v3128 = vadd.f32 %v1878, %v3127
  %3129 = vmatmul.bf16.gmra.mxu0 %v1721
  %v3130 = vpop.f32.mrf.mxu0
  %v3131 = vadd.f32 %v1878, %v3130
  %v3132 = vpop.f32.mrf.mxu0
  %v3133 = vadd.f32 %v1878, %v3132
  %3134 = vmatmul.bf16.gmra.mxu0 %v1725
  %v3135 = vpop.f32.mrf.mxu0
  %v3136 = vadd.f32 %v1878, %v3135
  %v3137 = vpop.f32.mrf.mxu0
  %v3138 = vadd.f32 %v1878, %v3137
  %3139 = vmatmul.bf16.gmra.mxu0 %v1729
  %v3140 = vpop.f32.mrf.mxu0
  %v3141 = vadd.f32 %v1878, %v3140
  %v3142 = vpop.f32.mrf.mxu0
  %v3143 = vadd.f32 %v1878, %v3142
  %3144 = vmatmul.bf16.gmra.mxu0 %v1733
  %v3145 = vpop.f32.mrf.mxu0
  %v3146 = vadd.f32 %v1878, %v3145
  %v3147 = vpop.f32.mrf.mxu0
  %v3148 = vadd.f32 %v1878, %v3147
  %3149 = vmatmul.bf16.gmra.mxu0 %v1737
  %v3150 = vpop.f32.mrf.mxu0
  %v3151 = vadd.f32 %v1878, %v3150
  %v3152 = vpop.f32.mrf.mxu0
  %v3153 = vadd.f32 %v1878, %v3152
  %3154 = vmatmul.bf16.gmra.mxu0 %v1741
  %v3155 = vpop.f32.mrf.mxu0
  %v3156 = vadd.f32 %v1878, %v3155
  %v3157 = vpop.f32.mrf.mxu0
  %v3158 = vadd.f32 %v1878, %v3157
  %3159 = vdwg.mxu0
  %3160 = vmatpush.bf16.msra.mxu0 %v2330
  %3161 = vmatpush.bf16.msra.mxu0 %v2326
  %3162 = vmatpush.bf16.msra.mxu0 %v2322
  %3163 = vmatpush.bf16.msra.mxu0 %v2318
  %3164 = vmatpush.bf16.msra.mxu0 %v2314
  %3165 = vmatpush.bf16.msra.mxu0 %v2310
  %3166 = vmatpush.bf16.msra.mxu0 %v2306
  %3167 = vmatpush.bf16.msra.mxu0 %v2302
  %3168 = vmatmul.bf16.gmra.mxu0 %v1714
  %v3169 = vpop.f32.mrf.mxu0
  %v3170 = vadd.f32 %v3121, %v3169
  %v3171 = vpop.f32.mrf.mxu0
  %v3172 = vadd.f32 %v3123, %v3171
  %3173 = vmatmul.bf16.gmra.mxu0 %v1718
  %v3174 = vpop.f32.mrf.mxu0
  %v3175 = vadd.f32 %v3126, %v3174
  %v3176 = vpop.f32.mrf.mxu0
  %v3177 = vadd.f32 %v3128, %v3176
  %3178 = vmatmul.bf16.gmra.mxu0 %v1722
  %v3179 = vpop.f32.mrf.mxu0
  %v3180 = vadd.f32 %v3131, %v3179
  %v3181 = vpop.f32.mrf.mxu0
  %v3182 = vadd.f32 %v3133, %v3181
  %3183 = vmatmul.bf16.gmra.mxu0 %v1726
  %v3184 = vpop.f32.mrf.mxu0
  %v3185 = vadd.f32 %v3136, %v3184
  %v3186 = vpop.f32.mrf.mxu0
  %v3187 = vadd.f32 %v3138, %v3186
  %3188 = vmatmul.bf16.gmra.mxu0 %v1730
  %v3189 = vpop.f32.mrf.mxu0
  %v3190 = vadd.f32 %v3141, %v3189
  %v3191 = vpop.f32.mrf.mxu0
  %v3192 = vadd.f32 %v3143, %v3191
  %3193 = vmatmul.bf16.gmra.mxu0 %v1734
  %v3194 = vpop.f32.mrf.mxu0
  %v3195 = vadd.f32 %v3146, %v3194
  %v3196 = vpop.f32.mrf.mxu0
  %v3197 = vadd.f32 %v3148, %v3196
  %3198 = vmatmul.bf16.gmra.mxu0 %v1738
  %v3199 = vpop.f32.mrf.mxu0
  %v3200 = vadd.f32 %v3151, %v3199
  %v3201 = vpop.f32.mrf.mxu0
  %v3202 = vadd.f32 %v3153, %v3201
  %3203 = vmatmul.bf16.gmra.mxu0 %v1742
  %v3204 = vpop.f32.mrf.mxu0
  %v3205 = vadd.f32 %v3156, %v3204
  %v3206 = vpop.f32.mrf.mxu0
  %v3207 = vadd.f32 %v3158, %v3206
  %3208 = vdwg.mxu0
  %3209 = vmatpush.bf16.msra.mxu0 %v2362
  %3210 = vmatpush.bf16.msra.mxu0 %v2358
  %3211 = vmatpush.bf16.msra.mxu0 %v2354
  %3212 = vmatpush.bf16.msra.mxu0 %v2350
  %3213 = vmatpush.bf16.msra.mxu0 %v2346
  %3214 = vmatpush.bf16.msra.mxu0 %v2342
  %3215 = vmatpush.bf16.msra.mxu0 %v2338
  %3216 = vmatpush.bf16.msra.mxu0 %v2334
  %3217 = vmatmul.bf16.gmra.mxu0 %v1715
  %v3218 = vpop.f32.mrf.mxu0
  %v3219 = vadd.f32 %v3170, %v3218
  %v3220 = vpop.f32.mrf.mxu0
  %v3221 = vadd.f32 %v3172, %v3220
  %3222 = vmatmul.bf16.gmra.mxu0 %v1719
  %v3223 = vpop.f32.mrf.mxu0
  %v3224 = vadd.f32 %v3175, %v3223
  %v3225 = vpop.f32.mrf.mxu0
  %v3226 = vadd.f32 %v3177, %v3225
  %3227 = vmatmul.bf16.gmra.mxu0 %v1723
  %v3228 = vpop.f32.mrf.mxu0
  %v3229 = vadd.f32 %v3180, %v3228
  %v3230 = vpop.f32.mrf.mxu0
  %v3231 = vadd.f32 %v3182, %v3230
  %3232 = vmatmul.bf16.gmra.mxu0 %v1727
  %v3233 = vpop.f32.mrf.mxu0
  %v3234 = vadd.f32 %v3185, %v3233
  %v3235 = vpop.f32.mrf.mxu0
  %v3236 = vadd.f32 %v3187, %v3235
  %3237 = vmatmul.bf16.gmra.mxu0 %v1731
  %v3238 = vpop.f32.mrf.mxu0
  %v3239 = vadd.f32 %v3190, %v3238
  %v3240 = vpop.f32.mrf.mxu0
  %v3241 = vadd.f32 %v3192, %v3240
  %3242 = vmatmul.bf16.gmra.mxu0 %v1735
  %v3243 = vpop.f32.mrf.mxu0
  %v3244 = vadd.f32 %v3195, %v3243
  %v3245 = vpop.f32.mrf.mxu0
  %v3246 = vadd.f32 %v3197, %v3245
  %3247 = vmatmul.bf16.gmra.mxu0 %v1739
  %v3248 = vpop.f32.mrf.mxu0
  %v3249 = vadd.f32 %v3200, %v3248
  %v3250 = vpop.f32.mrf.mxu0
  %v3251 = vadd.f32 %v3202, %v3250
  %3252 = vmatmul.bf16.gmra.mxu0 %v1743
  %v3253 = vpop.f32.mrf.mxu0
  %v3254 = vadd.f32 %v3205, %v3253
  %v3255 = vpop.f32.mrf.mxu0
  %v3256 = vadd.f32 %v3207, %v3255
  %3257 = vdwg.mxu0
  %3258 = vmatpush.bf16.msra.mxu0 %v2394
  %3259 = vmatpush.bf16.msra.mxu0 %v2390
  %3260 = vmatpush.bf16.msra.mxu0 %v2386
  %3261 = vmatpush.bf16.msra.mxu0 %v2382
  %3262 = vmatpush.bf16.msra.mxu0 %v2378
  %3263 = vmatpush.bf16.msra.mxu0 %v2374
  %3264 = vmatpush.bf16.msra.mxu0 %v2370
  %3265 = vmatpush.bf16.msra.mxu0 %v2366
  %3266 = vmatmul.bf16.gmra.mxu0 %v1716
  %v3267 = vpop.f32.mrf.mxu0
  %v3268 = vadd.f32 %v3219, %v3267
  %v3269 = vpop.f32.mrf.mxu0
  %v3270 = vadd.f32 %v3221, %v3269
  %3271 = vmatmul.bf16.gmra.mxu0 %v1720
  %v3272 = vpop.f32.mrf.mxu0
  %v3273 = vadd.f32 %v3224, %v3272
  %v3274 = vpop.f32.mrf.mxu0
  %v3275 = vadd.f32 %v3226, %v3274
  %3276 = vmatmul.bf16.gmra.mxu0 %v1724
  %v3277 = vpop.f32.mrf.mxu0
  %v3278 = vadd.f32 %v3229, %v3277
  %v3279 = vpop.f32.mrf.mxu0
  %v3280 = vadd.f32 %v3231, %v3279
  %3281 = vmatmul.bf16.gmra.mxu0 %v1728
  %v3282 = vpop.f32.mrf.mxu0
  %v3283 = vadd.f32 %v3234, %v3282
  %v3284 = vpop.f32.mrf.mxu0
  %v3285 = vadd.f32 %v3236, %v3284
  %3286 = vmatmul.bf16.gmra.mxu0 %v1732
  %v3287 = vpop.f32.mrf.mxu0
  %v3288 = vadd.f32 %v3239, %v3287
  %v3289 = vpop.f32.mrf.mxu0
  %v3290 = vadd.f32 %v3241, %v3289
  %3291 = vmatmul.bf16.gmra.mxu0 %v1736
  %v3292 = vpop.f32.mrf.mxu0
  %v3293 = vadd.f32 %v3244, %v3292
  %v3294 = vpop.f32.mrf.mxu0
  %v3295 = vadd.f32 %v3246, %v3294
  %3296 = vmatmul.bf16.gmra.mxu0 %v1740
  %v3297 = vpop.f32.mrf.mxu0
  %v3298 = vadd.f32 %v3249, %v3297
  %v3299 = vpop.f32.mrf.mxu0
  %v3300 = vadd.f32 %v3251, %v3299
  %3301 = vmatmul.bf16.gmra.mxu0 %v1744
  %v3302 = vpop.f32.mrf.mxu0
  %v3303 = vadd.f32 %v3254, %v3302
  %v3304 = vpop.f32.mrf.mxu0
  %v3305 = vadd.f32 %v3256, %v3304
  %3306 = vdwg.mxu0
  %v3307 = vmax.f32 %v2680, 0.0
  %v3308 = vmax.f32 %v2876, 0.0
  %v3309 = vmax.f32 %v3072, 0.0
  %v3310 = vmax.f32 %v3268, 0.0
  %v3311 = vmax.f32 %v2682, 0.0
  %v3312 = vmax.f32 %v2878, 0.0
  %v3313 = vmax.f32 %v3074, 0.0
  %v3314 = vmax.f32 %v3270, 0.0
  %v3315 = vmax.f32 %v2685, 0.0
  %v3316 = vmax.f32 %v2881, 0.0
  %v3317 = vmax.f32 %v3077, 0.0
  %v3318 = vmax.f32 %v3273, 0.0
  %v3319 = vmax.f32 %v2687, 0.0
  %v3320 = vmax.f32 %v2883, 0.0
  %v3321 = vmax.f32 %v3079, 0.0
  %v3322 = vmax.f32 %v3275, 0.0
  %v3323 = vmax.f32 %v2690, 0.0
  %v3324 = vmax.f32 %v2886, 0.0
  %v3325 = vmax.f32 %v3082, 0.0
  %v3326 = vmax.f32 %v3278, 0.0
  %v3327 = vmax.f32 %v2692, 0.0
  %v3328 = vmax.f32 %v2888, 0.0
  %v3329 = vmax.f32 %v3084, 0.0
  %v3330 = vmax.f32 %v3280, 0.0
  %v3331 = vmax.f32 %v2695, 0.0
  %v3332 = vmax.f32 %v2891, 0.0
  %v3333 = vmax.f32 %v3087, 0.0
  %v3334 = vmax.f32 %v3283, 0.0
  %v3335 = vmax.f32 %v2697, 0.0
  %v3336 = vmax.f32 %v2893, 0.0
  %v3337 = vmax.f32 %v3089, 0.0
  %v3338 = vmax.f32 %v3285, 0.0
  %v3339 = vmax.f32 %v2700, 0.0
  %v3340 = vmax.f32 %v2896, 0.0
  %v3341 = vmax.f32 %v3092, 0.0
  %v3342 = vmax.f32 %v3288, 0.0
  %v3343 = vmax.f32 %v2702, 0.0
  %v3344 = vmax.f32 %v2898, 0.0
  %v3345 = vmax.f32 %v3094, 0.0
  %v3346 = vmax.f32 %v3290, 0.0
  %v3347 = vmax.f32 %v2705, 0.0
  %v3348 = vmax.f32 %v2901, 0.0
  %v3349 = vmax.f32 %v3097, 0.0
  %v3350 = vmax.f32 %v3293, 0.0
  %v3351 = vmax.f32 %v2707, 0.0
  %v3352 = vmax.f32 %v2903, 0.0
  %v3353 = vmax.f32 %v3099, 0.0
  %v3354 = vmax.f32 %v3295, 0.0
  %v3355 = vmax.f32 %v2710, 0.0
  %v3356 = vmax.f32 %v2906, 0.0
  %v3357 = vmax.f32 %v3102, 0.0
  %v3358 = vmax.f32 %v3298, 0.0
  %v3359 = vmax.f32 %v2712, 0.0
  %v3360 = vmax.f32 %v2908, 0.0
  %v3361 = vmax.f32 %v3104, 0.0
  %v3362 = vmax.f32 %v3300, 0.0
  %v3363 = vmax.f32 %v2715, 0.0
  %v3364 = vmax.f32 %v2911, 0.0
  %v3365 = vmax.f32 %v3107, 0.0
  %v3366 = vmax.f32 %v3303, 0.0
  %v3367 = vmax.f32 %v2717, 0.0
  %v3368 = vmax.f32 %v2913, 0.0
  %v3369 = vmax.f32 %v3109, 0.0
  %v3370 = vmax.f32 %v3305, 0.0
  %v3371 = vpack.c.bf16 %v3308, %v3307
  %v3372 = vpack.c.bf16 %v3310, %v3309
  %v3373 = vpack.c.bf16 %v3312, %v3311
  %v3374 = vpack.c.bf16 %v3314, %v3313
  %v3375 = vpack.c.bf16 %v3316, %v3315
  %v3376 = vpack.c.bf16 %v3318, %v3317
  %v3377 = vpack.c.bf16 %v3320, %v3319
  %v3378 = vpack.c.bf16 %v3322, %v3321
  %v3379 = vpack.c.bf16 %v3324, %v3323
  %v3380 = vpack.c.bf16 %v3326, %v3325
  %v3381 = vpack.c.bf16 %v3328, %v3327
  %v3382 = vpack.c.bf16 %v3330, %v3329
  %v3383 = vpack.c.bf16 %v3332, %v3331
  %v3384 = vpack.c.bf16 %v3334, %v3333
  %v3385 = vpack.c.bf16 %v3336, %v3335
  %v3386 = vpack.c.bf16 %v3338, %v3337
  %v3387 = vpack.c.bf16 %v3340, %v3339
  %v3388 = vpack.c.bf16 %v3342, %v3341
  %v3389 = vpack.c.bf16 %v3344, %v3343
  %v3390 = vpack.c.bf16 %v3346, %v3345
  %v3391 = vpack.c.bf16 %v3348, %v3347
  %v3392 = vpack.c.bf16 %v3350, %v3349
  %v3393 = vpack.c.bf16 %v3352, %v3351
  %v3394 = vpack.c.bf16 %v3354, %v3353
  %v3395 = vpack.c.bf16 %v3356, %v3355
  %v3396 = vpack.c.bf16 %v3358, %v3357
  %v3397 = vpack.c.bf16 %v3360, %v3359
  %v3398 = vpack.c.bf16 %v3362, %v3361
  %v3399 = vpack.c.bf16 %v3364, %v3363
  %v3400 = vpack.c.bf16 %v3366, %v3365
  %v3401 = vpack.c.bf16 %v3368, %v3367
  %v3402 = vpack.c.bf16 %v3370, %v3369
  %v3404 = vshrl.u32 %v3371, 16
  %v3406 = vrot.slane %v3404, 7
  %v3407 = vshll.u32 %v3371, 16
  %v3409 = vor.u32 %v3406, %v3407
  %v3411 = vshrl.u32 %v3372, 16
  %v3413 = vrot.slane %v3411, 7
  %v3414 = vshll.u32 %v3372, 16
  %v3416 = vor.u32 %v3413, %v3414
  %v3417 = vrot.slane %v3406, 4
  %v3418 = vrot.slane %v3413, 4
  %v3420 = vshrl.u32 %v3373, 16
  %v3422 = vrot.slane %v3420, 7
  %v3423 = vshll.u32 %v3373, 16
  %v3425 = vor.u32 %v3422, %v3423
  %v3427 = vshrl.u32 %v3374, 16
  %v3429 = vrot.slane %v3427, 7
  %v3430 = vshll.u32 %v3374, 16
  %v3432 = vor.u32 %v3429, %v3430
  %v3433 = vrot.slane %v3422, 4
  %v3434 = vrot.slane %v3429, 4
  %v3436 = vshrl.u32 %v3375, 16
  %v3438 = vrot.slane %v3436, 7
  %v3439 = vshll.u32 %v3375, 16
  %v3441 = vor.u32 %v3438, %v3439
  %v3443 = vshrl.u32 %v3376, 16
  %v3445 = vrot.slane %v3443, 7
  %v3446 = vshll.u32 %v3376, 16
  %v3448 = vor.u32 %v3445, %v3446
  %v3449 = vrot.slane %v3438, 4
  %v3450 = vrot.slane %v3445, 4
  %v3452 = vshrl.u32 %v3377, 16
  %v3454 = vrot.slane %v3452, 7
  %v3455 = vshll.u32 %v3377, 16
  %v3457 = vor.u32 %v3454, %v3455
  %v3459 = vshrl.u32 %v3378, 16
  %v3461 = vrot.slane %v3459, 7
  %v3462 = vshll.u32 %v3378, 16
  %v3464 = vor.u32 %v3461, %v3462
  %v3465 = vrot.slane %v3454, 4
  %v3466 = vrot.slane %v3461, 4
  %v3468 = vshrl.u32 %v3379, 16
  %v3470 = vrot.slane %v3468, 7
  %v3471 = vshll.u32 %v3379, 16
  %v3473 = vor.u32 %v3470, %v3471
  %v3475 = vshrl.u32 %v3380, 16
  %v3477 = vrot.slane %v3475, 7
  %v3478 = vshll.u32 %v3380, 16
  %v3480 = vor.u32 %v3477, %v3478
  %v3481 = vrot.slane %v3470, 4
  %v3482 = vrot.slane %v3477, 4
  %v3484 = vshrl.u32 %v3381, 16
  %v3486 = vrot.slane %v3484, 7
  %v3487 = vshll.u32 %v3381, 16
  %v3489 = vor.u32 %v3486, %v3487
  %v3491 = vshrl.u32 %v3382, 16
  %v3493 = vrot.slane %v3491, 7
  %v3494 = vshll.u32 %v3382, 16
  %v3496 = vor.u32 %v3493, %v3494
  %v3497 = vrot.slane %v3486, 4
  %v3498 = vrot.slane %v3493, 4
  %v3500 = vshrl.u32 %v3383, 16
  %v3502 = vrot.slane %v3500, 7
  %v3503 = vshll.u32 %v3383, 16
  %v3505 = vor.u32 %v3502, %v3503
  %v3507 = vshrl.u32 %v3384, 16
  %v3509 = vrot.slane %v3507, 7
  %v3510 = vshll.u32 %v3384, 16
  %v3512 = vor.u32 %v3509, %v3510
  %v3513 = vrot.slane %v3502, 4
  %v3514 = vrot.slane %v3509, 4
  %v3516 = vshrl.u32 %v3385, 16
  %v3518 = vrot.slane %v3516, 7
  %v3519 = vshll.u32 %v3385, 16
  %v3521 = vor.u32 %v3518, %v3519
  %v3523 = vshrl.u32 %v3386, 16
  %v3525 = vrot.slane %v3523, 7
  %v3526 = vshll.u32 %v3386, 16
  %v3528 = vor.u32 %v3525, %v3526
  %v3529 = vrot.slane %v3518, 4
  %v3530 = vrot.slane %v3525, 4
  %v3532 = vshrl.u32 %v3387, 16
  %v3534 = vrot.slane %v3532, 7
  %v3535 = vshll.u32 %v3387, 16
  %v3537 = vor.u32 %v3534, %v3535
  %v3539 = vshrl.u32 %v3388, 16
  %v3541 = vrot.slane %v3539, 7
  %v3542 = vshll.u32 %v3388, 16
  %v3544 = vor.u32 %v3541, %v3542
  %v3545 = vrot.slane %v3534, 4
  %v3546 = vrot.slane %v3541, 4
  %v3548 = vshrl.u32 %v3389, 16
  %v3550 = vrot.slane %v3548, 7
  %v3551 = vshll.u32 %v3389, 16
  %v3553 = vor.u32 %v3550, %v3551
  %v3555 = vshrl.u32 %v3390, 16
  %v3557 = vrot.slane %v3555, 7
  %v3558 = vshll.u32 %v3390, 16
  %v3560 = vor.u32 %v3557, %v3558
  %v3561 = vrot.slane %v3550, 4
  %v3562 = vrot.slane %v3557, 4
  %v3564 = vshrl.u32 %v3391, 16
  %v3566 = vrot.slane %v3564, 7
  %v3567 = vshll.u32 %v3391, 16
  %v3569 = vor.u32 %v3566, %v3567
  %v3571 = vshrl.u32 %v3392, 16
  %v3573 = vrot.slane %v3571, 7
  %v3574 = vshll.u32 %v3392, 16
  %v3576 = vor.u32 %v3573, %v3574
  %v3577 = vrot.slane %v3566, 4
  %v3578 = vrot.slane %v3573, 4
  %v3580 = vshrl.u32 %v3393, 16
  %v3582 = vrot.slane %v3580, 7
  %v3583 = vshll.u32 %v3393, 16
  %v3585 = vor.u32 %v3582, %v3583
  %v3587 = vshrl.u32 %v3394, 16
  %v3589 = vrot.slane %v3587, 7
  %v3590 = vshll.u32 %v3394, 16
  %v3592 = vor.u32 %v3589, %v3590
  %v3593 = vrot.slane %v3582, 4
  %v3594 = vrot.slane %v3589, 4
  %v3596 = vshrl.u32 %v3395, 16
  %v3598 = vrot.slane %v3596, 7
  %v3599 = vshll.u32 %v3395, 16
  %v3601 = vor.u32 %v3598, %v3599
  %v3603 = vshrl.u32 %v3396, 16
  %v3605 = vrot.slane %v3603, 7
  %v3606 = vshll.u32 %v3396, 16
  %v3608 = vor.u32 %v3605, %v3606
  %v3609 = vrot.slane %v3598, 4
  %v3610 = vrot.slane %v3605, 4
  %v3612 = vshrl.u32 %v3397, 16
  %v3614 = vrot.slane %v3612, 7
  %v3615 = vshll.u32 %v3397, 16
  %v3617 = vor.u32 %v3614, %v3615
  %v3619 = vshrl.u32 %v3398, 16
  %v3621 = vrot.slane %v3619, 7
  %v3622 = vshll.u32 %v3398, 16
  %v3624 = vor.u32 %v3621, %v3622
  %v3625 = vrot.slane %v3614, 4
  %v3626 = vrot.slane %v3621, 4
  %v3628 = vshrl.u32 %v3399, 16
  %v3630 = vrot.slane %v3628, 7
  %v3631 = vshll.u32 %v3399, 16
  %v3633 = vor.u32 %v3630, %v3631
  %v3635 = vshrl.u32 %v3400, 16
  %v3637 = vrot.slane %v3635, 7
  %v3638 = vshll.u32 %v3400, 16
  %v3640 = vor.u32 %v3637, %v3638
  %v3641 = vrot.slane %v3630, 4
  %v3642 = vrot.slane %v3637, 4
  %v3644 = vshrl.u32 %v3401, 16
  %v3646 = vrot.slane %v3644, 7
  %v3647 = vshll.u32 %v3401, 16
  %v3649 = vor.u32 %v3646, %v3647
  %v3651 = vshrl.u32 %v3402, 16
  %v3653 = vrot.slane %v3651, 7
  %v3654 = vshll.u32 %v3402, 16
  %v3656 = vor.u32 %v3653, %v3654
  %v3657 = vrot.slane %v3646, 4
  %v3658 = vrot.slane %v3653, 4
  %s3723 = scalar_lea.vmem [#allocation3], 32
  %vm3724 = vcmask 1043456
  %vm3725 = vmand %vm3724, %vm238
  %vm3726 = vcmask 1047556
  %vm3727 = vmand %vm3726, %vm240
  %vm3728 = vmor %vm3727, %vm3725
  %v3729 = vld [vmem:[%s3723] sm:$0xff]
  %v3730 = vsel %vm3728, %v3409, %v3729
  %3731 = vst [vmem:[%s3723] sm:$0xff] %v3730
  %v3732 = vld [vmem:[%s3723 + $0x8] sm:$0xff]
  %v3733 = vsel %vm3728, %v3416, %v3732
  %3734 = vst [vmem:[%s3723 + $0x8] sm:$0xff] %v3733
  %v3735 = vld [vmem:[%s3723 + $0x10] sm:$0x11]
  %v3736 = vsel %vm117, %v3417, %v3735
  %3737 = vst [vmem:[%s3723 + $0x10] sm:$0x11] %v3736
  %v3738 = vld [vmem:[%s3723 + $0x18] sm:$0x11]
  %v3739 = vsel %vm117, %v3418, %v3738
  %3740 = vst [vmem:[%s3723 + $0x18] sm:$0x11] %v3739
  %v3741 = vld [vmem:[%s3723 + $0x20] sm:$0xff]
  %v3742 = vsel %vm3728, %v3425, %v3741
  %3743 = vst [vmem:[%s3723 + $0x20] sm:$0xff] %v3742
  %v3744 = vld [vmem:[%s3723 + $0x28] sm:$0xff]
  %v3745 = vsel %vm3728, %v3432, %v3744
  %3746 = vst [vmem:[%s3723 + $0x28] sm:$0xff] %v3745
  %v3747 = vld [vmem:[%s3723 + $0x30] sm:$0x11]
  %v3748 = vsel %vm117, %v3433, %v3747
  %3749 = vst [vmem:[%s3723 + $0x30] sm:$0x11] %v3748
  %v3750 = vld [vmem:[%s3723 + $0x38] sm:$0x11]
  %v3751 = vsel %vm117, %v3434, %v3750
  %3752 = vst [vmem:[%s3723 + $0x38] sm:$0x11] %v3751
  %v3753 = vld [vmem:[%s3723 + $0x40] sm:$0xff]
  %v3754 = vsel %vm3728, %v3441, %v3753
  %3755 = vst [vmem:[%s3723 + $0x40] sm:$0xff] %v3754
  %v3756 = vld [vmem:[%s3723 + $0x48] sm:$0xff]
  %v3757 = vsel %vm3728, %v3448, %v3756
  %3758 = vst [vmem:[%s3723 + $0x48] sm:$0xff] %v3757
  %v3759 = vld [vmem:[%s3723 + $0x50] sm:$0x11]
  %v3760 = vsel %vm117, %v3449, %v3759
  %3761 = vst [vmem:[%s3723 + $0x50] sm:$0x11] %v3760
  %v3762 = vld [vmem:[%s3723 + $0x58] sm:$0x11]
  %v3763 = vsel %vm117, %v3450, %v3762
  %3764 = vst [vmem:[%s3723 + $0x58] sm:$0x11] %v3763
  %v3765 = vld [vmem:[%s3723 + $0x60] sm:$0xff]
  %v3766 = vsel %vm3728, %v3457, %v3765
  %3767 = vst [vmem:[%s3723 + $0x60] sm:$0xff] %v3766
  %v3768 = vld [vmem:[%s3723 + $0x68] sm:$0xff]
  %v3769 = vsel %vm3728, %v3464, %v3768
  %3770 = vst [vmem:[%s3723 + $0x68] sm:$0xff] %v3769
  %v3771 = vld [vmem:[%s3723 + $0x70] sm:$0x11]
  %v3772 = vsel %vm117, %v3465, %v3771
  %3773 = vst [vmem:[%s3723 + $0x70] sm:$0x11] %v3772
  %v3774 = vld [vmem:[%s3723 + $0x78] sm:$0x11]
  %v3775 = vsel %vm117, %v3466, %v3774
  %3776 = vst [vmem:[%s3723 + $0x78] sm:$0x11] %v3775
  %v3777 = vld [vmem:[%s3723 + $0x80] sm:$0xff]
  %v3778 = vsel %vm3728, %v3473, %v3777
  %3779 = vst [vmem:[%s3723 + $0x80] sm:$0xff] %v3778
  %v3780 = vld [vmem:[%s3723 + $0x88] sm:$0xff]
  %v3781 = vsel %vm3728, %v3480, %v3780
  %3782 = vst [vmem:[%s3723 + $0x88] sm:$0xff] %v3781
  %v3783 = vld [vmem:[%s3723 + $0x90] sm:$0x11]
  %v3784 = vsel %vm117, %v3481, %v3783
  %3785 = vst [vmem:[%s3723 + $0x90] sm:$0x11] %v3784
  %v3786 = vld [vmem:[%s3723 + $0x98] sm:$0x11]
  %v3787 = vsel %vm117, %v3482, %v3786
  %3788 = vst [vmem:[%s3723 + $0x98] sm:$0x11] %v3787
  %v3789 = vld [vmem:[%s3723 + $0xa0] sm:$0xff]
  %v3790 = vsel %vm3728, %v3489, %v3789
  %3791 = vst [vmem:[%s3723 + $0xa0] sm:$0xff] %v3790
  %v3792 = vld [vmem:[%s3723 + $0xa8] sm:$0xff]
  %v3793 = vsel %vm3728, %v3496, %v3792
  %3794 = vst [vmem:[%s3723 + $0xa8] sm:$0xff] %v3793
  %v3795 = vld [vmem:[%s3723 + $0xb0] sm:$0x11]
  %v3796 = vsel %vm117, %v3497, %v3795
  %3797 = vst [vmem:[%s3723 + $0xb0] sm:$0x11] %v3796
  %v3798 = vld [vmem:[%s3723 + $0xb8] sm:$0x11]
  %v3799 = vsel %vm117, %v3498, %v3798
  %3800 = vst [vmem:[%s3723 + $0xb8] sm:$0x11] %v3799
  %v3801 = vld [vmem:[%s3723 + $0xc0] sm:$0xff]
  %v3802 = vsel %vm3728, %v3505, %v3801
  %3803 = vst [vmem:[%s3723 + $0xc0] sm:$0xff] %v3802
  %v3804 = vld [vmem:[%s3723 + $0xc8] sm:$0xff]
  %v3805 = vsel %vm3728, %v3512, %v3804
  %3806 = vst [vmem:[%s3723 + $0xc8] sm:$0xff] %v3805
  %v3807 = vld [vmem:[%s3723 + $0xd0] sm:$0x11]
  %v3808 = vsel %vm117, %v3513, %v3807
  %3809 = vst [vmem:[%s3723 + $0xd0] sm:$0x11] %v3808
  %v3810 = vld [vmem:[%s3723 + $0xd8] sm:$0x11]
  %v3811 = vsel %vm117, %v3514, %v3810
  %3812 = vst [vmem:[%s3723 + $0xd8] sm:$0x11] %v3811
  %v3813 = vld [vmem:[%s3723 + $0xe0] sm:$0xff]
  %v3814 = vsel %vm3728, %v3521, %v3813
  %3815 = vst [vmem:[%s3723 + $0xe0] sm:$0xff] %v3814
  %v3816 = vld [vmem:[%s3723 + $0xe8] sm:$0xff]
  %v3817 = vsel %vm3728, %v3528, %v3816
  %3818 = vst [vmem:[%s3723 + $0xe8] sm:$0xff] %v3817
  %v3819 = vld [vmem:[%s3723 + $0xf0] sm:$0x11]
  %v3820 = vsel %vm117, %v3529, %v3819
  %3821 = vst [vmem:[%s3723 + $0xf0] sm:$0x11] %v3820
  %v3822 = vld [vmem:[%s3723 + $0xf8] sm:$0x11]
  %v3823 = vsel %vm117, %v3530, %v3822
  %3824 = vst [vmem:[%s3723 + $0xf8] sm:$0x11] %v3823
  %v3825 = vld [vmem:[%s3723 + $0x140] sm:$0xff]
  %v3826 = vsel %vm3728, %v3537, %v3825
  %3827 = vst [vmem:[%s3723 + $0x140] sm:$0xff] %v3826
  %v3828 = vld [vmem:[%s3723 + $0x148] sm:$0xff]
  %v3829 = vsel %vm3728, %v3544, %v3828
  %3830 = vst [vmem:[%s3723 + $0x148] sm:$0xff] %v3829
  %v3831 = vld [vmem:[%s3723 + $0x150] sm:$0x11]
  %v3832 = vsel %vm117, %v3545, %v3831
  %3833 = vst [vmem:[%s3723 + $0x150] sm:$0x11] %v3832
  %v3834 = vld [vmem:[%s3723 + $0x158] sm:$0x11]
  %v3835 = vsel %vm117, %v3546, %v3834
  %3836 = vst [vmem:[%s3723 + $0x158] sm:$0x11] %v3835
  %v3837 = vld [vmem:[%s3723 + $0x160] sm:$0xff]
  %v3838 = vsel %vm3728, %v3553, %v3837
  %3839 = vst [vmem:[%s3723 + $0x160] sm:$0xff] %v3838
  %v3840 = vld [vmem:[%s3723 + $0x168] sm:$0xff]
  %v3841 = vsel %vm3728, %v3560, %v3840
  %3842 = vst [vmem:[%s3723 + $0x168] sm:$0xff] %v3841
  %v3843 = vld [vmem:[%s3723 + $0x170] sm:$0x11]
  %v3844 = vsel %vm117, %v3561, %v3843
  %3845 = vst [vmem:[%s3723 + $0x170] sm:$0x11] %v3844
  %v3846 = vld [vmem:[%s3723 + $0x178] sm:$0x11]
  %v3847 = vsel %vm117, %v3562, %v3846
  %3848 = vst [vmem:[%s3723 + $0x178] sm:$0x11] %v3847
  %v3849 = vld [vmem:[%s3723 + $0x180] sm:$0xff]
  %v3850 = vsel %vm3728, %v3569, %v3849
  %3851 = vst [vmem:[%s3723 + $0x180] sm:$0xff] %v3850
  %v3852 = vld [vmem:[%s3723 + $0x188] sm:$0xff]
  %v3853 = vsel %vm3728, %v3576, %v3852
  %3854 = vst [vmem:[%s3723 + $0x188] sm:$0xff] %v3853
  %v3855 = vld [vmem:[%s3723 + $0x190] sm:$0x11]
  %v3856 = vsel %vm117, %v3577, %v3855
  %3857 = vst [vmem:[%s3723 + $0x190] sm:$0x11] %v3856
  %v3858 = vld [vmem:[%s3723 + $0x198] sm:$0x11]
  %v3859 = vsel %vm117, %v3578, %v3858
  %3860 = vst [vmem:[%s3723 + $0x198] sm:$0x11] %v3859
  %v3861 = vld [vmem:[%s3723 + $0x1a0] sm:$0xff]
  %v3862 = vsel %vm3728, %v3585, %v3861
  %3863 = vst [vmem:[%s3723 + $0x1a0] sm:$0xff] %v3862
  %v3864 = vld [vmem:[%s3723 + $0x1a8] sm:$0xff]
  %v3865 = vsel %vm3728, %v3592, %v3864
  %3866 = vst [vmem:[%s3723 + $0x1a8] sm:$0xff] %v3865
  %v3867 = vld [vmem:[%s3723 + $0x1b0] sm:$0x11]
  %v3868 = vsel %vm117, %v3593, %v3867
  %3869 = vst [vmem:[%s3723 + $0x1b0] sm:$0x11] %v3868
  %v3870 = vld [vmem:[%s3723 + $0x1b8] sm:$0x11]
  %v3871 = vsel %vm117, %v3594, %v3870
  %3872 = vst [vmem:[%s3723 + $0x1b8] sm:$0x11] %v3871
  %v3873 = vld [vmem:[%s3723 + $0x1c0] sm:$0xff]
  %v3874 = vsel %vm3728, %v3601, %v3873
  %3875 = vst [vmem:[%s3723 + $0x1c0] sm:$0xff] %v3874
  %v3876 = vld [vmem:[%s3723 + $0x1c8] sm:$0xff]
  %v3877 = vsel %vm3728, %v3608, %v3876
  %3878 = vst [vmem:[%s3723 + $0x1c8] sm:$0xff] %v3877
  %v3879 = vld [vmem:[%s3723 + $0x1d0] sm:$0x11]
  %v3880 = vsel %vm117, %v3609, %v3879
  %3881 = vst [vmem:[%s3723 + $0x1d0] sm:$0x11] %v3880
  %v3882 = vld [vmem:[%s3723 + $0x1d8] sm:$0x11]
  %v3883 = vsel %vm117, %v3610, %v3882
  %3884 = vst [vmem:[%s3723 + $0x1d8] sm:$0x11] %v3883
  %v3885 = vld [vmem:[%s3723 + $0x1e0] sm:$0xff]
  %v3886 = vsel %vm3728, %v3617, %v3885
  %3887 = vst [vmem:[%s3723 + $0x1e0] sm:$0xff] %v3886
  %v3888 = vld [vmem:[%s3723 + $0x1e8] sm:$0xff]
  %v3889 = vsel %vm3728, %v3624, %v3888
  %3890 = vst [vmem:[%s3723 + $0x1e8] sm:$0xff] %v3889
  %v3891 = vld [vmem:[%s3723 + $0x1f0] sm:$0x11]
  %v3892 = vsel %vm117, %v3625, %v3891
  %3893 = vst [vmem:[%s3723 + $0x1f0] sm:$0x11] %v3892
  %v3894 = vld [vmem:[%s3723 + $0x1f8] sm:$0x11]
  %v3895 = vsel %vm117, %v3626, %v3894
  %3896 = vst [vmem:[%s3723 + $0x1f8] sm:$0x11] %v3895
  %v3897 = vld [vmem:[%s3723 + $0x200] sm:$0xff]
  %v3898 = vsel %vm3728, %v3633, %v3897
  %3899 = vst [vmem:[%s3723 + $0x200] sm:$0xff] %v3898
  %v3900 = vld [vmem:[%s3723 + $0x208] sm:$0xff]
  %v3901 = vsel %vm3728, %v3640, %v3900
  %3902 = vst [vmem:[%s3723 + $0x208] sm:$0xff] %v3901
  %v3903 = vld [vmem:[%s3723 + $0x210] sm:$0x11]
  %v3904 = vsel %vm117, %v3641, %v3903
  %3905 = vst [vmem:[%s3723 + $0x210] sm:$0x11] %v3904
  %v3906 = vld [vmem:[%s3723 + $0x218] sm:$0x11]
  %v3907 = vsel %vm117, %v3642, %v3906
  %3908 = vst [vmem:[%s3723 + $0x218] sm:$0x11] %v3907
  %v3909 = vld [vmem:[%s3723 + $0x220] sm:$0xff]
  %v3910 = vsel %vm3728, %v3649, %v3909
  %3911 = vst [vmem:[%s3723 + $0x220] sm:$0xff] %v3910
  %v3912 = vld [vmem:[%s3723 + $0x228] sm:$0xff]
  %v3913 = vsel %vm3728, %v3656, %v3912
  %3914 = vst [vmem:[%s3723 + $0x228] sm:$0xff] %v3913
  %v3915 = vld [vmem:[%s3723 + $0x230] sm:$0x11]
  %v3916 = vsel %vm117, %v3657, %v3915
  %3917 = vst [vmem:[%s3723 + $0x230] sm:$0x11] %v3916
  %v3918 = vld [vmem:[%s3723 + $0x238] sm:$0x11]
  %v3919 = vsel %vm117, %v3658, %v3918
  %3920 = vst [vmem:[%s3723 + $0x238] sm:$0x11] %v3919
  %v3921 = vld [vmem:[#allocation3] sm:$0xff]
  %v3922 = vld [vmem:[#allocation3 + $0x8] sm:$0xff]
  %v3923 = vld [vmem:[#allocation3 + $0x10] sm:$0x11]
  %v3924 = vld [vmem:[#allocation3 + $0x18] sm:$0x11]
  %v3925 = vld [vmem:[#allocation3 + $0x20] sm:$0xff]
  %v3926 = vld [vmem:[#allocation3 + $0x28] sm:$0xff]
  %v3927 = vld [vmem:[#allocation3 + $0x30] sm:$0x11]
  %v3928 = vld [vmem:[#allocation3 + $0x38] sm:$0x11]
  %v3929 = vld [vmem:[#allocation3 + $0x40] sm:$0xff]
  %v3930 = vld [vmem:[#allocation3 + $0x48] sm:$0xff]
  %v3931 = vld [vmem:[#allocation3 + $0x50] sm:$0x11]
  %v3932 = vld [vmem:[#allocation3 + $0x58] sm:$0x11]
  %v3933 = vld [vmem:[#allocation3 + $0x60] sm:$0xff]
  %v3934 = vld [vmem:[#allocation3 + $0x68] sm:$0xff]
  %v3935 = vld [vmem:[#allocation3 + $0x70] sm:$0x11]
  %v3936 = vld [vmem:[#allocation3 + $0x78] sm:$0x11]
  %v3937 = vld [vmem:[#allocation3 + $0x80] sm:$0xff]
  %v3938 = vld [vmem:[#allocation3 + $0x88] sm:$0xff]
  %v3939 = vld [vmem:[#allocation3 + $0x90] sm:$0x11]
  %v3940 = vld [vmem:[#allocation3 + $0x98] sm:$0x11]
  %v3941 = vld [vmem:[#allocation3 + $0xa0] sm:$0xff]
  %v3942 = vld [vmem:[#allocation3 + $0xa8] sm:$0xff]
  %v3943 = vld [vmem:[#allocation3 + $0xb0] sm:$0x11]
  %v3944 = vld [vmem:[#allocation3 + $0xb8] sm:$0x11]
  %v3945 = vld [vmem:[#allocation3 + $0xc0] sm:$0xff]
  %v3946 = vld [vmem:[#allocation3 + $0xc8] sm:$0xff]
  %v3947 = vld [vmem:[#allocation3 + $0xd0] sm:$0x11]
  %v3948 = vld [vmem:[#allocation3 + $0xd8] sm:$0x11]
  %v3949 = vld [vmem:[#allocation3 + $0xe0] sm:$0xff]
  %v3950 = vld [vmem:[#allocation3 + $0xe8] sm:$0xff]
  %v3951 = vld [vmem:[#allocation3 + $0xf0] sm:$0x11]
  %v3952 = vld [vmem:[#allocation3 + $0xf8] sm:$0x11]
  %v3953 = vld [vmem:[#allocation3 + $0x100] sm:$0xff]
  %v3954 = vld [vmem:[#allocation3 + $0x108] sm:$0xff]
  %v3955 = vld [vmem:[#allocation3 + $0x110] sm:$0x11]
  %v3956 = vld [vmem:[#allocation3 + $0x118] sm:$0x11]
  %v3957 = vld [vmem:[#allocation3 + $0x120] sm:$0xff]
  %v3958 = vld [vmem:[#allocation3 + $0x128] sm:$0xff]
  %v3959 = vld [vmem:[#allocation3 + $0x130] sm:$0x11]
  %v3960 = vld [vmem:[#allocation3 + $0x138] sm:$0x11]
  %v3961 = vld [vmem:[#allocation3 + $0x140] sm:$0xff]
  %v3962 = vld [vmem:[#allocation3 + $0x148] sm:$0xff]
  %v3963 = vld [vmem:[#allocation3 + $0x150] sm:$0x11]
  %v3964 = vld [vmem:[#allocation3 + $0x158] sm:$0x11]
  %v3965 = vld [vmem:[#allocation3 + $0x160] sm:$0xff]
  %v3966 = vld [vmem:[#allocation3 + $0x168] sm:$0xff]
  %v3967 = vld [vmem:[#allocation3 + $0x170] sm:$0x11]
  %v3968 = vld [vmem:[#allocation3 + $0x178] sm:$0x11]
  %v3969 = vld [vmem:[#allocation3 + $0x180] sm:$0xff]
  %v3970 = vld [vmem:[#allocation3 + $0x188] sm:$0xff]
  %v3971 = vld [vmem:[#allocation3 + $0x190] sm:$0x11]
  %v3972 = vld [vmem:[#allocation3 + $0x198] sm:$0x11]
  %v3973 = vld [vmem:[#allocation3 + $0x1a0] sm:$0xff]
  %v3974 = vld [vmem:[#allocation3 + $0x1a8] sm:$0xff]
  %v3975 = vld [vmem:[#allocation3 + $0x1b0] sm:$0x11]
  %v3976 = vld [vmem:[#allocation3 + $0x1b8] sm:$0x11]
  %v3977 = vld [vmem:[#allocation3 + $0x1c0] sm:$0xff]
  %v3978 = vld [vmem:[#allocation3 + $0x1c8] sm:$0xff]
  %v3979 = vld [vmem:[#allocation3 + $0x1d0] sm:$0x11]
  %v3980 = vld [vmem:[#allocation3 + $0x1d8] sm:$0x11]
  %v3981 = vld [vmem:[#allocation3 + $0x1e0] sm:$0xff]
  %v3982 = vld [vmem:[#allocation3 + $0x1e8] sm:$0xff]
  %v3983 = vld [vmem:[#allocation3 + $0x1f0] sm:$0x11]
  %v3984 = vld [vmem:[#allocation3 + $0x1f8] sm:$0x11]
  %v3985 = vld [vmem:[#allocation3 + $0x200] sm:$0xff]
  %v3986 = vld [vmem:[#allocation3 + $0x208] sm:$0xff]
  %v3987 = vld [vmem:[#allocation3 + $0x210] sm:$0x11]
  %v3988 = vld [vmem:[#allocation3 + $0x218] sm:$0x11]
  %v3989 = vld [vmem:[#allocation3 + $0x220] sm:$0xff]
  %v3990 = vld [vmem:[#allocation3 + $0x228] sm:$0xff]
  %v3991 = vld [vmem:[#allocation3 + $0x230] sm:$0x11]
  %v3992 = vld [vmem:[#allocation3 + $0x238] sm:$0x11]
  %v3993 = vld [vmem:[#allocation3 + $0x240] sm:$0xff]
  %v3994 = vld [vmem:[#allocation3 + $0x248] sm:$0xff]
  %v3995 = vld [vmem:[#allocation3 + $0x250] sm:$0x11]
  %v3996 = vld [vmem:[#allocation3 + $0x258] sm:$0x11]
  %v3997 = vld [vmem:[#allocation3 + $0x260] sm:$0xff]
  %v3998 = vld [vmem:[#allocation3 + $0x268] sm:$0xff]
  %v3999 = vld [vmem:[#allocation3 + $0x270] sm:$0x11]
  %v4000 = vld [vmem:[#allocation3 + $0x278] sm:$0x11]
  %v4001 = vld [vmem:[%s8] sm:$0xf]
  %v4002 = vld [vmem:[%s8 + $0x4] sm:$0xf]
  %v4003 = vld [vmem:[%s8 + $0x8] sm:$0xf]
  %v4004 = vld [vmem:[%s8 + $0xc] sm:$0xf]
  %v4005 = vld [vmem:[%s8 + $0x10] sm:$0xf]
  %v4006 = vld [vmem:[%s8 + $0x14] sm:$0xf]
  %v4007 = vld [vmem:[%s8 + $0x18] sm:$0xf]
  %v4008 = vld [vmem:[%s8 + $0x1c] sm:$0xf]
  %v4009 = vld [vmem:[%s8 + $0x20] sm:$0xf]
  %v4010 = vld [vmem:[%s8 + $0x24] sm:$0xf]
  %v4011 = vld [vmem:[%s8 + $0x28] sm:$0xf]
  %v4012 = vld [vmem:[%s8 + $0x2c] sm:$0xf]
  %v4013 = vld [vmem:[%s8 + $0x30] sm:$0xf]
  %v4014 = vld [vmem:[%s8 + $0x34] sm:$0xf]
  %v4015 = vld [vmem:[%s8 + $0x38] sm:$0xf]
  %v4016 = vld [vmem:[%s8 + $0x3c] sm:$0xf]
  %v4017 = vld [vmem:[%s8 + $0x40] sm:$0xf]
  %v4018 = vld [vmem:[%s8 + $0x44] sm:$0xf]
  %v4019 = vld [vmem:[%s8 + $0x48] sm:$0xf]
  %v4020 = vld [vmem:[%s8 + $0x4c] sm:$0xf]
  %v4021 = vld [vmem:[%s8 + $0x50] sm:$0xf]
  %v4022 = vld [vmem:[%s8 + $0x54] sm:$0xf]
  %v4023 = vld [vmem:[%s8 + $0x58] sm:$0xf]
  %v4024 = vld [vmem:[%s8 + $0x5c] sm:$0xf]
  %v4025 = vld [vmem:[%s8 + $0x60] sm:$0xf]
  %v4026 = vld [vmem:[%s8 + $0x64] sm:$0xf]
  %v4027 = vld [vmem:[%s8 + $0x68] sm:$0xf]
  %v4028 = vld [vmem:[%s8 + $0x6c] sm:$0xf]
  %v4029 = vld [vmem:[%s8 + $0x70] sm:$0xf]
  %v4030 = vld [vmem:[%s8 + $0x74] sm:$0xf]
  %v4031 = vld [vmem:[%s8 + $0x78] sm:$0xf]
  %v4032 = vld [vmem:[%s8 + $0x7c] sm:$0xf]
  %v4033 = vld [vmem:[%s8 + $0x80] sm:$0xf]
  %v4034 = vld [vmem:[%s8 + $0x84] sm:$0xf]
  %v4035 = vld [vmem:[%s8 + $0x88] sm:$0xf]
  %v4036 = vld [vmem:[%s8 + $0x8c] sm:$0xf]
  %v4037 = vld [vmem:[%s8 + $0x90] sm:$0xf]
  %v4038 = vld [vmem:[%s8 + $0x94] sm:$0xf]
  %v4039 = vld [vmem:[%s8 + $0x98] sm:$0xf]
  %v4040 = vld [vmem:[%s8 + $0x9c] sm:$0xf]
  %v4041 = vld [vmem:[%s8 + $0xa0] sm:$0xf]
  %v4042 = vld [vmem:[%s8 + $0xa4] sm:$0xf]
  %v4043 = vld [vmem:[%s8 + $0xa8] sm:$0xf]
  %v4044 = vld [vmem:[%s8 + $0xac] sm:$0xf]
  %v4045 = vld [vmem:[%s8 + $0xb0] sm:$0xf]
  %v4046 = vld [vmem:[%s8 + $0xb4] sm:$0xf]
  %v4047 = vld [vmem:[%s8 + $0xb8] sm:$0xf]
  %v4048 = vld [vmem:[%s8 + $0xbc] sm:$0xf]
  %v4049 = vld [vmem:[%s8 + $0xc0] sm:$0xf]
  %v4050 = vld [vmem:[%s8 + $0xc4] sm:$0xf]
  %v4051 = vld [vmem:[%s8 + $0xc8] sm:$0xf]
  %v4052 = vld [vmem:[%s8 + $0xcc] sm:$0xf]
  %v4053 = vld [vmem:[%s8 + $0xd0] sm:$0xf]
  %v4054 = vld [vmem:[%s8 + $0xd4] sm:$0xf]
  %v4055 = vld [vmem:[%s8 + $0xd8] sm:$0xf]
  %v4056 = vld [vmem:[%s8 + $0xdc] sm:$0xf]
  %v4057 = vld [vmem:[%s8 + $0xe0] sm:$0xf]
  %v4058 = vld [vmem:[%s8 + $0xe4] sm:$0xf]
  %v4059 = vld [vmem:[%s8 + $0xe8] sm:$0xf]
  %v4060 = vld [vmem:[%s8 + $0xec] sm:$0xf]
  %v4061 = vld [vmem:[%s8 + $0xf0] sm:$0xf]
  %v4062 = vld [vmem:[%s8 + $0xf4] sm:$0xf]
  %v4063 = vld [vmem:[%s8 + $0xf8] sm:$0xf]
  %v4064 = vld [vmem:[%s8 + $0xfc] sm:$0xf]
  %vm4065 = vsmask.f32 3328
  %vm4066 = vsmask.f32 7440
  %vm4067 = vmor %vm4065, %vm4066
  %v4069 = vshrl.u32 %v3921, 16
  %v4071 = vrot.slane %v4069, 4
  %v4072 = vshll.u32 %v3921, 16
  %v4074 = vrot.slane %v4072, 5
  %v4075 = vor.u32 %v4071, %v4074
  %v4076 = vrot.slane %v4075, 4
  %v4078 = vshll.u32 %v3923, 16
  %v4080 = vrot.slane %v4078, 5
  %v4081 = vsel %vm4067, %v4076, %v4080
  %v4083 = vshrl.u32 %v3922, 16
  %v4085 = vrot.slane %v4083, 4
  %v4086 = vshll.u32 %v3922, 16
  %v4088 = vrot.slane %v4086, 5
  %v4089 = vor.u32 %v4085, %v4088
  %v4090 = vrot.slane %v4089, 4
  %v4092 = vshll.u32 %v3924, 16
  %v4094 = vrot.slane %v4092, 5
  %v4095 = vsel %vm4067, %v4090, %v4094
  %v4097 = vshrl.u32 %v3925, 16
  %v4099 = vrot.slane %v4097, 4
  %v4100 = vshll.u32 %v3925, 16
  %v4102 = vrot.slane %v4100, 5
  %v4103 = vor.u32 %v4099, %v4102
  %v4104 = vrot.slane %v4103, 4
  %v4106 = vshll.u32 %v3927, 16
  %v4108 = vrot.slane %v4106, 5
  %v4109 = vsel %vm4067, %v4104, %v4108
  %v4111 = vshrl.u32 %v3926, 16
  %v4113 = vrot.slane %v4111, 4
  %v4114 = vshll.u32 %v3926, 16
  %v4116 = vrot.slane %v4114, 5
  %v4117 = vor.u32 %v4113, %v4116
  %v4118 = vrot.slane %v4117, 4
  %v4120 = vshll.u32 %v3928, 16
  %v4122 = vrot.slane %v4120, 5
  %v4123 = vsel %vm4067, %v4118, %v4122
  %v4125 = vshrl.u32 %v3929, 16
  %v4127 = vrot.slane %v4125, 4
  %v4128 = vshll.u32 %v3929, 16
  %v4130 = vrot.slane %v4128, 5
  %v4131 = vor.u32 %v4127, %v4130
  %v4132 = vrot.slane %v4131, 4
  %v4134 = vshll.u32 %v3931, 16
  %v4136 = vrot.slane %v4134, 5
  %v4137 = vsel %vm4067, %v4132, %v4136
  %v4139 = vshrl.u32 %v3930, 16
  %v4141 = vrot.slane %v4139, 4
  %v4142 = vshll.u32 %v3930, 16
  %v4144 = vrot.slane %v4142, 5
  %v4145 = vor.u32 %v4141, %v4144
  %v4146 = vrot.slane %v4145, 4
  %v4148 = vshll.u32 %v3932, 16
  %v4150 = vrot.slane %v4148, 5
  %v4151 = vsel %vm4067, %v4146, %v4150
  %v4153 = vshrl.u32 %v3933, 16
  %v4155 = vrot.slane %v4153, 4
  %v4156 = vshll.u32 %v3933, 16
  %v4158 = vrot.slane %v4156, 5
  %v4159 = vor.u32 %v4155, %v4158
  %v4160 = vrot.slane %v4159, 4
  %v4162 = vshll.u32 %v3935, 16
  %v4164 = vrot.slane %v4162, 5
  %v4165 = vsel %vm4067, %v4160, %v4164
  %v4167 = vshrl.u32 %v3934, 16
  %v4169 = vrot.slane %v4167, 4
  %v4170 = vshll.u32 %v3934, 16
  %v4172 = vrot.slane %v4170, 5
  %v4173 = vor.u32 %v4169, %v4172
  %v4174 = vrot.slane %v4173, 4
  %v4176 = vshll.u32 %v3936, 16
  %v4178 = vrot.slane %v4176, 5
  %v4179 = vsel %vm4067, %v4174, %v4178
  %v4181 = vshrl.u32 %v3937, 16
  %v4183 = vrot.slane %v4181, 4
  %v4184 = vshll.u32 %v3937, 16
  %v4186 = vrot.slane %v4184, 5
  %v4187 = vor.u32 %v4183, %v4186
  %v4188 = vrot.slane %v4187, 4
  %v4190 = vshll.u32 %v3939, 16
  %v4192 = vrot.slane %v4190, 5
  %v4193 = vsel %vm4067, %v4188, %v4192
  %v4195 = vshrl.u32 %v3938, 16
  %v4197 = vrot.slane %v4195, 4
  %v4198 = vshll.u32 %v3938, 16
  %v4200 = vrot.slane %v4198, 5
  %v4201 = vor.u32 %v4197, %v4200
  %v4202 = vrot.slane %v4201, 4
  %v4204 = vshll.u32 %v3940, 16
  %v4206 = vrot.slane %v4204, 5
  %v4207 = vsel %vm4067, %v4202, %v4206
  %v4209 = vshrl.u32 %v3941, 16
  %v4211 = vrot.slane %v4209, 4
  %v4212 = vshll.u32 %v3941, 16
  %v4214 = vrot.slane %v4212, 5
  %v4215 = vor.u32 %v4211, %v4214
  %v4216 = vrot.slane %v4215, 4
  %v4218 = vshll.u32 %v3943, 16
  %v4220 = vrot.slane %v4218, 5
  %v4221 = vsel %vm4067, %v4216, %v4220
  %v4223 = vshrl.u32 %v3942, 16
  %v4225 = vrot.slane %v4223, 4
  %v4226 = vshll.u32 %v3942, 16
  %v4228 = vrot.slane %v4226, 5
  %v4229 = vor.u32 %v4225, %v4228
  %v4230 = vrot.slane %v4229, 4
  %v4232 = vshll.u32 %v3944, 16
  %v4234 = vrot.slane %v4232, 5
  %v4235 = vsel %vm4067, %v4230, %v4234
  %v4237 = vshrl.u32 %v3945, 16
  %v4239 = vrot.slane %v4237, 4
  %v4240 = vshll.u32 %v3945, 16
  %v4242 = vrot.slane %v4240, 5
  %v4243 = vor.u32 %v4239, %v4242
  %v4244 = vrot.slane %v4243, 4
  %v4246 = vshll.u32 %v3947, 16
  %v4248 = vrot.slane %v4246, 5
  %v4249 = vsel %vm4067, %v4244, %v4248
  %v4251 = vshrl.u32 %v3946, 16
  %v4253 = vrot.slane %v4251, 4
  %v4254 = vshll.u32 %v3946, 16
  %v4256 = vrot.slane %v4254, 5
  %v4257 = vor.u32 %v4253, %v4256
  %v4258 = vrot.slane %v4257, 4
  %v4260 = vshll.u32 %v3948, 16
  %v4262 = vrot.slane %v4260, 5
  %v4263 = vsel %vm4067, %v4258, %v4262
  %v4265 = vshrl.u32 %v3949, 16
  %v4267 = vrot.slane %v4265, 4
  %v4268 = vshll.u32 %v3949, 16
  %v4270 = vrot.slane %v4268, 5
  %v4271 = vor.u32 %v4267, %v4270
  %v4272 = vrot.slane %v4271, 4
  %v4274 = vshll.u32 %v3951, 16
  %v4276 = vrot.slane %v4274, 5
  %v4277 = vsel %vm4067, %v4272, %v4276
  %v4279 = vshrl.u32 %v3950, 16
  %v4281 = vrot.slane %v4279, 4
  %v4282 = vshll.u32 %v3950, 16
  %v4284 = vrot.slane %v4282, 5
  %v4285 = vor.u32 %v4281, %v4284
  %v4286 = vrot.slane %v4285, 4
  %v4288 = vshll.u32 %v3952, 16
  %v4290 = vrot.slane %v4288, 5
  %v4291 = vsel %vm4067, %v4286, %v4290
  %v4293 = vshrl.u32 %v3961, 16
  %v4295 = vrot.slane %v4293, 4
  %v4296 = vshll.u32 %v3961, 16
  %v4298 = vrot.slane %v4296, 5
  %v4299 = vor.u32 %v4295, %v4298
  %v4300 = vrot.slane %v4299, 4
  %v4302 = vshll.u32 %v3963, 16
  %v4304 = vrot.slane %v4302, 5
  %v4305 = vsel %vm4067, %v4300, %v4304
  %v4307 = vshrl.u32 %v3962, 16
  %v4309 = vrot.slane %v4307, 4
  %v4310 = vshll.u32 %v3962, 16
  %v4312 = vrot.slane %v4310, 5
  %v4313 = vor.u32 %v4309, %v4312
  %v4314 = vrot.slane %v4313, 4
  %v4316 = vshll.u32 %v3964, 16
  %v4318 = vrot.slane %v4316, 5
  %v4319 = vsel %vm4067, %v4314, %v4318
  %v4321 = vshrl.u32 %v3965, 16
  %v4323 = vrot.slane %v4321, 4
  %v4324 = vshll.u32 %v3965, 16
  %v4326 = vrot.slane %v4324, 5
  %v4327 = vor.u32 %v4323, %v4326
  %v4328 = vrot.slane %v4327, 4
  %v4330 = vshll.u32 %v3967, 16
  %v4332 = vrot.slane %v4330, 5
  %v4333 = vsel %vm4067, %v4328, %v4332
  %v4335 = vshrl.u32 %v3966, 16
  %v4337 = vrot.slane %v4335, 4
  %v4338 = vshll.u32 %v3966, 16
  %v4340 = vrot.slane %v4338, 5
  %v4341 = vor.u32 %v4337, %v4340
  %v4342 = vrot.slane %v4341, 4
  %v4344 = vshll.u32 %v3968, 16
  %v4346 = vrot.slane %v4344, 5
  %v4347 = vsel %vm4067, %v4342, %v4346
  %v4349 = vshrl.u32 %v3969, 16
  %v4351 = vrot.slane %v4349, 4
  %v4352 = vshll.u32 %v3969, 16
  %v4354 = vrot.slane %v4352, 5
  %v4355 = vor.u32 %v4351, %v4354
  %v4356 = vrot.slane %v4355, 4
  %v4358 = vshll.u32 %v3971, 16
  %v4360 = vrot.slane %v4358, 5
  %v4361 = vsel %vm4067, %v4356, %v4360
  %v4363 = vshrl.u32 %v3970, 16
  %v4365 = vrot.slane %v4363, 4
  %v4366 = vshll.u32 %v3970, 16
  %v4368 = vrot.slane %v4366, 5
  %v4369 = vor.u32 %v4365, %v4368
  %v4370 = vrot.slane %v4369, 4
  %v4372 = vshll.u32 %v3972, 16
  %v4374 = vrot.slane %v4372, 5
  %v4375 = vsel %vm4067, %v4370, %v4374
  %v4377 = vshrl.u32 %v3973, 16
  %v4379 = vrot.slane %v4377, 4
  %v4380 = vshll.u32 %v3973, 16
  %v4382 = vrot.slane %v4380, 5
  %v4383 = vor.u32 %v4379, %v4382
  %v4384 = vrot.slane %v4383, 4
  %v4386 = vshll.u32 %v3975, 16
  %v4388 = vrot.slane %v4386, 5
  %v4389 = vsel %vm4067, %v4384, %v4388
  %v4391 = vshrl.u32 %v3974, 16
  %v4393 = vrot.slane %v4391, 4
  %v4394 = vshll.u32 %v3974, 16
  %v4396 = vrot.slane %v4394, 5
  %v4397 = vor.u32 %v4393, %v4396
  %v4398 = vrot.slane %v4397, 4
  %v4400 = vshll.u32 %v3976, 16
  %v4402 = vrot.slane %v4400, 5
  %v4403 = vsel %vm4067, %v4398, %v4402
  %v4405 = vshrl.u32 %v3977, 16
  %v4407 = vrot.slane %v4405, 4
  %v4408 = vshll.u32 %v3977, 16
  %v4410 = vrot.slane %v4408, 5
  %v4411 = vor.u32 %v4407, %v4410
  %v4412 = vrot.slane %v4411, 4
  %v4414 = vshll.u32 %v3979, 16
  %v4416 = vrot.slane %v4414, 5
  %v4417 = vsel %vm4067, %v4412, %v4416
  %v4419 = vshrl.u32 %v3978, 16
  %v4421 = vrot.slane %v4419, 4
  %v4422 = vshll.u32 %v3978, 16
  %v4424 = vrot.slane %v4422, 5
  %v4425 = vor.u32 %v4421, %v4424
  %v4426 = vrot.slane %v4425, 4
  %v4428 = vshll.u32 %v3980, 16
  %v4430 = vrot.slane %v4428, 5
  %v4431 = vsel %vm4067, %v4426, %v4430
  %v4433 = vshrl.u32 %v3981, 16
  %v4435 = vrot.slane %v4433, 4
  %v4436 = vshll.u32 %v3981, 16
  %v4438 = vrot.slane %v4436, 5
  %v4439 = vor.u32 %v4435, %v4438
  %v4440 = vrot.slane %v4439, 4
  %v4442 = vshll.u32 %v3983, 16
  %v4444 = vrot.slane %v4442, 5
  %v4445 = vsel %vm4067, %v4440, %v4444
  %v4447 = vshrl.u32 %v3982, 16
  %v4449 = vrot.slane %v4447, 4
  %v4450 = vshll.u32 %v3982, 16
  %v4452 = vrot.slane %v4450, 5
  %v4453 = vor.u32 %v4449, %v4452
  %v4454 = vrot.slane %v4453, 4
  %v4456 = vshll.u32 %v3984, 16
  %v4458 = vrot.slane %v4456, 5
  %v4459 = vsel %vm4067, %v4454, %v4458
  %v4461 = vshrl.u32 %v3985, 16
  %v4463 = vrot.slane %v4461, 4
  %v4464 = vshll.u32 %v3985, 16
  %v4466 = vrot.slane %v4464, 5
  %v4467 = vor.u32 %v4463, %v4466
  %v4468 = vrot.slane %v4467, 4
  %v4470 = vshll.u32 %v3987, 16
  %v4472 = vrot.slane %v4470, 5
  %v4473 = vsel %vm4067, %v4468, %v4472
  %v4475 = vshrl.u32 %v3986, 16
  %v4477 = vrot.slane %v4475, 4
  %v4478 = vshll.u32 %v3986, 16
  %v4480 = vrot.slane %v4478, 5
  %v4481 = vor.u32 %v4477, %v4480
  %v4482 = vrot.slane %v4481, 4
  %v4484 = vshll.u32 %v3988, 16
  %v4486 = vrot.slane %v4484, 5
  %v4487 = vsel %vm4067, %v4482, %v4486
  %v4489 = vshrl.u32 %v3989, 16
  %v4491 = vrot.slane %v4489, 4
  %v4492 = vshll.u32 %v3989, 16
  %v4494 = vrot.slane %v4492, 5
  %v4495 = vor.u32 %v4491, %v4494
  %v4496 = vrot.slane %v4495, 4
  %v4498 = vshll.u32 %v3991, 16
  %v4500 = vrot.slane %v4498, 5
  %v4501 = vsel %vm4067, %v4496, %v4500
  %v4503 = vshrl.u32 %v3990, 16
  %v4505 = vrot.slane %v4503, 4
  %v4506 = vshll.u32 %v3990, 16
  %v4508 = vrot.slane %v4506, 5
  %v4509 = vor.u32 %v4505, %v4508
  %v4510 = vrot.slane %v4509, 4
  %v4512 = vshll.u32 %v3992, 16
  %v4514 = vrot.slane %v4512, 5
  %v4515 = vsel %vm4067, %v4510, %v4514
  %s4516 = scalar_lea.vmem %s8, 256
  %v4517 = vld [vmem:[%s4516] sm:$0xf]
  %v4518 = vld [vmem:[%s4516 + $0x4] sm:$0xf]
  %v4519 = vld [vmem:[%s4516 + $0x8] sm:$0xf]
  %v4520 = vld [vmem:[%s4516 + $0xc] sm:$0xf]
  %v4521 = vld [vmem:[%s4516 + $0x10] sm:$0xf]
  %v4522 = vld [vmem:[%s4516 + $0x14] sm:$0xf]
  %v4523 = vld [vmem:[%s4516 + $0x18] sm:$0xf]
  %v4524 = vld [vmem:[%s4516 + $0x1c] sm:$0xf]
  %v4525 = vld [vmem:[%s4516 + $0x20] sm:$0xf]
  %v4526 = vld [vmem:[%s4516 + $0x24] sm:$0xf]
  %v4527 = vld [vmem:[%s4516 + $0x28] sm:$0xf]
  %v4528 = vld [vmem:[%s4516 + $0x2c] sm:$0xf]
  %v4529 = vld [vmem:[%s4516 + $0x30] sm:$0xf]
  %v4530 = vld [vmem:[%s4516 + $0x34] sm:$0xf]
  %v4531 = vld [vmem:[%s4516 + $0x38] sm:$0xf]
  %v4532 = vld [vmem:[%s4516 + $0x3c] sm:$0xf]
  %v4533 = vld [vmem:[%s4516 + $0x40] sm:$0xf]
  %v4534 = vld [vmem:[%s4516 + $0x44] sm:$0xf]
  %v4535 = vld [vmem:[%s4516 + $0x48] sm:$0xf]
  %v4536 = vld [vmem:[%s4516 + $0x4c] sm:$0xf]
  %v4537 = vld [vmem:[%s4516 + $0x50] sm:$0xf]
  %v4538 = vld [vmem:[%s4516 + $0x54] sm:$0xf]
  %v4539 = vld [vmem:[%s4516 + $0x58] sm:$0xf]
  %v4540 = vld [vmem:[%s4516 + $0x5c] sm:$0xf]
  %v4541 = vld [vmem:[%s4516 + $0x60] sm:$0xf]
  %v4542 = vld [vmem:[%s4516 + $0x64] sm:$0xf]
  %v4543 = vld [vmem:[%s4516 + $0x68] sm:$0xf]
  %v4544 = vld [vmem:[%s4516 + $0x6c] sm:$0xf]
  %v4545 = vld [vmem:[%s4516 + $0x70] sm:$0xf]
  %v4546 = vld [vmem:[%s4516 + $0x74] sm:$0xf]
  %v4547 = vld [vmem:[%s4516 + $0x78] sm:$0xf]
  %v4548 = vld [vmem:[%s4516 + $0x7c] sm:$0xf]
  %v4549 = vld [vmem:[%s4516 + $0x80] sm:$0xf]
  %v4550 = vld [vmem:[%s4516 + $0x84] sm:$0xf]
  %v4551 = vld [vmem:[%s4516 + $0x88] sm:$0xf]
  %v4552 = vld [vmem:[%s4516 + $0x8c] sm:$0xf]
  %v4553 = vld [vmem:[%s4516 + $0x90] sm:$0xf]
  %v4554 = vld [vmem:[%s4516 + $0x94] sm:$0xf]
  %v4555 = vld [vmem:[%s4516 + $0x98] sm:$0xf]
  %v4556 = vld [vmem:[%s4516 + $0x9c] sm:$0xf]
  %v4557 = vld [vmem:[%s4516 + $0xa0] sm:$0xf]
  %v4558 = vld [vmem:[%s4516 + $0xa4] sm:$0xf]
  %v4559 = vld [vmem:[%s4516 + $0xa8] sm:$0xf]
  %v4560 = vld [vmem:[%s4516 + $0xac] sm:$0xf]
  %v4561 = vld [vmem:[%s4516 + $0xb0] sm:$0xf]
  %v4562 = vld [vmem:[%s4516 + $0xb4] sm:$0xf]
  %v4563 = vld [vmem:[%s4516 + $0xb8] sm:$0xf]
  %v4564 = vld [vmem:[%s4516 + $0xbc] sm:$0xf]
  %v4565 = vld [vmem:[%s4516 + $0xc0] sm:$0xf]
  %v4566 = vld [vmem:[%s4516 + $0xc4] sm:$0xf]
  %v4567 = vld [vmem:[%s4516 + $0xc8] sm:$0xf]
  %v4568 = vld [vmem:[%s4516 + $0xcc] sm:$0xf]
  %v4569 = vld [vmem:[%s4516 + $0xd0] sm:$0xf]
  %v4570 = vld [vmem:[%s4516 + $0xd4] sm:$0xf]
  %v4571 = vld [vmem:[%s4516 + $0xd8] sm:$0xf]
  %v4572 = vld [vmem:[%s4516 + $0xdc] sm:$0xf]
  %v4573 = vld [vmem:[%s4516 + $0xe0] sm:$0xf]
  %v4574 = vld [vmem:[%s4516 + $0xe4] sm:$0xf]
  %v4575 = vld [vmem:[%s4516 + $0xe8] sm:$0xf]
  %v4576 = vld [vmem:[%s4516 + $0xec] sm:$0xf]
  %v4577 = vld [vmem:[%s4516 + $0xf0] sm:$0xf]
  %v4578 = vld [vmem:[%s4516 + $0xf4] sm:$0xf]
  %v4579 = vld [vmem:[%s4516 + $0xf8] sm:$0xf]
  %v4580 = vld [vmem:[%s4516 + $0xfc] sm:$0xf]
  %v4581 = vunpack.c.l.b16 %v4081
  %v4582 = vunpack.c.h.b16 %v4081
  %v4583 = vunpack.c.l.b16 %v4095
  %v4584 = vunpack.c.h.b16 %v4095
  %v4585 = vunpack.c.l.b16 %v4109
  %v4586 = vunpack.c.h.b16 %v4109
  %v4587 = vunpack.c.l.b16 %v4123
  %v4588 = vunpack.c.h.b16 %v4123
  %v4589 = vunpack.c.l.b16 %v4137
  %v4590 = vunpack.c.h.b16 %v4137
  %v4591 = vunpack.c.l.b16 %v4151
  %v4592 = vunpack.c.h.b16 %v4151
  %v4593 = vunpack.c.l.b16 %v4165
  %v4594 = vunpack.c.h.b16 %v4165
  %v4595 = vunpack.c.l.b16 %v4179
  %v4596 = vunpack.c.h.b16 %v4179
  %v4597 = vunpack.c.l.b16 %v4193
  %v4598 = vunpack.c.h.b16 %v4193
  %v4599 = vunpack.c.l.b16 %v4207
  %v4600 = vunpack.c.h.b16 %v4207
  %v4601 = vunpack.c.l.b16 %v4221
  %v4602 = vunpack.c.h.b16 %v4221
  %v4603 = vunpack.c.l.b16 %v4235
  %v4604 = vunpack.c.h.b16 %v4235
  %v4605 = vunpack.c.l.b16 %v4249
  %v4606 = vunpack.c.h.b16 %v4249
  %v4607 = vunpack.c.l.b16 %v4263
  %v4608 = vunpack.c.h.b16 %v4263
  %v4609 = vunpack.c.l.b16 %v4277
  %v4610 = vunpack.c.h.b16 %v4277
  %v4611 = vunpack.c.l.b16 %v4291
  %v4612 = vunpack.c.h.b16 %v4291
  %v4613 = vunpack.c.l.b16 %v4305
  %v4614 = vunpack.c.h.b16 %v4305
  %v4615 = vunpack.c.l.b16 %v4319
  %v4616 = vunpack.c.h.b16 %v4319
  %v4617 = vunpack.c.l.b16 %v4333
  %v4618 = vunpack.c.h.b16 %v4333
  %v4619 = vunpack.c.l.b16 %v4347
  %v4620 = vunpack.c.h.b16 %v4347
  %v4621 = vunpack.c.l.b16 %v4361
  %v4622 = vunpack.c.h.b16 %v4361
  %v4623 = vunpack.c.l.b16 %v4375
  %v4624 = vunpack.c.h.b16 %v4375
  %v4625 = vunpack.c.l.b16 %v4389
  %v4626 = vunpack.c.h.b16 %v4389
  %v4627 = vunpack.c.l.b16 %v4403
  %v4628 = vunpack.c.h.b16 %v4403
  %v4629 = vunpack.c.l.b16 %v4417
  %v4630 = vunpack.c.h.b16 %v4417
  %v4631 = vunpack.c.l.b16 %v4431
  %v4632 = vunpack.c.h.b16 %v4431
  %v4633 = vunpack.c.l.b16 %v4445
  %v4634 = vunpack.c.h.b16 %v4445
  %v4635 = vunpack.c.l.b16 %v4459
  %v4636 = vunpack.c.h.b16 %v4459
  %v4637 = vunpack.c.l.b16 %v4473
  %v4638 = vunpack.c.h.b16 %v4473
  %v4639 = vunpack.c.l.b16 %v4487
  %v4640 = vunpack.c.h.b16 %v4487
  %v4641 = vunpack.c.l.b16 %v4501
  %v4642 = vunpack.c.h.b16 %v4501
  %v4643 = vunpack.c.l.b16 %v4515
  %v4644 = vunpack.c.h.b16 %v4515
  %v4645 = vpack.c.b16 %v4585, %v4581
  %v4646 = vpack.c.b16 %v4586, %v4582
  %v4647 = vpack.c.b16 %v4587, %v4583
  %v4648 = vpack.c.b16 %v4588, %v4584
  %v4649 = vpack.c.b16 %v4593, %v4589
  %v4650 = vpack.c.b16 %v4594, %v4590
  %v4651 = vpack.c.b16 %v4595, %v4591
  %v4652 = vpack.c.b16 %v4596, %v4592
  %v4653 = vpack.c.b16 %v4601, %v4597
  %v4654 = vpack.c.b16 %v4602, %v4598
  %v4655 = vpack.c.b16 %v4603, %v4599
  %v4656 = vpack.c.b16 %v4604, %v4600
  %v4657 = vpack.c.b16 %v4609, %v4605
  %v4658 = vpack.c.b16 %v4610, %v4606
  %v4659 = vpack.c.b16 %v4611, %v4607
  %v4660 = vpack.c.b16 %v4612, %v4608
  %v4661 = vpack.c.b16 %v4617, %v4613
  %v4662 = vpack.c.b16 %v4618, %v4614
  %v4663 = vpack.c.b16 %v4619, %v4615
  %v4664 = vpack.c.b16 %v4620, %v4616
  %v4665 = vpack.c.b16 %v4625, %v4621
  %v4666 = vpack.c.b16 %v4626, %v4622
  %v4667 = vpack.c.b16 %v4627, %v4623
  %v4668 = vpack.c.b16 %v4628, %v4624
  %v4669 = vpack.c.b16 %v4633, %v4629
  %v4670 = vpack.c.b16 %v4634, %v4630
  %v4671 = vpack.c.b16 %v4635, %v4631
  %v4672 = vpack.c.b16 %v4636, %v4632
  %v4673 = vpack.c.b16 %v4641, %v4637
  %v4674 = vpack.c.b16 %v4642, %v4638
  %v4675 = vpack.c.b16 %v4643, %v4639
  %v4676 = vpack.c.b16 %v4644, %v4640
  %v4773 = vunpack.c.l.b16 %v4517
  %v4774 = vunpack.c.l.b16 %v4518
  %v4775 = vunpack.c.l.b16 %v4519
  %v4776 = vunpack.c.l.b16 %v4520
  %v4777 = vunpack.c.l.b16 %v4521
  %v4778 = vunpack.c.l.b16 %v4522
  %v4779 = vunpack.c.l.b16 %v4523
  %v4780 = vunpack.c.l.b16 %v4524
  %v4781 = vunpack.c.l.b16 %v4525
  %v4782 = vunpack.c.l.b16 %v4526
  %v4783 = vunpack.c.l.b16 %v4527
  %v4784 = vunpack.c.l.b16 %v4528
  %v4785 = vunpack.c.l.b16 %v4529
  %v4786 = vunpack.c.l.b16 %v4530
  %v4787 = vunpack.c.l.b16 %v4531
  %v4788 = vunpack.c.l.b16 %v4532
  %v4789 = vunpack.c.l.b16 %v4533
  %v4790 = vunpack.c.l.b16 %v4534
  %v4791 = vunpack.c.l.b16 %v4535
  %v4792 = vunpack.c.l.b16 %v4536
  %v4793 = vunpack.c.l.b16 %v4537
  %v4794 = vunpack.c.l.b16 %v4538
  %v4795 = vunpack.c.l.b16 %v4539
  %v4796 = vunpack.c.l.b16 %v4540
  %v4797 = vunpack.c.l.b16 %v4541
  %v4798 = vunpack.c.l.b16 %v4542
  %v4799 = vunpack.c.l.b16 %v4543
  %v4800 = vunpack.c.l.b16 %v4544
  %v4801 = vunpack.c.l.b16 %v4545
  %v4802 = vunpack.c.l.b16 %v4546
  %v4803 = vunpack.c.l.b16 %v4547
  %v4804 = vunpack.c.l.b16 %v4548
  %v4805 = vunpack.c.l.b16 %v4549
  %v4806 = vunpack.c.l.b16 %v4550
  %v4807 = vunpack.c.l.b16 %v4551
  %v4808 = vunpack.c.l.b16 %v4552
  %v4809 = vunpack.c.l.b16 %v4553
  %v4810 = vunpack.c.l.b16 %v4554
  %v4811 = vunpack.c.l.b16 %v4555
  %v4812 = vunpack.c.l.b16 %v4556
  %v4813 = vunpack.c.l.b16 %v4557
  %v4814 = vunpack.c.l.b16 %v4558
  %v4815 = vunpack.c.l.b16 %v4559
  %v4816 = vunpack.c.l.b16 %v4560
  %v4817 = vunpack.c.l.b16 %v4561
  %v4818 = vunpack.c.l.b16 %v4562
  %v4819 = vunpack.c.l.b16 %v4563
  %v4820 = vunpack.c.l.b16 %v4564
  %v4821 = vunpack.c.l.b16 %v4565
  %v4822 = vunpack.c.l.b16 %v4566
  %v4823 = vunpack.c.l.b16 %v4567
  %v4824 = vunpack.c.l.b16 %v4568
  %v4825 = vunpack.c.l.b16 %v4569
  %v4826 = vunpack.c.l.b16 %v4570
  %v4827 = vunpack.c.l.b16 %v4571
  %v4828 = vunpack.c.l.b16 %v4572
  %v4829 = vunpack.c.l.b16 %v4573
  %v4830 = vunpack.c.l.b16 %v4574
  %v4831 = vunpack.c.l.b16 %v4575
  %v4832 = vunpack.c.l.b16 %v4576
  %v4833 = vunpack.c.l.b16 %v4577
  %v4834 = vunpack.c.l.b16 %v4578
  %v4835 = vunpack.c.l.b16 %v4579
  %v4836 = vunpack.c.l.b16 %v4580
  %v4837 = vpack.c.b16 %v4774, %v4773
  %v4838 = vpack.c.b16 %v4776, %v4775
  %v4839 = vpack.c.b16 %v4778, %v4777
  %v4840 = vpack.c.b16 %v4780, %v4779
  %v4841 = vpack.c.b16 %v4782, %v4781
  %v4842 = vpack.c.b16 %v4784, %v4783
  %v4843 = vpack.c.b16 %v4786, %v4785
  %v4844 = vpack.c.b16 %v4788, %v4787
  %v4845 = vpack.c.b16 %v4790, %v4789
  %v4846 = vpack.c.b16 %v4792, %v4791
  %v4847 = vpack.c.b16 %v4794, %v4793
  %v4848 = vpack.c.b16 %v4796, %v4795
  %v4849 = vpack.c.b16 %v4798, %v4797
  %v4850 = vpack.c.b16 %v4800, %v4799
  %v4851 = vpack.c.b16 %v4802, %v4801
  %v4852 = vpack.c.b16 %v4804, %v4803
  %v4853 = vpack.c.b16 %v4806, %v4805
  %v4854 = vpack.c.b16 %v4808, %v4807
  %v4855 = vpack.c.b16 %v4810, %v4809
  %v4856 = vpack.c.b16 %v4812, %v4811
  %v4857 = vpack.c.b16 %v4814, %v4813
  %v4858 = vpack.c.b16 %v4816, %v4815
  %v4859 = vpack.c.b16 %v4818, %v4817
  %v4860 = vpack.c.b16 %v4820, %v4819
  %v4861 = vpack.c.b16 %v4822, %v4821
  %v4862 = vpack.c.b16 %v4824, %v4823
  %v4863 = vpack.c.b16 %v4826, %v4825
  %v4864 = vpack.c.b16 %v4828, %v4827
  %v4865 = vpack.c.b16 %v4830, %v4829
  %v4866 = vpack.c.b16 %v4832, %v4831
  %v4867 = vpack.c.b16 %v4834, %v4833
  %v4868 = vpack.c.b16 %v4836, %v4835
  %4901 = vmatpush.bf16.msra.mxu0 %v4844
  %4902 = vmatpush.bf16.msra.mxu0 %v4843
  %4903 = vmatpush.bf16.msra.mxu0 %v4842
  %4904 = vmatpush.bf16.msra.mxu0 %v4841
  %4905 = vmatpush.bf16.msra.mxu0 %v4840
  %4906 = vmatpush.bf16.msra.mxu0 %v4839
  %4907 = vmatpush.bf16.msra.mxu0 %v4838
  %4908 = vmatpush.bf16.msra.mxu0 %v4837
  %4909 = vmatmul.bf16.gmra.mxu0 %v4645
  %v4910 = vpop.f32.mrf.mxu0
  %v4911 = vadd.f32 0.0, %v4910
  %v4912 = vpop.f32.mrf.mxu0
  %v4913 = vadd.f32 0.0, %v4912
  %4914 = vmatmul.bf16.gmra.mxu0 %v4649
  %v4915 = vpop.f32.mrf.mxu0
  %v4916 = vadd.f32 0.0, %v4915
  %v4917 = vpop.f32.mrf.mxu0
  %v4918 = vadd.f32 0.0, %v4917
  %4919 = vmatmul.bf16.gmra.mxu0 %v4653
  %v4920 = vpop.f32.mrf.mxu0
  %v4921 = vadd.f32 0.0, %v4920
  %v4922 = vpop.f32.mrf.mxu0
  %v4923 = vadd.f32 0.0, %v4922
  %4924 = vmatmul.bf16.gmra.mxu0 %v4657
  %v4925 = vpop.f32.mrf.mxu0
  %v4926 = vadd.f32 0.0, %v4925
  %v4927 = vpop.f32.mrf.mxu0
  %v4928 = vadd.f32 0.0, %v4927
  %4929 = vmatmul.bf16.gmra.mxu0 %v4661
  %v4930 = vpop.f32.mrf.mxu0
  %v4931 = vadd.f32 0.0, %v4930
  %v4932 = vpop.f32.mrf.mxu0
  %v4933 = vadd.f32 0.0, %v4932
  %4934 = vmatmul.bf16.gmra.mxu0 %v4665
  %v4935 = vpop.f32.mrf.mxu0
  %v4936 = vadd.f32 0.0, %v4935
  %v4937 = vpop.f32.mrf.mxu0
  %v4938 = vadd.f32 0.0, %v4937
  %4939 = vmatmul.bf16.gmra.mxu0 %v4669
  %v4940 = vpop.f32.mrf.mxu0
  %v4941 = vadd.f32 0.0, %v4940
  %v4942 = vpop.f32.mrf.mxu0
  %v4943 = vadd.f32 0.0, %v4942
  %4944 = vmatmul.bf16.gmra.mxu0 %v4673
  %v4945 = vpop.f32.mrf.mxu0
  %v4946 = vadd.f32 0.0, %v4945
  %v4947 = vpop.f32.mrf.mxu0
  %v4948 = vadd.f32 0.0, %v4947
  %4949 = vdwg.mxu0
  %4950 = vmatpush.bf16.msra.mxu0 %v4852
  %4951 = vmatpush.bf16.msra.mxu0 %v4851
  %4952 = vmatpush.bf16.msra.mxu0 %v4850
  %4953 = vmatpush.bf16.msra.mxu0 %v4849
  %4954 = vmatpush.bf16.msra.mxu0 %v4848
  %4955 = vmatpush.bf16.msra.mxu0 %v4847
  %4956 = vmatpush.bf16.msra.mxu0 %v4846
  %4957 = vmatpush.bf16.msra.mxu0 %v4845
  %4958 = vmatmul.bf16.gmra.mxu0 %v4646
  %v4959 = vpop.f32.mrf.mxu0
  %v4960 = vadd.f32 %v4911, %v4959
  %v4961 = vpop.f32.mrf.mxu0
  %v4962 = vadd.f32 %v4913, %v4961
  %4963 = vmatmul.bf16.gmra.mxu0 %v4650
  %v4964 = vpop.f32.mrf.mxu0
  %v4965 = vadd.f32 %v4916, %v4964
  %v4966 = vpop.f32.mrf.mxu0
  %v4967 = vadd.f32 %v4918, %v4966
  %4968 = vmatmul.bf16.gmra.mxu0 %v4654
  %v4969 = vpop.f32.mrf.mxu0
  %v4970 = vadd.f32 %v4921, %v4969
  %v4971 = vpop.f32.mrf.mxu0
  %v4972 = vadd.f32 %v4923, %v4971
  %4973 = vmatmul.bf16.gmra.mxu0 %v4658
  %v4974 = vpop.f32.mrf.mxu0
  %v4975 = vadd.f32 %v4926, %v4974
  %v4976 = vpop.f32.mrf.mxu0
  %v4977 = vadd.f32 %v4928, %v4976
  %4978 = vmatmul.bf16.gmra.mxu0 %v4662
  %v4979 = vpop.f32.mrf.mxu0
  %v4980 = vadd.f32 %v4931, %v4979
  %v4981 = vpop.f32.mrf.mxu0
  %v4982 = vadd.f32 %v4933, %v4981
  %4983 = vmatmul.bf16.gmra.mxu0 %v4666
  %v4984 = vpop.f32.mrf.mxu0
  %v4985 = vadd.f32 %v4936, %v4984
  %v4986 = vpop.f32.mrf.mxu0
  %v4987 = vadd.f32 %v4938, %v4986
  %4988 = vmatmul.bf16.gmra.mxu0 %v4670
  %v4989 = vpop.f32.mrf.mxu0
  %v4990 = vadd.f32 %v4941, %v4989
  %v4991 = vpop.f32.mrf.mxu0
  %v4992 = vadd.f32 %v4943, %v4991
  %4993 = vmatmul.bf16.gmra.mxu0 %v4674
  %v4994 = vpop.f32.mrf.mxu0
  %v4995 = vadd.f32 %v4946, %v4994
  %v4996 = vpop.f32.mrf.mxu0
  %v4997 = vadd.f32 %v4948, %v4996
  %4998 = vdwg.mxu0
  %4999 = vmatpush.bf16.msra.mxu0 %v4860
  %5000 = vmatpush.bf16.msra.mxu0 %v4859
  %5001 = vmatpush.bf16.msra.mxu0 %v4858
  %5002 = vmatpush.bf16.msra.mxu0 %v4857
  %5003 = vmatpush.bf16.msra.mxu0 %v4856
  %5004 = vmatpush.bf16.msra.mxu0 %v4855
  %5005 = vmatpush.bf16.msra.mxu0 %v4854
  %5006 = vmatpush.bf16.msra.mxu0 %v4853
  %5007 = vmatmul.bf16.gmra.mxu0 %v4647
  %v5008 = vpop.f32.mrf.mxu0
  %v5009 = vadd.f32 %v4960, %v5008
  %v5010 = vpop.f32.mrf.mxu0
  %v5011 = vadd.f32 %v4962, %v5010
  %5012 = vmatmul.bf16.gmra.mxu0 %v4651
  %v5013 = vpop.f32.mrf.mxu0
  %v5014 = vadd.f32 %v4965, %v5013
  %v5015 = vpop.f32.mrf.mxu0
  %v5016 = vadd.f32 %v4967, %v5015
  %5017 = vmatmul.bf16.gmra.mxu0 %v4655
  %v5018 = vpop.f32.mrf.mxu0
  %v5019 = vadd.f32 %v4970, %v5018
  %v5020 = vpop.f32.mrf.mxu0
  %v5021 = vadd.f32 %v4972, %v5020
  %5022 = vmatmul.bf16.gmra.mxu0 %v4659
  %v5023 = vpop.f32.mrf.mxu0
  %v5024 = vadd.f32 %v4975, %v5023
  %v5025 = vpop.f32.mrf.mxu0
  %v5026 = vadd.f32 %v4977, %v5025
  %5027 = vmatmul.bf16.gmra.mxu0 %v4663
  %v5028 = vpop.f32.mrf.mxu0
  %v5029 = vadd.f32 %v4980, %v5028
  %v5030 = vpop.f32.mrf.mxu0
  %v5031 = vadd.f32 %v4982, %v5030
  %5032 = vmatmul.bf16.gmra.mxu0 %v4667
  %v5033 = vpop.f32.mrf.mxu0
  %v5034 = vadd.f32 %v4985, %v5033
  %v5035 = vpop.f32.mrf.mxu0
  %v5036 = vadd.f32 %v4987, %v5035
  %5037 = vmatmul.bf16.gmra.mxu0 %v4671
  %v5038 = vpop.f32.mrf.mxu0
  %v5039 = vadd.f32 %v4990, %v5038
  %v5040 = vpop.f32.mrf.mxu0
  %v5041 = vadd.f32 %v4992, %v5040
  %5042 = vmatmul.bf16.gmra.mxu0 %v4675
  %v5043 = vpop.f32.mrf.mxu0
  %v5044 = vadd.f32 %v4995, %v5043
  %v5045 = vpop.f32.mrf.mxu0
  %v5046 = vadd.f32 %v4997, %v5045
  %5047 = vdwg.mxu0
  %5048 = vmatpush.bf16.msra.mxu0 %v4868
  %5049 = vmatpush.bf16.msra.mxu0 %v4867
  %5050 = vmatpush.bf16.msra.mxu0 %v4866
  %5051 = vmatpush.bf16.msra.mxu0 %v4865
  %5052 = vmatpush.bf16.msra.mxu0 %v4864
  %5053 = vmatpush.bf16.msra.mxu0 %v4863
  %5054 = vmatpush.bf16.msra.mxu0 %v4862
  %5055 = vmatpush.bf16.msra.mxu0 %v4861
  %5056 = vmatmul.bf16.gmra.mxu0 %v4648
  %v5057 = vpop.f32.mrf.mxu0
  %v5058 = vadd.f32 %v5009, %v5057
  %v5059 = vpop.f32.mrf.mxu0
  %v5060 = vadd.f32 %v5011, %v5059
  %5061 = vmatmul.bf16.gmra.mxu0 %v4652
  %v5062 = vpop.f32.mrf.mxu0
  %v5063 = vadd.f32 %v5014, %v5062
  %v5064 = vpop.f32.mrf.mxu0
  %v5065 = vadd.f32 %v5016, %v5064
  %5066 = vmatmul.bf16.gmra.mxu0 %v4656
  %v5067 = vpop.f32.mrf.mxu0
  %v5068 = vadd.f32 %v5019, %v5067
  %v5069 = vpop.f32.mrf.mxu0
  %v5070 = vadd.f32 %v5021, %v5069
  %5071 = vmatmul.bf16.gmra.mxu0 %v4660
  %v5072 = vpop.f32.mrf.mxu0
  %v5073 = vadd.f32 %v5024, %v5072
  %v5074 = vpop.f32.mrf.mxu0
  %v5075 = vadd.f32 %v5026, %v5074
  %5076 = vmatmul.bf16.gmra.mxu0 %v4664
  %v5077 = vpop.f32.mrf.mxu0
  %v5078 = vadd.f32 %v5029, %v5077
  %v5079 = vpop.f32.mrf.mxu0
  %v5080 = vadd.f32 %v5031, %v5079
  %5081 = vmatmul.bf16.gmra.mxu0 %v4668
  %v5082 = vpop.f32.mrf.mxu0
  %v5083 = vadd.f32 %v5034, %v5082
  %v5084 = vpop.f32.mrf.mxu0
  %v5085 = vadd.f32 %v5036, %v5084
  %5086 = vmatmul.bf16.gmra.mxu0 %v4672
  %v5087 = vpop.f32.mrf.mxu0
  %v5088 = vadd.f32 %v5039, %v5087
  %v5089 = vpop.f32.mrf.mxu0
  %v5090 = vadd.f32 %v5041, %v5089
  %5091 = vmatmul.bf16.gmra.mxu0 %v4676
  %v5092 = vpop.f32.mrf.mxu0
  %v5093 = vadd.f32 %v5044, %v5092
  %v5094 = vpop.f32.mrf.mxu0
  %v5095 = vadd.f32 %v5046, %v5094
  %5096 = vdwg.mxu0
  %v5129 = vunpack.c.l.b16 %v3921
  %v5130 = vunpack.c.h.b16 %v3921
  %v5131 = vunpack.c.l.b16 %v3922
  %v5132 = vunpack.c.h.b16 %v3922
  %v5133 = vunpack.c.l.b16 %v3925
  %v5134 = vunpack.c.h.b16 %v3925
  %v5135 = vunpack.c.l.b16 %v3926
  %v5136 = vunpack.c.h.b16 %v3926
  %v5137 = vunpack.c.l.b16 %v3929
  %v5138 = vunpack.c.h.b16 %v3929
  %v5139 = vunpack.c.l.b16 %v3930
  %v5140 = vunpack.c.h.b16 %v3930
  %v5141 = vunpack.c.l.b16 %v3933
  %v5142 = vunpack.c.h.b16 %v3933
  %v5143 = vunpack.c.l.b16 %v3934
  %v5144 = vunpack.c.h.b16 %v3934
  %v5145 = vunpack.c.l.b16 %v3937
  %v5146 = vunpack.c.h.b16 %v3937
  %v5147 = vunpack.c.l.b16 %v3938
  %v5148 = vunpack.c.h.b16 %v3938
  %v5149 = vunpack.c.l.b16 %v3941
  %v5150 = vunpack.c.h.b16 %v3941
  %v5151 = vunpack.c.l.b16 %v3942
  %v5152 = vunpack.c.h.b16 %v3942
  %v5153 = vunpack.c.l.b16 %v3945
  %v5154 = vunpack.c.h.b16 %v3945
  %v5155 = vunpack.c.l.b16 %v3946
  %v5156 = vunpack.c.h.b16 %v3946
  %v5157 = vunpack.c.l.b16 %v3949
  %v5158 = vunpack.c.h.b16 %v3949
  %v5159 = vunpack.c.l.b16 %v3950
  %v5160 = vunpack.c.h.b16 %v3950
  %v5161 = vunpack.c.l.b16 %v3961
  %v5162 = vunpack.c.h.b16 %v3961
  %v5163 = vunpack.c.l.b16 %v3962
  %v5164 = vunpack.c.h.b16 %v3962
  %v5165 = vunpack.c.l.b16 %v3965
  %v5166 = vunpack.c.h.b16 %v3965
  %v5167 = vunpack.c.l.b16 %v3966
  %v5168 = vunpack.c.h.b16 %v3966
  %v5169 = vunpack.c.l.b16 %v3969
  %v5170 = vunpack.c.h.b16 %v3969
  %v5171 = vunpack.c.l.b16 %v3970
  %v5172 = vunpack.c.h.b16 %v3970
  %v5173 = vunpack.c.l.b16 %v3973
  %v5174 = vunpack.c.h.b16 %v3973
  %v5175 = vunpack.c.l.b16 %v3974
  %v5176 = vunpack.c.h.b16 %v3974
  %v5177 = vunpack.c.l.b16 %v3977
  %v5178 = vunpack.c.h.b16 %v3977
  %v5179 = vunpack.c.l.b16 %v3978
  %v5180 = vunpack.c.h.b16 %v3978
  %v5181 = vunpack.c.l.b16 %v3981
  %v5182 = vunpack.c.h.b16 %v3981
  %v5183 = vunpack.c.l.b16 %v3982
  %v5184 = vunpack.c.h.b16 %v3982
  %v5185 = vunpack.c.l.b16 %v3985
  %v5186 = vunpack.c.h.b16 %v3985
  %v5187 = vunpack.c.l.b16 %v3986
  %v5188 = vunpack.c.h.b16 %v3986
  %v5189 = vunpack.c.l.b16 %v3989
  %v5190 = vunpack.c.h.b16 %v3989
  %v5191 = vunpack.c.l.b16 %v3990
  %v5192 = vunpack.c.h.b16 %v3990
  %v5193 = vpack.c.b16 %v5133, %v5129
  %v5194 = vpack.c.b16 %v5134, %v5130
  %v5195 = vpack.c.b16 %v5135, %v5131
  %v5196 = vpack.c.b16 %v5136, %v5132
  %v5197 = vpack.c.b16 %v5141, %v5137
  %v5198 = vpack.c.b16 %v5142, %v5138
  %v5199 = vpack.c.b16 %v5143, %v5139
  %v5200 = vpack.c.b16 %v5144, %v5140
  %v5201 = vpack.c.b16 %v5149, %v5145
  %v5202 = vpack.c.b16 %v5150, %v5146
  %v5203 = vpack.c.b16 %v5151, %v5147
  %v5204 = vpack.c.b16 %v5152, %v5148
  %v5205 = vpack.c.b16 %v5157, %v5153
  %v5206 = vpack.c.b16 %v5158, %v5154
  %v5207 = vpack.c.b16 %v5159, %v5155
  %v5208 = vpack.c.b16 %v5160, %v5156
  %v5209 = vpack.c.b16 %v5165, %v5161
  %v5210 = vpack.c.b16 %v5166, %v5162
  %v5211 = vpack.c.b16 %v5167, %v5163
  %v5212 = vpack.c.b16 %v5168, %v5164
  %v5213 = vpack.c.b16 %v5173, %v5169
  %v5214 = vpack.c.b16 %v5174, %v5170
  %v5215 = vpack.c.b16 %v5175, %v5171
  %v5216 = vpack.c.b16 %v5176, %v5172
  %v5217 = vpack.c.b16 %v5181, %v5177
  %v5218 = vpack.c.b16 %v5182, %v5178
  %v5219 = vpack.c.b16 %v5183, %v5179
  %v5220 = vpack.c.b16 %v5184, %v5180
  %v5221 = vpack.c.b16 %v5189, %v5185
  %v5222 = vpack.c.b16 %v5190, %v5186
  %v5223 = vpack.c.b16 %v5191, %v5187
  %v5224 = vpack.c.b16 %v5192, %v5188
  %v5321 = vunpack.c.l.b16 %v4001
  %v5322 = vunpack.c.l.b16 %v4002
  %v5323 = vunpack.c.l.b16 %v4003
  %v5324 = vunpack.c.l.b16 %v4004
  %v5325 = vunpack.c.l.b16 %v4005
  %v5326 = vunpack.c.l.b16 %v4006
  %v5327 = vunpack.c.l.b16 %v4007
  %v5328 = vunpack.c.l.b16 %v4008
  %v5329 = vunpack.c.l.b16 %v4009
  %v5330 = vunpack.c.l.b16 %v4010
  %v5331 = vunpack.c.l.b16 %v4011
  %v5332 = vunpack.c.l.b16 %v4012
  %v5333 = vunpack.c.l.b16 %v4013
  %v5334 = vunpack.c.l.b16 %v4014
  %v5335 = vunpack.c.l.b16 %v4015
  %v5336 = vunpack.c.l.b16 %v4016
  %v5337 = vunpack.c.l.b16 %v4017
  %v5338 = vunpack.c.l.b16 %v4018
  %v5339 = vunpack.c.l.b16 %v4019
  %v5340 = vunpack.c.l.b16 %v4020
  %v5341 = vunpack.c.l.b16 %v4021
  %v5342 = vunpack.c.l.b16 %v4022
  %v5343 = vunpack.c.l.b16 %v4023
  %v5344 = vunpack.c.l.b16 %v4024
  %v5345 = vunpack.c.l.b16 %v4025
  %v5346 = vunpack.c.l.b16 %v4026
  %v5347 = vunpack.c.l.b16 %v4027
  %v5348 = vunpack.c.l.b16 %v4028
  %v5349 = vunpack.c.l.b16 %v4029
  %v5350 = vunpack.c.l.b16 %v4030
  %v5351 = vunpack.c.l.b16 %v4031
  %v5352 = vunpack.c.l.b16 %v4032
  %v5353 = vunpack.c.l.b16 %v4033
  %v5354 = vunpack.c.l.b16 %v4034
  %v5355 = vunpack.c.l.b16 %v4035
  %v5356 = vunpack.c.l.b16 %v4036
  %v5357 = vunpack.c.l.b16 %v4037
  %v5358 = vunpack.c.l.b16 %v4038
  %v5359 = vunpack.c.l.b16 %v4039
  %v5360 = vunpack.c.l.b16 %v4040
  %v5361 = vunpack.c.l.b16 %v4041
  %v5362 = vunpack.c.l.b16 %v4042
  %v5363 = vunpack.c.l.b16 %v4043
  %v5364 = vunpack.c.l.b16 %v4044
  %v5365 = vunpack.c.l.b16 %v4045
  %v5366 = vunpack.c.l.b16 %v4046
  %v5367 = vunpack.c.l.b16 %v4047
  %v5368 = vunpack.c.l.b16 %v4048
  %v5369 = vunpack.c.l.b16 %v4049
  %v5370 = vunpack.c.l.b16 %v4050
  %v5371 = vunpack.c.l.b16 %v4051
  %v5372 = vunpack.c.l.b16 %v4052
  %v5373 = vunpack.c.l.b16 %v4053
  %v5374 = vunpack.c.l.b16 %v4054
  %v5375 = vunpack.c.l.b16 %v4055
  %v5376 = vunpack.c.l.b16 %v4056
  %v5377 = vunpack.c.l.b16 %v4057
  %v5378 = vunpack.c.l.b16 %v4058
  %v5379 = vunpack.c.l.b16 %v4059
  %v5380 = vunpack.c.l.b16 %v4060
  %v5381 = vunpack.c.l.b16 %v4061
  %v5382 = vunpack.c.l.b16 %v4062
  %v5383 = vunpack.c.l.b16 %v4063
  %v5384 = vunpack.c.l.b16 %v4064
  %v5385 = vpack.c.b16 %v5322, %v5321
  %v5386 = vpack.c.b16 %v5324, %v5323
  %v5387 = vpack.c.b16 %v5326, %v5325
  %v5388 = vpack.c.b16 %v5328, %v5327
  %v5389 = vpack.c.b16 %v5330, %v5329
  %v5390 = vpack.c.b16 %v5332, %v5331
  %v5391 = vpack.c.b16 %v5334, %v5333
  %v5392 = vpack.c.b16 %v5336, %v5335
  %v5393 = vpack.c.b16 %v5338, %v5337
  %v5394 = vpack.c.b16 %v5340, %v5339
  %v5395 = vpack.c.b16 %v5342, %v5341
  %v5396 = vpack.c.b16 %v5344, %v5343
  %v5397 = vpack.c.b16 %v5346, %v5345
  %v5398 = vpack.c.b16 %v5348, %v5347
  %v5399 = vpack.c.b16 %v5350, %v5349
  %v5400 = vpack.c.b16 %v5352, %v5351
  %v5401 = vpack.c.b16 %v5354, %v5353
  %v5402 = vpack.c.b16 %v5356, %v5355
  %v5403 = vpack.c.b16 %v5358, %v5357
  %v5404 = vpack.c.b16 %v5360, %v5359
  %v5405 = vpack.c.b16 %v5362, %v5361
  %v5406 = vpack.c.b16 %v5364, %v5363
  %v5407 = vpack.c.b16 %v5366, %v5365
  %v5408 = vpack.c.b16 %v5368, %v5367
  %v5409 = vpack.c.b16 %v5370, %v5369
  %v5410 = vpack.c.b16 %v5372, %v5371
  %v5411 = vpack.c.b16 %v5374, %v5373
  %v5412 = vpack.c.b16 %v5376, %v5375
  %v5413 = vpack.c.b16 %v5378, %v5377
  %v5414 = vpack.c.b16 %v5380, %v5379
  %v5415 = vpack.c.b16 %v5382, %v5381
  %v5416 = vpack.c.b16 %v5384, %v5383
  %5449 = vmatpush.bf16.msra.mxu0 %v5392
  %5450 = vmatpush.bf16.msra.mxu0 %v5391
  %5451 = vmatpush.bf16.msra.mxu0 %v5390
  %5452 = vmatpush.bf16.msra.mxu0 %v5389
  %5453 = vmatpush.bf16.msra.mxu0 %v5388
  %5454 = vmatpush.bf16.msra.mxu0 %v5387
  %5455 = vmatpush.bf16.msra.mxu0 %v5386
  %5456 = vmatpush.bf16.msra.mxu0 %v5385
  %5457 = vmatmul.bf16.gmra.mxu0 %v5193
  %v5458 = vpop.f32.mrf.mxu0
  %v5459 = vadd.f32 %v5058, %v5458
  %v5460 = vpop.f32.mrf.mxu0
  %v5461 = vadd.f32 %v5060, %v5460
  %5462 = vmatmul.bf16.gmra.mxu0 %v5197
  %v5463 = vpop.f32.mrf.mxu0
  %v5464 = vadd.f32 %v5063, %v5463
  %v5465 = vpop.f32.mrf.mxu0
  %v5466 = vadd.f32 %v5065, %v5465
  %5467 = vmatmul.bf16.gmra.mxu0 %v5201
  %v5468 = vpop.f32.mrf.mxu0
  %v5469 = vadd.f32 %v5068, %v5468
  %v5470 = vpop.f32.mrf.mxu0
  %v5471 = vadd.f32 %v5070, %v5470
  %5472 = vmatmul.bf16.gmra.mxu0 %v5205
  %v5473 = vpop.f32.mrf.mxu0
  %v5474 = vadd.f32 %v5073, %v5473
  %v5475 = vpop.f32.mrf.mxu0
  %v5476 = vadd.f32 %v5075, %v5475
  %5477 = vmatmul.bf16.gmra.mxu0 %v5209
  %v5478 = vpop.f32.mrf.mxu0
  %v5479 = vadd.f32 %v5078, %v5478
  %v5480 = vpop.f32.mrf.mxu0
  %v5481 = vadd.f32 %v5080, %v5480
  %5482 = vmatmul.bf16.gmra.mxu0 %v5213
  %v5483 = vpop.f32.mrf.mxu0
  %v5484 = vadd.f32 %v5083, %v5483
  %v5485 = vpop.f32.mrf.mxu0
  %v5486 = vadd.f32 %v5085, %v5485
  %5487 = vmatmul.bf16.gmra.mxu0 %v5217
  %v5488 = vpop.f32.mrf.mxu0
  %v5489 = vadd.f32 %v5088, %v5488
  %v5490 = vpop.f32.mrf.mxu0
  %v5491 = vadd.f32 %v5090, %v5490
  %5492 = vmatmul.bf16.gmra.mxu0 %v5221
  %v5493 = vpop.f32.mrf.mxu0
  %v5494 = vadd.f32 %v5093, %v5493
  %v5495 = vpop.f32.mrf.mxu0
  %v5496 = vadd.f32 %v5095, %v5495
  %5497 = vdwg.mxu0
  %5498 = vmatpush.bf16.msra.mxu0 %v5400
  %5499 = vmatpush.bf16.msra.mxu0 %v5399
  %5500 = vmatpush.bf16.msra.mxu0 %v5398
  %5501 = vmatpush.bf16.msra.mxu0 %v5397
  %5502 = vmatpush.bf16.msra.mxu0 %v5396
  %5503 = vmatpush.bf16.msra.mxu0 %v5395
  %5504 = vmatpush.bf16.msra.mxu0 %v5394
  %5505 = vmatpush.bf16.msra.mxu0 %v5393
  %5506 = vmatmul.bf16.gmra.mxu0 %v5194
  %v5507 = vpop.f32.mrf.mxu0
  %v5508 = vadd.f32 %v5459, %v5507
  %v5509 = vpop.f32.mrf.mxu0
  %v5510 = vadd.f32 %v5461, %v5509
  %5511 = vmatmul.bf16.gmra.mxu0 %v5198
  %v5512 = vpop.f32.mrf.mxu0
  %v5513 = vadd.f32 %v5464, %v5512
  %v5514 = vpop.f32.mrf.mxu0
  %v5515 = vadd.f32 %v5466, %v5514
  %5516 = vmatmul.bf16.gmra.mxu0 %v5202
  %v5517 = vpop.f32.mrf.mxu0
  %v5518 = vadd.f32 %v5469, %v5517
  %v5519 = vpop.f32.mrf.mxu0
  %v5520 = vadd.f32 %v5471, %v5519
  %5521 = vmatmul.bf16.gmra.mxu0 %v5206
  %v5522 = vpop.f32.mrf.mxu0
  %v5523 = vadd.f32 %v5474, %v5522
  %v5524 = vpop.f32.mrf.mxu0
  %v5525 = vadd.f32 %v5476, %v5524
  %5526 = vmatmul.bf16.gmra.mxu0 %v5210
  %v5527 = vpop.f32.mrf.mxu0
  %v5528 = vadd.f32 %v5479, %v5527
  %v5529 = vpop.f32.mrf.mxu0
  %v5530 = vadd.f32 %v5481, %v5529
  %5531 = vmatmul.bf16.gmra.mxu0 %v5214
  %v5532 = vpop.f32.mrf.mxu0
  %v5533 = vadd.f32 %v5484, %v5532
  %v5534 = vpop.f32.mrf.mxu0
  %v5535 = vadd.f32 %v5486, %v5534
  %5536 = vmatmul.bf16.gmra.mxu0 %v5218
  %v5537 = vpop.f32.mrf.mxu0
  %v5538 = vadd.f32 %v5489, %v5537
  %v5539 = vpop.f32.mrf.mxu0
  %v5540 = vadd.f32 %v5491, %v5539
  %5541 = vmatmul.bf16.gmra.mxu0 %v5222
  %v5542 = vpop.f32.mrf.mxu0
  %v5543 = vadd.f32 %v5494, %v5542
  %v5544 = vpop.f32.mrf.mxu0
  %v5545 = vadd.f32 %v5496, %v5544
  %5546 = vdwg.mxu0
  %5547 = vmatpush.bf16.msra.mxu0 %v5408
  %5548 = vmatpush.bf16.msra.mxu0 %v5407
  %5549 = vmatpush.bf16.msra.mxu0 %v5406
  %5550 = vmatpush.bf16.msra.mxu0 %v5405
  %5551 = vmatpush.bf16.msra.mxu0 %v5404
  %5552 = vmatpush.bf16.msra.mxu0 %v5403
  %5553 = vmatpush.bf16.msra.mxu0 %v5402
  %5554 = vmatpush.bf16.msra.mxu0 %v5401
  %5555 = vmatmul.bf16.gmra.mxu0 %v5195
  %v5556 = vpop.f32.mrf.mxu0
  %v5557 = vadd.f32 %v5508, %v5556
  %v5558 = vpop.f32.mrf.mxu0
  %v5559 = vadd.f32 %v5510, %v5558
  %5560 = vmatmul.bf16.gmra.mxu0 %v5199
  %v5561 = vpop.f32.mrf.mxu0
  %v5562 = vadd.f32 %v5513, %v5561
  %v5563 = vpop.f32.mrf.mxu0
  %v5564 = vadd.f32 %v5515, %v5563
  %5565 = vmatmul.bf16.gmra.mxu0 %v5203
  %v5566 = vpop.f32.mrf.mxu0
  %v5567 = vadd.f32 %v5518, %v5566
  %v5568 = vpop.f32.mrf.mxu0
  %v5569 = vadd.f32 %v5520, %v5568
  %5570 = vmatmul.bf16.gmra.mxu0 %v5207
  %v5571 = vpop.f32.mrf.mxu0
  %v5572 = vadd.f32 %v5523, %v5571
  %v5573 = vpop.f32.mrf.mxu0
  %v5574 = vadd.f32 %v5525, %v5573
  %5575 = vmatmul.bf16.gmra.mxu0 %v5211
  %v5576 = vpop.f32.mrf.mxu0
  %v5577 = vadd.f32 %v5528, %v5576
  %v5578 = vpop.f32.mrf.mxu0
  %v5579 = vadd.f32 %v5530, %v5578
  %5580 = vmatmul.bf16.gmra.mxu0 %v5215
  %v5581 = vpop.f32.mrf.mxu0
  %v5582 = vadd.f32 %v5533, %v5581
  %v5583 = vpop.f32.mrf.mxu0
  %v5584 = vadd.f32 %v5535, %v5583
  %5585 = vmatmul.bf16.gmra.mxu0 %v5219
  %v5586 = vpop.f32.mrf.mxu0
  %v5587 = vadd.f32 %v5538, %v5586
  %v5588 = vpop.f32.mrf.mxu0
  %v5589 = vadd.f32 %v5540, %v5588
  %5590 = vmatmul.bf16.gmra.mxu0 %v5223
  %v5591 = vpop.f32.mrf.mxu0
  %v5592 = vadd.f32 %v5543, %v5591
  %v5593 = vpop.f32.mrf.mxu0
  %v5594 = vadd.f32 %v5545, %v5593
  %5595 = vdwg.mxu0
  %5596 = vmatpush.bf16.msra.mxu0 %v5416
  %5597 = vmatpush.bf16.msra.mxu0 %v5415
  %5598 = vmatpush.bf16.msra.mxu0 %v5414
  %5599 = vmatpush.bf16.msra.mxu0 %v5413
  %5600 = vmatpush.bf16.msra.mxu0 %v5412
  %5601 = vmatpush.bf16.msra.mxu0 %v5411
  %5602 = vmatpush.bf16.msra.mxu0 %v5410
  %5603 = vmatpush.bf16.msra.mxu0 %v5409
  %5604 = vmatmul.bf16.gmra.mxu0 %v5196
  %v5605 = vpop.f32.mrf.mxu0
  %v5606 = vadd.f32 %v5557, %v5605
  %v5607 = vpop.f32.mrf.mxu0
  %v5608 = vadd.f32 %v5559, %v5607
  %5609 = vmatmul.bf16.gmra.mxu0 %v5200
  %v5610 = vpop.f32.mrf.mxu0
  %v5611 = vadd.f32 %v5562, %v5610
  %v5612 = vpop.f32.mrf.mxu0
  %v5613 = vadd.f32 %v5564, %v5612
  %5614 = vmatmul.bf16.gmra.mxu0 %v5204
  %v5615 = vpop.f32.mrf.mxu0
  %v5616 = vadd.f32 %v5567, %v5615
  %v5617 = vpop.f32.mrf.mxu0
  %v5618 = vadd.f32 %v5569, %v5617
  %5619 = vmatmul.bf16.gmra.mxu0 %v5208
  %v5620 = vpop.f32.mrf.mxu0
  %v5621 = vadd.f32 %v5572, %v5620
  %v5622 = vpop.f32.mrf.mxu0
  %v5623 = vadd.f32 %v5574, %v5622
  %5624 = vmatmul.bf16.gmra.mxu0 %v5212
  %v5625 = vpop.f32.mrf.mxu0
  %v5626 = vadd.f32 %v5577, %v5625
  %v5627 = vpop.f32.mrf.mxu0
  %v5628 = vadd.f32 %v5579, %v5627
  %5629 = vmatmul.bf16.gmra.mxu0 %v5216
  %v5630 = vpop.f32.mrf.mxu0
  %v5631 = vadd.f32 %v5582, %v5630
  %v5632 = vpop.f32.mrf.mxu0
  %v5633 = vadd.f32 %v5584, %v5632
  %5634 = vmatmul.bf16.gmra.mxu0 %v5220
  %v5635 = vpop.f32.mrf.mxu0
  %v5636 = vadd.f32 %v5587, %v5635
  %v5637 = vpop.f32.mrf.mxu0
  %v5638 = vadd.f32 %v5589, %v5637
  %5639 = vmatmul.bf16.gmra.mxu0 %v5224
  %v5640 = vpop.f32.mrf.mxu0
  %v5641 = vadd.f32 %v5592, %v5640
  %v5642 = vpop.f32.mrf.mxu0
  %v5643 = vadd.f32 %v5594, %v5642
  %5644 = vdwg.mxu0
  %vm5677 = vcmask 1042432
  %vm5678 = vcmask 1046532
  %vm5679 = vmor %vm5677, %vm5678
  %v5680 = vrot.slane %v3921, 5
  %v5681 = vrot.slane %v5680, 4
  %v5682 = vrot.slane %v3923, 5
  %v5683 = vsel %vm5679, %v5681, %v5682
  %v5684 = vrot.slane %v3922, 5
  %v5685 = vrot.slane %v5684, 4
  %v5686 = vrot.slane %v3924, 5
  %v5687 = vsel %vm5679, %v5685, %v5686
  %v5688 = vrot.slane %v3925, 5
  %v5689 = vrot.slane %v5688, 4
  %v5690 = vrot.slane %v3927, 5
  %v5691 = vsel %vm5679, %v5689, %v5690
  %v5692 = vrot.slane %v3926, 5
  %v5693 = vrot.slane %v5692, 4
  %v5694 = vrot.slane %v3928, 5
  %v5695 = vsel %vm5679, %v5693, %v5694
  %v5696 = vrot.slane %v3929, 5
  %v5697 = vrot.slane %v5696, 4
  %v5698 = vrot.slane %v3931, 5
  %v5699 = vsel %vm5679, %v5697, %v5698
  %v5700 = vrot.slane %v3930, 5
  %v5701 = vrot.slane %v5700, 4
  %v5702 = vrot.slane %v3932, 5
  %v5703 = vsel %vm5679, %v5701, %v5702
  %v5704 = vrot.slane %v3933, 5
  %v5705 = vrot.slane %v5704, 4
  %v5706 = vrot.slane %v3935, 5
  %v5707 = vsel %vm5679, %v5705, %v5706
  %v5708 = vrot.slane %v3934, 5
  %v5709 = vrot.slane %v5708, 4
  %v5710 = vrot.slane %v3936, 5
  %v5711 = vsel %vm5679, %v5709, %v5710
  %v5712 = vrot.slane %v3937, 5
  %v5713 = vrot.slane %v5712, 4
  %v5714 = vrot.slane %v3939, 5
  %v5715 = vsel %vm5679, %v5713, %v5714
  %v5716 = vrot.slane %v3938, 5
  %v5717 = vrot.slane %v5716, 4
  %v5718 = vrot.slane %v3940, 5
  %v5719 = vsel %vm5679, %v5717, %v5718
  %v5720 = vrot.slane %v3941, 5
  %v5721 = vrot.slane %v5720, 4
  %v5722 = vrot.slane %v3943, 5
  %v5723 = vsel %vm5679, %v5721, %v5722
  %v5724 = vrot.slane %v3942, 5
  %v5725 = vrot.slane %v5724, 4
  %v5726 = vrot.slane %v3944, 5
  %v5727 = vsel %vm5679, %v5725, %v5726
  %v5728 = vrot.slane %v3945, 5
  %v5729 = vrot.slane %v5728, 4
  %v5730 = vrot.slane %v3947, 5
  %v5731 = vsel %vm5679, %v5729, %v5730
  %v5732 = vrot.slane %v3946, 5
  %v5733 = vrot.slane %v5732, 4
  %v5734 = vrot.slane %v3948, 5
  %v5735 = vsel %vm5679, %v5733, %v5734
  %v5736 = vrot.slane %v3949, 5
  %v5737 = vrot.slane %v5736, 4
  %v5738 = vrot.slane %v3951, 5
  %v5739 = vsel %vm5679, %v5737, %v5738
  %v5740 = vrot.slane %v3950, 5
  %v5741 = vrot.slane %v5740, 4
  %v5742 = vrot.slane %v3952, 5
  %v5743 = vsel %vm5679, %v5741, %v5742
  %v5744 = vrot.slane %v3961, 5
  %v5745 = vrot.slane %v5744, 4
  %v5746 = vrot.slane %v3963, 5
  %v5747 = vsel %vm5679, %v5745, %v5746
  %v5748 = vrot.slane %v3962, 5
  %v5749 = vrot.slane %v5748, 4
  %v5750 = vrot.slane %v3964, 5
  %v5751 = vsel %vm5679, %v5749, %v5750
  %v5752 = vrot.slane %v3965, 5
  %v5753 = vrot.slane %v5752, 4
  %v5754 = vrot.slane %v3967, 5
  %v5755 = vsel %vm5679, %v5753, %v5754
  %v5756 = vrot.slane %v3966, 5
  %v5757 = vrot.slane %v5756, 4
  %v5758 = vrot.slane %v3968, 5
  %v5759 = vsel %vm5679, %v5757, %v5758
  %v5760 = vrot.slane %v3969, 5
  %v5761 = vrot.slane %v5760, 4
  %v5762 = vrot.slane %v3971, 5
  %v5763 = vsel %vm5679, %v5761, %v5762
  %v5764 = vrot.slane %v3970, 5
  %v5765 = vrot.slane %v5764, 4
  %v5766 = vrot.slane %v3972, 5
  %v5767 = vsel %vm5679, %v5765, %v5766
  %v5768 = vrot.slane %v3973, 5
  %v5769 = vrot.slane %v5768, 4
  %v5770 = vrot.slane %v3975, 5
  %v5771 = vsel %vm5679, %v5769, %v5770
  %v5772 = vrot.slane %v3974, 5
  %v5773 = vrot.slane %v5772, 4
  %v5774 = vrot.slane %v3976, 5
  %v5775 = vsel %vm5679, %v5773, %v5774
  %v5776 = vrot.slane %v3977, 5
  %v5777 = vrot.slane %v5776, 4
  %v5778 = vrot.slane %v3979, 5
  %v5779 = vsel %vm5679, %v5777, %v5778
  %v5780 = vrot.slane %v3978, 5
  %v5781 = vrot.slane %v5780, 4
  %v5782 = vrot.slane %v3980, 5
  %v5783 = vsel %vm5679, %v5781, %v5782
  %v5784 = vrot.slane %v3981, 5
  %v5785 = vrot.slane %v5784, 4
  %v5786 = vrot.slane %v3983, 5
  %v5787 = vsel %vm5679, %v5785, %v5786
  %v5788 = vrot.slane %v3982, 5
  %v5789 = vrot.slane %v5788, 4
  %v5790 = vrot.slane %v3984, 5
  %v5791 = vsel %vm5679, %v5789, %v5790
  %v5792 = vrot.slane %v3985, 5
  %v5793 = vrot.slane %v5792, 4
  %v5794 = vrot.slane %v3987, 5
  %v5795 = vsel %vm5679, %v5793, %v5794
  %v5796 = vrot.slane %v3986, 5
  %v5797 = vrot.slane %v5796, 4
  %v5798 = vrot.slane %v3988, 5
  %v5799 = vsel %vm5679, %v5797, %v5798
  %v5800 = vrot.slane %v3989, 5
  %v5801 = vrot.slane %v5800, 4
  %v5802 = vrot.slane %v3991, 5
  %v5803 = vsel %vm5679, %v5801, %v5802
  %v5804 = vrot.slane %v3990, 5
  %v5805 = vrot.slane %v5804, 4
  %v5806 = vrot.slane %v3992, 5
  %v5807 = vsel %vm5679, %v5805, %v5806
  %s5808 = scalar_lea.vmem %s8, 512
  %v5809 = vld [vmem:[%s5808] sm:$0xf]
  %v5810 = vld [vmem:[%s5808 + $0x4] sm:$0xf]
  %v5811 = vld [vmem:[%s5808 + $0x8] sm:$0xf]
  %v5812 = vld [vmem:[%s5808 + $0xc] sm:$0xf]
  %v5813 = vld [vmem:[%s5808 + $0x10] sm:$0xf]
  %v5814 = vld [vmem:[%s5808 + $0x14] sm:$0xf]
  %v5815 = vld [vmem:[%s5808 + $0x18] sm:$0xf]
  %v5816 = vld [vmem:[%s5808 + $0x1c] sm:$0xf]
  %v5817 = vld [vmem:[%s5808 + $0x20] sm:$0xf]
  %v5818 = vld [vmem:[%s5808 + $0x24] sm:$0xf]
  %v5819 = vld [vmem:[%s5808 + $0x28] sm:$0xf]
  %v5820 = vld [vmem:[%s5808 + $0x2c] sm:$0xf]
  %v5821 = vld [vmem:[%s5808 + $0x30] sm:$0xf]
  %v5822 = vld [vmem:[%s5808 + $0x34] sm:$0xf]
  %v5823 = vld [vmem:[%s5808 + $0x38] sm:$0xf]
  %v5824 = vld [vmem:[%s5808 + $0x3c] sm:$0xf]
  %v5825 = vld [vmem:[%s5808 + $0x40] sm:$0xf]
  %v5826 = vld [vmem:[%s5808 + $0x44] sm:$0xf]
  %v5827 = vld [vmem:[%s5808 + $0x48] sm:$0xf]
  %v5828 = vld [vmem:[%s5808 + $0x4c] sm:$0xf]
  %v5829 = vld [vmem:[%s5808 + $0x50] sm:$0xf]
  %v5830 = vld [vmem:[%s5808 + $0x54] sm:$0xf]
  %v5831 = vld [vmem:[%s5808 + $0x58] sm:$0xf]
  %v5832 = vld [vmem:[%s5808 + $0x5c] sm:$0xf]
  %v5833 = vld [vmem:[%s5808 + $0x60] sm:$0xf]
  %v5834 = vld [vmem:[%s5808 + $0x64] sm:$0xf]
  %v5835 = vld [vmem:[%s5808 + $0x68] sm:$0xf]
  %v5836 = vld [vmem:[%s5808 + $0x6c] sm:$0xf]
  %v5837 = vld [vmem:[%s5808 + $0x70] sm:$0xf]
  %v5838 = vld [vmem:[%s5808 + $0x74] sm:$0xf]
  %v5839 = vld [vmem:[%s5808 + $0x78] sm:$0xf]
  %v5840 = vld [vmem:[%s5808 + $0x7c] sm:$0xf]
  %v5841 = vld [vmem:[%s5808 + $0x80] sm:$0xf]
  %v5842 = vld [vmem:[%s5808 + $0x84] sm:$0xf]
  %v5843 = vld [vmem:[%s5808 + $0x88] sm:$0xf]
  %v5844 = vld [vmem:[%s5808 + $0x8c] sm:$0xf]
  %v5845 = vld [vmem:[%s5808 + $0x90] sm:$0xf]
  %v5846 = vld [vmem:[%s5808 + $0x94] sm:$0xf]
  %v5847 = vld [vmem:[%s5808 + $0x98] sm:$0xf]
  %v5848 = vld [vmem:[%s5808 + $0x9c] sm:$0xf]
  %v5849 = vld [vmem:[%s5808 + $0xa0] sm:$0xf]
  %v5850 = vld [vmem:[%s5808 + $0xa4] sm:$0xf]
  %v5851 = vld [vmem:[%s5808 + $0xa8] sm:$0xf]
  %v5852 = vld [vmem:[%s5808 + $0xac] sm:$0xf]
  %v5853 = vld [vmem:[%s5808 + $0xb0] sm:$0xf]
  %v5854 = vld [vmem:[%s5808 + $0xb4] sm:$0xf]
  %v5855 = vld [vmem:[%s5808 + $0xb8] sm:$0xf]
  %v5856 = vld [vmem:[%s5808 + $0xbc] sm:$0xf]
  %v5857 = vld [vmem:[%s5808 + $0xc0] sm:$0xf]
  %v5858 = vld [vmem:[%s5808 + $0xc4] sm:$0xf]
  %v5859 = vld [vmem:[%s5808 + $0xc8] sm:$0xf]
  %v5860 = vld [vmem:[%s5808 + $0xcc] sm:$0xf]
  %v5861 = vld [vmem:[%s5808 + $0xd0] sm:$0xf]
  %v5862 = vld [vmem:[%s5808 + $0xd4] sm:$0xf]
  %v5863 = vld [vmem:[%s5808 + $0xd8] sm:$0xf]
  %v5864 = vld [vmem:[%s5808 + $0xdc] sm:$0xf]
  %v5865 = vld [vmem:[%s5808 + $0xe0] sm:$0xf]
  %v5866 = vld [vmem:[%s5808 + $0xe4] sm:$0xf]
  %v5867 = vld [vmem:[%s5808 + $0xe8] sm:$0xf]
  %v5868 = vld [vmem:[%s5808 + $0xec] sm:$0xf]
  %v5869 = vld [vmem:[%s5808 + $0xf0] sm:$0xf]
  %v5870 = vld [vmem:[%s5808 + $0xf4] sm:$0xf]
  %v5871 = vld [vmem:[%s5808 + $0xf8] sm:$0xf]
  %v5872 = vld [vmem:[%s5808 + $0xfc] sm:$0xf]
  %v5873 = vunpack.c.l.b16 %v5683
  %v5874 = vunpack.c.h.b16 %v5683
  %v5875 = vunpack.c.l.b16 %v5687
  %v5876 = vunpack.c.h.b16 %v5687
  %v5877 = vunpack.c.l.b16 %v5691
  %v5878 = vunpack.c.h.b16 %v5691
  %v5879 = vunpack.c.l.b16 %v5695
  %v5880 = vunpack.c.h.b16 %v5695
  %v5881 = vunpack.c.l.b16 %v5699
  %v5882 = vunpack.c.h.b16 %v5699
  %v5883 = vunpack.c.l.b16 %v5703
  %v5884 = vunpack.c.h.b16 %v5703
  %v5885 = vunpack.c.l.b16 %v5707
  %v5886 = vunpack.c.h.b16 %v5707
  %v5887 = vunpack.c.l.b16 %v5711
  %v5888 = vunpack.c.h.b16 %v5711
  %v5889 = vunpack.c.l.b16 %v5715
  %v5890 = vunpack.c.h.b16 %v5715
  %v5891 = vunpack.c.l.b16 %v5719
  %v5892 = vunpack.c.h.b16 %v5719
  %v5893 = vunpack.c.l.b16 %v5723
  %v5894 = vunpack.c.h.b16 %v5723
  %v5895 = vunpack.c.l.b16 %v5727
  %v5896 = vunpack.c.h.b16 %v5727
  %v5897 = vunpack.c.l.b16 %v5731
  %v5898 = vunpack.c.h.b16 %v5731
  %v5899 = vunpack.c.l.b16 %v5735
  %v5900 = vunpack.c.h.b16 %v5735
  %v5901 = vunpack.c.l.b16 %v5739
  %v5902 = vunpack.c.h.b16 %v5739
  %v5903 = vunpack.c.l.b16 %v5743
  %v5904 = vunpack.c.h.b16 %v5743
  %v5905 = vunpack.c.l.b16 %v5747
  %v5906 = vunpack.c.h.b16 %v5747
  %v5907 = vunpack.c.l.b16 %v5751
  %v5908 = vunpack.c.h.b16 %v5751
  %v5909 = vunpack.c.l.b16 %v5755
  %v5910 = vunpack.c.h.b16 %v5755
  %v5911 = vunpack.c.l.b16 %v5759
  %v5912 = vunpack.c.h.b16 %v5759
  %v5913 = vunpack.c.l.b16 %v5763
  %v5914 = vunpack.c.h.b16 %v5763
  %v5915 = vunpack.c.l.b16 %v5767
  %v5916 = vunpack.c.h.b16 %v5767
  %v5917 = vunpack.c.l.b16 %v5771
  %v5918 = vunpack.c.h.b16 %v5771
  %v5919 = vunpack.c.l.b16 %v5775
  %v5920 = vunpack.c.h.b16 %v5775
  %v5921 = vunpack.c.l.b16 %v5779
  %v5922 = vunpack.c.h.b16 %v5779
  %v5923 = vunpack.c.l.b16 %v5783
  %v5924 = vunpack.c.h.b16 %v5783
  %v5925 = vunpack.c.l.b16 %v5787
  %v5926 = vunpack.c.h.b16 %v5787
  %v5927 = vunpack.c.l.b16 %v5791
  %v5928 = vunpack.c.h.b16 %v5791
  %v5929 = vunpack.c.l.b16 %v5795
  %v5930 = vunpack.c.h.b16 %v5795
  %v5931 = vunpack.c.l.b16 %v5799
  %v5932 = vunpack.c.h.b16 %v5799
  %v5933 = vunpack.c.l.b16 %v5803
  %v5934 = vunpack.c.h.b16 %v5803
  %v5935 = vunpack.c.l.b16 %v5807
  %v5936 = vunpack.c.h.b16 %v5807
  %v5937 = vpack.c.b16 %v5877, %v5873
  %v5938 = vpack.c.b16 %v5878, %v5874
  %v5939 = vpack.c.b16 %v5879, %v5875
  %v5940 = vpack.c.b16 %v5880, %v5876
  %v5941 = vpack.c.b16 %v5885, %v5881
  %v5942 = vpack.c.b16 %v5886, %v5882
  %v5943 = vpack.c.b16 %v5887, %v5883
  %v5944 = vpack.c.b16 %v5888, %v5884
  %v5945 = vpack.c.b16 %v5893, %v5889
  %v5946 = vpack.c.b16 %v5894, %v5890
  %v5947 = vpack.c.b16 %v5895, %v5891
  %v5948 = vpack.c.b16 %v5896, %v5892
  %v5949 = vpack.c.b16 %v5901, %v5897
  %v5950 = vpack.c.b16 %v5902, %v5898
  %v5951 = vpack.c.b16 %v5903, %v5899
  %v5952 = vpack.c.b16 %v5904, %v5900
  %v5953 = vpack.c.b16 %v5909, %v5905
  %v5954 = vpack.c.b16 %v5910, %v5906
  %v5955 = vpack.c.b16 %v5911, %v5907
  %v5956 = vpack.c.b16 %v5912, %v5908
  %v5957 = vpack.c.b16 %v5917, %v5913
  %v5958 = vpack.c.b16 %v5918, %v5914
  %v5959 = vpack.c.b16 %v5919, %v5915
  %v5960 = vpack.c.b16 %v5920, %v5916
  %v5961 = vpack.c.b16 %v5925, %v5921
  %v5962 = vpack.c.b16 %v5926, %v5922
  %v5963 = vpack.c.b16 %v5927, %v5923
  %v5964 = vpack.c.b16 %v5928, %v5924
  %v5965 = vpack.c.b16 %v5933, %v5929
  %v5966 = vpack.c.b16 %v5934, %v5930
  %v5967 = vpack.c.b16 %v5935, %v5931
  %v5968 = vpack.c.b16 %v5936, %v5932
  %v6065 = vunpack.c.l.b16 %v5809
  %v6066 = vunpack.c.l.b16 %v5810
  %v6067 = vunpack.c.l.b16 %v5811
  %v6068 = vunpack.c.l.b16 %v5812
  %v6069 = vunpack.c.l.b16 %v5813
  %v6070 = vunpack.c.l.b16 %v5814
  %v6071 = vunpack.c.l.b16 %v5815
  %v6072 = vunpack.c.l.b16 %v5816
  %v6073 = vunpack.c.l.b16 %v5817
  %v6074 = vunpack.c.l.b16 %v5818
  %v6075 = vunpack.c.l.b16 %v5819
  %v6076 = vunpack.c.l.b16 %v5820
  %v6077 = vunpack.c.l.b16 %v5821
  %v6078 = vunpack.c.l.b16 %v5822
  %v6079 = vunpack.c.l.b16 %v5823
  %v6080 = vunpack.c.l.b16 %v5824
  %v6081 = vunpack.c.l.b16 %v5825
  %v6082 = vunpack.c.l.b16 %v5826
  %v6083 = vunpack.c.l.b16 %v5827
  %v6084 = vunpack.c.l.b16 %v5828
  %v6085 = vunpack.c.l.b16 %v5829
  %v6086 = vunpack.c.l.b16 %v5830
  %v6087 = vunpack.c.l.b16 %v5831
  %v6088 = vunpack.c.l.b16 %v5832
  %v6089 = vunpack.c.l.b16 %v5833
  %v6090 = vunpack.c.l.b16 %v5834
  %v6091 = vunpack.c.l.b16 %v5835
  %v6092 = vunpack.c.l.b16 %v5836
  %v6093 = vunpack.c.l.b16 %v5837
  %v6094 = vunpack.c.l.b16 %v5838
  %v6095 = vunpack.c.l.b16 %v5839
  %v6096 = vunpack.c.l.b16 %v5840
  %v6097 = vunpack.c.l.b16 %v5841
  %v6098 = vunpack.c.l.b16 %v5842
  %v6099 = vunpack.c.l.b16 %v5843
  %v6100 = vunpack.c.l.b16 %v5844
  %v6101 = vunpack.c.l.b16 %v5845
  %v6102 = vunpack.c.l.b16 %v5846
  %v6103 = vunpack.c.l.b16 %v5847
  %v6104 = vunpack.c.l.b16 %v5848
  %v6105 = vunpack.c.l.b16 %v5849
  %v6106 = vunpack.c.l.b16 %v5850
  %v6107 = vunpack.c.l.b16 %v5851
  %v6108 = vunpack.c.l.b16 %v5852
  %v6109 = vunpack.c.l.b16 %v5853
  %v6110 = vunpack.c.l.b16 %v5854
  %v6111 = vunpack.c.l.b16 %v5855
  %v6112 = vunpack.c.l.b16 %v5856
  %v6113 = vunpack.c.l.b16 %v5857
  %v6114 = vunpack.c.l.b16 %v5858
  %v6115 = vunpack.c.l.b16 %v5859
  %v6116 = vunpack.c.l.b16 %v5860
  %v6117 = vunpack.c.l.b16 %v5861
  %v6118 = vunpack.c.l.b16 %v5862
  %v6119 = vunpack.c.l.b16 %v5863
  %v6120 = vunpack.c.l.b16 %v5864
  %v6121 = vunpack.c.l.b16 %v5865
  %v6122 = vunpack.c.l.b16 %v5866
  %v6123 = vunpack.c.l.b16 %v5867
  %v6124 = vunpack.c.l.b16 %v5868
  %v6125 = vunpack.c.l.b16 %v5869
  %v6126 = vunpack.c.l.b16 %v5870
  %v6127 = vunpack.c.l.b16 %v5871
  %v6128 = vunpack.c.l.b16 %v5872
  %v6129 = vpack.c.b16 %v6066, %v6065
  %v6130 = vpack.c.b16 %v6068, %v6067
  %v6131 = vpack.c.b16 %v6070, %v6069
  %v6132 = vpack.c.b16 %v6072, %v6071
  %v6133 = vpack.c.b16 %v6074, %v6073
  %v6134 = vpack.c.b16 %v6076, %v6075
  %v6135 = vpack.c.b16 %v6078, %v6077
  %v6136 = vpack.c.b16 %v6080, %v6079
  %v6137 = vpack.c.b16 %v6082, %v6081
  %v6138 = vpack.c.b16 %v6084, %v6083
  %v6139 = vpack.c.b16 %v6086, %v6085
  %v6140 = vpack.c.b16 %v6088, %v6087
  %v6141 = vpack.c.b16 %v6090, %v6089
  %v6142 = vpack.c.b16 %v6092, %v6091
  %v6143 = vpack.c.b16 %v6094, %v6093
  %v6144 = vpack.c.b16 %v6096, %v6095
  %v6145 = vpack.c.b16 %v6098, %v6097
  %v6146 = vpack.c.b16 %v6100, %v6099
  %v6147 = vpack.c.b16 %v6102, %v6101
  %v6148 = vpack.c.b16 %v6104, %v6103
  %v6149 = vpack.c.b16 %v6106, %v6105
  %v6150 = vpack.c.b16 %v6108, %v6107
  %v6151 = vpack.c.b16 %v6110, %v6109
  %v6152 = vpack.c.b16 %v6112, %v6111
  %v6153 = vpack.c.b16 %v6114, %v6113
  %v6154 = vpack.c.b16 %v6116, %v6115
  %v6155 = vpack.c.b16 %v6118, %v6117
  %v6156 = vpack.c.b16 %v6120, %v6119
  %v6157 = vpack.c.b16 %v6122, %v6121
  %v6158 = vpack.c.b16 %v6124, %v6123
  %v6159 = vpack.c.b16 %v6126, %v6125
  %v6160 = vpack.c.b16 %v6128, %v6127
  %6193 = vmatpush.bf16.msra.mxu0 %v6136
  %6194 = vmatpush.bf16.msra.mxu0 %v6135
  %6195 = vmatpush.bf16.msra.mxu0 %v6134
  %6196 = vmatpush.bf16.msra.mxu0 %v6133
  %6197 = vmatpush.bf16.msra.mxu0 %v6132
  %6198 = vmatpush.bf16.msra.mxu0 %v6131
  %6199 = vmatpush.bf16.msra.mxu0 %v6130
  %6200 = vmatpush.bf16.msra.mxu0 %v6129
  %6201 = vmatmul.bf16.gmra.mxu0 %v5937
  %v6202 = vpop.f32.mrf.mxu0
  %v6203 = vadd.f32 0.0, %v6202
  %v6204 = vpop.f32.mrf.mxu0
  %v6205 = vadd.f32 0.0, %v6204
  %6206 = vmatmul.bf16.gmra.mxu0 %v5941
  %v6207 = vpop.f32.mrf.mxu0
  %v6208 = vadd.f32 0.0, %v6207
  %v6209 = vpop.f32.mrf.mxu0
  %v6210 = vadd.f32 0.0, %v6209
  %6211 = vmatmul.bf16.gmra.mxu0 %v5945
  %v6212 = vpop.f32.mrf.mxu0
  %v6213 = vadd.f32 0.0, %v6212
  %v6214 = vpop.f32.mrf.mxu0
  %v6215 = vadd.f32 0.0, %v6214
  %6216 = vmatmul.bf16.gmra.mxu0 %v5949
  %v6217 = vpop.f32.mrf.mxu0
  %v6218 = vadd.f32 0.0, %v6217
  %v6219 = vpop.f32.mrf.mxu0
  %v6220 = vadd.f32 0.0, %v6219
  %6221 = vmatmul.bf16.gmra.mxu0 %v5953
  %v6222 = vpop.f32.mrf.mxu0
  %v6223 = vadd.f32 0.0, %v6222
  %v6224 = vpop.f32.mrf.mxu0
  %v6225 = vadd.f32 0.0, %v6224
  %6226 = vmatmul.bf16.gmra.mxu0 %v5957
  %v6227 = vpop.f32.mrf.mxu0
  %v6228 = vadd.f32 0.0, %v6227
  %v6229 = vpop.f32.mrf.mxu0
  %v6230 = vadd.f32 0.0, %v6229
  %6231 = vmatmul.bf16.gmra.mxu0 %v5961
  %v6232 = vpop.f32.mrf.mxu0
  %v6233 = vadd.f32 0.0, %v6232
  %v6234 = vpop.f32.mrf.mxu0
  %v6235 = vadd.f32 0.0, %v6234
  %6236 = vmatmul.bf16.gmra.mxu0 %v5965
  %v6237 = vpop.f32.mrf.mxu0
  %v6238 = vadd.f32 0.0, %v6237
  %v6239 = vpop.f32.mrf.mxu0
  %v6240 = vadd.f32 0.0, %v6239
  %6241 = vdwg.mxu0
  %6242 = vmatpush.bf16.msra.mxu0 %v6144
  %6243 = vmatpush.bf16.msra.mxu0 %v6143
  %6244 = vmatpush.bf16.msra.mxu0 %v6142
  %6245 = vmatpush.bf16.msra.mxu0 %v6141
  %6246 = vmatpush.bf16.msra.mxu0 %v6140
  %6247 = vmatpush.bf16.msra.mxu0 %v6139
  %6248 = vmatpush.bf16.msra.mxu0 %v6138
  %6249 = vmatpush.bf16.msra.mxu0 %v6137
  %6250 = vmatmul.bf16.gmra.mxu0 %v5938
  %v6251 = vpop.f32.mrf.mxu0
  %v6252 = vadd.f32 %v6203, %v6251
  %v6253 = vpop.f32.mrf.mxu0
  %v6254 = vadd.f32 %v6205, %v6253
  %6255 = vmatmul.bf16.gmra.mxu0 %v5942
  %v6256 = vpop.f32.mrf.mxu0
  %v6257 = vadd.f32 %v6208, %v6256
  %v6258 = vpop.f32.mrf.mxu0
  %v6259 = vadd.f32 %v6210, %v6258
  %6260 = vmatmul.bf16.gmra.mxu0 %v5946
  %v6261 = vpop.f32.mrf.mxu0
  %v6262 = vadd.f32 %v6213, %v6261
  %v6263 = vpop.f32.mrf.mxu0
  %v6264 = vadd.f32 %v6215, %v6263
  %6265 = vmatmul.bf16.gmra.mxu0 %v5950
  %v6266 = vpop.f32.mrf.mxu0
  %v6267 = vadd.f32 %v6218, %v6266
  %v6268 = vpop.f32.mrf.mxu0
  %v6269 = vadd.f32 %v6220, %v6268
  %6270 = vmatmul.bf16.gmra.mxu0 %v5954
  %v6271 = vpop.f32.mrf.mxu0
  %v6272 = vadd.f32 %v6223, %v6271
  %v6273 = vpop.f32.mrf.mxu0
  %v6274 = vadd.f32 %v6225, %v6273
  %6275 = vmatmul.bf16.gmra.mxu0 %v5958
  %v6276 = vpop.f32.mrf.mxu0
  %v6277 = vadd.f32 %v6228, %v6276
  %v6278 = vpop.f32.mrf.mxu0
  %v6279 = vadd.f32 %v6230, %v6278
  %6280 = vmatmul.bf16.gmra.mxu0 %v5962
  %v6281 = vpop.f32.mrf.mxu0
  %v6282 = vadd.f32 %v6233, %v6281
  %v6283 = vpop.f32.mrf.mxu0
  %v6284 = vadd.f32 %v6235, %v6283
  %6285 = vmatmul.bf16.gmra.mxu0 %v5966
  %v6286 = vpop.f32.mrf.mxu0
  %v6287 = vadd.f32 %v6238, %v6286
  %v6288 = vpop.f32.mrf.mxu0
  %v6289 = vadd.f32 %v6240, %v6288
  %6290 = vdwg.mxu0
  %6291 = vmatpush.bf16.msra.mxu0 %v6152
  %6292 = vmatpush.bf16.msra.mxu0 %v6151
  %6293 = vmatpush.bf16.msra.mxu0 %v6150
  %6294 = vmatpush.bf16.msra.mxu0 %v6149
  %6295 = vmatpush.bf16.msra.mxu0 %v6148
  %6296 = vmatpush.bf16.msra.mxu0 %v6147
  %6297 = vmatpush.bf16.msra.mxu0 %v6146
  %6298 = vmatpush.bf16.msra.mxu0 %v6145
  %6299 = vmatmul.bf16.gmra.mxu0 %v5939
  %v6300 = vpop.f32.mrf.mxu0
  %v6301 = vadd.f32 %v6252, %v6300
  %v6302 = vpop.f32.mrf.mxu0
  %v6303 = vadd.f32 %v6254, %v6302
  %6304 = vmatmul.bf16.gmra.mxu0 %v5943
  %v6305 = vpop.f32.mrf.mxu0
  %v6306 = vadd.f32 %v6257, %v6305
  %v6307 = vpop.f32.mrf.mxu0
  %v6308 = vadd.f32 %v6259, %v6307
  %6309 = vmatmul.bf16.gmra.mxu0 %v5947
  %v6310 = vpop.f32.mrf.mxu0
  %v6311 = vadd.f32 %v6262, %v6310
  %v6312 = vpop.f32.mrf.mxu0
  %v6313 = vadd.f32 %v6264, %v6312
  %6314 = vmatmul.bf16.gmra.mxu0 %v5951
  %v6315 = vpop.f32.mrf.mxu0
  %v6316 = vadd.f32 %v6267, %v6315
  %v6317 = vpop.f32.mrf.mxu0
  %v6318 = vadd.f32 %v6269, %v6317
  %6319 = vmatmul.bf16.gmra.mxu0 %v5955
  %v6320 = vpop.f32.mrf.mxu0
  %v6321 = vadd.f32 %v6272, %v6320
  %v6322 = vpop.f32.mrf.mxu0
  %v6323 = vadd.f32 %v6274, %v6322
  %6324 = vmatmul.bf16.gmra.mxu0 %v5959
  %v6325 = vpop.f32.mrf.mxu0
  %v6326 = vadd.f32 %v6277, %v6325
  %v6327 = vpop.f32.mrf.mxu0
  %v6328 = vadd.f32 %v6279, %v6327
  %6329 = vmatmul.bf16.gmra.mxu0 %v5963
  %v6330 = vpop.f32.mrf.mxu0
  %v6331 = vadd.f32 %v6282, %v6330
  %v6332 = vpop.f32.mrf.mxu0
  %v6333 = vadd.f32 %v6284, %v6332
  %6334 = vmatmul.bf16.gmra.mxu0 %v5967
  %v6335 = vpop.f32.mrf.mxu0
  %v6336 = vadd.f32 %v6287, %v6335
  %v6337 = vpop.f32.mrf.mxu0
  %v6338 = vadd.f32 %v6289, %v6337
  %6339 = vdwg.mxu0
  %6340 = vmatpush.bf16.msra.mxu0 %v6160
  %6341 = vmatpush.bf16.msra.mxu0 %v6159
  %6342 = vmatpush.bf16.msra.mxu0 %v6158
  %6343 = vmatpush.bf16.msra.mxu0 %v6157
  %6344 = vmatpush.bf16.msra.mxu0 %v6156
  %6345 = vmatpush.bf16.msra.mxu0 %v6155
  %6346 = vmatpush.bf16.msra.mxu0 %v6154
  %6347 = vmatpush.bf16.msra.mxu0 %v6153
  %6348 = vmatmul.bf16.gmra.mxu0 %v5940
  %v6349 = vpop.f32.mrf.mxu0
  %v6350 = vadd.f32 %v6301, %v6349
  %v6351 = vpop.f32.mrf.mxu0
  %v6352 = vadd.f32 %v6303, %v6351
  %6353 = vmatmul.bf16.gmra.mxu0 %v5944
  %v6354 = vpop.f32.mrf.mxu0
  %v6355 = vadd.f32 %v6306, %v6354
  %v6356 = vpop.f32.mrf.mxu0
  %v6357 = vadd.f32 %v6308, %v6356
  %6358 = vmatmul.bf16.gmra.mxu0 %v5948
  %v6359 = vpop.f32.mrf.mxu0
  %v6360 = vadd.f32 %v6311, %v6359
  %v6361 = vpop.f32.mrf.mxu0
  %v6362 = vadd.f32 %v6313, %v6361
  %6363 = vmatmul.bf16.gmra.mxu0 %v5952
  %v6364 = vpop.f32.mrf.mxu0
  %v6365 = vadd.f32 %v6316, %v6364
  %v6366 = vpop.f32.mrf.mxu0
  %v6367 = vadd.f32 %v6318, %v6366
  %6368 = vmatmul.bf16.gmra.mxu0 %v5956
  %v6369 = vpop.f32.mrf.mxu0
  %v6370 = vadd.f32 %v6321, %v6369
  %v6371 = vpop.f32.mrf.mxu0
  %v6372 = vadd.f32 %v6323, %v6371
  %6373 = vmatmul.bf16.gmra.mxu0 %v5960
  %v6374 = vpop.f32.mrf.mxu0
  %v6375 = vadd.f32 %v6326, %v6374
  %v6376 = vpop.f32.mrf.mxu0
  %v6377 = vadd.f32 %v6328, %v6376
  %6378 = vmatmul.bf16.gmra.mxu0 %v5964
  %v6379 = vpop.f32.mrf.mxu0
  %v6380 = vadd.f32 %v6331, %v6379
  %v6381 = vpop.f32.mrf.mxu0
  %v6382 = vadd.f32 %v6333, %v6381
  %6383 = vmatmul.bf16.gmra.mxu0 %v5968
  %v6384 = vpop.f32.mrf.mxu0
  %v6385 = vadd.f32 %v6336, %v6384
  %v6386 = vpop.f32.mrf.mxu0
  %v6387 = vadd.f32 %v6338, %v6386
  %6388 = vdwg.mxu0
  %v6389 = vadd.f32 %v5606, %v6350
  %v6390 = vadd.f32 %v5608, %v6352
  %v6391 = vadd.f32 %v5611, %v6355
  %v6392 = vadd.f32 %v5613, %v6357
  %v6393 = vadd.f32 %v5616, %v6360
  %v6394 = vadd.f32 %v5618, %v6362
  %v6395 = vadd.f32 %v5621, %v6365
  %v6396 = vadd.f32 %v5623, %v6367
  %v6397 = vadd.f32 %v5626, %v6370
  %v6398 = vadd.f32 %v5628, %v6372
  %v6399 = vadd.f32 %v5631, %v6375
  %v6400 = vadd.f32 %v5633, %v6377
  %v6401 = vadd.f32 %v5636, %v6380
  %v6402 = vadd.f32 %v5638, %v6382
  %v6403 = vadd.f32 %v5641, %v6385
  %v6404 = vadd.f32 %v5643, %v6387
  %s6405 = scalar_lea.vmem %s8, 768
  %v6406 = vld [vmem:[%s6405] sm:$0xf]
  %v6407 = vld [vmem:[%s6405 + $0x4] sm:$0xf]
  %v6408 = vld [vmem:[%s6405 + $0x8] sm:$0xf]
  %v6409 = vld [vmem:[%s6405 + $0xc] sm:$0xf]
  %v6410 = vld [vmem:[%s6405 + $0x10] sm:$0xf]
  %v6411 = vld [vmem:[%s6405 + $0x14] sm:$0xf]
  %v6412 = vld [vmem:[%s6405 + $0x18] sm:$0xf]
  %v6413 = vld [vmem:[%s6405 + $0x1c] sm:$0xf]
  %v6414 = vld [vmem:[%s6405 + $0x20] sm:$0xf]
  %v6415 = vld [vmem:[%s6405 + $0x24] sm:$0xf]
  %v6416 = vld [vmem:[%s6405 + $0x28] sm:$0xf]
  %v6417 = vld [vmem:[%s6405 + $0x2c] sm:$0xf]
  %v6418 = vld [vmem:[%s6405 + $0x30] sm:$0xf]
  %v6419 = vld [vmem:[%s6405 + $0x34] sm:$0xf]
  %v6420 = vld [vmem:[%s6405 + $0x38] sm:$0xf]
  %v6421 = vld [vmem:[%s6405 + $0x3c] sm:$0xf]
  %v6422 = vld [vmem:[%s6405 + $0x40] sm:$0xf]
  %v6423 = vld [vmem:[%s6405 + $0x44] sm:$0xf]
  %v6424 = vld [vmem:[%s6405 + $0x48] sm:$0xf]
  %v6425 = vld [vmem:[%s6405 + $0x4c] sm:$0xf]
  %v6426 = vld [vmem:[%s6405 + $0x50] sm:$0xf]
  %v6427 = vld [vmem:[%s6405 + $0x54] sm:$0xf]
  %v6428 = vld [vmem:[%s6405 + $0x58] sm:$0xf]
  %v6429 = vld [vmem:[%s6405 + $0x5c] sm:$0xf]
  %v6430 = vld [vmem:[%s6405 + $0x60] sm:$0xf]
  %v6431 = vld [vmem:[%s6405 + $0x64] sm:$0xf]
  %v6432 = vld [vmem:[%s6405 + $0x68] sm:$0xf]
  %v6433 = vld [vmem:[%s6405 + $0x6c] sm:$0xf]
  %v6434 = vld [vmem:[%s6405 + $0x70] sm:$0xf]
  %v6435 = vld [vmem:[%s6405 + $0x74] sm:$0xf]
  %v6436 = vld [vmem:[%s6405 + $0x78] sm:$0xf]
  %v6437 = vld [vmem:[%s6405 + $0x7c] sm:$0xf]
  %v6438 = vld [vmem:[%s6405 + $0x80] sm:$0xf]
  %v6439 = vld [vmem:[%s6405 + $0x84] sm:$0xf]
  %v6440 = vld [vmem:[%s6405 + $0x88] sm:$0xf]
  %v6441 = vld [vmem:[%s6405 + $0x8c] sm:$0xf]
  %v6442 = vld [vmem:[%s6405 + $0x90] sm:$0xf]
  %v6443 = vld [vmem:[%s6405 + $0x94] sm:$0xf]
  %v6444 = vld [vmem:[%s6405 + $0x98] sm:$0xf]
  %v6445 = vld [vmem:[%s6405 + $0x9c] sm:$0xf]
  %v6446 = vld [vmem:[%s6405 + $0xa0] sm:$0xf]
  %v6447 = vld [vmem:[%s6405 + $0xa4] sm:$0xf]
  %v6448 = vld [vmem:[%s6405 + $0xa8] sm:$0xf]
  %v6449 = vld [vmem:[%s6405 + $0xac] sm:$0xf]
  %v6450 = vld [vmem:[%s6405 + $0xb0] sm:$0xf]
  %v6451 = vld [vmem:[%s6405 + $0xb4] sm:$0xf]
  %v6452 = vld [vmem:[%s6405 + $0xb8] sm:$0xf]
  %v6453 = vld [vmem:[%s6405 + $0xbc] sm:$0xf]
  %v6454 = vld [vmem:[%s6405 + $0xc0] sm:$0xf]
  %v6455 = vld [vmem:[%s6405 + $0xc4] sm:$0xf]
  %v6456 = vld [vmem:[%s6405 + $0xc8] sm:$0xf]
  %v6457 = vld [vmem:[%s6405 + $0xcc] sm:$0xf]
  %v6458 = vld [vmem:[%s6405 + $0xd0] sm:$0xf]
  %v6459 = vld [vmem:[%s6405 + $0xd4] sm:$0xf]
  %v6460 = vld [vmem:[%s6405 + $0xd8] sm:$0xf]
  %v6461 = vld [vmem:[%s6405 + $0xdc] sm:$0xf]
  %v6462 = vld [vmem:[%s6405 + $0xe0] sm:$0xf]
  %v6463 = vld [vmem:[%s6405 + $0xe4] sm:$0xf]
  %v6464 = vld [vmem:[%s6405 + $0xe8] sm:$0xf]
  %v6465 = vld [vmem:[%s6405 + $0xec] sm:$0xf]
  %v6466 = vld [vmem:[%s6405 + $0xf0] sm:$0xf]
  %v6467 = vld [vmem:[%s6405 + $0xf4] sm:$0xf]
  %v6468 = vld [vmem:[%s6405 + $0xf8] sm:$0xf]
  %v6469 = vld [vmem:[%s6405 + $0xfc] sm:$0xf]
  %v6474 = vunpack.c.l.b16 %v3953
  %v6475 = vunpack.c.h.b16 %v3953
  %v6476 = vunpack.c.l.b16 %v3954
  %v6477 = vunpack.c.h.b16 %v3954
  %v6478 = vunpack.c.l.b16 %v3993
  %v6479 = vunpack.c.h.b16 %v3993
  %v6480 = vunpack.c.l.b16 %v3994
  %v6481 = vunpack.c.h.b16 %v3994
  %v6482 = vpack.c.b16 %v5137, %v5133
  %v6483 = vpack.c.b16 %v5138, %v5134
  %v6484 = vpack.c.b16 %v5139, %v5135
  %v6485 = vpack.c.b16 %v5140, %v5136
  %v6486 = vpack.c.b16 %v5145, %v5141
  %v6487 = vpack.c.b16 %v5146, %v5142
  %v6488 = vpack.c.b16 %v5147, %v5143
  %v6489 = vpack.c.b16 %v5148, %v5144
  %v6490 = vpack.c.b16 %v5153, %v5149
  %v6491 = vpack.c.b16 %v5154, %v5150
  %v6492 = vpack.c.b16 %v5155, %v5151
  %v6493 = vpack.c.b16 %v5156, %v5152
  %v6494 = vpack.c.b16 %v6474, %v5157
  %v6495 = vpack.c.b16 %v6475, %v5158
  %v6496 = vpack.c.b16 %v6476, %v5159
  %v6497 = vpack.c.b16 %v6477, %v5160
  %v6498 = vpack.c.b16 %v5169, %v5165
  %v6499 = vpack.c.b16 %v5170, %v5166
  %v6500 = vpack.c.b16 %v5171, %v5167
  %v6501 = vpack.c.b16 %v5172, %v5168
  %v6502 = vpack.c.b16 %v5177, %v5173
  %v6503 = vpack.c.b16 %v5178, %v5174
  %v6504 = vpack.c.b16 %v5179, %v5175
  %v6505 = vpack.c.b16 %v5180, %v5176
  %v6506 = vpack.c.b16 %v5185, %v5181
  %v6507 = vpack.c.b16 %v5186, %v5182
  %v6508 = vpack.c.b16 %v5187, %v5183
  %v6509 = vpack.c.b16 %v5188, %v5184
  %v6510 = vpack.c.b16 %v6478, %v5189
  %v6511 = vpack.c.b16 %v6479, %v5190
  %v6512 = vpack.c.b16 %v6480, %v5191
  %v6513 = vpack.c.b16 %v6481, %v5192
  %v6610 = vunpack.c.l.b16 %v6406
  %v6611 = vunpack.c.l.b16 %v6407
  %v6612 = vunpack.c.l.b16 %v6408
  %v6613 = vunpack.c.l.b16 %v6409
  %v6614 = vunpack.c.l.b16 %v6410
  %v6615 = vunpack.c.l.b16 %v6411
  %v6616 = vunpack.c.l.b16 %v6412
  %v6617 = vunpack.c.l.b16 %v6413
  %v6618 = vunpack.c.l.b16 %v6414
  %v6619 = vunpack.c.l.b16 %v6415
  %v6620 = vunpack.c.l.b16 %v6416
  %v6621 = vunpack.c.l.b16 %v6417
  %v6622 = vunpack.c.l.b16 %v6418
  %v6623 = vunpack.c.l.b16 %v6419
  %v6624 = vunpack.c.l.b16 %v6420
  %v6625 = vunpack.c.l.b16 %v6421
  %v6626 = vunpack.c.l.b16 %v6422
  %v6627 = vunpack.c.l.b16 %v6423
  %v6628 = vunpack.c.l.b16 %v6424
  %v6629 = vunpack.c.l.b16 %v6425
  %v6630 = vunpack.c.l.b16 %v6426
  %v6631 = vunpack.c.l.b16 %v6427
  %v6632 = vunpack.c.l.b16 %v6428
  %v6633 = vunpack.c.l.b16 %v6429
  %v6634 = vunpack.c.l.b16 %v6430
  %v6635 = vunpack.c.l.b16 %v6431
  %v6636 = vunpack.c.l.b16 %v6432
  %v6637 = vunpack.c.l.b16 %v6433
  %v6638 = vunpack.c.l.b16 %v6434
  %v6639 = vunpack.c.l.b16 %v6435
  %v6640 = vunpack.c.l.b16 %v6436
  %v6641 = vunpack.c.l.b16 %v6437
  %v6642 = vunpack.c.l.b16 %v6438
  %v6643 = vunpack.c.l.b16 %v6439
  %v6644 = vunpack.c.l.b16 %v6440
  %v6645 = vunpack.c.l.b16 %v6441
  %v6646 = vunpack.c.l.b16 %v6442
  %v6647 = vunpack.c.l.b16 %v6443
  %v6648 = vunpack.c.l.b16 %v6444
  %v6649 = vunpack.c.l.b16 %v6445
  %v6650 = vunpack.c.l.b16 %v6446
  %v6651 = vunpack.c.l.b16 %v6447
  %v6652 = vunpack.c.l.b16 %v6448
  %v6653 = vunpack.c.l.b16 %v6449
  %v6654 = vunpack.c.l.b16 %v6450
  %v6655 = vunpack.c.l.b16 %v6451
  %v6656 = vunpack.c.l.b16 %v6452
  %v6657 = vunpack.c.l.b16 %v6453
  %v6658 = vunpack.c.l.b16 %v6454
  %v6659 = vunpack.c.l.b16 %v6455
  %v6660 = vunpack.c.l.b16 %v6456
  %v6661 = vunpack.c.l.b16 %v6457
  %v6662 = vunpack.c.l.b16 %v6458
  %v6663 = vunpack.c.l.b16 %v6459
  %v6664 = vunpack.c.l.b16 %v6460
  %v6665 = vunpack.c.l.b16 %v6461
  %v6666 = vunpack.c.l.b16 %v6462
  %v6667 = vunpack.c.l.b16 %v6463
  %v6668 = vunpack.c.l.b16 %v6464
  %v6669 = vunpack.c.l.b16 %v6465
  %v6670 = vunpack.c.l.b16 %v6466
  %v6671 = vunpack.c.l.b16 %v6467
  %v6672 = vunpack.c.l.b16 %v6468
  %v6673 = vunpack.c.l.b16 %v6469
  %v6674 = vpack.c.b16 %v6611, %v6610
  %v6675 = vpack.c.b16 %v6613, %v6612
  %v6676 = vpack.c.b16 %v6615, %v6614
  %v6677 = vpack.c.b16 %v6617, %v6616
  %v6678 = vpack.c.b16 %v6619, %v6618
  %v6679 = vpack.c.b16 %v6621, %v6620
  %v6680 = vpack.c.b16 %v6623, %v6622
  %v6681 = vpack.c.b16 %v6625, %v6624
  %v6682 = vpack.c.b16 %v6627, %v6626
  %v6683 = vpack.c.b16 %v6629, %v6628
  %v6684 = vpack.c.b16 %v6631, %v6630
  %v6685 = vpack.c.b16 %v6633, %v6632
  %v6686 = vpack.c.b16 %v6635, %v6634
  %v6687 = vpack.c.b16 %v6637, %v6636
  %v6688 = vpack.c.b16 %v6639, %v6638
  %v6689 = vpack.c.b16 %v6641, %v6640
  %v6690 = vpack.c.b16 %v6643, %v6642
  %v6691 = vpack.c.b16 %v6645, %v6644
  %v6692 = vpack.c.b16 %v6647, %v6646
  %v6693 = vpack.c.b16 %v6649, %v6648
  %v6694 = vpack.c.b16 %v6651, %v6650
  %v6695 = vpack.c.b16 %v6653, %v6652
  %v6696 = vpack.c.b16 %v6655, %v6654
  %v6697 = vpack.c.b16 %v6657, %v6656
  %v6698 = vpack.c.b16 %v6659, %v6658
  %v6699 = vpack.c.b16 %v6661, %v6660
  %v6700 = vpack.c.b16 %v6663, %v6662
  %v6701 = vpack.c.b16 %v6665, %v6664
  %v6702 = vpack.c.b16 %v6667, %v6666
  %v6703 = vpack.c.b16 %v6669, %v6668
  %v6704 = vpack.c.b16 %v6671, %v6670
  %v6705 = vpack.c.b16 %v6673, %v6672
  %6738 = vmatpush.bf16.msra.mxu0 %v6681
  %6739 = vmatpush.bf16.msra.mxu0 %v6680
  %6740 = vmatpush.bf16.msra.mxu0 %v6679
  %6741 = vmatpush.bf16.msra.mxu0 %v6678
  %6742 = vmatpush.bf16.msra.mxu0 %v6677
  %6743 = vmatpush.bf16.msra.mxu0 %v6676
  %6744 = vmatpush.bf16.msra.mxu0 %v6675
  %6745 = vmatpush.bf16.msra.mxu0 %v6674
  %6746 = vmatmul.bf16.gmra.mxu0 %v6482
  %v6747 = vpop.f32.mrf.mxu0
  %v6748 = vadd.f32 0.0, %v6747
  %v6749 = vpop.f32.mrf.mxu0
  %v6750 = vadd.f32 0.0, %v6749
  %6751 = vmatmul.bf16.gmra.mxu0 %v6486
  %v6752 = vpop.f32.mrf.mxu0
  %v6753 = vadd.f32 0.0, %v6752
  %v6754 = vpop.f32.mrf.mxu0
  %v6755 = vadd.f32 0.0, %v6754
  %6756 = vmatmul.bf16.gmra.mxu0 %v6490
  %v6757 = vpop.f32.mrf.mxu0
  %v6758 = vadd.f32 0.0, %v6757
  %v6759 = vpop.f32.mrf.mxu0
  %v6760 = vadd.f32 0.0, %v6759
  %6761 = vmatmul.bf16.gmra.mxu0 %v6494
  %v6762 = vpop.f32.mrf.mxu0
  %v6763 = vadd.f32 0.0, %v6762
  %v6764 = vpop.f32.mrf.mxu0
  %v6765 = vadd.f32 0.0, %v6764
  %6766 = vmatmul.bf16.gmra.mxu0 %v6498
  %v6767 = vpop.f32.mrf.mxu0
  %v6768 = vadd.f32 0.0, %v6767
  %v6769 = vpop.f32.mrf.mxu0
  %v6770 = vadd.f32 0.0, %v6769
  %6771 = vmatmul.bf16.gmra.mxu0 %v6502
  %v6772 = vpop.f32.mrf.mxu0
  %v6773 = vadd.f32 0.0, %v6772
  %v6774 = vpop.f32.mrf.mxu0
  %v6775 = vadd.f32 0.0, %v6774
  %6776 = vmatmul.bf16.gmra.mxu0 %v6506
  %v6777 = vpop.f32.mrf.mxu0
  %v6778 = vadd.f32 0.0, %v6777
  %v6779 = vpop.f32.mrf.mxu0
  %v6780 = vadd.f32 0.0, %v6779
  %6781 = vmatmul.bf16.gmra.mxu0 %v6510
  %v6782 = vpop.f32.mrf.mxu0
  %v6783 = vadd.f32 0.0, %v6782
  %v6784 = vpop.f32.mrf.mxu0
  %v6785 = vadd.f32 0.0, %v6784
  %6786 = vdwg.mxu0
  %6787 = vmatpush.bf16.msra.mxu0 %v6689
  %6788 = vmatpush.bf16.msra.mxu0 %v6688
  %6789 = vmatpush.bf16.msra.mxu0 %v6687
  %6790 = vmatpush.bf16.msra.mxu0 %v6686
  %6791 = vmatpush.bf16.msra.mxu0 %v6685
  %6792 = vmatpush.bf16.msra.mxu0 %v6684
  %6793 = vmatpush.bf16.msra.mxu0 %v6683
  %6794 = vmatpush.bf16.msra.mxu0 %v6682
  %6795 = vmatmul.bf16.gmra.mxu0 %v6483
  %v6796 = vpop.f32.mrf.mxu0
  %v6797 = vadd.f32 %v6748, %v6796
  %v6798 = vpop.f32.mrf.mxu0
  %v6799 = vadd.f32 %v6750, %v6798
  %6800 = vmatmul.bf16.gmra.mxu0 %v6487
  %v6801 = vpop.f32.mrf.mxu0
  %v6802 = vadd.f32 %v6753, %v6801
  %v6803 = vpop.f32.mrf.mxu0
  %v6804 = vadd.f32 %v6755, %v6803
  %6805 = vmatmul.bf16.gmra.mxu0 %v6491
  %v6806 = vpop.f32.mrf.mxu0
  %v6807 = vadd.f32 %v6758, %v6806
  %v6808 = vpop.f32.mrf.mxu0
  %v6809 = vadd.f32 %v6760, %v6808
  %6810 = vmatmul.bf16.gmra.mxu0 %v6495
  %v6811 = vpop.f32.mrf.mxu0
  %v6812 = vadd.f32 %v6763, %v6811
  %v6813 = vpop.f32.mrf.mxu0
  %v6814 = vadd.f32 %v6765, %v6813
  %6815 = vmatmul.bf16.gmra.mxu0 %v6499
  %v6816 = vpop.f32.mrf.mxu0
  %v6817 = vadd.f32 %v6768, %v6816
  %v6818 = vpop.f32.mrf.mxu0
  %v6819 = vadd.f32 %v6770, %v6818
  %6820 = vmatmul.bf16.gmra.mxu0 %v6503
  %v6821 = vpop.f32.mrf.mxu0
  %v6822 = vadd.f32 %v6773, %v6821
  %v6823 = vpop.f32.mrf.mxu0
  %v6824 = vadd.f32 %v6775, %v6823
  %6825 = vmatmul.bf16.gmra.mxu0 %v6507
  %v6826 = vpop.f32.mrf.mxu0
  %v6827 = vadd.f32 %v6778, %v6826
  %v6828 = vpop.f32.mrf.mxu0
  %v6829 = vadd.f32 %v6780, %v6828
  %6830 = vmatmul.bf16.gmra.mxu0 %v6511
  %v6831 = vpop.f32.mrf.mxu0
  %v6832 = vadd.f32 %v6783, %v6831
  %v6833 = vpop.f32.mrf.mxu0
  %v6834 = vadd.f32 %v6785, %v6833
  %6835 = vdwg.mxu0
  %6836 = vmatpush.bf16.msra.mxu0 %v6697
  %6837 = vmatpush.bf16.msra.mxu0 %v6696
  %6838 = vmatpush.bf16.msra.mxu0 %v6695
  %6839 = vmatpush.bf16.msra.mxu0 %v6694
  %6840 = vmatpush.bf16.msra.mxu0 %v6693
  %6841 = vmatpush.bf16.msra.mxu0 %v6692
  %6842 = vmatpush.bf16.msra.mxu0 %v6691
  %6843 = vmatpush.bf16.msra.mxu0 %v6690
  %6844 = vmatmul.bf16.gmra.mxu0 %v6484
  %v6845 = vpop.f32.mrf.mxu0
  %v6846 = vadd.f32 %v6797, %v6845
  %v6847 = vpop.f32.mrf.mxu0
  %v6848 = vadd.f32 %v6799, %v6847
  %6849 = vmatmul.bf16.gmra.mxu0 %v6488
  %v6850 = vpop.f32.mrf.mxu0
  %v6851 = vadd.f32 %v6802, %v6850
  %v6852 = vpop.f32.mrf.mxu0
  %v6853 = vadd.f32 %v6804, %v6852
  %6854 = vmatmul.bf16.gmra.mxu0 %v6492
  %v6855 = vpop.f32.mrf.mxu0
  %v6856 = vadd.f32 %v6807, %v6855
  %v6857 = vpop.f32.mrf.mxu0
  %v6858 = vadd.f32 %v6809, %v6857
  %6859 = vmatmul.bf16.gmra.mxu0 %v6496
  %v6860 = vpop.f32.mrf.mxu0
  %v6861 = vadd.f32 %v6812, %v6860
  %v6862 = vpop.f32.mrf.mxu0
  %v6863 = vadd.f32 %v6814, %v6862
  %6864 = vmatmul.bf16.gmra.mxu0 %v6500
  %v6865 = vpop.f32.mrf.mxu0
  %v6866 = vadd.f32 %v6817, %v6865
  %v6867 = vpop.f32.mrf.mxu0
  %v6868 = vadd.f32 %v6819, %v6867
  %6869 = vmatmul.bf16.gmra.mxu0 %v6504
  %v6870 = vpop.f32.mrf.mxu0
  %v6871 = vadd.f32 %v6822, %v6870
  %v6872 = vpop.f32.mrf.mxu0
  %v6873 = vadd.f32 %v6824, %v6872
  %6874 = vmatmul.bf16.gmra.mxu0 %v6508
  %v6875 = vpop.f32.mrf.mxu0
  %v6876 = vadd.f32 %v6827, %v6875
  %v6877 = vpop.f32.mrf.mxu0
  %v6878 = vadd.f32 %v6829, %v6877
  %6879 = vmatmul.bf16.gmra.mxu0 %v6512
  %v6880 = vpop.f32.mrf.mxu0
  %v6881 = vadd.f32 %v6832, %v6880
  %v6882 = vpop.f32.mrf.mxu0
  %v6883 = vadd.f32 %v6834, %v6882
  %6884 = vdwg.mxu0
  %6885 = vmatpush.bf16.msra.mxu0 %v6705
  %6886 = vmatpush.bf16.msra.mxu0 %v6704
  %6887 = vmatpush.bf16.msra.mxu0 %v6703
  %6888 = vmatpush.bf16.msra.mxu0 %v6702
  %6889 = vmatpush.bf16.msra.mxu0 %v6701
  %6890 = vmatpush.bf16.msra.mxu0 %v6700
  %6891 = vmatpush.bf16.msra.mxu0 %v6699
  %6892 = vmatpush.bf16.msra.mxu0 %v6698
  %6893 = vmatmul.bf16.gmra.mxu0 %v6485
  %v6894 = vpop.f32.mrf.mxu0
  %v6895 = vadd.f32 %v6846, %v6894
  %v6896 = vpop.f32.mrf.mxu0
  %v6897 = vadd.f32 %v6848, %v6896
  %6898 = vmatmul.bf16.gmra.mxu0 %v6489
  %v6899 = vpop.f32.mrf.mxu0
  %v6900 = vadd.f32 %v6851, %v6899
  %v6901 = vpop.f32.mrf.mxu0
  %v6902 = vadd.f32 %v6853, %v6901
  %6903 = vmatmul.bf16.gmra.mxu0 %v6493
  %v6904 = vpop.f32.mrf.mxu0
  %v6905 = vadd.f32 %v6856, %v6904
  %v6906 = vpop.f32.mrf.mxu0
  %v6907 = vadd.f32 %v6858, %v6906
  %6908 = vmatmul.bf16.gmra.mxu0 %v6497
  %v6909 = vpop.f32.mrf.mxu0
  %v6910 = vadd.f32 %v6861, %v6909
  %v6911 = vpop.f32.mrf.mxu0
  %v6912 = vadd.f32 %v6863, %v6911
  %6913 = vmatmul.bf16.gmra.mxu0 %v6501
  %v6914 = vpop.f32.mrf.mxu0
  %v6915 = vadd.f32 %v6866, %v6914
  %v6916 = vpop.f32.mrf.mxu0
  %v6917 = vadd.f32 %v6868, %v6916
  %6918 = vmatmul.bf16.gmra.mxu0 %v6505
  %v6919 = vpop.f32.mrf.mxu0
  %v6920 = vadd.f32 %v6871, %v6919
  %v6921 = vpop.f32.mrf.mxu0
  %v6922 = vadd.f32 %v6873, %v6921
  %6923 = vmatmul.bf16.gmra.mxu0 %v6509
  %v6924 = vpop.f32.mrf.mxu0
  %v6925 = vadd.f32 %v6876, %v6924
  %v6926 = vpop.f32.mrf.mxu0
  %v6927 = vadd.f32 %v6878, %v6926
  %6928 = vmatmul.bf16.gmra.mxu0 %v6513
  %v6929 = vpop.f32.mrf.mxu0
  %v6930 = vadd.f32 %v6881, %v6929
  %v6931 = vpop.f32.mrf.mxu0
  %v6932 = vadd.f32 %v6883, %v6931
  %6933 = vdwg.mxu0
  %v6934 = vadd.f32 %v6389, %v6895
  %v6935 = vadd.f32 %v6390, %v6897
  %v6936 = vadd.f32 %v6391, %v6900
  %v6937 = vadd.f32 %v6392, %v6902
  %v6938 = vadd.f32 %v6393, %v6905
  %v6939 = vadd.f32 %v6394, %v6907
  %v6940 = vadd.f32 %v6395, %v6910
  %v6941 = vadd.f32 %v6396, %v6912
  %v6942 = vadd.f32 %v6397, %v6915
  %v6943 = vadd.f32 %v6398, %v6917
  %v6944 = vadd.f32 %v6399, %v6920
  %v6945 = vadd.f32 %v6400, %v6922
  %v6946 = vadd.f32 %v6401, %v6925
  %v6947 = vadd.f32 %v6402, %v6927
  %v6948 = vadd.f32 %v6403, %v6930
  %v6949 = vadd.f32 %v6404, %v6932
  %v6951 = vshrl.u32 %v3953, 16
  %v6953 = vrot.slane %v6951, 4
  %v6954 = vshll.u32 %v3953, 16
  %v6956 = vrot.slane %v6954, 5
  %v6957 = vor.u32 %v6953, %v6956
  %v6958 = vrot.slane %v6957, 4
  %v6960 = vshll.u32 %v3955, 16
  %v6962 = vrot.slane %v6960, 5
  %v6963 = vsel %vm4067, %v6958, %v6962
  %v6965 = vshrl.u32 %v3954, 16
  %v6967 = vrot.slane %v6965, 4
  %v6968 = vshll.u32 %v3954, 16
  %v6970 = vrot.slane %v6968, 5
  %v6971 = vor.u32 %v6967, %v6970
  %v6972 = vrot.slane %v6971, 4
  %v6974 = vshll.u32 %v3956, 16
  %v6976 = vrot.slane %v6974, 5
  %v6977 = vsel %vm4067, %v6972, %v6976
  %v6979 = vshrl.u32 %v3993, 16
  %v6981 = vrot.slane %v6979, 4
  %v6982 = vshll.u32 %v3993, 16
  %v6984 = vrot.slane %v6982, 5
  %v6985 = vor.u32 %v6981, %v6984
  %v6986 = vrot.slane %v6985, 4
  %v6988 = vshll.u32 %v3995, 16
  %v6990 = vrot.slane %v6988, 5
  %v6991 = vsel %vm4067, %v6986, %v6990
  %v6993 = vshrl.u32 %v3994, 16
  %v6995 = vrot.slane %v6993, 4
  %v6996 = vshll.u32 %v3994, 16
  %v6998 = vrot.slane %v6996, 5
  %v6999 = vor.u32 %v6995, %v6998
  %v7000 = vrot.slane %v6999, 4
  %v7002 = vshll.u32 %v3996, 16
  %v7004 = vrot.slane %v7002, 5
  %v7005 = vsel %vm4067, %v7000, %v7004
  %s7006 = scalar_lea.vmem %s8, 1024
  %v7007 = vld [vmem:[%s7006] sm:$0xf]
  %v7008 = vld [vmem:[%s7006 + $0x4] sm:$0xf]
  %v7009 = vld [vmem:[%s7006 + $0x8] sm:$0xf]
  %v7010 = vld [vmem:[%s7006 + $0xc] sm:$0xf]
  %v7011 = vld [vmem:[%s7006 + $0x10] sm:$0xf]
  %v7012 = vld [vmem:[%s7006 + $0x14] sm:$0xf]
  %v7013 = vld [vmem:[%s7006 + $0x18] sm:$0xf]
  %v7014 = vld [vmem:[%s7006 + $0x1c] sm:$0xf]
  %v7015 = vld [vmem:[%s7006 + $0x20] sm:$0xf]
  %v7016 = vld [vmem:[%s7006 + $0x24] sm:$0xf]
  %v7017 = vld [vmem:[%s7006 + $0x28] sm:$0xf]
  %v7018 = vld [vmem:[%s7006 + $0x2c] sm:$0xf]
  %v7019 = vld [vmem:[%s7006 + $0x30] sm:$0xf]
  %v7020 = vld [vmem:[%s7006 + $0x34] sm:$0xf]
  %v7021 = vld [vmem:[%s7006 + $0x38] sm:$0xf]
  %v7022 = vld [vmem:[%s7006 + $0x3c] sm:$0xf]
  %v7023 = vld [vmem:[%s7006 + $0x40] sm:$0xf]
  %v7024 = vld [vmem:[%s7006 + $0x44] sm:$0xf]
  %v7025 = vld [vmem:[%s7006 + $0x48] sm:$0xf]
  %v7026 = vld [vmem:[%s7006 + $0x4c] sm:$0xf]
  %v7027 = vld [vmem:[%s7006 + $0x50] sm:$0xf]
  %v7028 = vld [vmem:[%s7006 + $0x54] sm:$0xf]
  %v7029 = vld [vmem:[%s7006 + $0x58] sm:$0xf]
  %v7030 = vld [vmem:[%s7006 + $0x5c] sm:$0xf]
  %v7031 = vld [vmem:[%s7006 + $0x60] sm:$0xf]
  %v7032 = vld [vmem:[%s7006 + $0x64] sm:$0xf]
  %v7033 = vld [vmem:[%s7006 + $0x68] sm:$0xf]
  %v7034 = vld [vmem:[%s7006 + $0x6c] sm:$0xf]
  %v7035 = vld [vmem:[%s7006 + $0x70] sm:$0xf]
  %v7036 = vld [vmem:[%s7006 + $0x74] sm:$0xf]
  %v7037 = vld [vmem:[%s7006 + $0x78] sm:$0xf]
  %v7038 = vld [vmem:[%s7006 + $0x7c] sm:$0xf]
  %v7039 = vld [vmem:[%s7006 + $0x80] sm:$0xf]
  %v7040 = vld [vmem:[%s7006 + $0x84] sm:$0xf]
  %v7041 = vld [vmem:[%s7006 + $0x88] sm:$0xf]
  %v7042 = vld [vmem:[%s7006 + $0x8c] sm:$0xf]
  %v7043 = vld [vmem:[%s7006 + $0x90] sm:$0xf]
  %v7044 = vld [vmem:[%s7006 + $0x94] sm:$0xf]
  %v7045 = vld [vmem:[%s7006 + $0x98] sm:$0xf]
  %v7046 = vld [vmem:[%s7006 + $0x9c] sm:$0xf]
  %v7047 = vld [vmem:[%s7006 + $0xa0] sm:$0xf]
  %v7048 = vld [vmem:[%s7006 + $0xa4] sm:$0xf]
  %v7049 = vld [vmem:[%s7006 + $0xa8] sm:$0xf]
  %v7050 = vld [vmem:[%s7006 + $0xac] sm:$0xf]
  %v7051 = vld [vmem:[%s7006 + $0xb0] sm:$0xf]
  %v7052 = vld [vmem:[%s7006 + $0xb4] sm:$0xf]
  %v7053 = vld [vmem:[%s7006 + $0xb8] sm:$0xf]
  %v7054 = vld [vmem:[%s7006 + $0xbc] sm:$0xf]
  %v7055 = vld [vmem:[%s7006 + $0xc0] sm:$0xf]
  %v7056 = vld [vmem:[%s7006 + $0xc4] sm:$0xf]
  %v7057 = vld [vmem:[%s7006 + $0xc8] sm:$0xf]
  %v7058 = vld [vmem:[%s7006 + $0xcc] sm:$0xf]
  %v7059 = vld [vmem:[%s7006 + $0xd0] sm:$0xf]
  %v7060 = vld [vmem:[%s7006 + $0xd4] sm:$0xf]
  %v7061 = vld [vmem:[%s7006 + $0xd8] sm:$0xf]
  %v7062 = vld [vmem:[%s7006 + $0xdc] sm:$0xf]
  %v7063 = vld [vmem:[%s7006 + $0xe0] sm:$0xf]
  %v7064 = vld [vmem:[%s7006 + $0xe4] sm:$0xf]
  %v7065 = vld [vmem:[%s7006 + $0xe8] sm:$0xf]
  %v7066 = vld [vmem:[%s7006 + $0xec] sm:$0xf]
  %v7067 = vld [vmem:[%s7006 + $0xf0] sm:$0xf]
  %v7068 = vld [vmem:[%s7006 + $0xf4] sm:$0xf]
  %v7069 = vld [vmem:[%s7006 + $0xf8] sm:$0xf]
  %v7070 = vld [vmem:[%s7006 + $0xfc] sm:$0xf]
  %v7071 = vunpack.c.l.b16 %v6963
  %v7072 = vunpack.c.h.b16 %v6963
  %v7073 = vunpack.c.l.b16 %v6977
  %v7074 = vunpack.c.h.b16 %v6977
  %v7075 = vunpack.c.l.b16 %v6991
  %v7076 = vunpack.c.h.b16 %v6991
  %v7077 = vunpack.c.l.b16 %v7005
  %v7078 = vunpack.c.h.b16 %v7005
  %v7079 = vpack.c.b16 %v4589, %v4585
  %v7080 = vpack.c.b16 %v4590, %v4586
  %v7081 = vpack.c.b16 %v4591, %v4587
  %v7082 = vpack.c.b16 %v4592, %v4588
  %v7083 = vpack.c.b16 %v4597, %v4593
  %v7084 = vpack.c.b16 %v4598, %v4594
  %v7085 = vpack.c.b16 %v4599, %v4595
  %v7086 = vpack.c.b16 %v4600, %v4596
  %v7087 = vpack.c.b16 %v4605, %v4601
  %v7088 = vpack.c.b16 %v4606, %v4602
  %v7089 = vpack.c.b16 %v4607, %v4603
  %v7090 = vpack.c.b16 %v4608, %v4604
  %v7091 = vpack.c.b16 %v7071, %v4609
  %v7092 = vpack.c.b16 %v7072, %v4610
  %v7093 = vpack.c.b16 %v7073, %v4611
  %v7094 = vpack.c.b16 %v7074, %v4612
  %v7095 = vpack.c.b16 %v4621, %v4617
  %v7096 = vpack.c.b16 %v4622, %v4618
  %v7097 = vpack.c.b16 %v4623, %v4619
  %v7098 = vpack.c.b16 %v4624, %v4620
  %v7099 = vpack.c.b16 %v4629, %v4625
  %v7100 = vpack.c.b16 %v4630, %v4626
  %v7101 = vpack.c.b16 %v4631, %v4627
  %v7102 = vpack.c.b16 %v4632, %v4628
  %v7103 = vpack.c.b16 %v4637, %v4633
  %v7104 = vpack.c.b16 %v4638, %v4634
  %v7105 = vpack.c.b16 %v4639, %v4635
  %v7106 = vpack.c.b16 %v4640, %v4636
  %v7107 = vpack.c.b16 %v7075, %v4641
  %v7108 = vpack.c.b16 %v7076, %v4642
  %v7109 = vpack.c.b16 %v7077, %v4643
  %v7110 = vpack.c.b16 %v7078, %v4644
  %v7207 = vunpack.c.l.b16 %v7007
  %v7208 = vunpack.c.l.b16 %v7008
  %v7209 = vunpack.c.l.b16 %v7009
  %v7210 = vunpack.c.l.b16 %v7010
  %v7211 = vunpack.c.l.b16 %v7011
  %v7212 = vunpack.c.l.b16 %v7012
  %v7213 = vunpack.c.l.b16 %v7013
  %v7214 = vunpack.c.l.b16 %v7014
  %v7215 = vunpack.c.l.b16 %v7015
  %v7216 = vunpack.c.l.b16 %v7016
  %v7217 = vunpack.c.l.b16 %v7017
  %v7218 = vunpack.c.l.b16 %v7018
  %v7219 = vunpack.c.l.b16 %v7019
  %v7220 = vunpack.c.l.b16 %v7020
  %v7221 = vunpack.c.l.b16 %v7021
  %v7222 = vunpack.c.l.b16 %v7022
  %v7223 = vunpack.c.l.b16 %v7023
  %v7224 = vunpack.c.l.b16 %v7024
  %v7225 = vunpack.c.l.b16 %v7025
  %v7226 = vunpack.c.l.b16 %v7026
  %v7227 = vunpack.c.l.b16 %v7027
  %v7228 = vunpack.c.l.b16 %v7028
  %v7229 = vunpack.c.l.b16 %v7029
  %v7230 = vunpack.c.l.b16 %v7030
  %v7231 = vunpack.c.l.b16 %v7031
  %v7232 = vunpack.c.l.b16 %v7032
  %v7233 = vunpack.c.l.b16 %v7033
  %v7234 = vunpack.c.l.b16 %v7034
  %v7235 = vunpack.c.l.b16 %v7035
  %v7236 = vunpack.c.l.b16 %v7036
  %v7237 = vunpack.c.l.b16 %v7037
  %v7238 = vunpack.c.l.b16 %v7038
  %v7239 = vunpack.c.l.b16 %v7039
  %v7240 = vunpack.c.l.b16 %v7040
  %v7241 = vunpack.c.l.b16 %v7041
  %v7242 = vunpack.c.l.b16 %v7042
  %v7243 = vunpack.c.l.b16 %v7043
  %v7244 = vunpack.c.l.b16 %v7044
  %v7245 = vunpack.c.l.b16 %v7045
  %v7246 = vunpack.c.l.b16 %v7046
  %v7247 = vunpack.c.l.b16 %v7047
  %v7248 = vunpack.c.l.b16 %v7048
  %v7249 = vunpack.c.l.b16 %v7049
  %v7250 = vunpack.c.l.b16 %v7050
  %v7251 = vunpack.c.l.b16 %v7051
  %v7252 = vunpack.c.l.b16 %v7052
  %v7253 = vunpack.c.l.b16 %v7053
  %v7254 = vunpack.c.l.b16 %v7054
  %v7255 = vunpack.c.l.b16 %v7055
  %v7256 = vunpack.c.l.b16 %v7056
  %v7257 = vunpack.c.l.b16 %v7057
  %v7258 = vunpack.c.l.b16 %v7058
  %v7259 = vunpack.c.l.b16 %v7059
  %v7260 = vunpack.c.l.b16 %v7060
  %v7261 = vunpack.c.l.b16 %v7061
  %v7262 = vunpack.c.l.b16 %v7062
  %v7263 = vunpack.c.l.b16 %v7063
  %v7264 = vunpack.c.l.b16 %v7064
  %v7265 = vunpack.c.l.b16 %v7065
  %v7266 = vunpack.c.l.b16 %v7066
  %v7267 = vunpack.c.l.b16 %v7067
  %v7268 = vunpack.c.l.b16 %v7068
  %v7269 = vunpack.c.l.b16 %v7069
  %v7270 = vunpack.c.l.b16 %v7070
  %v7271 = vpack.c.b16 %v7208, %v7207
  %v7272 = vpack.c.b16 %v7210, %v7209
  %v7273 = vpack.c.b16 %v7212, %v7211
  %v7274 = vpack.c.b16 %v7214, %v7213
  %v7275 = vpack.c.b16 %v7216, %v7215
  %v7276 = vpack.c.b16 %v7218, %v7217
  %v7277 = vpack.c.b16 %v7220, %v7219
  %v7278 = vpack.c.b16 %v7222, %v7221
  %v7279 = vpack.c.b16 %v7224, %v7223
  %v7280 = vpack.c.b16 %v7226, %v7225
  %v7281 = vpack.c.b16 %v7228, %v7227
  %v7282 = vpack.c.b16 %v7230, %v7229
  %v7283 = vpack.c.b16 %v7232, %v7231
  %v7284 = vpack.c.b16 %v7234, %v7233
  %v7285 = vpack.c.b16 %v7236, %v7235
  %v7286 = vpack.c.b16 %v7238, %v7237
  %v7287 = vpack.c.b16 %v7240, %v7239
  %v7288 = vpack.c.b16 %v7242, %v7241
  %v7289 = vpack.c.b16 %v7244, %v7243
  %v7290 = vpack.c.b16 %v7246, %v7245
  %v7291 = vpack.c.b16 %v7248, %v7247
  %v7292 = vpack.c.b16 %v7250, %v7249
  %v7293 = vpack.c.b16 %v7252, %v7251
  %v7294 = vpack.c.b16 %v7254, %v7253
  %v7295 = vpack.c.b16 %v7256, %v7255
  %v7296 = vpack.c.b16 %v7258, %v7257
  %v7297 = vpack.c.b16 %v7260, %v7259
  %v7298 = vpack.c.b16 %v7262, %v7261
  %v7299 = vpack.c.b16 %v7264, %v7263
  %v7300 = vpack.c.b16 %v7266, %v7265
  %v7301 = vpack.c.b16 %v7268, %v7267
  %v7302 = vpack.c.b16 %v7270, %v7269
  %7335 = vmatpush.bf16.msra.mxu0 %v7278
  %7336 = vmatpush.bf16.msra.mxu0 %v7277
  %7337 = vmatpush.bf16.msra.mxu0 %v7276
  %7338 = vmatpush.bf16.msra.mxu0 %v7275
  %7339 = vmatpush.bf16.msra.mxu0 %v7274
  %7340 = vmatpush.bf16.msra.mxu0 %v7273
  %7341 = vmatpush.bf16.msra.mxu0 %v7272
  %7342 = vmatpush.bf16.msra.mxu0 %v7271
  %7343 = vmatmul.bf16.gmra.mxu0 %v7079
  %v7344 = vpop.f32.mrf.mxu0
  %v7345 = vadd.f32 0.0, %v7344
  %v7346 = vpop.f32.mrf.mxu0
  %v7347 = vadd.f32 0.0, %v7346
  %7348 = vmatmul.bf16.gmra.mxu0 %v7083
  %v7349 = vpop.f32.mrf.mxu0
  %v7350 = vadd.f32 0.0, %v7349
  %v7351 = vpop.f32.mrf.mxu0
  %v7352 = vadd.f32 0.0, %v7351
  %7353 = vmatmul.bf16.gmra.mxu0 %v7087
  %v7354 = vpop.f32.mrf.mxu0
  %v7355 = vadd.f32 0.0, %v7354
  %v7356 = vpop.f32.mrf.mxu0
  %v7357 = vadd.f32 0.0, %v7356
  %7358 = vmatmul.bf16.gmra.mxu0 %v7091
  %v7359 = vpop.f32.mrf.mxu0
  %v7360 = vadd.f32 0.0, %v7359
  %v7361 = vpop.f32.mrf.mxu0
  %v7362 = vadd.f32 0.0, %v7361
  %7363 = vmatmul.bf16.gmra.mxu0 %v7095
  %v7364 = vpop.f32.mrf.mxu0
  %v7365 = vadd.f32 0.0, %v7364
  %v7366 = vpop.f32.mrf.mxu0
  %v7367 = vadd.f32 0.0, %v7366
  %7368 = vmatmul.bf16.gmra.mxu0 %v7099
  %v7369 = vpop.f32.mrf.mxu0
  %v7370 = vadd.f32 0.0, %v7369
  %v7371 = vpop.f32.mrf.mxu0
  %v7372 = vadd.f32 0.0, %v7371
  %7373 = vmatmul.bf16.gmra.mxu0 %v7103
  %v7374 = vpop.f32.mrf.mxu0
  %v7375 = vadd.f32 0.0, %v7374
  %v7376 = vpop.f32.mrf.mxu0
  %v7377 = vadd.f32 0.0, %v7376
  %7378 = vmatmul.bf16.gmra.mxu0 %v7107
  %v7379 = vpop.f32.mrf.mxu0
  %v7380 = vadd.f32 0.0, %v7379
  %v7381 = vpop.f32.mrf.mxu0
  %v7382 = vadd.f32 0.0, %v7381
  %7383 = vdwg.mxu0
  %7384 = vmatpush.bf16.msra.mxu0 %v7286
  %7385 = vmatpush.bf16.msra.mxu0 %v7285
  %7386 = vmatpush.bf16.msra.mxu0 %v7284
  %7387 = vmatpush.bf16.msra.mxu0 %v7283
  %7388 = vmatpush.bf16.msra.mxu0 %v7282
  %7389 = vmatpush.bf16.msra.mxu0 %v7281
  %7390 = vmatpush.bf16.msra.mxu0 %v7280
  %7391 = vmatpush.bf16.msra.mxu0 %v7279
  %7392 = vmatmul.bf16.gmra.mxu0 %v7080
  %v7393 = vpop.f32.mrf.mxu0
  %v7394 = vadd.f32 %v7345, %v7393
  %v7395 = vpop.f32.mrf.mxu0
  %v7396 = vadd.f32 %v7347, %v7395
  %7397 = vmatmul.bf16.gmra.mxu0 %v7084
  %v7398 = vpop.f32.mrf.mxu0
  %v7399 = vadd.f32 %v7350, %v7398
  %v7400 = vpop.f32.mrf.mxu0
  %v7401 = vadd.f32 %v7352, %v7400
  %7402 = vmatmul.bf16.gmra.mxu0 %v7088
  %v7403 = vpop.f32.mrf.mxu0
  %v7404 = vadd.f32 %v7355, %v7403
  %v7405 = vpop.f32.mrf.mxu0
  %v7406 = vadd.f32 %v7357, %v7405
  %7407 = vmatmul.bf16.gmra.mxu0 %v7092
  %v7408 = vpop.f32.mrf.mxu0
  %v7409 = vadd.f32 %v7360, %v7408
  %v7410 = vpop.f32.mrf.mxu0
  %v7411 = vadd.f32 %v7362, %v7410
  %7412 = vmatmul.bf16.gmra.mxu0 %v7096
  %v7413 = vpop.f32.mrf.mxu0
  %v7414 = vadd.f32 %v7365, %v7413
  %v7415 = vpop.f32.mrf.mxu0
  %v7416 = vadd.f32 %v7367, %v7415
  %7417 = vmatmul.bf16.gmra.mxu0 %v7100
  %v7418 = vpop.f32.mrf.mxu0
  %v7419 = vadd.f32 %v7370, %v7418
  %v7420 = vpop.f32.mrf.mxu0
  %v7421 = vadd.f32 %v7372, %v7420
  %7422 = vmatmul.bf16.gmra.mxu0 %v7104
  %v7423 = vpop.f32.mrf.mxu0
  %v7424 = vadd.f32 %v7375, %v7423
  %v7425 = vpop.f32.mrf.mxu0
  %v7426 = vadd.f32 %v7377, %v7425
  %7427 = vmatmul.bf16.gmra.mxu0 %v7108
  %v7428 = vpop.f32.mrf.mxu0
  %v7429 = vadd.f32 %v7380, %v7428
  %v7430 = vpop.f32.mrf.mxu0
  %v7431 = vadd.f32 %v7382, %v7430
  %7432 = vdwg.mxu0
  %7433 = vmatpush.bf16.msra.mxu0 %v7294
  %7434 = vmatpush.bf16.msra.mxu0 %v7293
  %7435 = vmatpush.bf16.msra.mxu0 %v7292
  %7436 = vmatpush.bf16.msra.mxu0 %v7291
  %7437 = vmatpush.bf16.msra.mxu0 %v7290
  %7438 = vmatpush.bf16.msra.mxu0 %v7289
  %7439 = vmatpush.bf16.msra.mxu0 %v7288
  %7440 = vmatpush.bf16.msra.mxu0 %v7287
  %7441 = vmatmul.bf16.gmra.mxu0 %v7081
  %v7442 = vpop.f32.mrf.mxu0
  %v7443 = vadd.f32 %v7394, %v7442
  %v7444 = vpop.f32.mrf.mxu0
  %v7445 = vadd.f32 %v7396, %v7444
  %7446 = vmatmul.bf16.gmra.mxu0 %v7085
  %v7447 = vpop.f32.mrf.mxu0
  %v7448 = vadd.f32 %v7399, %v7447
  %v7449 = vpop.f32.mrf.mxu0
  %v7450 = vadd.f32 %v7401, %v7449
  %7451 = vmatmul.bf16.gmra.mxu0 %v7089
  %v7452 = vpop.f32.mrf.mxu0
  %v7453 = vadd.f32 %v7404, %v7452
  %v7454 = vpop.f32.mrf.mxu0
  %v7455 = vadd.f32 %v7406, %v7454
  %7456 = vmatmul.bf16.gmra.mxu0 %v7093
  %v7457 = vpop.f32.mrf.mxu0
  %v7458 = vadd.f32 %v7409, %v7457
  %v7459 = vpop.f32.mrf.mxu0
  %v7460 = vadd.f32 %v7411, %v7459
  %7461 = vmatmul.bf16.gmra.mxu0 %v7097
  %v7462 = vpop.f32.mrf.mxu0
  %v7463 = vadd.f32 %v7414, %v7462
  %v7464 = vpop.f32.mrf.mxu0
  %v7465 = vadd.f32 %v7416, %v7464
  %7466 = vmatmul.bf16.gmra.mxu0 %v7101
  %v7467 = vpop.f32.mrf.mxu0
  %v7468 = vadd.f32 %v7419, %v7467
  %v7469 = vpop.f32.mrf.mxu0
  %v7470 = vadd.f32 %v7421, %v7469
  %7471 = vmatmul.bf16.gmra.mxu0 %v7105
  %v7472 = vpop.f32.mrf.mxu0
  %v7473 = vadd.f32 %v7424, %v7472
  %v7474 = vpop.f32.mrf.mxu0
  %v7475 = vadd.f32 %v7426, %v7474
  %7476 = vmatmul.bf16.gmra.mxu0 %v7109
  %v7477 = vpop.f32.mrf.mxu0
  %v7478 = vadd.f32 %v7429, %v7477
  %v7479 = vpop.f32.mrf.mxu0
  %v7480 = vadd.f32 %v7431, %v7479
  %7481 = vdwg.mxu0
  %7482 = vmatpush.bf16.msra.mxu0 %v7302
  %7483 = vmatpush.bf16.msra.mxu0 %v7301
  %7484 = vmatpush.bf16.msra.mxu0 %v7300
  %7485 = vmatpush.bf16.msra.mxu0 %v7299
  %7486 = vmatpush.bf16.msra.mxu0 %v7298
  %7487 = vmatpush.bf16.msra.mxu0 %v7297
  %7488 = vmatpush.bf16.msra.mxu0 %v7296
  %7489 = vmatpush.bf16.msra.mxu0 %v7295
  %7490 = vmatmul.bf16.gmra.mxu0 %v7082
  %v7491 = vpop.f32.mrf.mxu0
  %v7492 = vadd.f32 %v7443, %v7491
  %v7493 = vpop.f32.mrf.mxu0
  %v7494 = vadd.f32 %v7445, %v7493
  %7495 = vmatmul.bf16.gmra.mxu0 %v7086
  %v7496 = vpop.f32.mrf.mxu0
  %v7497 = vadd.f32 %v7448, %v7496
  %v7498 = vpop.f32.mrf.mxu0
  %v7499 = vadd.f32 %v7450, %v7498
  %7500 = vmatmul.bf16.gmra.mxu0 %v7090
  %v7501 = vpop.f32.mrf.mxu0
  %v7502 = vadd.f32 %v7453, %v7501
  %v7503 = vpop.f32.mrf.mxu0
  %v7504 = vadd.f32 %v7455, %v7503
  %7505 = vmatmul.bf16.gmra.mxu0 %v7094
  %v7506 = vpop.f32.mrf.mxu0
  %v7507 = vadd.f32 %v7458, %v7506
  %v7508 = vpop.f32.mrf.mxu0
  %v7509 = vadd.f32 %v7460, %v7508
  %7510 = vmatmul.bf16.gmra.mxu0 %v7098
  %v7511 = vpop.f32.mrf.mxu0
  %v7512 = vadd.f32 %v7463, %v7511
  %v7513 = vpop.f32.mrf.mxu0
  %v7514 = vadd.f32 %v7465, %v7513
  %7515 = vmatmul.bf16.gmra.mxu0 %v7102
  %v7516 = vpop.f32.mrf.mxu0
  %v7517 = vadd.f32 %v7468, %v7516
  %v7518 = vpop.f32.mrf.mxu0
  %v7519 = vadd.f32 %v7470, %v7518
  %7520 = vmatmul.bf16.gmra.mxu0 %v7106
  %v7521 = vpop.f32.mrf.mxu0
  %v7522 = vadd.f32 %v7473, %v7521
  %v7523 = vpop.f32.mrf.mxu0
  %v7524 = vadd.f32 %v7475, %v7523
  %7525 = vmatmul.bf16.gmra.mxu0 %v7110
  %v7526 = vpop.f32.mrf.mxu0
  %v7527 = vadd.f32 %v7478, %v7526
  %v7528 = vpop.f32.mrf.mxu0
  %v7529 = vadd.f32 %v7480, %v7528
  %7530 = vdwg.mxu0
  %v7531 = vadd.f32 %v6934, %v7492
  %v7532 = vadd.f32 %v6935, %v7494
  %v7533 = vadd.f32 %v6936, %v7497
  %v7534 = vadd.f32 %v6937, %v7499
  %v7535 = vadd.f32 %v6938, %v7502
  %v7536 = vadd.f32 %v6939, %v7504
  %v7537 = vadd.f32 %v6940, %v7507
  %v7538 = vadd.f32 %v6941, %v7509
  %v7539 = vadd.f32 %v6942, %v7512
  %v7540 = vadd.f32 %v6943, %v7514
  %v7541 = vadd.f32 %v6944, %v7517
  %v7542 = vadd.f32 %v6945, %v7519
  %v7543 = vadd.f32 %v6946, %v7522
  %v7544 = vadd.f32 %v6947, %v7524
  %v7545 = vadd.f32 %v6948, %v7527
  %v7546 = vadd.f32 %v6949, %v7529
  %v7551 = vrot.slane %v3953, 5
  %v7552 = vrot.slane %v7551, 4
  %v7553 = vrot.slane %v3955, 5
  %v7554 = vsel %vm5679, %v7552, %v7553
  %v7555 = vrot.slane %v3954, 5
  %v7556 = vrot.slane %v7555, 4
  %v7557 = vrot.slane %v3956, 5
  %v7558 = vsel %vm5679, %v7556, %v7557
  %v7559 = vrot.slane %v3993, 5
  %v7560 = vrot.slane %v7559, 4
  %v7561 = vrot.slane %v3995, 5
  %v7562 = vsel %vm5679, %v7560, %v7561
  %v7563 = vrot.slane %v3994, 5
  %v7564 = vrot.slane %v7563, 4
  %v7565 = vrot.slane %v3996, 5
  %v7566 = vsel %vm5679, %v7564, %v7565
  %s7567 = scalar_lea.vmem %s8, 1280
  %v7568 = vld [vmem:[%s7567] sm:$0xf]
  %v7569 = vld [vmem:[%s7567 + $0x4] sm:$0xf]
  %v7570 = vld [vmem:[%s7567 + $0x8] sm:$0xf]
  %v7571 = vld [vmem:[%s7567 + $0xc] sm:$0xf]
  %v7572 = vld [vmem:[%s7567 + $0x10] sm:$0xf]
  %v7573 = vld [vmem:[%s7567 + $0x14] sm:$0xf]
  %v7574 = vld [vmem:[%s7567 + $0x18] sm:$0xf]
  %v7575 = vld [vmem:[%s7567 + $0x1c] sm:$0xf]
  %v7576 = vld [vmem:[%s7567 + $0x20] sm:$0xf]
  %v7577 = vld [vmem:[%s7567 + $0x24] sm:$0xf]
  %v7578 = vld [vmem:[%s7567 + $0x28] sm:$0xf]
  %v7579 = vld [vmem:[%s7567 + $0x2c] sm:$0xf]
  %v7580 = vld [vmem:[%s7567 + $0x30] sm:$0xf]
  %v7581 = vld [vmem:[%s7567 + $0x34] sm:$0xf]
  %v7582 = vld [vmem:[%s7567 + $0x38] sm:$0xf]
  %v7583 = vld [vmem:[%s7567 + $0x3c] sm:$0xf]
  %v7584 = vld [vmem:[%s7567 + $0x40] sm:$0xf]
  %v7585 = vld [vmem:[%s7567 + $0x44] sm:$0xf]
  %v7586 = vld [vmem:[%s7567 + $0x48] sm:$0xf]
  %v7587 = vld [vmem:[%s7567 + $0x4c] sm:$0xf]
  %v7588 = vld [vmem:[%s7567 + $0x50] sm:$0xf]
  %v7589 = vld [vmem:[%s7567 + $0x54] sm:$0xf]
  %v7590 = vld [vmem:[%s7567 + $0x58] sm:$0xf]
  %v7591 = vld [vmem:[%s7567 + $0x5c] sm:$0xf]
  %v7592 = vld [vmem:[%s7567 + $0x60] sm:$0xf]
  %v7593 = vld [vmem:[%s7567 + $0x64] sm:$0xf]
  %v7594 = vld [vmem:[%s7567 + $0x68] sm:$0xf]
  %v7595 = vld [vmem:[%s7567 + $0x6c] sm:$0xf]
  %v7596 = vld [vmem:[%s7567 + $0x70] sm:$0xf]
  %v7597 = vld [vmem:[%s7567 + $0x74] sm:$0xf]
  %v7598 = vld [vmem:[%s7567 + $0x78] sm:$0xf]
  %v7599 = vld [vmem:[%s7567 + $0x7c] sm:$0xf]
  %v7600 = vld [vmem:[%s7567 + $0x80] sm:$0xf]
  %v7601 = vld [vmem:[%s7567 + $0x84] sm:$0xf]
  %v7602 = vld [vmem:[%s7567 + $0x88] sm:$0xf]
  %v7603 = vld [vmem:[%s7567 + $0x8c] sm:$0xf]
  %v7604 = vld [vmem:[%s7567 + $0x90] sm:$0xf]
  %v7605 = vld [vmem:[%s7567 + $0x94] sm:$0xf]
  %v7606 = vld [vmem:[%s7567 + $0x98] sm:$0xf]
  %v7607 = vld [vmem:[%s7567 + $0x9c] sm:$0xf]
  %v7608 = vld [vmem:[%s7567 + $0xa0] sm:$0xf]
  %v7609 = vld [vmem:[%s7567 + $0xa4] sm:$0xf]
  %v7610 = vld [vmem:[%s7567 + $0xa8] sm:$0xf]
  %v7611 = vld [vmem:[%s7567 + $0xac] sm:$0xf]
  %v7612 = vld [vmem:[%s7567 + $0xb0] sm:$0xf]
  %v7613 = vld [vmem:[%s7567 + $0xb4] sm:$0xf]
  %v7614 = vld [vmem:[%s7567 + $0xb8] sm:$0xf]
  %v7615 = vld [vmem:[%s7567 + $0xbc] sm:$0xf]
  %v7616 = vld [vmem:[%s7567 + $0xc0] sm:$0xf]
  %v7617 = vld [vmem:[%s7567 + $0xc4] sm:$0xf]
  %v7618 = vld [vmem:[%s7567 + $0xc8] sm:$0xf]
  %v7619 = vld [vmem:[%s7567 + $0xcc] sm:$0xf]
  %v7620 = vld [vmem:[%s7567 + $0xd0] sm:$0xf]
  %v7621 = vld [vmem:[%s7567 + $0xd4] sm:$0xf]
  %v7622 = vld [vmem:[%s7567 + $0xd8] sm:$0xf]
  %v7623 = vld [vmem:[%s7567 + $0xdc] sm:$0xf]
  %v7624 = vld [vmem:[%s7567 + $0xe0] sm:$0xf]
  %v7625 = vld [vmem:[%s7567 + $0xe4] sm:$0xf]
  %v7626 = vld [vmem:[%s7567 + $0xe8] sm:$0xf]
  %v7627 = vld [vmem:[%s7567 + $0xec] sm:$0xf]
  %v7628 = vld [vmem:[%s7567 + $0xf0] sm:$0xf]
  %v7629 = vld [vmem:[%s7567 + $0xf4] sm:$0xf]
  %v7630 = vld [vmem:[%s7567 + $0xf8] sm:$0xf]
  %v7631 = vld [vmem:[%s7567 + $0xfc] sm:$0xf]
  %v7632 = vunpack.c.l.b16 %v7554
  %v7633 = vunpack.c.h.b16 %v7554
  %v7634 = vunpack.c.l.b16 %v7558
  %v7635 = vunpack.c.h.b16 %v7558
  %v7636 = vunpack.c.l.b16 %v7562
  %v7637 = vunpack.c.h.b16 %v7562
  %v7638 = vunpack.c.l.b16 %v7566
  %v7639 = vunpack.c.h.b16 %v7566
  %v7640 = vpack.c.b16 %v5881, %v5877
  %v7641 = vpack.c.b16 %v5882, %v5878
  %v7642 = vpack.c.b16 %v5883, %v5879
  %v7643 = vpack.c.b16 %v5884, %v5880
  %v7644 = vpack.c.b16 %v5889, %v5885
  %v7645 = vpack.c.b16 %v5890, %v5886
  %v7646 = vpack.c.b16 %v5891, %v5887
  %v7647 = vpack.c.b16 %v5892, %v5888
  %v7648 = vpack.c.b16 %v5897, %v5893
  %v7649 = vpack.c.b16 %v5898, %v5894
  %v7650 = vpack.c.b16 %v5899, %v5895
  %v7651 = vpack.c.b16 %v5900, %v5896
  %v7652 = vpack.c.b16 %v7632, %v5901
  %v7653 = vpack.c.b16 %v7633, %v5902
  %v7654 = vpack.c.b16 %v7634, %v5903
  %v7655 = vpack.c.b16 %v7635, %v5904
  %v7656 = vpack.c.b16 %v5913, %v5909
  %v7657 = vpack.c.b16 %v5914, %v5910
  %v7658 = vpack.c.b16 %v5915, %v5911
  %v7659 = vpack.c.b16 %v5916, %v5912
  %v7660 = vpack.c.b16 %v5921, %v5917
  %v7661 = vpack.c.b16 %v5922, %v5918
  %v7662 = vpack.c.b16 %v5923, %v5919
  %v7663 = vpack.c.b16 %v5924, %v5920
  %v7664 = vpack.c.b16 %v5929, %v5925
  %v7665 = vpack.c.b16 %v5930, %v5926
  %v7666 = vpack.c.b16 %v5931, %v5927
  %v7667 = vpack.c.b16 %v5932, %v5928
  %v7668 = vpack.c.b16 %v7636, %v5933
  %v7669 = vpack.c.b16 %v7637, %v5934
  %v7670 = vpack.c.b16 %v7638, %v5935
  %v7671 = vpack.c.b16 %v7639, %v5936
  %v7768 = vunpack.c.l.b16 %v7568
  %v7769 = vunpack.c.l.b16 %v7569
  %v7770 = vunpack.c.l.b16 %v7570
  %v7771 = vunpack.c.l.b16 %v7571
  %v7772 = vunpack.c.l.b16 %v7572
  %v7773 = vunpack.c.l.b16 %v7573
  %v7774 = vunpack.c.l.b16 %v7574
  %v7775 = vunpack.c.l.b16 %v7575
  %v7776 = vunpack.c.l.b16 %v7576
  %v7777 = vunpack.c.l.b16 %v7577
  %v7778 = vunpack.c.l.b16 %v7578
  %v7779 = vunpack.c.l.b16 %v7579
  %v7780 = vunpack.c.l.b16 %v7580
  %v7781 = vunpack.c.l.b16 %v7581
  %v7782 = vunpack.c.l.b16 %v7582
  %v7783 = vunpack.c.l.b16 %v7583
  %v7784 = vunpack.c.l.b16 %v7584
  %v7785 = vunpack.c.l.b16 %v7585
  %v7786 = vunpack.c.l.b16 %v7586
  %v7787 = vunpack.c.l.b16 %v7587
  %v7788 = vunpack.c.l.b16 %v7588
  %v7789 = vunpack.c.l.b16 %v7589
  %v7790 = vunpack.c.l.b16 %v7590
  %v7791 = vunpack.c.l.b16 %v7591
  %v7792 = vunpack.c.l.b16 %v7592
  %v7793 = vunpack.c.l.b16 %v7593
  %v7794 = vunpack.c.l.b16 %v7594
  %v7795 = vunpack.c.l.b16 %v7595
  %v7796 = vunpack.c.l.b16 %v7596
  %v7797 = vunpack.c.l.b16 %v7597
  %v7798 = vunpack.c.l.b16 %v7598
  %v7799 = vunpack.c.l.b16 %v7599
  %v7800 = vunpack.c.l.b16 %v7600
  %v7801 = vunpack.c.l.b16 %v7601
  %v7802 = vunpack.c.l.b16 %v7602
  %v7803 = vunpack.c.l.b16 %v7603
  %v7804 = vunpack.c.l.b16 %v7604
  %v7805 = vunpack.c.l.b16 %v7605
  %v7806 = vunpack.c.l.b16 %v7606
  %v7807 = vunpack.c.l.b16 %v7607
  %v7808 = vunpack.c.l.b16 %v7608
  %v7809 = vunpack.c.l.b16 %v7609
  %v7810 = vunpack.c.l.b16 %v7610
  %v7811 = vunpack.c.l.b16 %v7611
  %v7812 = vunpack.c.l.b16 %v7612
  %v7813 = vunpack.c.l.b16 %v7613
  %v7814 = vunpack.c.l.b16 %v7614
  %v7815 = vunpack.c.l.b16 %v7615
  %v7816 = vunpack.c.l.b16 %v7616
  %v7817 = vunpack.c.l.b16 %v7617
  %v7818 = vunpack.c.l.b16 %v7618
  %v7819 = vunpack.c.l.b16 %v7619
  %v7820 = vunpack.c.l.b16 %v7620
  %v7821 = vunpack.c.l.b16 %v7621
  %v7822 = vunpack.c.l.b16 %v7622
  %v7823 = vunpack.c.l.b16 %v7623
  %v7824 = vunpack.c.l.b16 %v7624
  %v7825 = vunpack.c.l.b16 %v7625
  %v7826 = vunpack.c.l.b16 %v7626
  %v7827 = vunpack.c.l.b16 %v7627
  %v7828 = vunpack.c.l.b16 %v7628
  %v7829 = vunpack.c.l.b16 %v7629
  %v7830 = vunpack.c.l.b16 %v7630
  %v7831 = vunpack.c.l.b16 %v7631
  %v7832 = vpack.c.b16 %v7769, %v7768
  %v7833 = vpack.c.b16 %v7771, %v7770
  %v7834 = vpack.c.b16 %v7773, %v7772
  %v7835 = vpack.c.b16 %v7775, %v7774
  %v7836 = vpack.c.b16 %v7777, %v7776
  %v7837 = vpack.c.b16 %v7779, %v7778
  %v7838 = vpack.c.b16 %v7781, %v7780
  %v7839 = vpack.c.b16 %v7783, %v7782
  %v7840 = vpack.c.b16 %v7785, %v7784
  %v7841 = vpack.c.b16 %v7787, %v7786
  %v7842 = vpack.c.b16 %v7789, %v7788
  %v7843 = vpack.c.b16 %v7791, %v7790
  %v7844 = vpack.c.b16 %v7793, %v7792
  %v7845 = vpack.c.b16 %v7795, %v7794
  %v7846 = vpack.c.b16 %v7797, %v7796
  %v7847 = vpack.c.b16 %v7799, %v7798
  %v7848 = vpack.c.b16 %v7801, %v7800
  %v7849 = vpack.c.b16 %v7803, %v7802
  %v7850 = vpack.c.b16 %v7805, %v7804
  %v7851 = vpack.c.b16 %v7807, %v7806
  %v7852 = vpack.c.b16 %v7809, %v7808
  %v7853 = vpack.c.b16 %v7811, %v7810
  %v7854 = vpack.c.b16 %v7813, %v7812
  %v7855 = vpack.c.b16 %v7815, %v7814
  %v7856 = vpack.c.b16 %v7817, %v7816
  %v7857 = vpack.c.b16 %v7819, %v7818
  %v7858 = vpack.c.b16 %v7821, %v7820
  %v7859 = vpack.c.b16 %v7823, %v7822
  %v7860 = vpack.c.b16 %v7825, %v7824
  %v7861 = vpack.c.b16 %v7827, %v7826
  %v7862 = vpack.c.b16 %v7829, %v7828
  %v7863 = vpack.c.b16 %v7831, %v7830
  %7896 = vmatpush.bf16.msra.mxu0 %v7839
  %7897 = vmatpush.bf16.msra.mxu0 %v7838
  %7898 = vmatpush.bf16.msra.mxu0 %v7837
  %7899 = vmatpush.bf16.msra.mxu0 %v7836
  %7900 = vmatpush.bf16.msra.mxu0 %v7835
  %7901 = vmatpush.bf16.msra.mxu0 %v7834
  %7902 = vmatpush.bf16.msra.mxu0 %v7833
  %7903 = vmatpush.bf16.msra.mxu0 %v7832
  %7904 = vmatmul.bf16.gmra.mxu0 %v7640
  %v7905 = vpop.f32.mrf.mxu0
  %v7906 = vadd.f32 0.0, %v7905
  %v7907 = vpop.f32.mrf.mxu0
  %v7908 = vadd.f32 0.0, %v7907
  %7909 = vmatmul.bf16.gmra.mxu0 %v7644
  %v7910 = vpop.f32.mrf.mxu0
  %v7911 = vadd.f32 0.0, %v7910
  %v7912 = vpop.f32.mrf.mxu0
  %v7913 = vadd.f32 0.0, %v7912
  %7914 = vmatmul.bf16.gmra.mxu0 %v7648
  %v7915 = vpop.f32.mrf.mxu0
  %v7916 = vadd.f32 0.0, %v7915
  %v7917 = vpop.f32.mrf.mxu0
  %v7918 = vadd.f32 0.0, %v7917
  %7919 = vmatmul.bf16.gmra.mxu0 %v7652
  %v7920 = vpop.f32.mrf.mxu0
  %v7921 = vadd.f32 0.0, %v7920
  %v7922 = vpop.f32.mrf.mxu0
  %v7923 = vadd.f32 0.0, %v7922
  %7924 = vmatmul.bf16.gmra.mxu0 %v7656
  %v7925 = vpop.f32.mrf.mxu0
  %v7926 = vadd.f32 0.0, %v7925
  %v7927 = vpop.f32.mrf.mxu0
  %v7928 = vadd.f32 0.0, %v7927
  %7929 = vmatmul.bf16.gmra.mxu0 %v7660
  %v7930 = vpop.f32.mrf.mxu0
  %v7931 = vadd.f32 0.0, %v7930
  %v7932 = vpop.f32.mrf.mxu0
  %v7933 = vadd.f32 0.0, %v7932
  %7934 = vmatmul.bf16.gmra.mxu0 %v7664
  %v7935 = vpop.f32.mrf.mxu0
  %v7936 = vadd.f32 0.0, %v7935
  %v7937 = vpop.f32.mrf.mxu0
  %v7938 = vadd.f32 0.0, %v7937
  %7939 = vmatmul.bf16.gmra.mxu0 %v7668
  %v7940 = vpop.f32.mrf.mxu0
  %v7941 = vadd.f32 0.0, %v7940
  %v7942 = vpop.f32.mrf.mxu0
  %v7943 = vadd.f32 0.0, %v7942
  %7944 = vdwg.mxu0
  %7945 = vmatpush.bf16.msra.mxu0 %v7847
  %7946 = vmatpush.bf16.msra.mxu0 %v7846
  %7947 = vmatpush.bf16.msra.mxu0 %v7845
  %7948 = vmatpush.bf16.msra.mxu0 %v7844
  %7949 = vmatpush.bf16.msra.mxu0 %v7843
  %7950 = vmatpush.bf16.msra.mxu0 %v7842
  %7951 = vmatpush.bf16.msra.mxu0 %v7841
  %7952 = vmatpush.bf16.msra.mxu0 %v7840
  %7953 = vmatmul.bf16.gmra.mxu0 %v7641
  %v7954 = vpop.f32.mrf.mxu0
  %v7955 = vadd.f32 %v7906, %v7954
  %v7956 = vpop.f32.mrf.mxu0
  %v7957 = vadd.f32 %v7908, %v7956
  %7958 = vmatmul.bf16.gmra.mxu0 %v7645
  %v7959 = vpop.f32.mrf.mxu0
  %v7960 = vadd.f32 %v7911, %v7959
  %v7961 = vpop.f32.mrf.mxu0
  %v7962 = vadd.f32 %v7913, %v7961
  %7963 = vmatmul.bf16.gmra.mxu0 %v7649
  %v7964 = vpop.f32.mrf.mxu0
  %v7965 = vadd.f32 %v7916, %v7964
  %v7966 = vpop.f32.mrf.mxu0
  %v7967 = vadd.f32 %v7918, %v7966
  %7968 = vmatmul.bf16.gmra.mxu0 %v7653
  %v7969 = vpop.f32.mrf.mxu0
  %v7970 = vadd.f32 %v7921, %v7969
  %v7971 = vpop.f32.mrf.mxu0
  %v7972 = vadd.f32 %v7923, %v7971
  %7973 = vmatmul.bf16.gmra.mxu0 %v7657
  %v7974 = vpop.f32.mrf.mxu0
  %v7975 = vadd.f32 %v7926, %v7974
  %v7976 = vpop.f32.mrf.mxu0
  %v7977 = vadd.f32 %v7928, %v7976
  %7978 = vmatmul.bf16.gmra.mxu0 %v7661
  %v7979 = vpop.f32.mrf.mxu0
  %v7980 = vadd.f32 %v7931, %v7979
  %v7981 = vpop.f32.mrf.mxu0
  %v7982 = vadd.f32 %v7933, %v7981
  %7983 = vmatmul.bf16.gmra.mxu0 %v7665
  %v7984 = vpop.f32.mrf.mxu0
  %v7985 = vadd.f32 %v7936, %v7984
  %v7986 = vpop.f32.mrf.mxu0
  %v7987 = vadd.f32 %v7938, %v7986
  %7988 = vmatmul.bf16.gmra.mxu0 %v7669
  %v7989 = vpop.f32.mrf.mxu0
  %v7990 = vadd.f32 %v7941, %v7989
  %v7991 = vpop.f32.mrf.mxu0
  %v7992 = vadd.f32 %v7943, %v7991
  %7993 = vdwg.mxu0
  %7994 = vmatpush.bf16.msra.mxu0 %v7855
  %7995 = vmatpush.bf16.msra.mxu0 %v7854
  %7996 = vmatpush.bf16.msra.mxu0 %v7853
  %7997 = vmatpush.bf16.msra.mxu0 %v7852
  %7998 = vmatpush.bf16.msra.mxu0 %v7851
  %7999 = vmatpush.bf16.msra.mxu0 %v7850
  %8000 = vmatpush.bf16.msra.mxu0 %v7849
  %8001 = vmatpush.bf16.msra.mxu0 %v7848
  %8002 = vmatmul.bf16.gmra.mxu0 %v7642
  %v8003 = vpop.f32.mrf.mxu0
  %v8004 = vadd.f32 %v7955, %v8003
  %v8005 = vpop.f32.mrf.mxu0
  %v8006 = vadd.f32 %v7957, %v8005
  %8007 = vmatmul.bf16.gmra.mxu0 %v7646
  %v8008 = vpop.f32.mrf.mxu0
  %v8009 = vadd.f32 %v7960, %v8008
  %v8010 = vpop.f32.mrf.mxu0
  %v8011 = vadd.f32 %v7962, %v8010
  %8012 = vmatmul.bf16.gmra.mxu0 %v7650
  %v8013 = vpop.f32.mrf.mxu0
  %v8014 = vadd.f32 %v7965, %v8013
  %v8015 = vpop.f32.mrf.mxu0
  %v8016 = vadd.f32 %v7967, %v8015
  %8017 = vmatmul.bf16.gmra.mxu0 %v7654
  %v8018 = vpop.f32.mrf.mxu0
  %v8019 = vadd.f32 %v7970, %v8018
  %v8020 = vpop.f32.mrf.mxu0
  %v8021 = vadd.f32 %v7972, %v8020
  %8022 = vmatmul.bf16.gmra.mxu0 %v7658
  %v8023 = vpop.f32.mrf.mxu0
  %v8024 = vadd.f32 %v7975, %v8023
  %v8025 = vpop.f32.mrf.mxu0
  %v8026 = vadd.f32 %v7977, %v8025
  %8027 = vmatmul.bf16.gmra.mxu0 %v7662
  %v8028 = vpop.f32.mrf.mxu0
  %v8029 = vadd.f32 %v7980, %v8028
  %v8030 = vpop.f32.mrf.mxu0
  %v8031 = vadd.f32 %v7982, %v8030
  %8032 = vmatmul.bf16.gmra.mxu0 %v7666
  %v8033 = vpop.f32.mrf.mxu0
  %v8034 = vadd.f32 %v7985, %v8033
  %v8035 = vpop.f32.mrf.mxu0
  %v8036 = vadd.f32 %v7987, %v8035
  %8037 = vmatmul.bf16.gmra.mxu0 %v7670
  %v8038 = vpop.f32.mrf.mxu0
  %v8039 = vadd.f32 %v7990, %v8038
  %v8040 = vpop.f32.mrf.mxu0
  %v8041 = vadd.f32 %v7992, %v8040
  %8042 = vdwg.mxu0
  %8043 = vmatpush.bf16.msra.mxu0 %v7863
  %8044 = vmatpush.bf16.msra.mxu0 %v7862
  %8045 = vmatpush.bf16.msra.mxu0 %v7861
  %8046 = vmatpush.bf16.msra.mxu0 %v7860
  %8047 = vmatpush.bf16.msra.mxu0 %v7859
  %8048 = vmatpush.bf16.msra.mxu0 %v7858
  %8049 = vmatpush.bf16.msra.mxu0 %v7857
  %8050 = vmatpush.bf16.msra.mxu0 %v7856
  %8051 = vmatmul.bf16.gmra.mxu0 %v7643
  %v8052 = vpop.f32.mrf.mxu0
  %v8053 = vadd.f32 %v8004, %v8052
  %v8054 = vpop.f32.mrf.mxu0
  %v8055 = vadd.f32 %v8006, %v8054
  %8056 = vmatmul.bf16.gmra.mxu0 %v7647
  %v8057 = vpop.f32.mrf.mxu0
  %v8058 = vadd.f32 %v8009, %v8057
  %v8059 = vpop.f32.mrf.mxu0
  %v8060 = vadd.f32 %v8011, %v8059
  %8061 = vmatmul.bf16.gmra.mxu0 %v7651
  %v8062 = vpop.f32.mrf.mxu0
  %v8063 = vadd.f32 %v8014, %v8062
  %v8064 = vpop.f32.mrf.mxu0
  %v8065 = vadd.f32 %v8016, %v8064
  %8066 = vmatmul.bf16.gmra.mxu0 %v7655
  %v8067 = vpop.f32.mrf.mxu0
  %v8068 = vadd.f32 %v8019, %v8067
  %v8069 = vpop.f32.mrf.mxu0
  %v8070 = vadd.f32 %v8021, %v8069
  %8071 = vmatmul.bf16.gmra.mxu0 %v7659
  %v8072 = vpop.f32.mrf.mxu0
  %v8073 = vadd.f32 %v8024, %v8072
  %v8074 = vpop.f32.mrf.mxu0
  %v8075 = vadd.f32 %v8026, %v8074
  %8076 = vmatmul.bf16.gmra.mxu0 %v7663
  %v8077 = vpop.f32.mrf.mxu0
  %v8078 = vadd.f32 %v8029, %v8077
  %v8079 = vpop.f32.mrf.mxu0
  %v8080 = vadd.f32 %v8031, %v8079
  %8081 = vmatmul.bf16.gmra.mxu0 %v7667
  %v8082 = vpop.f32.mrf.mxu0
  %v8083 = vadd.f32 %v8034, %v8082
  %v8084 = vpop.f32.mrf.mxu0
  %v8085 = vadd.f32 %v8036, %v8084
  %8086 = vmatmul.bf16.gmra.mxu0 %v7671
  %v8087 = vpop.f32.mrf.mxu0
  %v8088 = vadd.f32 %v8039, %v8087
  %v8089 = vpop.f32.mrf.mxu0
  %v8090 = vadd.f32 %v8041, %v8089
  %8091 = vdwg.mxu0
  %v8092 = vadd.f32 %v7531, %v8053
  %v8093 = vadd.f32 %v7532, %v8055
  %v8094 = vadd.f32 %v7533, %v8058
  %v8095 = vadd.f32 %v7534, %v8060
  %v8096 = vadd.f32 %v7535, %v8063
  %v8097 = vadd.f32 %v7536, %v8065
  %v8098 = vadd.f32 %v7537, %v8068
  %v8099 = vadd.f32 %v7538, %v8070
  %v8100 = vadd.f32 %v7539, %v8073
  %v8101 = vadd.f32 %v7540, %v8075
  %v8102 = vadd.f32 %v7541, %v8078
  %v8103 = vadd.f32 %v7542, %v8080
  %v8104 = vadd.f32 %v7543, %v8083
  %v8105 = vadd.f32 %v7544, %v8085
  %v8106 = vadd.f32 %v7545, %v8088
  %v8107 = vadd.f32 %v7546, %v8090
  %s8108 = scalar_lea.vmem %s8, 1536
  %v8109 = vld [vmem:[%s8108] sm:$0xf]
  %v8110 = vld [vmem:[%s8108 + $0x4] sm:$0xf]
  %v8111 = vld [vmem:[%s8108 + $0x8] sm:$0xf]
  %v8112 = vld [vmem:[%s8108 + $0xc] sm:$0xf]
  %v8113 = vld [vmem:[%s8108 + $0x10] sm:$0xf]
  %v8114 = vld [vmem:[%s8108 + $0x14] sm:$0xf]
  %v8115 = vld [vmem:[%s8108 + $0x18] sm:$0xf]
  %v8116 = vld [vmem:[%s8108 + $0x1c] sm:$0xf]
  %v8117 = vld [vmem:[%s8108 + $0x20] sm:$0xf]
  %v8118 = vld [vmem:[%s8108 + $0x24] sm:$0xf]
  %v8119 = vld [vmem:[%s8108 + $0x28] sm:$0xf]
  %v8120 = vld [vmem:[%s8108 + $0x2c] sm:$0xf]
  %v8121 = vld [vmem:[%s8108 + $0x30] sm:$0xf]
  %v8122 = vld [vmem:[%s8108 + $0x34] sm:$0xf]
  %v8123 = vld [vmem:[%s8108 + $0x38] sm:$0xf]
  %v8124 = vld [vmem:[%s8108 + $0x3c] sm:$0xf]
  %v8125 = vld [vmem:[%s8108 + $0x40] sm:$0xf]
  %v8126 = vld [vmem:[%s8108 + $0x44] sm:$0xf]
  %v8127 = vld [vmem:[%s8108 + $0x48] sm:$0xf]
  %v8128 = vld [vmem:[%s8108 + $0x4c] sm:$0xf]
  %v8129 = vld [vmem:[%s8108 + $0x50] sm:$0xf]
  %v8130 = vld [vmem:[%s8108 + $0x54] sm:$0xf]
  %v8131 = vld [vmem:[%s8108 + $0x58] sm:$0xf]
  %v8132 = vld [vmem:[%s8108 + $0x5c] sm:$0xf]
  %v8133 = vld [vmem:[%s8108 + $0x60] sm:$0xf]
  %v8134 = vld [vmem:[%s8108 + $0x64] sm:$0xf]
  %v8135 = vld [vmem:[%s8108 + $0x68] sm:$0xf]
  %v8136 = vld [vmem:[%s8108 + $0x6c] sm:$0xf]
  %v8137 = vld [vmem:[%s8108 + $0x70] sm:$0xf]
  %v8138 = vld [vmem:[%s8108 + $0x74] sm:$0xf]
  %v8139 = vld [vmem:[%s8108 + $0x78] sm:$0xf]
  %v8140 = vld [vmem:[%s8108 + $0x7c] sm:$0xf]
  %v8141 = vld [vmem:[%s8108 + $0x80] sm:$0xf]
  %v8142 = vld [vmem:[%s8108 + $0x84] sm:$0xf]
  %v8143 = vld [vmem:[%s8108 + $0x88] sm:$0xf]
  %v8144 = vld [vmem:[%s8108 + $0x8c] sm:$0xf]
  %v8145 = vld [vmem:[%s8108 + $0x90] sm:$0xf]
  %v8146 = vld [vmem:[%s8108 + $0x94] sm:$0xf]
  %v8147 = vld [vmem:[%s8108 + $0x98] sm:$0xf]
  %v8148 = vld [vmem:[%s8108 + $0x9c] sm:$0xf]
  %v8149 = vld [vmem:[%s8108 + $0xa0] sm:$0xf]
  %v8150 = vld [vmem:[%s8108 + $0xa4] sm:$0xf]
  %v8151 = vld [vmem:[%s8108 + $0xa8] sm:$0xf]
  %v8152 = vld [vmem:[%s8108 + $0xac] sm:$0xf]
  %v8153 = vld [vmem:[%s8108 + $0xb0] sm:$0xf]
  %v8154 = vld [vmem:[%s8108 + $0xb4] sm:$0xf]
  %v8155 = vld [vmem:[%s8108 + $0xb8] sm:$0xf]
  %v8156 = vld [vmem:[%s8108 + $0xbc] sm:$0xf]
  %v8157 = vld [vmem:[%s8108 + $0xc0] sm:$0xf]
  %v8158 = vld [vmem:[%s8108 + $0xc4] sm:$0xf]
  %v8159 = vld [vmem:[%s8108 + $0xc8] sm:$0xf]
  %v8160 = vld [vmem:[%s8108 + $0xcc] sm:$0xf]
  %v8161 = vld [vmem:[%s8108 + $0xd0] sm:$0xf]
  %v8162 = vld [vmem:[%s8108 + $0xd4] sm:$0xf]
  %v8163 = vld [vmem:[%s8108 + $0xd8] sm:$0xf]
  %v8164 = vld [vmem:[%s8108 + $0xdc] sm:$0xf]
  %v8165 = vld [vmem:[%s8108 + $0xe0] sm:$0xf]
  %v8166 = vld [vmem:[%s8108 + $0xe4] sm:$0xf]
  %v8167 = vld [vmem:[%s8108 + $0xe8] sm:$0xf]
  %v8168 = vld [vmem:[%s8108 + $0xec] sm:$0xf]
  %v8169 = vld [vmem:[%s8108 + $0xf0] sm:$0xf]
  %v8170 = vld [vmem:[%s8108 + $0xf4] sm:$0xf]
  %v8171 = vld [vmem:[%s8108 + $0xf8] sm:$0xf]
  %v8172 = vld [vmem:[%s8108 + $0xfc] sm:$0xf]
  %v8177 = vunpack.c.l.b16 %v3957
  %v8178 = vunpack.c.h.b16 %v3957
  %v8179 = vunpack.c.l.b16 %v3958
  %v8180 = vunpack.c.h.b16 %v3958
  %v8181 = vunpack.c.l.b16 %v3997
  %v8182 = vunpack.c.h.b16 %v3997
  %v8183 = vunpack.c.l.b16 %v3998
  %v8184 = vunpack.c.h.b16 %v3998
  %v8185 = vpack.c.b16 %v8177, %v6474
  %v8186 = vpack.c.b16 %v8178, %v6475
  %v8187 = vpack.c.b16 %v8179, %v6476
  %v8188 = vpack.c.b16 %v8180, %v6477
  %v8189 = vpack.c.b16 %v8181, %v6478
  %v8190 = vpack.c.b16 %v8182, %v6479
  %v8191 = vpack.c.b16 %v8183, %v6480
  %v8192 = vpack.c.b16 %v8184, %v6481
  %v8265 = vunpack.c.l.b16 %v8109
  %v8266 = vunpack.c.l.b16 %v8110
  %v8267 = vunpack.c.l.b16 %v8111
  %v8268 = vunpack.c.l.b16 %v8112
  %v8269 = vunpack.c.l.b16 %v8113
  %v8270 = vunpack.c.l.b16 %v8114
  %v8271 = vunpack.c.l.b16 %v8115
  %v8272 = vunpack.c.l.b16 %v8116
  %v8273 = vunpack.c.l.b16 %v8117
  %v8274 = vunpack.c.l.b16 %v8118
  %v8275 = vunpack.c.l.b16 %v8119
  %v8276 = vunpack.c.l.b16 %v8120
  %v8277 = vunpack.c.l.b16 %v8121
  %v8278 = vunpack.c.l.b16 %v8122
  %v8279 = vunpack.c.l.b16 %v8123
  %v8280 = vunpack.c.l.b16 %v8124
  %v8281 = vunpack.c.l.b16 %v8125
  %v8282 = vunpack.c.l.b16 %v8126
  %v8283 = vunpack.c.l.b16 %v8127
  %v8284 = vunpack.c.l.b16 %v8128
  %v8285 = vunpack.c.l.b16 %v8129
  %v8286 = vunpack.c.l.b16 %v8130
  %v8287 = vunpack.c.l.b16 %v8131
  %v8288 = vunpack.c.l.b16 %v8132
  %v8289 = vunpack.c.l.b16 %v8133
  %v8290 = vunpack.c.l.b16 %v8134
  %v8291 = vunpack.c.l.b16 %v8135
  %v8292 = vunpack.c.l.b16 %v8136
  %v8293 = vunpack.c.l.b16 %v8137
  %v8294 = vunpack.c.l.b16 %v8138
  %v8295 = vunpack.c.l.b16 %v8139
  %v8296 = vunpack.c.l.b16 %v8140
  %v8297 = vunpack.c.l.b16 %v8141
  %v8298 = vunpack.c.l.b16 %v8142
  %v8299 = vunpack.c.l.b16 %v8143
  %v8300 = vunpack.c.l.b16 %v8144
  %v8301 = vunpack.c.l.b16 %v8145
  %v8302 = vunpack.c.l.b16 %v8146
  %v8303 = vunpack.c.l.b16 %v8147
  %v8304 = vunpack.c.l.b16 %v8148
  %v8305 = vunpack.c.l.b16 %v8149
  %v8306 = vunpack.c.l.b16 %v8150
  %v8307 = vunpack.c.l.b16 %v8151
  %v8308 = vunpack.c.l.b16 %v8152
  %v8309 = vunpack.c.l.b16 %v8153
  %v8310 = vunpack.c.l.b16 %v8154
  %v8311 = vunpack.c.l.b16 %v8155
  %v8312 = vunpack.c.l.b16 %v8156
  %v8313 = vunpack.c.l.b16 %v8157
  %v8314 = vunpack.c.l.b16 %v8158
  %v8315 = vunpack.c.l.b16 %v8159
  %v8316 = vunpack.c.l.b16 %v8160
  %v8317 = vunpack.c.l.b16 %v8161
  %v8318 = vunpack.c.l.b16 %v8162
  %v8319 = vunpack.c.l.b16 %v8163
  %v8320 = vunpack.c.l.b16 %v8164
  %v8321 = vunpack.c.l.b16 %v8165
  %v8322 = vunpack.c.l.b16 %v8166
  %v8323 = vunpack.c.l.b16 %v8167
  %v8324 = vunpack.c.l.b16 %v8168
  %v8325 = vunpack.c.l.b16 %v8169
  %v8326 = vunpack.c.l.b16 %v8170
  %v8327 = vunpack.c.l.b16 %v8171
  %v8328 = vunpack.c.l.b16 %v8172
  %v8329 = vpack.c.b16 %v8266, %v8265
  %v8330 = vpack.c.b16 %v8268, %v8267
  %v8331 = vpack.c.b16 %v8270, %v8269
  %v8332 = vpack.c.b16 %v8272, %v8271
  %v8333 = vpack.c.b16 %v8274, %v8273
  %v8334 = vpack.c.b16 %v8276, %v8275
  %v8335 = vpack.c.b16 %v8278, %v8277
  %v8336 = vpack.c.b16 %v8280, %v8279
  %v8337 = vpack.c.b16 %v8282, %v8281
  %v8338 = vpack.c.b16 %v8284, %v8283
  %v8339 = vpack.c.b16 %v8286, %v8285
  %v8340 = vpack.c.b16 %v8288, %v8287
  %v8341 = vpack.c.b16 %v8290, %v8289
  %v8342 = vpack.c.b16 %v8292, %v8291
  %v8343 = vpack.c.b16 %v8294, %v8293
  %v8344 = vpack.c.b16 %v8296, %v8295
  %v8345 = vpack.c.b16 %v8298, %v8297
  %v8346 = vpack.c.b16 %v8300, %v8299
  %v8347 = vpack.c.b16 %v8302, %v8301
  %v8348 = vpack.c.b16 %v8304, %v8303
  %v8349 = vpack.c.b16 %v8306, %v8305
  %v8350 = vpack.c.b16 %v8308, %v8307
  %v8351 = vpack.c.b16 %v8310, %v8309
  %v8352 = vpack.c.b16 %v8312, %v8311
  %v8353 = vpack.c.b16 %v8314, %v8313
  %v8354 = vpack.c.b16 %v8316, %v8315
  %v8355 = vpack.c.b16 %v8318, %v8317
  %v8356 = vpack.c.b16 %v8320, %v8319
  %v8357 = vpack.c.b16 %v8322, %v8321
  %v8358 = vpack.c.b16 %v8324, %v8323
  %v8359 = vpack.c.b16 %v8326, %v8325
  %v8360 = vpack.c.b16 %v8328, %v8327
  %8393 = vmatpush.bf16.msra.mxu0 %v8336
  %8394 = vmatpush.bf16.msra.mxu0 %v8335
  %8395 = vmatpush.bf16.msra.mxu0 %v8334
  %8396 = vmatpush.bf16.msra.mxu0 %v8333
  %8397 = vmatpush.bf16.msra.mxu0 %v8332
  %8398 = vmatpush.bf16.msra.mxu0 %v8331
  %8399 = vmatpush.bf16.msra.mxu0 %v8330
  %8400 = vmatpush.bf16.msra.mxu0 %v8329
  %8401 = vmatmul.bf16.gmra.mxu0 %v5197
  %v8402 = vpop.f32.mrf.mxu0
  %v8403 = vadd.f32 0.0, %v8402
  %v8404 = vpop.f32.mrf.mxu0
  %v8405 = vadd.f32 0.0, %v8404
  %8406 = vmatmul.bf16.gmra.mxu0 %v5201
  %v8407 = vpop.f32.mrf.mxu0
  %v8408 = vadd.f32 0.0, %v8407
  %v8409 = vpop.f32.mrf.mxu0
  %v8410 = vadd.f32 0.0, %v8409
  %8411 = vmatmul.bf16.gmra.mxu0 %v5205
  %v8412 = vpop.f32.mrf.mxu0
  %v8413 = vadd.f32 0.0, %v8412
  %v8414 = vpop.f32.mrf.mxu0
  %v8415 = vadd.f32 0.0, %v8414
  %8416 = vmatmul.bf16.gmra.mxu0 %v8185
  %v8417 = vpop.f32.mrf.mxu0
  %v8418 = vadd.f32 0.0, %v8417
  %v8419 = vpop.f32.mrf.mxu0
  %v8420 = vadd.f32 0.0, %v8419
  %8421 = vmatmul.bf16.gmra.mxu0 %v5213
  %v8422 = vpop.f32.mrf.mxu0
  %v8423 = vadd.f32 0.0, %v8422
  %v8424 = vpop.f32.mrf.mxu0
  %v8425 = vadd.f32 0.0, %v8424
  %8426 = vmatmul.bf16.gmra.mxu0 %v5217
  %v8427 = vpop.f32.mrf.mxu0
  %v8428 = vadd.f32 0.0, %v8427
  %v8429 = vpop.f32.mrf.mxu0
  %v8430 = vadd.f32 0.0, %v8429
  %8431 = vmatmul.bf16.gmra.mxu0 %v5221
  %v8432 = vpop.f32.mrf.mxu0
  %v8433 = vadd.f32 0.0, %v8432
  %v8434 = vpop.f32.mrf.mxu0
  %v8435 = vadd.f32 0.0, %v8434
  %8436 = vmatmul.bf16.gmra.mxu0 %v8189
  %v8437 = vpop.f32.mrf.mxu0
  %v8438 = vadd.f32 0.0, %v8437
  %v8439 = vpop.f32.mrf.mxu0
  %v8440 = vadd.f32 0.0, %v8439
  %8441 = vdwg.mxu0
  %8442 = vmatpush.bf16.msra.mxu0 %v8344
  %8443 = vmatpush.bf16.msra.mxu0 %v8343
  %8444 = vmatpush.bf16.msra.mxu0 %v8342
  %8445 = vmatpush.bf16.msra.mxu0 %v8341
  %8446 = vmatpush.bf16.msra.mxu0 %v8340
  %8447 = vmatpush.bf16.msra.mxu0 %v8339
  %8448 = vmatpush.bf16.msra.mxu0 %v8338
  %8449 = vmatpush.bf16.msra.mxu0 %v8337
  %8450 = vmatmul.bf16.gmra.mxu0 %v5198
  %v8451 = vpop.f32.mrf.mxu0
  %v8452 = vadd.f32 %v8403, %v8451
  %v8453 = vpop.f32.mrf.mxu0
  %v8454 = vadd.f32 %v8405, %v8453
  %8455 = vmatmul.bf16.gmra.mxu0 %v5202
  %v8456 = vpop.f32.mrf.mxu0
  %v8457 = vadd.f32 %v8408, %v8456
  %v8458 = vpop.f32.mrf.mxu0
  %v8459 = vadd.f32 %v8410, %v8458
  %8460 = vmatmul.bf16.gmra.mxu0 %v5206
  %v8461 = vpop.f32.mrf.mxu0
  %v8462 = vadd.f32 %v8413, %v8461
  %v8463 = vpop.f32.mrf.mxu0
  %v8464 = vadd.f32 %v8415, %v8463
  %8465 = vmatmul.bf16.gmra.mxu0 %v8186
  %v8466 = vpop.f32.mrf.mxu0
  %v8467 = vadd.f32 %v8418, %v8466
  %v8468 = vpop.f32.mrf.mxu0
  %v8469 = vadd.f32 %v8420, %v8468
  %8470 = vmatmul.bf16.gmra.mxu0 %v5214
  %v8471 = vpop.f32.mrf.mxu0
  %v8472 = vadd.f32 %v8423, %v8471
  %v8473 = vpop.f32.mrf.mxu0
  %v8474 = vadd.f32 %v8425, %v8473
  %8475 = vmatmul.bf16.gmra.mxu0 %v5218
  %v8476 = vpop.f32.mrf.mxu0
  %v8477 = vadd.f32 %v8428, %v8476
  %v8478 = vpop.f32.mrf.mxu0
  %v8479 = vadd.f32 %v8430, %v8478
  %8480 = vmatmul.bf16.gmra.mxu0 %v5222
  %v8481 = vpop.f32.mrf.mxu0
  %v8482 = vadd.f32 %v8433, %v8481
  %v8483 = vpop.f32.mrf.mxu0
  %v8484 = vadd.f32 %v8435, %v8483
  %8485 = vmatmul.bf16.gmra.mxu0 %v8190
  %v8486 = vpop.f32.mrf.mxu0
  %v8487 = vadd.f32 %v8438, %v8486
  %v8488 = vpop.f32.mrf.mxu0
  %v8489 = vadd.f32 %v8440, %v8488
  %8490 = vdwg.mxu0
  %8491 = vmatpush.bf16.msra.mxu0 %v8352
  %8492 = vmatpush.bf16.msra.mxu0 %v8351
  %8493 = vmatpush.bf16.msra.mxu0 %v8350
  %8494 = vmatpush.bf16.msra.mxu0 %v8349
  %8495 = vmatpush.bf16.msra.mxu0 %v8348
  %8496 = vmatpush.bf16.msra.mxu0 %v8347
  %8497 = vmatpush.bf16.msra.mxu0 %v8346
  %8498 = vmatpush.bf16.msra.mxu0 %v8345
  %8499 = vmatmul.bf16.gmra.mxu0 %v5199
  %v8500 = vpop.f32.mrf.mxu0
  %v8501 = vadd.f32 %v8452, %v8500
  %v8502 = vpop.f32.mrf.mxu0
  %v8503 = vadd.f32 %v8454, %v8502
  %8504 = vmatmul.bf16.gmra.mxu0 %v5203
  %v8505 = vpop.f32.mrf.mxu0
  %v8506 = vadd.f32 %v8457, %v8505
  %v8507 = vpop.f32.mrf.mxu0
  %v8508 = vadd.f32 %v8459, %v8507
  %8509 = vmatmul.bf16.gmra.mxu0 %v5207
  %v8510 = vpop.f32.mrf.mxu0
  %v8511 = vadd.f32 %v8462, %v8510
  %v8512 = vpop.f32.mrf.mxu0
  %v8513 = vadd.f32 %v8464, %v8512
  %8514 = vmatmul.bf16.gmra.mxu0 %v8187
  %v8515 = vpop.f32.mrf.mxu0
  %v8516 = vadd.f32 %v8467, %v8515
  %v8517 = vpop.f32.mrf.mxu0
  %v8518 = vadd.f32 %v8469, %v8517
  %8519 = vmatmul.bf16.gmra.mxu0 %v5215
  %v8520 = vpop.f32.mrf.mxu0
  %v8521 = vadd.f32 %v8472, %v8520
  %v8522 = vpop.f32.mrf.mxu0
  %v8523 = vadd.f32 %v8474, %v8522
  %8524 = vmatmul.bf16.gmra.mxu0 %v5219
  %v8525 = vpop.f32.mrf.mxu0
  %v8526 = vadd.f32 %v8477, %v8525
  %v8527 = vpop.f32.mrf.mxu0
  %v8528 = vadd.f32 %v8479, %v8527
  %8529 = vmatmul.bf16.gmra.mxu0 %v5223
  %v8530 = vpop.f32.mrf.mxu0
  %v8531 = vadd.f32 %v8482, %v8530
  %v8532 = vpop.f32.mrf.mxu0
  %v8533 = vadd.f32 %v8484, %v8532
  %8534 = vmatmul.bf16.gmra.mxu0 %v8191
  %v8535 = vpop.f32.mrf.mxu0
  %v8536 = vadd.f32 %v8487, %v8535
  %v8537 = vpop.f32.mrf.mxu0
  %v8538 = vadd.f32 %v8489, %v8537
  %8539 = vdwg.mxu0
  %8540 = vmatpush.bf16.msra.mxu0 %v8360
  %8541 = vmatpush.bf16.msra.mxu0 %v8359
  %8542 = vmatpush.bf16.msra.mxu0 %v8358
  %8543 = vmatpush.bf16.msra.mxu0 %v8357
  %8544 = vmatpush.bf16.msra.mxu0 %v8356
  %8545 = vmatpush.bf16.msra.mxu0 %v8355
  %8546 = vmatpush.bf16.msra.mxu0 %v8354
  %8547 = vmatpush.bf16.msra.mxu0 %v8353
  %8548 = vmatmul.bf16.gmra.mxu0 %v5200
  %v8549 = vpop.f32.mrf.mxu0
  %v8550 = vadd.f32 %v8501, %v8549
  %v8551 = vpop.f32.mrf.mxu0
  %v8552 = vadd.f32 %v8503, %v8551
  %8553 = vmatmul.bf16.gmra.mxu0 %v5204
  %v8554 = vpop.f32.mrf.mxu0
  %v8555 = vadd.f32 %v8506, %v8554
  %v8556 = vpop.f32.mrf.mxu0
  %v8557 = vadd.f32 %v8508, %v8556
  %8558 = vmatmul.bf16.gmra.mxu0 %v5208
  %v8559 = vpop.f32.mrf.mxu0
  %v8560 = vadd.f32 %v8511, %v8559
  %v8561 = vpop.f32.mrf.mxu0
  %v8562 = vadd.f32 %v8513, %v8561
  %8563 = vmatmul.bf16.gmra.mxu0 %v8188
  %v8564 = vpop.f32.mrf.mxu0
  %v8565 = vadd.f32 %v8516, %v8564
  %v8566 = vpop.f32.mrf.mxu0
  %v8567 = vadd.f32 %v8518, %v8566
  %8568 = vmatmul.bf16.gmra.mxu0 %v5216
  %v8569 = vpop.f32.mrf.mxu0
  %v8570 = vadd.f32 %v8521, %v8569
  %v8571 = vpop.f32.mrf.mxu0
  %v8572 = vadd.f32 %v8523, %v8571
  %8573 = vmatmul.bf16.gmra.mxu0 %v5220
  %v8574 = vpop.f32.mrf.mxu0
  %v8575 = vadd.f32 %v8526, %v8574
  %v8576 = vpop.f32.mrf.mxu0
  %v8577 = vadd.f32 %v8528, %v8576
  %8578 = vmatmul.bf16.gmra.mxu0 %v5224
  %v8579 = vpop.f32.mrf.mxu0
  %v8580 = vadd.f32 %v8531, %v8579
  %v8581 = vpop.f32.mrf.mxu0
  %v8582 = vadd.f32 %v8533, %v8581
  %8583 = vmatmul.bf16.gmra.mxu0 %v8192
  %v8584 = vpop.f32.mrf.mxu0
  %v8585 = vadd.f32 %v8536, %v8584
  %v8586 = vpop.f32.mrf.mxu0
  %v8587 = vadd.f32 %v8538, %v8586
  %8588 = vdwg.mxu0
  %v8589 = vadd.f32 %v8092, %v8550
  %v8590 = vadd.f32 %v8093, %v8552
  %v8591 = vadd.f32 %v8094, %v8555
  %v8592 = vadd.f32 %v8095, %v8557
  %v8593 = vadd.f32 %v8096, %v8560
  %v8594 = vadd.f32 %v8097, %v8562
  %v8595 = vadd.f32 %v8098, %v8565
  %v8596 = vadd.f32 %v8099, %v8567
  %v8597 = vadd.f32 %v8100, %v8570
  %v8598 = vadd.f32 %v8101, %v8572
  %v8599 = vadd.f32 %v8102, %v8575
  %v8600 = vadd.f32 %v8103, %v8577
  %v8601 = vadd.f32 %v8104, %v8580
  %v8602 = vadd.f32 %v8105, %v8582
  %v8603 = vadd.f32 %v8106, %v8585
  %v8604 = vadd.f32 %v8107, %v8587
  %v8606 = vshrl.u32 %v3957, 16
  %v8608 = vrot.slane %v8606, 4
  %v8609 = vshll.u32 %v3957, 16
  %v8611 = vrot.slane %v8609, 5
  %v8612 = vor.u32 %v8608, %v8611
  %v8613 = vrot.slane %v8612, 4
  %v8615 = vshll.u32 %v3959, 16
  %v8617 = vrot.slane %v8615, 5
  %v8618 = vsel %vm4067, %v8613, %v8617
  %v8620 = vshrl.u32 %v3958, 16
  %v8622 = vrot.slane %v8620, 4
  %v8623 = vshll.u32 %v3958, 16
  %v8625 = vrot.slane %v8623, 5
  %v8626 = vor.u32 %v8622, %v8625
  %v8627 = vrot.slane %v8626, 4
  %v8629 = vshll.u32 %v3960, 16
  %v8631 = vrot.slane %v8629, 5
  %v8632 = vsel %vm4067, %v8627, %v8631
  %v8634 = vshrl.u32 %v3997, 16
  %v8636 = vrot.slane %v8634, 4
  %v8637 = vshll.u32 %v3997, 16
  %v8639 = vrot.slane %v8637, 5
  %v8640 = vor.u32 %v8636, %v8639
  %v8641 = vrot.slane %v8640, 4
  %v8643 = vshll.u32 %v3999, 16
  %v8645 = vrot.slane %v8643, 5
  %v8646 = vsel %vm4067, %v8641, %v8645
  %v8648 = vshrl.u32 %v3998, 16
  %v8650 = vrot.slane %v8648, 4
  %v8651 = vshll.u32 %v3998, 16
  %v8653 = vrot.slane %v8651, 5
  %v8654 = vor.u32 %v8650, %v8653
  %v8655 = vrot.slane %v8654, 4
  %v8657 = vshll.u32 %v4000, 16
  %v8659 = vrot.slane %v8657, 5
  %v8660 = vsel %vm4067, %v8655, %v8659
  %s8661 = scalar_lea.vmem %s8, 1792
  %v8662 = vld [vmem:[%s8661] sm:$0xf]
  %v8663 = vld [vmem:[%s8661 + $0x4] sm:$0xf]
  %v8664 = vld [vmem:[%s8661 + $0x8] sm:$0xf]
  %v8665 = vld [vmem:[%s8661 + $0xc] sm:$0xf]
  %v8666 = vld [vmem:[%s8661 + $0x10] sm:$0xf]
  %v8667 = vld [vmem:[%s8661 + $0x14] sm:$0xf]
  %v8668 = vld [vmem:[%s8661 + $0x18] sm:$0xf]
  %v8669 = vld [vmem:[%s8661 + $0x1c] sm:$0xf]
  %v8670 = vld [vmem:[%s8661 + $0x20] sm:$0xf]
  %v8671 = vld [vmem:[%s8661 + $0x24] sm:$0xf]
  %v8672 = vld [vmem:[%s8661 + $0x28] sm:$0xf]
  %v8673 = vld [vmem:[%s8661 + $0x2c] sm:$0xf]
  %v8674 = vld [vmem:[%s8661 + $0x30] sm:$0xf]
  %v8675 = vld [vmem:[%s8661 + $0x34] sm:$0xf]
  %v8676 = vld [vmem:[%s8661 + $0x38] sm:$0xf]
  %v8677 = vld [vmem:[%s8661 + $0x3c] sm:$0xf]
  %v8678 = vld [vmem:[%s8661 + $0x40] sm:$0xf]
  %v8679 = vld [vmem:[%s8661 + $0x44] sm:$0xf]
  %v8680 = vld [vmem:[%s8661 + $0x48] sm:$0xf]
  %v8681 = vld [vmem:[%s8661 + $0x4c] sm:$0xf]
  %v8682 = vld [vmem:[%s8661 + $0x50] sm:$0xf]
  %v8683 = vld [vmem:[%s8661 + $0x54] sm:$0xf]
  %v8684 = vld [vmem:[%s8661 + $0x58] sm:$0xf]
  %v8685 = vld [vmem:[%s8661 + $0x5c] sm:$0xf]
  %v8686 = vld [vmem:[%s8661 + $0x60] sm:$0xf]
  %v8687 = vld [vmem:[%s8661 + $0x64] sm:$0xf]
  %v8688 = vld [vmem:[%s8661 + $0x68] sm:$0xf]
  %v8689 = vld [vmem:[%s8661 + $0x6c] sm:$0xf]
  %v8690 = vld [vmem:[%s8661 + $0x70] sm:$0xf]
  %v8691 = vld [vmem:[%s8661 + $0x74] sm:$0xf]
  %v8692 = vld [vmem:[%s8661 + $0x78] sm:$0xf]
  %v8693 = vld [vmem:[%s8661 + $0x7c] sm:$0xf]
  %v8694 = vld [vmem:[%s8661 + $0x80] sm:$0xf]
  %v8695 = vld [vmem:[%s8661 + $0x84] sm:$0xf]
  %v8696 = vld [vmem:[%s8661 + $0x88] sm:$0xf]
  %v8697 = vld [vmem:[%s8661 + $0x8c] sm:$0xf]
  %v8698 = vld [vmem:[%s8661 + $0x90] sm:$0xf]
  %v8699 = vld [vmem:[%s8661 + $0x94] sm:$0xf]
  %v8700 = vld [vmem:[%s8661 + $0x98] sm:$0xf]
  %v8701 = vld [vmem:[%s8661 + $0x9c] sm:$0xf]
  %v8702 = vld [vmem:[%s8661 + $0xa0] sm:$0xf]
  %v8703 = vld [vmem:[%s8661 + $0xa4] sm:$0xf]
  %v8704 = vld [vmem:[%s8661 + $0xa8] sm:$0xf]
  %v8705 = vld [vmem:[%s8661 + $0xac] sm:$0xf]
  %v8706 = vld [vmem:[%s8661 + $0xb0] sm:$0xf]
  %v8707 = vld [vmem:[%s8661 + $0xb4] sm:$0xf]
  %v8708 = vld [vmem:[%s8661 + $0xb8] sm:$0xf]
  %v8709 = vld [vmem:[%s8661 + $0xbc] sm:$0xf]
  %v8710 = vld [vmem:[%s8661 + $0xc0] sm:$0xf]
  %v8711 = vld [vmem:[%s8661 + $0xc4] sm:$0xf]
  %v8712 = vld [vmem:[%s8661 + $0xc8] sm:$0xf]
  %v8713 = vld [vmem:[%s8661 + $0xcc] sm:$0xf]
  %v8714 = vld [vmem:[%s8661 + $0xd0] sm:$0xf]
  %v8715 = vld [vmem:[%s8661 + $0xd4] sm:$0xf]
  %v8716 = vld [vmem:[%s8661 + $0xd8] sm:$0xf]
  %v8717 = vld [vmem:[%s8661 + $0xdc] sm:$0xf]
  %v8718 = vld [vmem:[%s8661 + $0xe0] sm:$0xf]
  %v8719 = vld [vmem:[%s8661 + $0xe4] sm:$0xf]
  %v8720 = vld [vmem:[%s8661 + $0xe8] sm:$0xf]
  %v8721 = vld [vmem:[%s8661 + $0xec] sm:$0xf]
  %v8722 = vld [vmem:[%s8661 + $0xf0] sm:$0xf]
  %v8723 = vld [vmem:[%s8661 + $0xf4] sm:$0xf]
  %v8724 = vld [vmem:[%s8661 + $0xf8] sm:$0xf]
  %v8725 = vld [vmem:[%s8661 + $0xfc] sm:$0xf]
  %v8726 = vunpack.c.l.b16 %v8618
  %v8727 = vunpack.c.h.b16 %v8618
  %v8728 = vunpack.c.l.b16 %v8632
  %v8729 = vunpack.c.h.b16 %v8632
  %v8730 = vunpack.c.l.b16 %v8646
  %v8731 = vunpack.c.h.b16 %v8646
  %v8732 = vunpack.c.l.b16 %v8660
  %v8733 = vunpack.c.h.b16 %v8660
  %v8734 = vpack.c.b16 %v8726, %v7071
  %v8735 = vpack.c.b16 %v8727, %v7072
  %v8736 = vpack.c.b16 %v8728, %v7073
  %v8737 = vpack.c.b16 %v8729, %v7074
  %v8738 = vpack.c.b16 %v8730, %v7075
  %v8739 = vpack.c.b16 %v8731, %v7076
  %v8740 = vpack.c.b16 %v8732, %v7077
  %v8741 = vpack.c.b16 %v8733, %v7078
  %v8814 = vunpack.c.l.b16 %v8662
  %v8815 = vunpack.c.l.b16 %v8663
  %v8816 = vunpack.c.l.b16 %v8664
  %v8817 = vunpack.c.l.b16 %v8665
  %v8818 = vunpack.c.l.b16 %v8666
  %v8819 = vunpack.c.l.b16 %v8667
  %v8820 = vunpack.c.l.b16 %v8668
  %v8821 = vunpack.c.l.b16 %v8669
  %v8822 = vunpack.c.l.b16 %v8670
  %v8823 = vunpack.c.l.b16 %v8671
  %v8824 = vunpack.c.l.b16 %v8672
  %v8825 = vunpack.c.l.b16 %v8673
  %v8826 = vunpack.c.l.b16 %v8674
  %v8827 = vunpack.c.l.b16 %v8675
  %v8828 = vunpack.c.l.b16 %v8676
  %v8829 = vunpack.c.l.b16 %v8677
  %v8830 = vunpack.c.l.b16 %v8678
  %v8831 = vunpack.c.l.b16 %v8679
  %v8832 = vunpack.c.l.b16 %v8680
  %v8833 = vunpack.c.l.b16 %v8681
  %v8834 = vunpack.c.l.b16 %v8682
  %v8835 = vunpack.c.l.b16 %v8683
  %v8836 = vunpack.c.l.b16 %v8684
  %v8837 = vunpack.c.l.b16 %v8685
  %v8838 = vunpack.c.l.b16 %v8686
  %v8839 = vunpack.c.l.b16 %v8687
  %v8840 = vunpack.c.l.b16 %v8688
  %v8841 = vunpack.c.l.b16 %v8689
  %v8842 = vunpack.c.l.b16 %v8690
  %v8843 = vunpack.c.l.b16 %v8691
  %v8844 = vunpack.c.l.b16 %v8692
  %v8845 = vunpack.c.l.b16 %v8693
  %v8846 = vunpack.c.l.b16 %v8694
  %v8847 = vunpack.c.l.b16 %v8695
  %v8848 = vunpack.c.l.b16 %v8696
  %v8849 = vunpack.c.l.b16 %v8697
  %v8850 = vunpack.c.l.b16 %v8698
  %v8851 = vunpack.c.l.b16 %v8699
  %v8852 = vunpack.c.l.b16 %v8700
  %v8853 = vunpack.c.l.b16 %v8701
  %v8854 = vunpack.c.l.b16 %v8702
  %v8855 = vunpack.c.l.b16 %v8703
  %v8856 = vunpack.c.l.b16 %v8704
  %v8857 = vunpack.c.l.b16 %v8705
  %v8858 = vunpack.c.l.b16 %v8706
  %v8859 = vunpack.c.l.b16 %v8707
  %v8860 = vunpack.c.l.b16 %v8708
  %v8861 = vunpack.c.l.b16 %v8709
  %v8862 = vunpack.c.l.b16 %v8710
  %v8863 = vunpack.c.l.b16 %v8711
  %v8864 = vunpack.c.l.b16 %v8712
  %v8865 = vunpack.c.l.b16 %v8713
  %v8866 = vunpack.c.l.b16 %v8714
  %v8867 = vunpack.c.l.b16 %v8715
  %v8868 = vunpack.c.l.b16 %v8716
  %v8869 = vunpack.c.l.b16 %v8717
  %v8870 = vunpack.c.l.b16 %v8718
  %v8871 = vunpack.c.l.b16 %v8719
  %v8872 = vunpack.c.l.b16 %v8720
  %v8873 = vunpack.c.l.b16 %v8721
  %v8874 = vunpack.c.l.b16 %v8722
  %v8875 = vunpack.c.l.b16 %v8723
  %v8876 = vunpack.c.l.b16 %v8724
  %v8877 = vunpack.c.l.b16 %v8725
  %v8878 = vpack.c.b16 %v8815, %v8814
  %v8879 = vpack.c.b16 %v8817, %v8816
  %v8880 = vpack.c.b16 %v8819, %v8818
  %v8881 = vpack.c.b16 %v8821, %v8820
  %v8882 = vpack.c.b16 %v8823, %v8822
  %v8883 = vpack.c.b16 %v8825, %v8824
  %v8884 = vpack.c.b16 %v8827, %v8826
  %v8885 = vpack.c.b16 %v8829, %v8828
  %v8886 = vpack.c.b16 %v8831, %v8830
  %v8887 = vpack.c.b16 %v8833, %v8832
  %v8888 = vpack.c.b16 %v8835, %v8834
  %v8889 = vpack.c.b16 %v8837, %v8836
  %v8890 = vpack.c.b16 %v8839, %v8838
  %v8891 = vpack.c.b16 %v8841, %v8840
  %v8892 = vpack.c.b16 %v8843, %v8842
  %v8893 = vpack.c.b16 %v8845, %v8844
  %v8894 = vpack.c.b16 %v8847, %v8846
  %v8895 = vpack.c.b16 %v8849, %v8848
  %v8896 = vpack.c.b16 %v8851, %v8850
  %v8897 = vpack.c.b16 %v8853, %v8852
  %v8898 = vpack.c.b16 %v8855, %v8854
  %v8899 = vpack.c.b16 %v8857, %v8856
  %v8900 = vpack.c.b16 %v8859, %v8858
  %v8901 = vpack.c.b16 %v8861, %v8860
  %v8902 = vpack.c.b16 %v8863, %v8862
  %v8903 = vpack.c.b16 %v8865, %v8864
  %v8904 = vpack.c.b16 %v8867, %v8866
  %v8905 = vpack.c.b16 %v8869, %v8868
  %v8906 = vpack.c.b16 %v8871, %v8870
  %v8907 = vpack.c.b16 %v8873, %v8872
  %v8908 = vpack.c.b16 %v8875, %v8874
  %v8909 = vpack.c.b16 %v8877, %v8876
  %8942 = vmatpush.bf16.msra.mxu0 %v8885
  %8943 = vmatpush.bf16.msra.mxu0 %v8884
  %8944 = vmatpush.bf16.msra.mxu0 %v8883
  %8945 = vmatpush.bf16.msra.mxu0 %v8882
  %8946 = vmatpush.bf16.msra.mxu0 %v8881
  %8947 = vmatpush.bf16.msra.mxu0 %v8880
  %8948 = vmatpush.bf16.msra.mxu0 %v8879
  %8949 = vmatpush.bf16.msra.mxu0 %v8878
  %8950 = vmatmul.bf16.gmra.mxu0 %v4649
  %v8951 = vpop.f32.mrf.mxu0
  %v8952 = vadd.f32 0.0, %v8951
  %v8953 = vpop.f32.mrf.mxu0
  %v8954 = vadd.f32 0.0, %v8953
  %8955 = vmatmul.bf16.gmra.mxu0 %v4653
  %v8956 = vpop.f32.mrf.mxu0
  %v8957 = vadd.f32 0.0, %v8956
  %v8958 = vpop.f32.mrf.mxu0
  %v8959 = vadd.f32 0.0, %v8958
  %8960 = vmatmul.bf16.gmra.mxu0 %v4657
  %v8961 = vpop.f32.mrf.mxu0
  %v8962 = vadd.f32 0.0, %v8961
  %v8963 = vpop.f32.mrf.mxu0
  %v8964 = vadd.f32 0.0, %v8963
  %8965 = vmatmul.bf16.gmra.mxu0 %v8734
  %v8966 = vpop.f32.mrf.mxu0
  %v8967 = vadd.f32 0.0, %v8966
  %v8968 = vpop.f32.mrf.mxu0
  %v8969 = vadd.f32 0.0, %v8968
  %8970 = vmatmul.bf16.gmra.mxu0 %v4665
  %v8971 = vpop.f32.mrf.mxu0
  %v8972 = vadd.f32 0.0, %v8971
  %v8973 = vpop.f32.mrf.mxu0
  %v8974 = vadd.f32 0.0, %v8973
  %8975 = vmatmul.bf16.gmra.mxu0 %v4669
  %v8976 = vpop.f32.mrf.mxu0
  %v8977 = vadd.f32 0.0, %v8976
  %v8978 = vpop.f32.mrf.mxu0
  %v8979 = vadd.f32 0.0, %v8978
  %8980 = vmatmul.bf16.gmra.mxu0 %v4673
  %v8981 = vpop.f32.mrf.mxu0
  %v8982 = vadd.f32 0.0, %v8981
  %v8983 = vpop.f32.mrf.mxu0
  %v8984 = vadd.f32 0.0, %v8983
  %8985 = vmatmul.bf16.gmra.mxu0 %v8738
  %v8986 = vpop.f32.mrf.mxu0
  %v8987 = vadd.f32 0.0, %v8986
  %v8988 = vpop.f32.mrf.mxu0
  %v8989 = vadd.f32 0.0, %v8988
  %8990 = vdwg.mxu0
  %8991 = vmatpush.bf16.msra.mxu0 %v8893
  %8992 = vmatpush.bf16.msra.mxu0 %v8892
  %8993 = vmatpush.bf16.msra.mxu0 %v8891
  %8994 = vmatpush.bf16.msra.mxu0 %v8890
  %8995 = vmatpush.bf16.msra.mxu0 %v8889
  %8996 = vmatpush.bf16.msra.mxu0 %v8888
  %8997 = vmatpush.bf16.msra.mxu0 %v8887
  %8998 = vmatpush.bf16.msra.mxu0 %v8886
  %8999 = vmatmul.bf16.gmra.mxu0 %v4650
  %v9000 = vpop.f32.mrf.mxu0
  %v9001 = vadd.f32 %v8952, %v9000
  %v9002 = vpop.f32.mrf.mxu0
  %v9003 = vadd.f32 %v8954, %v9002
  %9004 = vmatmul.bf16.gmra.mxu0 %v4654
  %v9005 = vpop.f32.mrf.mxu0
  %v9006 = vadd.f32 %v8957, %v9005
  %v9007 = vpop.f32.mrf.mxu0
  %v9008 = vadd.f32 %v8959, %v9007
  %9009 = vmatmul.bf16.gmra.mxu0 %v4658
  %v9010 = vpop.f32.mrf.mxu0
  %v9011 = vadd.f32 %v8962, %v9010
  %v9012 = vpop.f32.mrf.mxu0
  %v9013 = vadd.f32 %v8964, %v9012
  %9014 = vmatmul.bf16.gmra.mxu0 %v8735
  %v9015 = vpop.f32.mrf.mxu0
  %v9016 = vadd.f32 %v8967, %v9015
  %v9017 = vpop.f32.mrf.mxu0
  %v9018 = vadd.f32 %v8969, %v9017
  %9019 = vmatmul.bf16.gmra.mxu0 %v4666
  %v9020 = vpop.f32.mrf.mxu0
  %v9021 = vadd.f32 %v8972, %v9020
  %v9022 = vpop.f32.mrf.mxu0
  %v9023 = vadd.f32 %v8974, %v9022
  %9024 = vmatmul.bf16.gmra.mxu0 %v4670
  %v9025 = vpop.f32.mrf.mxu0
  %v9026 = vadd.f32 %v8977, %v9025
  %v9027 = vpop.f32.mrf.mxu0
  %v9028 = vadd.f32 %v8979, %v9027
  %9029 = vmatmul.bf16.gmra.mxu0 %v4674
  %v9030 = vpop.f32.mrf.mxu0
  %v9031 = vadd.f32 %v8982, %v9030
  %v9032 = vpop.f32.mrf.mxu0
  %v9033 = vadd.f32 %v8984, %v9032
  %9034 = vmatmul.bf16.gmra.mxu0 %v8739
  %v9035 = vpop.f32.mrf.mxu0
  %v9036 = vadd.f32 %v8987, %v9035
  %v9037 = vpop.f32.mrf.mxu0
  %v9038 = vadd.f32 %v8989, %v9037
  %9039 = vdwg.mxu0
  %9040 = vmatpush.bf16.msra.mxu0 %v8901
  %9041 = vmatpush.bf16.msra.mxu0 %v8900
  %9042 = vmatpush.bf16.msra.mxu0 %v8899
  %9043 = vmatpush.bf16.msra.mxu0 %v8898
  %9044 = vmatpush.bf16.msra.mxu0 %v8897
  %9045 = vmatpush.bf16.msra.mxu0 %v8896
  %9046 = vmatpush.bf16.msra.mxu0 %v8895
  %9047 = vmatpush.bf16.msra.mxu0 %v8894
  %9048 = vmatmul.bf16.gmra.mxu0 %v4651
  %v9049 = vpop.f32.mrf.mxu0
  %v9050 = vadd.f32 %v9001, %v9049
  %v9051 = vpop.f32.mrf.mxu0
  %v9052 = vadd.f32 %v9003, %v9051
  %9053 = vmatmul.bf16.gmra.mxu0 %v4655
  %v9054 = vpop.f32.mrf.mxu0
  %v9055 = vadd.f32 %v9006, %v9054
  %v9056 = vpop.f32.mrf.mxu0
  %v9057 = vadd.f32 %v9008, %v9056
  %9058 = vmatmul.bf16.gmra.mxu0 %v4659
  %v9059 = vpop.f32.mrf.mxu0
  %v9060 = vadd.f32 %v9011, %v9059
  %v9061 = vpop.f32.mrf.mxu0
  %v9062 = vadd.f32 %v9013, %v9061
  %9063 = vmatmul.bf16.gmra.mxu0 %v8736
  %v9064 = vpop.f32.mrf.mxu0
  %v9065 = vadd.f32 %v9016, %v9064
  %v9066 = vpop.f32.mrf.mxu0
  %v9067 = vadd.f32 %v9018, %v9066
  %9068 = vmatmul.bf16.gmra.mxu0 %v4667
  %v9069 = vpop.f32.mrf.mxu0
  %v9070 = vadd.f32 %v9021, %v9069
  %v9071 = vpop.f32.mrf.mxu0
  %v9072 = vadd.f32 %v9023, %v9071
  %9073 = vmatmul.bf16.gmra.mxu0 %v4671
  %v9074 = vpop.f32.mrf.mxu0
  %v9075 = vadd.f32 %v9026, %v9074
  %v9076 = vpop.f32.mrf.mxu0
  %v9077 = vadd.f32 %v9028, %v9076
  %9078 = vmatmul.bf16.gmra.mxu0 %v4675
  %v9079 = vpop.f32.mrf.mxu0
  %v9080 = vadd.f32 %v9031, %v9079
  %v9081 = vpop.f32.mrf.mxu0
  %v9082 = vadd.f32 %v9033, %v9081
  %9083 = vmatmul.bf16.gmra.mxu0 %v8740
  %v9084 = vpop.f32.mrf.mxu0
  %v9085 = vadd.f32 %v9036, %v9084
  %v9086 = vpop.f32.mrf.mxu0
  %v9087 = vadd.f32 %v9038, %v9086
  %9088 = vdwg.mxu0
  %9089 = vmatpush.bf16.msra.mxu0 %v8909
  %9090 = vmatpush.bf16.msra.mxu0 %v8908
  %9091 = vmatpush.bf16.msra.mxu0 %v8907
  %9092 = vmatpush.bf16.msra.mxu0 %v8906
  %9093 = vmatpush.bf16.msra.mxu0 %v8905
  %9094 = vmatpush.bf16.msra.mxu0 %v8904
  %9095 = vmatpush.bf16.msra.mxu0 %v8903
  %9096 = vmatpush.bf16.msra.mxu0 %v8902
  %9097 = vmatmul.bf16.gmra.mxu0 %v4652
  %v9098 = vpop.f32.mrf.mxu0
  %v9099 = vadd.f32 %v9050, %v9098
  %v9100 = vpop.f32.mrf.mxu0
  %v9101 = vadd.f32 %v9052, %v9100
  %9102 = vmatmul.bf16.gmra.mxu0 %v4656
  %v9103 = vpop.f32.mrf.mxu0
  %v9104 = vadd.f32 %v9055, %v9103
  %v9105 = vpop.f32.mrf.mxu0
  %v9106 = vadd.f32 %v9057, %v9105
  %9107 = vmatmul.bf16.gmra.mxu0 %v4660
  %v9108 = vpop.f32.mrf.mxu0
  %v9109 = vadd.f32 %v9060, %v9108
  %v9110 = vpop.f32.mrf.mxu0
  %v9111 = vadd.f32 %v9062, %v9110
  %9112 = vmatmul.bf16.gmra.mxu0 %v8737
  %v9113 = vpop.f32.mrf.mxu0
  %v9114 = vadd.f32 %v9065, %v9113
  %v9115 = vpop.f32.mrf.mxu0
  %v9116 = vadd.f32 %v9067, %v9115
  %9117 = vmatmul.bf16.gmra.mxu0 %v4668
  %v9118 = vpop.f32.mrf.mxu0
  %v9119 = vadd.f32 %v9070, %v9118
  %v9120 = vpop.f32.mrf.mxu0
  %v9121 = vadd.f32 %v9072, %v9120
  %9122 = vmatmul.bf16.gmra.mxu0 %v4672
  %v9123 = vpop.f32.mrf.mxu0
  %v9124 = vadd.f32 %v9075, %v9123
  %v9125 = vpop.f32.mrf.mxu0
  %v9126 = vadd.f32 %v9077, %v9125
  %9127 = vmatmul.bf16.gmra.mxu0 %v4676
  %v9128 = vpop.f32.mrf.mxu0
  %v9129 = vadd.f32 %v9080, %v9128
  %v9130 = vpop.f32.mrf.mxu0
  %v9131 = vadd.f32 %v9082, %v9130
  %9132 = vmatmul.bf16.gmra.mxu0 %v8741
  %v9133 = vpop.f32.mrf.mxu0
  %v9134 = vadd.f32 %v9085, %v9133
  %v9135 = vpop.f32.mrf.mxu0
  %v9136 = vadd.f32 %v9087, %v9135
  %9137 = vdwg.mxu0
  %v9138 = vadd.f32 %v8589, %v9099
  %v9139 = vadd.f32 %v8590, %v9101
  %v9140 = vadd.f32 %v8591, %v9104
  %v9141 = vadd.f32 %v8592, %v9106
  %v9142 = vadd.f32 %v8593, %v9109
  %v9143 = vadd.f32 %v8594, %v9111
  %v9144 = vadd.f32 %v8595, %v9114
  %v9145 = vadd.f32 %v8596, %v9116
  %v9146 = vadd.f32 %v8597, %v9119
  %v9147 = vadd.f32 %v8598, %v9121
  %v9148 = vadd.f32 %v8599, %v9124
  %v9149 = vadd.f32 %v8600, %v9126
  %v9150 = vadd.f32 %v8601, %v9129
  %v9151 = vadd.f32 %v8602, %v9131
  %v9152 = vadd.f32 %v8603, %v9134
  %v9153 = vadd.f32 %v8604, %v9136
  %v9158 = vrot.slane %v3957, 5
  %v9159 = vrot.slane %v9158, 4
  %v9160 = vrot.slane %v3959, 5
  %v9161 = vsel %vm5679, %v9159, %v9160
  %v9162 = vrot.slane %v3958, 5
  %v9163 = vrot.slane %v9162, 4
  %v9164 = vrot.slane %v3960, 5
  %v9165 = vsel %vm5679, %v9163, %v9164
  %v9166 = vrot.slane %v3997, 5
  %v9167 = vrot.slane %v9166, 4
  %v9168 = vrot.slane %v3999, 5
  %v9169 = vsel %vm5679, %v9167, %v9168
  %v9170 = vrot.slane %v3998, 5
  %v9171 = vrot.slane %v9170, 4
  %v9172 = vrot.slane %v4000, 5
  %v9173 = vsel %vm5679, %v9171, %v9172
  %s9174 = scalar_lea.vmem %s8, 2048
  %v9175 = vld [vmem:[%s9174] sm:$0xf]
  %v9176 = vld [vmem:[%s9174 + $0x4] sm:$0xf]
  %v9177 = vld [vmem:[%s9174 + $0x8] sm:$0xf]
  %v9178 = vld [vmem:[%s9174 + $0xc] sm:$0xf]
  %v9179 = vld [vmem:[%s9174 + $0x10] sm:$0xf]
  %v9180 = vld [vmem:[%s9174 + $0x14] sm:$0xf]
  %v9181 = vld [vmem:[%s9174 + $0x18] sm:$0xf]
  %v9182 = vld [vmem:[%s9174 + $0x1c] sm:$0xf]
  %v9183 = vld [vmem:[%s9174 + $0x20] sm:$0xf]
  %v9184 = vld [vmem:[%s9174 + $0x24] sm:$0xf]
  %v9185 = vld [vmem:[%s9174 + $0x28] sm:$0xf]
  %v9186 = vld [vmem:[%s9174 + $0x2c] sm:$0xf]
  %v9187 = vld [vmem:[%s9174 + $0x30] sm:$0xf]
  %v9188 = vld [vmem:[%s9174 + $0x34] sm:$0xf]
  %v9189 = vld [vmem:[%s9174 + $0x38] sm:$0xf]
  %v9190 = vld [vmem:[%s9174 + $0x3c] sm:$0xf]
  %v9191 = vld [vmem:[%s9174 + $0x40] sm:$0xf]
  %v9192 = vld [vmem:[%s9174 + $0x44] sm:$0xf]
  %v9193 = vld [vmem:[%s9174 + $0x48] sm:$0xf]
  %v9194 = vld [vmem:[%s9174 + $0x4c] sm:$0xf]
  %v9195 = vld [vmem:[%s9174 + $0x50] sm:$0xf]
  %v9196 = vld [vmem:[%s9174 + $0x54] sm:$0xf]
  %v9197 = vld [vmem:[%s9174 + $0x58] sm:$0xf]
  %v9198 = vld [vmem:[%s9174 + $0x5c] sm:$0xf]
  %v9199 = vld [vmem:[%s9174 + $0x60] sm:$0xf]
  %v9200 = vld [vmem:[%s9174 + $0x64] sm:$0xf]
  %v9201 = vld [vmem:[%s9174 + $0x68] sm:$0xf]
  %v9202 = vld [vmem:[%s9174 + $0x6c] sm:$0xf]
  %v9203 = vld [vmem:[%s9174 + $0x70] sm:$0xf]
  %v9204 = vld [vmem:[%s9174 + $0x74] sm:$0xf]
  %v9205 = vld [vmem:[%s9174 + $0x78] sm:$0xf]
  %v9206 = vld [vmem:[%s9174 + $0x7c] sm:$0xf]
  %v9207 = vld [vmem:[%s9174 + $0x80] sm:$0xf]
  %v9208 = vld [vmem:[%s9174 + $0x84] sm:$0xf]
  %v9209 = vld [vmem:[%s9174 + $0x88] sm:$0xf]
  %v9210 = vld [vmem:[%s9174 + $0x8c] sm:$0xf]
  %v9211 = vld [vmem:[%s9174 + $0x90] sm:$0xf]
  %v9212 = vld [vmem:[%s9174 + $0x94] sm:$0xf]
  %v9213 = vld [vmem:[%s9174 + $0x98] sm:$0xf]
  %v9214 = vld [vmem:[%s9174 + $0x9c] sm:$0xf]
  %v9215 = vld [vmem:[%s9174 + $0xa0] sm:$0xf]
  %v9216 = vld [vmem:[%s9174 + $0xa4] sm:$0xf]
  %v9217 = vld [vmem:[%s9174 + $0xa8] sm:$0xf]
  %v9218 = vld [vmem:[%s9174 + $0xac] sm:$0xf]
  %v9219 = vld [vmem:[%s9174 + $0xb0] sm:$0xf]
  %v9220 = vld [vmem:[%s9174 + $0xb4] sm:$0xf]
  %v9221 = vld [vmem:[%s9174 + $0xb8] sm:$0xf]
  %v9222 = vld [vmem:[%s9174 + $0xbc] sm:$0xf]
  %v9223 = vld [vmem:[%s9174 + $0xc0] sm:$0xf]
  %v9224 = vld [vmem:[%s9174 + $0xc4] sm:$0xf]
  %v9225 = vld [vmem:[%s9174 + $0xc8] sm:$0xf]
  %v9226 = vld [vmem:[%s9174 + $0xcc] sm:$0xf]
  %v9227 = vld [vmem:[%s9174 + $0xd0] sm:$0xf]
  %v9228 = vld [vmem:[%s9174 + $0xd4] sm:$0xf]
  %v9229 = vld [vmem:[%s9174 + $0xd8] sm:$0xf]
  %v9230 = vld [vmem:[%s9174 + $0xdc] sm:$0xf]
  %v9231 = vld [vmem:[%s9174 + $0xe0] sm:$0xf]
  %v9232 = vld [vmem:[%s9174 + $0xe4] sm:$0xf]
  %v9233 = vld [vmem:[%s9174 + $0xe8] sm:$0xf]
  %v9234 = vld [vmem:[%s9174 + $0xec] sm:$0xf]
  %v9235 = vld [vmem:[%s9174 + $0xf0] sm:$0xf]
  %v9236 = vld [vmem:[%s9174 + $0xf4] sm:$0xf]
  %v9237 = vld [vmem:[%s9174 + $0xf8] sm:$0xf]
  %v9238 = vld [vmem:[%s9174 + $0xfc] sm:$0xf]
  %v9239 = vunpack.c.l.b16 %v9161
  %v9240 = vunpack.c.h.b16 %v9161
  %v9241 = vunpack.c.l.b16 %v9165
  %v9242 = vunpack.c.h.b16 %v9165
  %v9243 = vunpack.c.l.b16 %v9169
  %v9244 = vunpack.c.h.b16 %v9169
  %v9245 = vunpack.c.l.b16 %v9173
  %v9246 = vunpack.c.h.b16 %v9173
  %v9247 = vpack.c.b16 %v9239, %v7632
  %v9248 = vpack.c.b16 %v9240, %v7633
  %v9249 = vpack.c.b16 %v9241, %v7634
  %v9250 = vpack.c.b16 %v9242, %v7635
  %v9251 = vpack.c.b16 %v9243, %v7636
  %v9252 = vpack.c.b16 %v9244, %v7637
  %v9253 = vpack.c.b16 %v9245, %v7638
  %v9254 = vpack.c.b16 %v9246, %v7639
  %v9327 = vunpack.c.l.b16 %v9175
  %v9328 = vunpack.c.l.b16 %v9176
  %v9329 = vunpack.c.l.b16 %v9177
  %v9330 = vunpack.c.l.b16 %v9178
  %v9331 = vunpack.c.l.b16 %v9179
  %v9332 = vunpack.c.l.b16 %v9180
  %v9333 = vunpack.c.l.b16 %v9181
  %v9334 = vunpack.c.l.b16 %v9182
  %v9335 = vunpack.c.l.b16 %v9183
  %v9336 = vunpack.c.l.b16 %v9184
  %v9337 = vunpack.c.l.b16 %v9185
  %v9338 = vunpack.c.l.b16 %v9186
  %v9339 = vunpack.c.l.b16 %v9187
  %v9340 = vunpack.c.l.b16 %v9188
  %v9341 = vunpack.c.l.b16 %v9189
  %v9342 = vunpack.c.l.b16 %v9190
  %v9343 = vunpack.c.l.b16 %v9191
  %v9344 = vunpack.c.l.b16 %v9192
  %v9345 = vunpack.c.l.b16 %v9193
  %v9346 = vunpack.c.l.b16 %v9194
  %v9347 = vunpack.c.l.b16 %v9195
  %v9348 = vunpack.c.l.b16 %v9196
  %v9349 = vunpack.c.l.b16 %v9197
  %v9350 = vunpack.c.l.b16 %v9198
  %v9351 = vunpack.c.l.b16 %v9199
  %v9352 = vunpack.c.l.b16 %v9200
  %v9353 = vunpack.c.l.b16 %v9201
  %v9354 = vunpack.c.l.b16 %v9202
  %v9355 = vunpack.c.l.b16 %v9203
  %v9356 = vunpack.c.l.b16 %v9204
  %v9357 = vunpack.c.l.b16 %v9205
  %v9358 = vunpack.c.l.b16 %v9206
  %v9359 = vunpack.c.l.b16 %v9207
  %v9360 = vunpack.c.l.b16 %v9208
  %v9361 = vunpack.c.l.b16 %v9209
  %v9362 = vunpack.c.l.b16 %v9210
  %v9363 = vunpack.c.l.b16 %v9211
  %v9364 = vunpack.c.l.b16 %v9212
  %v9365 = vunpack.c.l.b16 %v9213
  %v9366 = vunpack.c.l.b16 %v9214
  %v9367 = vunpack.c.l.b16 %v9215
  %v9368 = vunpack.c.l.b16 %v9216
  %v9369 = vunpack.c.l.b16 %v9217
  %v9370 = vunpack.c.l.b16 %v9218
  %v9371 = vunpack.c.l.b16 %v9219
  %v9372 = vunpack.c.l.b16 %v9220
  %v9373 = vunpack.c.l.b16 %v9221
  %v9374 = vunpack.c.l.b16 %v9222
  %v9375 = vunpack.c.l.b16 %v9223
  %v9376 = vunpack.c.l.b16 %v9224
  %v9377 = vunpack.c.l.b16 %v9225
  %v9378 = vunpack.c.l.b16 %v9226
  %v9379 = vunpack.c.l.b16 %v9227
  %v9380 = vunpack.c.l.b16 %v9228
  %v9381 = vunpack.c.l.b16 %v9229
  %v9382 = vunpack.c.l.b16 %v9230
  %v9383 = vunpack.c.l.b16 %v9231
  %v9384 = vunpack.c.l.b16 %v9232
  %v9385 = vunpack.c.l.b16 %v9233
  %v9386 = vunpack.c.l.b16 %v9234
  %v9387 = vunpack.c.l.b16 %v9235
  %v9388 = vunpack.c.l.b16 %v9236
  %v9389 = vunpack.c.l.b16 %v9237
  %v9390 = vunpack.c.l.b16 %v9238
  %v9391 = vpack.c.b16 %v9328, %v9327
  %v9392 = vpack.c.b16 %v9330, %v9329
  %v9393 = vpack.c.b16 %v9332, %v9331
  %v9394 = vpack.c.b16 %v9334, %v9333
  %v9395 = vpack.c.b16 %v9336, %v9335
  %v9396 = vpack.c.b16 %v9338, %v9337
  %v9397 = vpack.c.b16 %v9340, %v9339
  %v9398 = vpack.c.b16 %v9342, %v9341
  %v9399 = vpack.c.b16 %v9344, %v9343
  %v9400 = vpack.c.b16 %v9346, %v9345
  %v9401 = vpack.c.b16 %v9348, %v9347
  %v9402 = vpack.c.b16 %v9350, %v9349
  %v9403 = vpack.c.b16 %v9352, %v9351
  %v9404 = vpack.c.b16 %v9354, %v9353
  %v9405 = vpack.c.b16 %v9356, %v9355
  %v9406 = vpack.c.b16 %v9358, %v9357
  %v9407 = vpack.c.b16 %v9360, %v9359
  %v9408 = vpack.c.b16 %v9362, %v9361
  %v9409 = vpack.c.b16 %v9364, %v9363
  %v9410 = vpack.c.b16 %v9366, %v9365
  %v9411 = vpack.c.b16 %v9368, %v9367
  %v9412 = vpack.c.b16 %v9370, %v9369
  %v9413 = vpack.c.b16 %v9372, %v9371
  %v9414 = vpack.c.b16 %v9374, %v9373
  %v9415 = vpack.c.b16 %v9376, %v9375
  %v9416 = vpack.c.b16 %v9378, %v9377
  %v9417 = vpack.c.b16 %v9380, %v9379
  %v9418 = vpack.c.b16 %v9382, %v9381
  %v9419 = vpack.c.b16 %v9384, %v9383
  %v9420 = vpack.c.b16 %v9386, %v9385
  %v9421 = vpack.c.b16 %v9388, %v9387
  %v9422 = vpack.c.b16 %v9390, %v9389
  %9455 = vmatpush.bf16.msra.mxu0 %v9398
  %9456 = vmatpush.bf16.msra.mxu0 %v9397
  %9457 = vmatpush.bf16.msra.mxu0 %v9396
  %9458 = vmatpush.bf16.msra.mxu0 %v9395
  %9459 = vmatpush.bf16.msra.mxu0 %v9394
  %9460 = vmatpush.bf16.msra.mxu0 %v9393
  %9461 = vmatpush.bf16.msra.mxu0 %v9392
  %9462 = vmatpush.bf16.msra.mxu0 %v9391
  %9463 = vmatmul.bf16.gmra.mxu0 %v5941
  %v9464 = vpop.f32.mrf.mxu0
  %v9465 = vadd.f32 0.0, %v9464
  %v9466 = vpop.f32.mrf.mxu0
  %v9467 = vadd.f32 0.0, %v9466
  %9468 = vmatmul.bf16.gmra.mxu0 %v5945
  %v9469 = vpop.f32.mrf.mxu0
  %v9470 = vadd.f32 0.0, %v9469
  %v9471 = vpop.f32.mrf.mxu0
  %v9472 = vadd.f32 0.0, %v9471
  %9473 = vmatmul.bf16.gmra.mxu0 %v5949
  %v9474 = vpop.f32.mrf.mxu0
  %v9475 = vadd.f32 0.0, %v9474
  %v9476 = vpop.f32.mrf.mxu0
  %v9477 = vadd.f32 0.0, %v9476
  %9478 = vmatmul.bf16.gmra.mxu0 %v9247
  %v9479 = vpop.f32.mrf.mxu0
  %v9480 = vadd.f32 0.0, %v9479
  %v9481 = vpop.f32.mrf.mxu0
  %v9482 = vadd.f32 0.0, %v9481
  %9483 = vmatmul.bf16.gmra.mxu0 %v5957
  %v9484 = vpop.f32.mrf.mxu0
  %v9485 = vadd.f32 0.0, %v9484
  %v9486 = vpop.f32.mrf.mxu0
  %v9487 = vadd.f32 0.0, %v9486
  %9488 = vmatmul.bf16.gmra.mxu0 %v5961
  %v9489 = vpop.f32.mrf.mxu0
  %v9490 = vadd.f32 0.0, %v9489
  %v9491 = vpop.f32.mrf.mxu0
  %v9492 = vadd.f32 0.0, %v9491
  %9493 = vmatmul.bf16.gmra.mxu0 %v5965
  %v9494 = vpop.f32.mrf.mxu0
  %v9495 = vadd.f32 0.0, %v9494
  %v9496 = vpop.f32.mrf.mxu0
  %v9497 = vadd.f32 0.0, %v9496
  %9498 = vmatmul.bf16.gmra.mxu0 %v9251
  %v9499 = vpop.f32.mrf.mxu0
  %v9500 = vadd.f32 0.0, %v9499
  %v9501 = vpop.f32.mrf.mxu0
  %v9502 = vadd.f32 0.0, %v9501
  %9503 = vdwg.mxu0
  %9504 = vmatpush.bf16.msra.mxu0 %v9406
  %9505 = vmatpush.bf16.msra.mxu0 %v9405
  %9506 = vmatpush.bf16.msra.mxu0 %v9404
  %9507 = vmatpush.bf16.msra.mxu0 %v9403
  %9508 = vmatpush.bf16.msra.mxu0 %v9402
  %9509 = vmatpush.bf16.msra.mxu0 %v9401
  %9510 = vmatpush.bf16.msra.mxu0 %v9400
  %9511 = vmatpush.bf16.msra.mxu0 %v9399
  %9512 = vmatmul.bf16.gmra.mxu0 %v5942
  %v9513 = vpop.f32.mrf.mxu0
  %v9514 = vadd.f32 %v9465, %v9513
  %v9515 = vpop.f32.mrf.mxu0
  %v9516 = vadd.f32 %v9467, %v9515
  %9517 = vmatmul.bf16.gmra.mxu0 %v5946
  %v9518 = vpop.f32.mrf.mxu0
  %v9519 = vadd.f32 %v9470, %v9518
  %v9520 = vpop.f32.mrf.mxu0
  %v9521 = vadd.f32 %v9472, %v9520
  %9522 = vmatmul.bf16.gmra.mxu0 %v5950
  %v9523 = vpop.f32.mrf.mxu0
  %v9524 = vadd.f32 %v9475, %v9523
  %v9525 = vpop.f32.mrf.mxu0
  %v9526 = vadd.f32 %v9477, %v9525
  %9527 = vmatmul.bf16.gmra.mxu0 %v9248
  %v9528 = vpop.f32.mrf.mxu0
  %v9529 = vadd.f32 %v9480, %v9528
  %v9530 = vpop.f32.mrf.mxu0
  %v9531 = vadd.f32 %v9482, %v9530
  %9532 = vmatmul.bf16.gmra.mxu0 %v5958
  %v9533 = vpop.f32.mrf.mxu0
  %v9534 = vadd.f32 %v9485, %v9533
  %v9535 = vpop.f32.mrf.mxu0
  %v9536 = vadd.f32 %v9487, %v9535
  %9537 = vmatmul.bf16.gmra.mxu0 %v5962
  %v9538 = vpop.f32.mrf.mxu0
  %v9539 = vadd.f32 %v9490, %v9538
  %v9540 = vpop.f32.mrf.mxu0
  %v9541 = vadd.f32 %v9492, %v9540
  %9542 = vmatmul.bf16.gmra.mxu0 %v5966
  %v9543 = vpop.f32.mrf.mxu0
  %v9544 = vadd.f32 %v9495, %v9543
  %v9545 = vpop.f32.mrf.mxu0
  %v9546 = vadd.f32 %v9497, %v9545
  %9547 = vmatmul.bf16.gmra.mxu0 %v9252
  %v9548 = vpop.f32.mrf.mxu0
  %v9549 = vadd.f32 %v9500, %v9548
  %v9550 = vpop.f32.mrf.mxu0
  %v9551 = vadd.f32 %v9502, %v9550
  %9552 = vdwg.mxu0
  %9553 = vmatpush.bf16.msra.mxu0 %v9414
  %9554 = vmatpush.bf16.msra.mxu0 %v9413
  %9555 = vmatpush.bf16.msra.mxu0 %v9412
  %9556 = vmatpush.bf16.msra.mxu0 %v9411
  %9557 = vmatpush.bf16.msra.mxu0 %v9410
  %9558 = vmatpush.bf16.msra.mxu0 %v9409
  %9559 = vmatpush.bf16.msra.mxu0 %v9408
  %9560 = vmatpush.bf16.msra.mxu0 %v9407
  %9561 = vmatmul.bf16.gmra.mxu0 %v5943
  %v9562 = vpop.f32.mrf.mxu0
  %v9563 = vadd.f32 %v9514, %v9562
  %v9564 = vpop.f32.mrf.mxu0
  %v9565 = vadd.f32 %v9516, %v9564
  %9566 = vmatmul.bf16.gmra.mxu0 %v5947
  %v9567 = vpop.f32.mrf.mxu0
  %v9568 = vadd.f32 %v9519, %v9567
  %v9569 = vpop.f32.mrf.mxu0
  %v9570 = vadd.f32 %v9521, %v9569
  %9571 = vmatmul.bf16.gmra.mxu0 %v5951
  %v9572 = vpop.f32.mrf.mxu0
  %v9573 = vadd.f32 %v9524, %v9572
  %v9574 = vpop.f32.mrf.mxu0
  %v9575 = vadd.f32 %v9526, %v9574
  %9576 = vmatmul.bf16.gmra.mxu0 %v9249
  %v9577 = vpop.f32.mrf.mxu0
  %v9578 = vadd.f32 %v9529, %v9577
  %v9579 = vpop.f32.mrf.mxu0
  %v9580 = vadd.f32 %v9531, %v9579
  %9581 = vmatmul.bf16.gmra.mxu0 %v5959
  %v9582 = vpop.f32.mrf.mxu0
  %v9583 = vadd.f32 %v9534, %v9582
  %v9584 = vpop.f32.mrf.mxu0
  %v9585 = vadd.f32 %v9536, %v9584
  %9586 = vmatmul.bf16.gmra.mxu0 %v5963
  %v9587 = vpop.f32.mrf.mxu0
  %v9588 = vadd.f32 %v9539, %v9587
  %v9589 = vpop.f32.mrf.mxu0
  %v9590 = vadd.f32 %v9541, %v9589
  %9591 = vmatmul.bf16.gmra.mxu0 %v5967
  %v9592 = vpop.f32.mrf.mxu0
  %v9593 = vadd.f32 %v9544, %v9592
  %v9594 = vpop.f32.mrf.mxu0
  %v9595 = vadd.f32 %v9546, %v9594
  %9596 = vmatmul.bf16.gmra.mxu0 %v9253
  %v9597 = vpop.f32.mrf.mxu0
  %v9598 = vadd.f32 %v9549, %v9597
  %v9599 = vpop.f32.mrf.mxu0
  %v9600 = vadd.f32 %v9551, %v9599
  %9601 = vdwg.mxu0
  %9602 = vmatpush.bf16.msra.mxu0 %v9422
  %9603 = vmatpush.bf16.msra.mxu0 %v9421
  %9604 = vmatpush.bf16.msra.mxu0 %v9420
  %9605 = vmatpush.bf16.msra.mxu0 %v9419
  %9606 = vmatpush.bf16.msra.mxu0 %v9418
  %9607 = vmatpush.bf16.msra.mxu0 %v9417
  %9608 = vmatpush.bf16.msra.mxu0 %v9416
  %9609 = vmatpush.bf16.msra.mxu0 %v9415
  %9610 = vmatmul.bf16.gmra.mxu0 %v5944
  %v9611 = vpop.f32.mrf.mxu0
  %v9612 = vadd.f32 %v9563, %v9611
  %v9613 = vpop.f32.mrf.mxu0
  %v9614 = vadd.f32 %v9565, %v9613
  %9615 = vmatmul.bf16.gmra.mxu0 %v5948
  %v9616 = vpop.f32.mrf.mxu0
  %v9617 = vadd.f32 %v9568, %v9616
  %v9618 = vpop.f32.mrf.mxu0
  %v9619 = vadd.f32 %v9570, %v9618
  %9620 = vmatmul.bf16.gmra.mxu0 %v5952
  %v9621 = vpop.f32.mrf.mxu0
  %v9622 = vadd.f32 %v9573, %v9621
  %v9623 = vpop.f32.mrf.mxu0
  %v9624 = vadd.f32 %v9575, %v9623
  %9625 = vmatmul.bf16.gmra.mxu0 %v9250
  %v9626 = vpop.f32.mrf.mxu0
  %v9627 = vadd.f32 %v9578, %v9626
  %v9628 = vpop.f32.mrf.mxu0
  %v9629 = vadd.f32 %v9580, %v9628
  %9630 = vmatmul.bf16.gmra.mxu0 %v5960
  %v9631 = vpop.f32.mrf.mxu0
  %v9632 = vadd.f32 %v9583, %v9631
  %v9633 = vpop.f32.mrf.mxu0
  %v9634 = vadd.f32 %v9585, %v9633
  %9635 = vmatmul.bf16.gmra.mxu0 %v5964
  %v9636 = vpop.f32.mrf.mxu0
  %v9637 = vadd.f32 %v9588, %v9636
  %v9638 = vpop.f32.mrf.mxu0
  %v9639 = vadd.f32 %v9590, %v9638
  %9640 = vmatmul.bf16.gmra.mxu0 %v5968
  %v9641 = vpop.f32.mrf.mxu0
  %v9642 = vadd.f32 %v9593, %v9641
  %v9643 = vpop.f32.mrf.mxu0
  %v9644 = vadd.f32 %v9595, %v9643
  %9645 = vmatmul.bf16.gmra.mxu0 %v9254
  %v9646 = vpop.f32.mrf.mxu0
  %v9647 = vadd.f32 %v9598, %v9646
  %v9648 = vpop.f32.mrf.mxu0
  %v9649 = vadd.f32 %v9600, %v9648
  %9650 = vdwg.mxu0
  %v9651 = vadd.f32 %v9138, %v9612
  %v9652 = vadd.f32 %v9139, %v9614
  %v9653 = vadd.f32 %v9140, %v9617
  %v9654 = vadd.f32 %v9141, %v9619
  %v9655 = vadd.f32 %v9142, %v9622
  %v9656 = vadd.f32 %v9143, %v9624
  %v9657 = vadd.f32 %v9144, %v9627
  %v9658 = vadd.f32 %v9145, %v9629
  %v9659 = vadd.f32 %v9146, %v9632
  %v9660 = vadd.f32 %v9147, %v9634
  %v9661 = vadd.f32 %v9148, %v9637
  %v9662 = vadd.f32 %v9149, %v9639
  %v9663 = vadd.f32 %v9150, %v9642
  %v9664 = vadd.f32 %v9151, %v9644
  %v9665 = vadd.f32 %v9152, %v9647
  %v9666 = vadd.f32 %v9153, %v9649
  %v9667 = vld [vmem:[%s9] sm:$0x1]
  %v9669 = vperm.slane %v9667, 0
  %v9671 = vadd.f32 %v9651, %v9669
  %v9672 = vadd.f32 %v9652, %v9669
  %v9673 = vadd.f32 %v9653, %v9669
  %v9674 = vadd.f32 %v9654, %v9669
  %v9675 = vadd.f32 %v9655, %v9669
  %v9676 = vadd.f32 %v9656, %v9669
  %v9677 = vadd.f32 %v9657, %v9669
  %v9678 = vadd.f32 %v9658, %v9669
  %v9679 = vadd.f32 %v9659, %v9669
  %v9680 = vadd.f32 %v9660, %v9669
  %v9681 = vadd.f32 %v9661, %v9669
  %v9682 = vadd.f32 %v9662, %v9669
  %v9683 = vadd.f32 %v9663, %v9669
  %v9684 = vadd.f32 %v9664, %v9669
  %v9685 = vadd.f32 %v9665, %v9669
  %v9686 = vadd.f32 %v9666, %v9669
  %v9687 = vld [vmem:[%s10] sm:$0x1]
  %v9688 = vmul.f32 %v9687, 3.0
  %v9689 = vmul.f32 %v9688, 1.442695
  %v9690 = vpow.pop %v9689
  %v9692 = vperm.slane %v9690, 0
  %v9694 = vmul.f32 %v9671, %v9692
  %v9695 = vmul.f32 %v9672, %v9692
  %v9696 = vmul.f32 %v9673, %v9692
  %v9697 = vmul.f32 %v9674, %v9692
  %v9698 = vmul.f32 %v9675, %v9692
  %v9699 = vmul.f32 %v9676, %v9692
  %v9700 = vmul.f32 %v9677, %v9692
  %v9701 = vmul.f32 %v9678, %v9692
  %v9702 = vmul.f32 %v9679, %v9692
  %v9703 = vmul.f32 %v9680, %v9692
  %v9704 = vmul.f32 %v9681, %v9692
  %v9705 = vmul.f32 %v9682, %v9692
  %v9706 = vmul.f32 %v9683, %v9692
  %v9707 = vmul.f32 %v9684, %v9692
  %v9708 = vmul.f32 %v9685, %v9692
  %v9709 = vmul.f32 %v9686, %v9692
  %v9710 = vmax.f32 %v9694, -10.0
  %v9711 = vmax.f32 %v9695, -10.0
  %v9712 = vmax.f32 %v9696, -10.0
  %v9713 = vmax.f32 %v9697, -10.0
  %v9714 = vmax.f32 %v9698, -10.0
  %v9715 = vmax.f32 %v9699, -10.0
  %v9716 = vmax.f32 %v9700, -10.0
  %v9717 = vmax.f32 %v9701, -10.0
  %v9718 = vmax.f32 %v9702, -10.0
  %v9719 = vmax.f32 %v9703, -10.0
  %v9720 = vmax.f32 %v9704, -10.0
  %v9721 = vmax.f32 %v9705, -10.0
  %v9722 = vmax.f32 %v9706, -10.0
  %v9723 = vmax.f32 %v9707, -10.0
  %v9724 = vmax.f32 %v9708, -10.0
  %v9725 = vmax.f32 %v9709, -10.0
  %v9726 = vmin.f32 %v9710, 10.0
  %v9727 = vmin.f32 %v9711, 10.0
  %v9728 = vmin.f32 %v9712, 10.0
  %v9729 = vmin.f32 %v9713, 10.0
  %v9730 = vmin.f32 %v9714, 10.0
  %v9731 = vmin.f32 %v9715, 10.0
  %v9732 = vmin.f32 %v9716, 10.0
  %v9733 = vmin.f32 %v9717, 10.0
  %v9734 = vmin.f32 %v9718, 10.0
  %v9735 = vmin.f32 %v9719, 10.0
  %v9736 = vmin.f32 %v9720, 10.0
  %v9737 = vmin.f32 %v9721, 10.0
  %v9738 = vmin.f32 %v9722, 10.0
  %v9739 = vmin.f32 %v9723, 10.0
  %v9740 = vmin.f32 %v9724, 10.0
  %v9741 = vmin.f32 %v9725, 10.0
  %v9742 = vadd.f32 %v9726, 2.0
  %v9743 = vadd.f32 %v9727, 2.0
  %v9744 = vadd.f32 %v9728, 2.0
  %v9745 = vadd.f32 %v9729, 2.0
  %v9746 = vadd.f32 %v9730, 2.0
  %v9747 = vadd.f32 %v9731, 2.0
  %v9748 = vadd.f32 %v9732, 2.0
  %v9749 = vadd.f32 %v9733, 2.0
  %v9750 = vadd.f32 %v9734, 2.0
  %v9751 = vadd.f32 %v9735, 2.0
  %v9752 = vadd.f32 %v9736, 2.0
  %v9753 = vadd.f32 %v9737, 2.0
  %v9754 = vadd.f32 %v9738, 2.0
  %v9755 = vadd.f32 %v9739, 2.0
  %v9756 = vadd.f32 %v9740, 2.0
  %v9757 = vadd.f32 %v9741, 2.0
  %v9758 = vxor.u32 %v9742, 2147483648
  %v9759 = vxor.u32 %v9743, 2147483648
  %v9760 = vxor.u32 %v9744, 2147483648
  %v9761 = vxor.u32 %v9745, 2147483648
  %v9762 = vxor.u32 %v9746, 2147483648
  %v9763 = vxor.u32 %v9747, 2147483648
  %v9764 = vxor.u32 %v9748, 2147483648
  %v9765 = vxor.u32 %v9749, 2147483648
  %v9766 = vxor.u32 %v9750, 2147483648
  %v9767 = vxor.u32 %v9751, 2147483648
  %v9768 = vxor.u32 %v9752, 2147483648
  %v9769 = vxor.u32 %v9753, 2147483648
  %v9770 = vxor.u32 %v9754, 2147483648
  %v9771 = vxor.u32 %v9755, 2147483648
  %v9772 = vxor.u32 %v9756, 2147483648
  %v9773 = vxor.u32 %v9757, 2147483648
  %v9774 = vmul.f32 %v9758, 1.442695
  %v9775 = vpow.pop %v9774
  %v9776 = vmul.f32 %v9759, 1.442695
  %v9777 = vpow.pop %v9776
  %v9778 = vmul.f32 %v9760, 1.442695
  %v9779 = vpow.pop %v9778
  %v9780 = vmul.f32 %v9761, 1.442695
  %v9781 = vpow.pop %v9780
  %v9782 = vmul.f32 %v9762, 1.442695
  %v9783 = vpow.pop %v9782
  %v9784 = vmul.f32 %v9763, 1.442695
  %v9785 = vpow.pop %v9784
  %v9786 = vmul.f32 %v9764, 1.442695
  %v9787 = vpow.pop %v9786
  %v9788 = vmul.f32 %v9765, 1.442695
  %v9789 = vpow.pop %v9788
  %v9790 = vmul.f32 %v9766, 1.442695
  %v9791 = vpow.pop %v9790
  %v9792 = vmul.f32 %v9767, 1.442695
  %v9793 = vpow.pop %v9792
  %v9794 = vmul.f32 %v9768, 1.442695
  %v9795 = vpow.pop %v9794
  %v9796 = vmul.f32 %v9769, 1.442695
  %v9797 = vpow.pop %v9796
  %v9798 = vmul.f32 %v9770, 1.442695
  %v9799 = vpow.pop %v9798
  %v9800 = vmul.f32 %v9771, 1.442695
  %v9801 = vpow.pop %v9800
  %v9802 = vmul.f32 %v9772, 1.442695
  %v9803 = vpow.pop %v9802
  %v9804 = vmul.f32 %v9773, 1.442695
  %v9805 = vpow.pop %v9804
  %v9806 = vadd.f32 %v9775, 1.0
  %v9807 = vadd.f32 %v9777, 1.0
  %v9808 = vadd.f32 %v9779, 1.0
  %v9809 = vadd.f32 %v9781, 1.0
  %v9810 = vadd.f32 %v9783, 1.0
  %v9811 = vadd.f32 %v9785, 1.0
  %v9812 = vadd.f32 %v9787, 1.0
  %v9813 = vadd.f32 %v9789, 1.0
  %v9814 = vadd.f32 %v9791, 1.0
  %v9815 = vadd.f32 %v9793, 1.0
  %v9816 = vadd.f32 %v9795, 1.0
  %v9817 = vadd.f32 %v9797, 1.0
  %v9818 = vadd.f32 %v9799, 1.0
  %v9819 = vadd.f32 %v9801, 1.0
  %v9820 = vadd.f32 %v9803, 1.0
  %v9821 = vadd.f32 %v9805, 1.0
  %v9822 = vrcp.pop %v9806
  %v9823 = vmul.f32 %v9806, %v9822
  %v9824 = vsub.f32 1.0, %v9823
  %v9825 = vmul.f32 %v9822, %v9824
  %v9826 = vadd.f32 %v9822, %v9825
  %vm9827 = vweird.f32 %v9806
  %vm9828 = vweird.f32 %v9822
  %vm9829 = vmor %vm9827, %vm9828
  %v9830 = vsel %vm9829, %v9822, %v9826
  %v9831 = vand.u32 2147483647, %v9806
  %vm9832 = vcmp.eq.f32.partialorder %v9831, 8.507059e+37
  %v9833 = vand.u32 %v9806, 2147483648
  %v9834 = vor.u32 1.1754944e-38, %v9833
  %v9835 = vsel %vm9832, %v9834, %v9830
  %v9836 = vmul.f32 1.0, %v9835
  %v9837 = vrcp.pop %v9807
  %v9838 = vmul.f32 %v9807, %v9837
  %v9839 = vsub.f32 1.0, %v9838
  %v9840 = vmul.f32 %v9837, %v9839
  %v9841 = vadd.f32 %v9837, %v9840
  %vm9842 = vweird.f32 %v9807
  %vm9843 = vweird.f32 %v9837
  %vm9844 = vmor %vm9842, %vm9843
  %v9845 = vsel %vm9844, %v9837, %v9841
  %v9846 = vand.u32 2147483647, %v9807
  %vm9847 = vcmp.eq.f32.partialorder %v9846, 8.507059e+37
  %v9848 = vand.u32 %v9807, 2147483648
  %v9849 = vor.u32 1.1754944e-38, %v9848
  %v9850 = vsel %vm9847, %v9849, %v9845
  %v9851 = vmul.f32 1.0, %v9850
  %v9852 = vrcp.pop %v9808
  %v9853 = vmul.f32 %v9808, %v9852
  %v9854 = vsub.f32 1.0, %v9853
  %v9855 = vmul.f32 %v9852, %v9854
  %v9856 = vadd.f32 %v9852, %v9855
  %vm9857 = vweird.f32 %v9808
  %vm9858 = vweird.f32 %v9852
  %vm9859 = vmor %vm9857, %vm9858
  %v9860 = vsel %vm9859, %v9852, %v9856
  %v9861 = vand.u32 2147483647, %v9808
  %vm9862 = vcmp.eq.f32.partialorder %v9861, 8.507059e+37
  %v9863 = vand.u32 %v9808, 2147483648
  %v9864 = vor.u32 1.1754944e-38, %v9863
  %v9865 = vsel %vm9862, %v9864, %v9860
  %v9866 = vmul.f32 1.0, %v9865
  %v9867 = vrcp.pop %v9809
  %v9868 = vmul.f32 %v9809, %v9867
  %v9869 = vsub.f32 1.0, %v9868
  %v9870 = vmul.f32 %v9867, %v9869
  %v9871 = vadd.f32 %v9867, %v9870
  %vm9872 = vweird.f32 %v9809
  %vm9873 = vweird.f32 %v9867
  %vm9874 = vmor %vm9872, %vm9873
  %v9875 = vsel %vm9874, %v9867, %v9871
  %v9876 = vand.u32 2147483647, %v9809
  %vm9877 = vcmp.eq.f32.partialorder %v9876, 8.507059e+37
  %v9878 = vand.u32 %v9809, 2147483648
  %v9879 = vor.u32 1.1754944e-38, %v9878
  %v9880 = vsel %vm9877, %v9879, %v9875
  %v9881 = vmul.f32 1.0, %v9880
  %v9882 = vrcp.pop %v9810
  %v9883 = vmul.f32 %v9810, %v9882
  %v9884 = vsub.f32 1.0, %v9883
  %v9885 = vmul.f32 %v9882, %v9884
  %v9886 = vadd.f32 %v9882, %v9885
  %vm9887 = vweird.f32 %v9810
  %vm9888 = vweird.f32 %v9882
  %vm9889 = vmor %vm9887, %vm9888
  %v9890 = vsel %vm9889, %v9882, %v9886
  %v9891 = vand.u32 2147483647, %v9810
  %vm9892 = vcmp.eq.f32.partialorder %v9891, 8.507059e+37
  %v9893 = vand.u32 %v9810, 2147483648
  %v9894 = vor.u32 1.1754944e-38, %v9893
  %v9895 = vsel %vm9892, %v9894, %v9890
  %v9896 = vmul.f32 1.0, %v9895
  %v9897 = vrcp.pop %v9811
  %v9898 = vmul.f32 %v9811, %v9897
  %v9899 = vsub.f32 1.0, %v9898
  %v9900 = vmul.f32 %v9897, %v9899
  %v9901 = vadd.f32 %v9897, %v9900
  %vm9902 = vweird.f32 %v9811
  %vm9903 = vweird.f32 %v9897
  %vm9904 = vmor %vm9902, %vm9903
  %v9905 = vsel %vm9904, %v9897, %v9901
  %v9906 = vand.u32 2147483647, %v9811
  %vm9907 = vcmp.eq.f32.partialorder %v9906, 8.507059e+37
  %v9908 = vand.u32 %v9811, 2147483648
  %v9909 = vor.u32 1.1754944e-38, %v9908
  %v9910 = vsel %vm9907, %v9909, %v9905
  %v9911 = vmul.f32 1.0, %v9910
  %v9912 = vrcp.pop %v9812
  %v9913 = vmul.f32 %v9812, %v9912
  %v9914 = vsub.f32 1.0, %v9913
  %v9915 = vmul.f32 %v9912, %v9914
  %v9916 = vadd.f32 %v9912, %v9915
  %vm9917 = vweird.f32 %v9812
  %vm9918 = vweird.f32 %v9912
  %vm9919 = vmor %vm9917, %vm9918
  %v9920 = vsel %vm9919, %v9912, %v9916
  %v9921 = vand.u32 2147483647, %v9812
  %vm9922 = vcmp.eq.f32.partialorder %v9921, 8.507059e+37
  %v9923 = vand.u32 %v9812, 2147483648
  %v9924 = vor.u32 1.1754944e-38, %v9923
  %v9925 = vsel %vm9922, %v9924, %v9920
  %v9926 = vmul.f32 1.0, %v9925
  %v9927 = vrcp.pop %v9813
  %v9928 = vmul.f32 %v9813, %v9927
  %v9929 = vsub.f32 1.0, %v9928
  %v9930 = vmul.f32 %v9927, %v9929
  %v9931 = vadd.f32 %v9927, %v9930
  %vm9932 = vweird.f32 %v9813
  %vm9933 = vweird.f32 %v9927
  %vm9934 = vmor %vm9932, %vm9933
  %v9935 = vsel %vm9934, %v9927, %v9931
  %v9936 = vand.u32 2147483647, %v9813
  %vm9937 = vcmp.eq.f32.partialorder %v9936, 8.507059e+37
  %v9938 = vand.u32 %v9813, 2147483648
  %v9939 = vor.u32 1.1754944e-38, %v9938
  %v9940 = vsel %vm9937, %v9939, %v9935
  %v9941 = vmul.f32 1.0, %v9940
  %v9942 = vrcp.pop %v9814
  %v9943 = vmul.f32 %v9814, %v9942
  %v9944 = vsub.f32 1.0, %v9943
  %v9945 = vmul.f32 %v9942, %v9944
  %v9946 = vadd.f32 %v9942, %v9945
  %vm9947 = vweird.f32 %v9814
  %vm9948 = vweird.f32 %v9942
  %vm9949 = vmor %vm9947, %vm9948
  %v9950 = vsel %vm9949, %v9942, %v9946
  %v9951 = vand.u32 2147483647, %v9814
  %vm9952 = vcmp.eq.f32.partialorder %v9951, 8.507059e+37
  %v9953 = vand.u32 %v9814, 2147483648
  %v9954 = vor.u32 1.1754944e-38, %v9953
  %v9955 = vsel %vm9952, %v9954, %v9950
  %v9956 = vmul.f32 1.0, %v9955
  %v9957 = vrcp.pop %v9815
  %v9958 = vmul.f32 %v9815, %v9957
  %v9959 = vsub.f32 1.0, %v9958
  %v9960 = vmul.f32 %v9957, %v9959
  %v9961 = vadd.f32 %v9957, %v9960
  %vm9962 = vweird.f32 %v9815
  %vm9963 = vweird.f32 %v9957
  %vm9964 = vmor %vm9962, %vm9963
  %v9965 = vsel %vm9964, %v9957, %v9961
  %v9966 = vand.u32 2147483647, %v9815
  %vm9967 = vcmp.eq.f32.partialorder %v9966, 8.507059e+37
  %v9968 = vand.u32 %v9815, 2147483648
  %v9969 = vor.u32 1.1754944e-38, %v9968
  %v9970 = vsel %vm9967, %v9969, %v9965
  %v9971 = vmul.f32 1.0, %v9970
  %v9972 = vrcp.pop %v9816
  %v9973 = vmul.f32 %v9816, %v9972
  %v9974 = vsub.f32 1.0, %v9973
  %v9975 = vmul.f32 %v9972, %v9974
  %v9976 = vadd.f32 %v9972, %v9975
  %vm9977 = vweird.f32 %v9816
  %vm9978 = vweird.f32 %v9972
  %vm9979 = vmor %vm9977, %vm9978
  %v9980 = vsel %vm9979, %v9972, %v9976
  %v9981 = vand.u32 2147483647, %v9816
  %vm9982 = vcmp.eq.f32.partialorder %v9981, 8.507059e+37
  %v9983 = vand.u32 %v9816, 2147483648
  %v9984 = vor.u32 1.1754944e-38, %v9983
  %v9985 = vsel %vm9982, %v9984, %v9980
  %v9986 = vmul.f32 1.0, %v9985
  %v9987 = vrcp.pop %v9817
  %v9988 = vmul.f32 %v9817, %v9987
  %v9989 = vsub.f32 1.0, %v9988
  %v9990 = vmul.f32 %v9987, %v9989
  %v9991 = vadd.f32 %v9987, %v9990
  %vm9992 = vweird.f32 %v9817
  %vm9993 = vweird.f32 %v9987
  %vm9994 = vmor %vm9992, %vm9993
  %v9995 = vsel %vm9994, %v9987, %v9991
  %v9996 = vand.u32 2147483647, %v9817
  %vm9997 = vcmp.eq.f32.partialorder %v9996, 8.507059e+37
  %v9998 = vand.u32 %v9817, 2147483648
  %v9999 = vor.u32 1.1754944e-38, %v9998
  %v10000 = vsel %vm9997, %v9999, %v9995
  %v10001 = vmul.f32 1.0, %v10000
  %v10002 = vrcp.pop %v9818
  %v10003 = vmul.f32 %v9818, %v10002
  %v10004 = vsub.f32 1.0, %v10003
  %v10005 = vmul.f32 %v10002, %v10004
  %v10006 = vadd.f32 %v10002, %v10005
  %vm10007 = vweird.f32 %v9818
  %vm10008 = vweird.f32 %v10002
  %vm10009 = vmor %vm10007, %vm10008
  %v10010 = vsel %vm10009, %v10002, %v10006
  %v10011 = vand.u32 2147483647, %v9818
  %vm10012 = vcmp.eq.f32.partialorder %v10011, 8.507059e+37
  %v10013 = vand.u32 %v9818, 2147483648
  %v10014 = vor.u32 1.1754944e-38, %v10013
  %v10015 = vsel %vm10012, %v10014, %v10010
  %v10016 = vmul.f32 1.0, %v10015
  %v10017 = vrcp.pop %v9819
  %v10018 = vmul.f32 %v9819, %v10017
  %v10019 = vsub.f32 1.0, %v10018
  %v10020 = vmul.f32 %v10017, %v10019
  %v10021 = vadd.f32 %v10017, %v10020
  %vm10022 = vweird.f32 %v9819
  %vm10023 = vweird.f32 %v10017
  %vm10024 = vmor %vm10022, %vm10023
  %v10025 = vsel %vm10024, %v10017, %v10021
  %v10026 = vand.u32 2147483647, %v9819
  %vm10027 = vcmp.eq.f32.partialorder %v10026, 8.507059e+37
  %v10028 = vand.u32 %v9819, 2147483648
  %v10029 = vor.u32 1.1754944e-38, %v10028
  %v10030 = vsel %vm10027, %v10029, %v10025
  %v10031 = vmul.f32 1.0, %v10030
  %v10032 = vrcp.pop %v9820
  %v10033 = vmul.f32 %v9820, %v10032
  %v10034 = vsub.f32 1.0, %v10033
  %v10035 = vmul.f32 %v10032, %v10034
  %v10036 = vadd.f32 %v10032, %v10035
  %vm10037 = vweird.f32 %v9820
  %vm10038 = vweird.f32 %v10032
  %vm10039 = vmor %vm10037, %vm10038
  %v10040 = vsel %vm10039, %v10032, %v10036
  %v10041 = vand.u32 2147483647, %v9820
  %vm10042 = vcmp.eq.f32.partialorder %v10041, 8.507059e+37
  %v10043 = vand.u32 %v9820, 2147483648
  %v10044 = vor.u32 1.1754944e-38, %v10043
  %v10045 = vsel %vm10042, %v10044, %v10040
  %v10046 = vmul.f32 1.0, %v10045
  %v10047 = vrcp.pop %v9821
  %v10048 = vmul.f32 %v9821, %v10047
  %v10049 = vsub.f32 1.0, %v10048
  %v10050 = vmul.f32 %v10047, %v10049
  %v10051 = vadd.f32 %v10047, %v10050
  %vm10052 = vweird.f32 %v9821
  %vm10053 = vweird.f32 %v10047
  %vm10054 = vmor %vm10052, %vm10053
  %v10055 = vsel %vm10054, %v10047, %v10051
  %v10056 = vand.u32 2147483647, %v9821
  %vm10057 = vcmp.eq.f32.partialorder %v10056, 8.507059e+37
  %v10058 = vand.u32 %v9821, 2147483648
  %v10059 = vor.u32 1.1754944e-38, %v10058
  %v10060 = vsel %vm10057, %v10059, %v10055
  %v10061 = vmul.f32 1.0, %v10060
  %v10062 = vadd.f32 %v454, %v9694
  %v10063 = vadd.f32 %v457, %v9695
  %v10064 = vadd.f32 %v460, %v9696
  %v10065 = vadd.f32 %v463, %v9697
  %v10066 = vadd.f32 %v466, %v9698
  %v10067 = vadd.f32 %v469, %v9699
  %v10068 = vadd.f32 %v472, %v9700
  %v10069 = vadd.f32 %v475, %v9701
  %v10070 = vadd.f32 %v478, %v9702
  %v10071 = vadd.f32 %v481, %v9703
  %v10072 = vadd.f32 %v484, %v9704
  %v10073 = vadd.f32 %v487, %v9705
  %v10074 = vadd.f32 %v490, %v9706
  %v10075 = vadd.f32 %v493, %v9707
  %v10076 = vadd.f32 %v496, %v9708
  %v10077 = vadd.f32 %v499, %v9709
  %10094 = vrot.lane.b32.xlu0 %v9836, 2
  %v10095 = vpop.permute.xlu0 %10094
  %10096 = vrot.lane.b32.xlu0 %v9851, 2
  %v10097 = vpop.permute.xlu0 %10096
  %10098 = vrot.lane.b32.xlu0 %v9866, 2
  %v10099 = vpop.permute.xlu0 %10098
  %10100 = vrot.lane.b32.xlu0 %v9881, 2
  %v10101 = vpop.permute.xlu0 %10100
  %10102 = vrot.lane.b32.xlu0 %v9896, 2
  %v10103 = vpop.permute.xlu0 %10102
  %10104 = vrot.lane.b32.xlu0 %v9911, 2
  %v10105 = vpop.permute.xlu0 %10104
  %10106 = vrot.lane.b32.xlu0 %v9926, 2
  %v10107 = vpop.permute.xlu0 %10106
  %10108 = vrot.lane.b32.xlu0 %v9941, 2
  %v10109 = vpop.permute.xlu0 %10108
  %10110 = vrot.lane.b32.xlu0 %v9956, 2
  %v10111 = vpop.permute.xlu0 %10110
  %10112 = vrot.lane.b32.xlu0 %v9971, 2
  %v10113 = vpop.permute.xlu0 %10112
  %10114 = vrot.lane.b32.xlu0 %v9986, 2
  %v10115 = vpop.permute.xlu0 %10114
  %10116 = vrot.lane.b32.xlu0 %v10001, 2
  %v10117 = vpop.permute.xlu0 %10116
  %10118 = vrot.lane.b32.xlu0 %v10016, 2
  %v10119 = vpop.permute.xlu0 %10118
  %10120 = vrot.lane.b32.xlu0 %v10031, 2
  %v10121 = vpop.permute.xlu0 %10120
  %10122 = vrot.lane.b32.xlu0 %v10046, 2
  %v10123 = vpop.permute.xlu0 %10122
  %10124 = vrot.lane.b32.xlu0 %v10061, 2
  %v10125 = vpop.permute.xlu0 %10124
  %v10142 = vmul.f32 %v10062, %v10095
  %v10143 = vmul.f32 %v10063, %v10097
  %v10144 = vmul.f32 %v10064, %v10099
  %v10145 = vmul.f32 %v10065, %v10101
  %v10146 = vmul.f32 %v10066, %v10103
  %v10147 = vmul.f32 %v10067, %v10105
  %v10148 = vmul.f32 %v10068, %v10107
  %v10149 = vmul.f32 %v10069, %v10109
  %v10150 = vmul.f32 %v10070, %v10111
  %v10151 = vmul.f32 %v10071, %v10113
  %v10152 = vmul.f32 %v10072, %v10115
  %v10153 = vmul.f32 %v10073, %v10117
  %v10154 = vmul.f32 %v10074, %v10119
  %v10155 = vmul.f32 %v10075, %v10121
  %v10156 = vmul.f32 %v10076, %v10123
  %v10157 = vmul.f32 %v10077, %v10125
  %10158 = vst.msk [vmem:[%s11] sm:$0xff] %vm502, %v454
  %10159 = vst.msk [vmem:[%s11 + $0x8] sm:$0xff] %vm502, %v457
  %10160 = vst.msk [vmem:[%s11 + $0x10] sm:$0xff] %vm502, %v460
  %10161 = vst.msk [vmem:[%s11 + $0x18] sm:$0xff] %vm502, %v463
  %10162 = vst.msk [vmem:[%s11 + $0x20] sm:$0xff] %vm502, %v466
  %10163 = vst.msk [vmem:[%s11 + $0x28] sm:$0xff] %vm502, %v469
  %10164 = vst.msk [vmem:[%s11 + $0x30] sm:$0xff] %vm502, %v472
  %10165 = vst.msk [vmem:[%s11 + $0x38] sm:$0xff] %vm502, %v475
  %10166 = vst.msk [vmem:[%s11 + $0x40] sm:$0xff] %vm502, %v478
  %10167 = vst.msk [vmem:[%s11 + $0x48] sm:$0xff] %vm502, %v481
  %10168 = vst.msk [vmem:[%s11 + $0x50] sm:$0xff] %vm502, %v484
  %10169 = vst.msk [vmem:[%s11 + $0x58] sm:$0xff] %vm502, %v487
  %10170 = vst.msk [vmem:[%s11 + $0x60] sm:$0xff] %vm502, %v490
  %10171 = vst.msk [vmem:[%s11 + $0x68] sm:$0xff] %vm502, %v493
  %10172 = vst.msk [vmem:[%s11 + $0x70] sm:$0xff] %vm502, %v496
  %10173 = vst.msk [vmem:[%s11 + $0x78] sm:$0xff] %vm502, %v499
  %10174 = vst.msk [vmem:[%s11] sm:$0xff] %vm599, %v10142
  %10175 = vst.msk [vmem:[%s11 + $0x8] sm:$0xff] %vm599, %v10143
  %10176 = vst.msk [vmem:[%s11 + $0x10] sm:$0xff] %vm599, %v10144
  %10177 = vst.msk [vmem:[%s11 + $0x18] sm:$0xff] %vm599, %v10145
  %10178 = vst.msk [vmem:[%s11 + $0x20] sm:$0xff] %vm599, %v10146
  %10179 = vst.msk [vmem:[%s11 + $0x28] sm:$0xff] %vm599, %v10147
  %10180 = vst.msk [vmem:[%s11 + $0x30] sm:$0xff] %vm599, %v10148
  %10181 = vst.msk [vmem:[%s11 + $0x38] sm:$0xff] %vm599, %v10149
  %10182 = vst.msk [vmem:[%s11 + $0x40] sm:$0xff] %vm599, %v10150
  %10183 = vst.msk [vmem:[%s11 + $0x48] sm:$0xff] %vm599, %v10151
  %10184 = vst.msk [vmem:[%s11 + $0x50] sm:$0xff] %vm599, %v10152
  %10185 = vst.msk [vmem:[%s11 + $0x58] sm:$0xff] %vm599, %v10153
  %10186 = vst.msk [vmem:[%s11 + $0x60] sm:$0xff] %vm599, %v10154
  %10187 = vst.msk [vmem:[%s11 + $0x68] sm:$0xff] %vm599, %v10155
  %10188 = vst.msk [vmem:[%s11 + $0x70] sm:$0xff] %vm599, %v10156
  %10189 = vst.msk [vmem:[%s11 + $0x78] sm:$0xff] %vm599, %v10157
  %v10190 = vlaneseq
  %v10191 = vand.u32 %v10190, 127
  %v10192 = vlaneseq
  %v10193 = vshrl.u32 %v10192, 7
  %v10194 = vmul.u32 %v10193, 64
  %vm10195 = vcmp.ge.s32.totalorder %v10191, %v10194
  %v10196 = vadd.s32 %v10194, 64
  %vm10197 = vcmp.lt.s32.totalorder %v10191, %v10196
  %vm10198 = vmand %vm10195, %vm10197
  %v10199 = vsel %vm10198, 1, 0
  %v10200 = vcvt.s32.f32 %v10199
  %v10201 = vlog2.pop %v9836
  %v10202 = vmul.f32 %v10201, 0.6931472
  %v10203 = vlog2.pop %v9851
  %v10204 = vmul.f32 %v10203, 0.6931472
  %v10205 = vlog2.pop %v9866
  %v10206 = vmul.f32 %v10205, 0.6931472
  %v10207 = vlog2.pop %v9881
  %v10208 = vmul.f32 %v10207, 0.6931472
  %v10209 = vlog2.pop %v9896
  %v10210 = vmul.f32 %v10209, 0.6931472
  %v10211 = vlog2.pop %v9911
  %v10212 = vmul.f32 %v10211, 0.6931472
  %v10213 = vlog2.pop %v9926
  %v10214 = vmul.f32 %v10213, 0.6931472
  %v10215 = vlog2.pop %v9941
  %v10216 = vmul.f32 %v10215, 0.6931472
  %v10217 = vlog2.pop %v9956
  %v10218 = vmul.f32 %v10217, 0.6931472
  %v10219 = vlog2.pop %v9971
  %v10220 = vmul.f32 %v10219, 0.6931472
  %v10221 = vlog2.pop %v9986
  %v10222 = vmul.f32 %v10221, 0.6931472
  %v10223 = vlog2.pop %v10001
  %v10224 = vmul.f32 %v10223, 0.6931472
  %v10225 = vlog2.pop %v10016
  %v10226 = vmul.f32 %v10225, 0.6931472
  %v10227 = vlog2.pop %v10031
  %v10228 = vmul.f32 %v10227, 0.6931472
  %v10229 = vlog2.pop %v10046
  %v10230 = vmul.f32 %v10229, 0.6931472
  %v10231 = vlog2.pop %v10061
  %v10232 = vmul.f32 %v10231, 0.6931472
  %10233 = vmatpush.msra.mxu0 %v10232
  %10234 = vmatpush.msra.mxu0 %v10230
  %10235 = vmatpush.msra.mxu0 %v10228
  %10236 = vmatpush.msra.mxu0 %v10226
  %10237 = vmatpush.msra.mxu0 %v10224
  %10238 = vmatpush.msra.mxu0 %v10222
  %10239 = vmatpush.msra.mxu0 %v10220
  %10240 = vmatpush.msra.mxu0 %v10218
  %10241 = vmatpush.msra.mxu0 %v10216
  %10242 = vmatpush.msra.mxu0 %v10214
  %10243 = vmatpush.msra.mxu0 %v10212
  %10244 = vmatpush.msra.mxu0 %v10210
  %10245 = vmatpush.msra.mxu0 %v10208
  %10246 = vmatpush.msra.mxu0 %v10206
  %10247 = vmatpush.msra.mxu0 %v10204
  %10248 = vmatpush.msra.mxu0 %v10202
  %10249 = vmatmul.f32.gmra.mxu0 %v10200
  %v10250 = vpop.f32.mrf.mxu0
  %v10251 = vadd.f32 0.0, %v10250
  %10252 = vdwg.mxu0
  %vm10253 = vcmask 9216
  %v10254 = vsel %vm10253, %v10251, 0.0
  %10255 = vadd.xlane.f32.xlu0 %v10254
  %v10256 = vpop.xlane.xlu0 %10255
  %v10258 = vperm.slane %v10256, 0
  %v10259 = vperm.slane %v10256, 1
  %10262 = vst [vmem:[%s12] sm:$0xff] %v10258
  %10263 = vst [vmem:[%s12 + $0x8] sm:$0xff] %v10259
  // Predicated region
  $region46: #{conditional_flow_forward.3} parent=0 // pred_check
    _
  $region47: #{conditional_flow_forward.3} parent=0 // pred_check_branch
    %10265 = sbr.rel (0) target = $region49
  $region48: #{conditional_flow_forward.3} parent=0 // pred_region
    _
  $region49: #{conditional_flow_forward.3} parent=0 // pred_fallthru
    _
  // Predicated region
  $region50: #{conditional_flow_forward.3} parent=0 // pred_check
    _
  $region51: #{conditional_flow_forward.3} parent=0 // pred_check_branch
    %10267 = sbr.rel (0) target = $region53
  $region52: #{conditional_flow_forward.3} parent=0 // pred_region
    _
  $region53: #{conditional_flow_forward.3} parent=0 // pred_fallthru
    _
  // Predicated region
  $region54: #{conditional_flow_forward.3} parent=0 // pred_check
    _
  $region55: #{conditional_flow_forward.3} parent=0 // pred_check_branch
    %10269 = sbr.rel (0) target = $region57
  $region56: #{conditional_flow_forward.3} parent=0 // pred_region
    _
  $region57: #{conditional_flow_forward.3} parent=0 // pred_fallthru
    _
  // Predicated region
  $region58: #{conditional_flow_forward.3} parent=0 // pred_check
    _
  $region59: #{conditional_flow_forward.3} parent=0 // pred_check_branch
    %10271 = sbr.rel (0) target = $region61
  $region60: #{conditional_flow_forward.3} parent=0 // pred_region
    _
  $region61: #{conditional_flow_forward.3} parent=0 // pred_fallthru
    _

</llo_original>
